<compile_context>
chip_gen: v5e
topology: v5e:2x2
jax: 0.10.0
libtpu: 0.0.40
codegen_flags: <defaults>
</compile_context>

<pallas_src>
import functools
import math

import jax
import jax.numpy as jnp
from jax.experimental import pallas as pl
from jax.experimental.pallas import tpu as pltpu

NEG_INF = -1e9          # large finite mask value (avoids NaN on fully-masked rows)
LANE = 128


def _vmem():
    return pl.BlockSpec(memory_space=pltpu.MemorySpace.VMEM)


# ----------------------------------------------------------------------------
# In-kernel helpers (traced inline inside the fused kernels)
# ----------------------------------------------------------------------------

def _ln(x, g, b, eps=1e-5):
    mean = jnp.mean(x, axis=-1, keepdims=True)
    var = jnp.mean(jnp.square(x - mean), axis=-1, keepdims=True)
    return (x - mean) * jax.lax.rsqrt(var + eps) * g + b


def _mm(x, w, b):
    """Row-major matmul: bf16 MXU dot with f32 accumulation + f32 bias."""
    return jnp.dot(x.astype(jnp.bfloat16), w,
                   preferred_element_type=jnp.float32) + b


def _proj_t(x_t, w_pt, b_col):
    """Feature-major projection: (D_out,D_in) @ (D_in,S) + (D_out,1) -> (D_out,S)."""
    return jnp.dot(w_pt, x_t.astype(jnp.bfloat16),
                   preferred_element_type=jnp.float32) + b_col


def _mha_from_t(qT, kT, vT, bias, H, dh):
    """Multi-head attention from feature-major projections.

    qT:(D,Sq)  kT,vT:(D,Skv)  bias:(Sq,Skv) or None  ->  (Sq,D)
    Only leading-dim reshapes, minor-two transposes and canonical batched
    dot_generals are used (all cheap / well supported by Mosaic).
    """
    D, Sq = qT.shape
    Skv = kT.shape[1]
    qh = jnp.transpose(qT.reshape(H, dh, Sq), (0, 2, 1))      # (H, Sq, dh)
    kh = kT.reshape(H, dh, Skv)                               # (H, dh, Skv)
    vh = jnp.transpose(vT.reshape(H, dh, Skv), (0, 2, 1))     # (H, Skv, dh)

    s = jnp.einsum("hqd,hdk->hqk", qh, kh,
                   preferred_element_type=jnp.float32)         # one batched MXU dot
    if bias is not None:
        s = s + bias[None, :, :]
    m = jnp.max(s, axis=-1, keepdims=True)
    p = jnp.exp(s - m)
    p = p * pl.reciprocal(jnp.sum(p, axis=-1, keepdims=True), approx=True)  # EUP
    o = jnp.einsum("hqk,hkd->hqd", p, vh,
                   preferred_element_type=jnp.float32)         # (H, Sq, dh)
    attn_t = jnp.transpose(o, (0, 2, 1)).reshape(D, Sq)        # head-major rows
    return attn_t.T                                            # (Sq, D)


def _masked_log_softmax(logits, valid_cols):
    col = jax.lax.broadcasted_iota(jnp.int32, logits.shape, dimension=1)
    logits = jnp.where(col < valid_cols, logits, NEG_INF)
    m = jnp.max(logits, axis=-1, keepdims=True)
    lse = jnp.log(jnp.sum(jnp.exp(logits - m), axis=-1, keepdims=True)) + m
    return logits - lse


# ----------------------------------------------------------------------------
# Pallas kernels
# ----------------------------------------------------------------------------

def _linear_kernel(x_ref, w_ref, b_ref, o_ref):
    o_ref[...] = _mm(x_ref[...], w_ref[...], b_ref[...]).astype(o_ref.dtype)


def _conv_pe_kernel(x_ref, w_ref, b_ref, pe_ref, o_ref, *, B, T, D):
    # conv2-as-matmul + bias + positional-encoding add; output already (B,T,D)
    y = _mm(x_ref[...], w_ref[...], b_ref[...])
    o_ref[...] = (y.reshape(B, T, D) + pe_ref[...][None, :, :]).astype(o_ref.dtype)


def _encoder_layer_kernel(x_ref, wqkv_ref, bqkv_ref, wo_ref, bo_ref,
                          ln1_g_ref, ln1_b_ref, w1_ref, b1_ref, w2_ref, b2_ref,
                          ln2_g_ref, ln2_b_ref, o_ref, *, H, D):
    """Post-norm encoder layer, fully fused; one batch element per grid step."""
    dh = D // H
    scale = 1.0 / math.sqrt(dh)
    x = x_ref[0].astype(jnp.float32)                 # (S, D)
    x_t = x.T                                        # (D, S) feature-major

    qT = _proj_t(x_t, wqkv_ref[0], bqkv_ref[0]) * scale   # scale folded into q
    kT = _proj_t(x_t, wqkv_ref[1], bqkv_ref[1])
    vT = _proj_t(x_t, wqkv_ref[2], bqkv_ref[2])
    attn = _mha_from_t(qT, kT, vT, None, H, dh)           # src_pad_mask is None

    x = x + _mm(attn, wo_ref[...], bo_ref[...])            # out proj + residual
    x = _ln(x, ln1_g_ref[...], ln1_b_ref[...])
    ff = jnp.maximum(_mm(x, w1_ref[...], b1_ref[...]), 0.0)
    ff = _mm(ff, w2_ref[...], b2_ref[...])
    o_ref[0] = _ln(x + ff, ln2_g_ref[...], ln2_b_ref[...]).astype(o_ref.dtype)


def _decoder_layer_kernel(x_ref, mem_ref, pad_ref,
                          s_wqkv_ref, s_bqkv_ref, s_wo_ref, s_bo_ref,
                          ln1_g_ref, ln1_b_ref,
                          c_wq_ref, c_bq_ref, c_wkv_ref, c_bkv_ref,
                          c_wo_ref, c_bo_ref,
                          ln2_g_ref, ln2_b_ref,
                          w1_ref, b1_ref, w2_ref, b2_ref,
                          ln3_g_ref, ln3_b_ref,
                          o_ref, *, S, H, D):
    """nn.TransformerDecoderLayer (norm_first=True, batch_first=True), fused;
    one batch element per grid step."""
    dh = D // H
    scale = 1.0 / math.sqrt(dh)
    x = x_ref[0].astype(jnp.float32)                 # (S, D)
    mem_t = mem_ref[0].astype(jnp.float32).T         # (D, T) feature-major memory

    # causal + key-padding additive bias, rebuilt in-kernel (no (B,S,S) DMA)
    row = jax.lax.broadcasted_iota(jnp.int32, (S, S), 0)
    col = jax.lax.broadcasted_iota(jnp.int32, (S, S), 1)
    bias = jnp.where(col > row, NEG_INF, 0.0) + pad_ref[0]    # (S,S)+(1,S)

    # --- self-attention block (pre-norm) ---
    xn = _ln(x, ln1_g_ref[...], ln1_b_ref[...])
    xn_t = xn.T
    qT = _proj_t(xn_t, s_wqkv_ref[0], s_bqkv_ref[0]) * scale
    kT = _proj_t(xn_t, s_wqkv_ref[1], s_bqkv_ref[1])
    vT = _proj_t(xn_t, s_wqkv_ref[2], s_bqkv_ref[2])
    sa = _mha_from_t(qT, kT, vT, bias, H, dh)
    x = x + _mm(sa, s_wo_ref[...], s_bo_ref[...])

    # --- cross-attention block (pre-norm, no mask) ---
    xn = _ln(x, ln2_g_ref[...], ln2_b_ref[...])
    xn_t = xn.T
    qT = _proj_t(xn_t, c_wq_ref[...], c_bq_ref[...]) * scale
    kT = _proj_t(mem_t, c_wkv_ref[0], c_bkv_ref[0])
    vT = _proj_t(mem_t, c_wkv_ref[1], c_bkv_ref[1])
    ca = _mha_from_t(qT, kT, vT, None, H, dh)
    x = x + _mm(ca, c_wo_ref[...], c_bo_ref[...])

    # --- feed-forward block (pre-norm) ---
    xn = _ln(x, ln3_g_ref[...], ln3_b_ref[...])
    ff = jnp.maximum(_mm(xn, w1_ref[...], b1_ref[...]), 0.0)
    o_ref[0] = (x + _mm(ff, w2_ref[...], b2_ref[...])).astype(o_ref.dtype)


def _dec_head_kernel(x_ref, ln_g_ref, ln_b_ref, w_ref, b_ref, o_ref, *, V):
    """Shared final LayerNorm + linear (vocab padded to 128 lanes) + log_softmax."""
    x = _ln(x_ref[0, 0].astype(jnp.float32), ln_g_ref[...], ln_b_ref[...])
    logits = jnp.dot(x.astype(jnp.bfloat16), w_ref[0],
                     preferred_element_type=jnp.float32) + b_ref[0]
    o_ref[0, 0] = _masked_log_softmax(logits, V)


def _enc_head_kernel(x_ref, w_ref, b_ref, o_ref, *, V):
    logits = jnp.dot(x_ref[0, 0].astype(jnp.bfloat16), w_ref[0],
                     preferred_element_type=jnp.float32) + b_ref[0]
    o_ref[0, 0] = _masked_log_softmax(logits, V)


# ----------------------------------------------------------------------------
# Wrappers
# ----------------------------------------------------------------------------

def pl_linear(x2, w, b):
    M, N = x2.shape[0], w.shape[1]
    return pl.pallas_call(
        _linear_kernel,
        out_shape=jax.ShapeDtypeStruct((M, N), jnp.bfloat16),
        in_specs=[_vmem()] * 3,
        out_specs=_vmem(),
    )(x2, w, b)


def pl_conv_pe(cols, w, b, pe, *, B, T, D):
    return pl.pallas_call(
        functools.partial(_conv_pe_kernel, B=B, T=T, D=D),
        out_shape=jax.ShapeDtypeStruct((B, T, D), jnp.bfloat16),
        in_specs=[_vmem()] * 4,
        out_specs=_vmem(),
    )(cols, w, b, pe)


def pl_encoder_layer(x, p, *, H, D):
    B, S, _ = x.shape
    dff = p["w1"].shape[1]
    c2 = lambda b: (0, 0)
    c3 = lambda b: (0, 0, 0)
    act = lambda b: (b, 0, 0)
    return pl.pallas_call(
        functools.partial(_encoder_layer_kernel, H=H, D=D),
        out_shape=jax.ShapeDtypeStruct((B, S, D), jnp.bfloat16),
        grid=(B,),
        in_specs=[
            pl.BlockSpec((1, S, D), act),      # x
            pl.BlockSpec((3, D, D), c3),       # wqkv (out,in layout, packed)
            pl.BlockSpec((3, D, 1), c3),       # bqkv (column biases)
            pl.BlockSpec((D, D), c2),          # wo
            pl.BlockSpec((1, D), c2),          # bo
            pl.BlockSpec((1, D), c2), pl.BlockSpec((1, D), c2),      # ln1
            pl.BlockSpec((D, dff), c2), pl.BlockSpec((1, dff), c2),  # ffn w1/b1
            pl.BlockSpec((dff, D), c2), pl.BlockSpec((1, D), c2),    # ffn w2/b2
            pl.BlockSpec((1, D), c2), pl.BlockSpec((1, D), c2),      # ln2
        ],
        out_specs=pl.BlockSpec((1, S, D), act),
        compiler_params=pltpu.CompilerParams(dimension_semantics=("parallel",)),
    )(x, p["sa"]["wqkv"], p["sa"]["bqkv"], p["sa"]["wo"], p["sa"]["bo"],
      p["ln1_g"], p["ln1_b"], p["w1"], p["b1"], p["w2"], p["b2"],
      p["ln2_g"], p["ln2_b"])


def pl_decoder_layer(x, mem, pad_bias, p, *, H, D):
    B, S, _ = x.shape
    T = mem.shape[1]
    dff = p["w1"].shape[1]
    c2 = lambda b: (0, 0)
    c3 = lambda b: (0, 0, 0)
    act = lambda b: (b, 0, 0)
    return pl.pallas_call(
        functools.partial(_decoder_layer_kernel, S=S, H=H, D=D),
        out_shape=jax.ShapeDtypeStruct((B, S, D), jnp.bfloat16),
        grid=(B,),
        in_specs=[
            pl.BlockSpec((1, S, D), act),      # x
            pl.BlockSpec((1, T, D), act),      # memory
            pl.BlockSpec((1, 1, S), act),      # key-padding bias row
            pl.BlockSpec((3, D, D), c3),       # self wqkv
            pl.BlockSpec((3, D, 1), c3),       # self bqkv
            pl.BlockSpec((D, D), c2),          # self wo
            pl.BlockSpec((1, D), c2),          # self bo
            pl.BlockSpec((1, D), c2), pl.BlockSpec((1, D), c2),      # ln1
            pl.BlockSpec((D, D), c2),          # cross wq
            pl.BlockSpec((D, 1), c2),          # cross bq
            pl.BlockSpec((2, D, D), c3),       # cross wkv
            pl.BlockSpec((2, D, 1), c3),       # cross bkv
            pl.BlockSpec((D, D), c2),          # cross wo
            pl.BlockSpec((1, D), c2),          # cross bo
            pl.BlockSpec((1, D), c2), pl.BlockSpec((1, D), c2),      # ln2
            pl.BlockSpec((D, dff), c2), pl.BlockSpec((1, dff), c2),  # ffn w1/b1
            pl.BlockSpec((dff, D), c2), pl.BlockSpec((1, D), c2),    # ffn w2/b2
            pl.BlockSpec((1, D), c2), pl.BlockSpec((1, D), c2),      # ln3
        ],
        out_specs=pl.BlockSpec((1, S, D), act),
        compiler_params=pltpu.CompilerParams(dimension_semantics=("parallel",)),
    )(x, mem, pad_bias,
      p["sa"]["wqkv"], p["sa"]["bqkv"], p["sa"]["wo"], p["sa"]["bo"],
      p["ln1_g"], p["ln1_b"],
      p["ca"]["wq"], p["ca"]["bq"], p["ca"]["wkv"], p["ca"]["bkv"],
      p["ca"]["wo"], p["ca"]["bo"],
      p["ln2_g"], p["ln2_b"],
      p["w1"], p["b1"], p["w2"], p["b2"],
      p["ln3_g"], p["ln3_b"])


def pl_dec_heads(decs, ln_g, ln_b, w_st, b_st, *, V):
    E, B, S, D = decs.shape
    Vp = w_st.shape[-1]
    out = pl.pallas_call(
        functools.partial(_dec_head_kernel, V=V),
        out_shape=jax.ShapeDtypeStruct((E, B, S, Vp), jnp.float32),
        grid=(E, B),
        in_specs=[
            pl.BlockSpec((1, 1, S, D), lambda e, b: (e, b, 0, 0)),
            pl.BlockSpec((1, D), lambda e, b: (0, 0)),
            pl.BlockSpec((1, D), lambda e, b: (0, 0)),
            pl.BlockSpec((1, D, Vp), lambda e, b: (e, 0, 0)),
            pl.BlockSpec((1, 1, Vp), lambda e, b: (e, 0, 0)),
        ],
        out_specs=pl.BlockSpec((1, 1, S, Vp), lambda e, b: (e, b, 0, 0)),
        compiler_params=pltpu.CompilerParams(
            dimension_semantics=("parallel", "parallel")),
    )(decs, ln_g, ln_b, w_st, b_st)
    return out[..., :V]


def pl_enc_heads(encs, w_st, b_st, *, V):
    E, B, T, D = encs.shape
    Vp = w_st.shape[-1]
    out = pl.pallas_call(
        functools.partial(_enc_head_kernel, V=V),
        out_shape=jax.ShapeDtypeStruct((E, B, T, Vp), jnp.float32),
        grid=(E, B),
        in_specs=[
            pl.BlockSpec((1, 1, T, D), lambda e, b: (e, b, 0, 0)),
            pl.BlockSpec((1, D, Vp), lambda e, b: (e, 0, 0)),
            pl.BlockSpec((1, 1, Vp), lambda e, b: (e, 0, 0)),
        ],
        out_specs=pl.BlockSpec((1, 1, T, Vp), lambda e, b: (e, b, 0, 0)),
        compiler_params=pltpu.CompilerParams(
            dimension_semantics=("parallel", "parallel")),
    )(encs, w_st, b_st)
    return out[..., :V]


# ----------------------------------------------------------------------------
# Forward pass (glue: im2col gathers, embedding lookup, mask build, stacking)
# ----------------------------------------------------------------------------

def early_transformer_forward(params, src, trg, *, n_head, trg_pad_idx, dec_voc_size):
    B, F, T_in = src.shape
    D = params["pe"].shape[1]

    # --- Conv1dSubampling: two Conv1d(k=3, s=2, p=0), no activation between ---
    T1 = (T_in - 3) // 2 + 1
    idx1 = (jnp.arange(T1) * 2)[:, None] + jnp.arange(3)[None, :]
    cols1 = src[:, :, idx1].transpose(0, 2, 1, 3).reshape(B * T1, F * 3)   # im2col
    y1 = pl_linear(cols1, params["conv1_wcol"], params["conv1_b"]).reshape(B, T1, D)

    T2 = (T1 - 3) // 2 + 1
    idx2 = (jnp.arange(T2) * 2)[:, None] + jnp.arange(3)[None, :]
    cols2 = y1[:, idx2, :].reshape(B * T2, 3 * D)
    # conv2 matmul + bias + positional encoding fused; output (B, T, D) bf16
    src_emb = pl_conv_pe(cols2, params["conv2_wcol"], params["conv2_b"],
                         params["pe"][:T2], B=B, T=T2, D=D)
    T = T2

    # --- target embedding + PE + key-padding bias row ---
    S = trg.shape[1]
    pad_bias = jnp.where(trg == trg_pad_idx, NEG_INF, 0.0).astype(jnp.float32)
    pad_bias = pad_bias.reshape(B, 1, S)                   # (B,1,S): keys masked
    trg_emb = (params["emb"][trg] + params["pe"][None, :S, :]).astype(jnp.bfloat16)

    enc = src_emb
    decs, encs = [], []
    for i in range(len(params["encoders"])):
        for lp in params["encoders"][i]:
            enc = pl_encoder_layer(enc, lp, H=n_head, D=D)
        dec = trg_emb
        for lp in params["decoders"][i]:
            dec = pl_decoder_layer(dec, enc, pad_bias, lp, H=n_head, D=D)
        decs.append(dec)
        encs.append(enc)

    E = len(decs)
    decs = jnp.stack(decs, axis=0)      # (E, B, S, D) bf16
    encs = jnp.stack(encs, axis=0)      # (E, B, T, D) bf16
    V = dec_voc_size
    out = pl_dec_heads(decs, params["ln_g"], params["ln_b"],
                       params["lin2_w"], params["lin2_b"], V=V)
    enc_out = pl_enc_heads(encs, params["lin1_w"], params["lin1_b"], V=V)
    return out, enc_out                  # (E,B,S,V), (E,B,T,V)


# ----------------------------------------------------------------------------
# Deterministic parameter init
# ----------------------------------------------------------------------------

def sinusoid_pe(max_len, d_model):
    pos = jnp.arange(max_len, dtype=jnp.float32)[:, None]
    div = jnp.exp(jnp.arange(0, d_model, 2, dtype=jnp.float32)
                  * (-math.log(10000.0) / d_model))
    pe = jnp.zeros((max_len, d_model), jnp.float32)
    pe = pe.at[:, 0::2].set(jnp.sin(pos * div))
    pe = pe.at[:, 1::2].set(jnp.cos(pos * div))
    return pe


def init_params(key, *, F, D, dff, V, max_len, n_exits, n_enc_layers, n_dec_layers):
    Vp = ((V + LANE - 1) // LANE) * LANE
    kit = iter(jax.random.split(key, 4096))

    def nrm(shape, scale=0.02, dtype=jnp.bfloat16):
        return (scale * jax.random.normal(next(kit), shape)).astype(dtype)

    def zeros(shape):
        return jnp.zeros(shape, jnp.float32)

    def ones(shape):
        return jnp.ones(shape, jnp.float32)

    # Attention projection weights are stored in PyTorch (out_features,
    # in_features) layout because the kernels compute them feature-major
    # (W @ x.T); everything else uses (in, out) layout for x @ W.
    def mha_self():
        return dict(wqkv=nrm((3, D, D)), bqkv=zeros((3, D, 1)),
                    wo=nrm((D, D)), bo=zeros((1, D)))

    def mha_cross():
        return dict(wq=nrm((D, D)), bq=zeros((D, 1)),
                    wkv=nrm((2, D, D)), bkv=zeros((2, D, 1)),
                    wo=nrm((D, D)), bo=zeros((1, D)))

    def enc_layer():
        return dict(sa=mha_self(),
                    ln1_g=ones((1, D)), ln1_b=zeros((1, D)),
                    w1=nrm((D, dff)), b1=zeros((1, dff)),
                    w2=nrm((dff, D)), b2=zeros((1, D)),
                    ln2_g=ones((1, D)), ln2_b=zeros((1, D)))

    def dec_layer():
        return dict(sa=mha_self(), ca=mha_cross(),
                    ln1_g=ones((1, D)), ln1_b=zeros((1, D)),
                    ln2_g=ones((1, D)), ln2_b=zeros((1, D)),
                    ln3_g=ones((1, D)), ln3_b=zeros((1, D)),
                    w1=nrm((D, dff)), b1=zeros((1, dff)),
                    w2=nrm((dff, D)), b2=zeros((1, D)))

    def head_weights():
        ws, bs = [], []
        for _ in range(n_exits):
            w = (0.02 * jax.random.normal(next(kit), (D, V))).astype(jnp.float32)
            ws.append(jnp.pad(w, ((0, 0), (0, Vp - V))).astype(jnp.bfloat16))
            bs.append(jnp.zeros((1, Vp), jnp.float32))
        return jnp.stack(ws, 0), jnp.stack(bs, 0)      # (E, D, Vp), (E, 1, Vp)

    # conv weights generated in PyTorch layout (C_out, C_in, K), converted to
    # the im2col-matmul layouts used by the kernels.
    conv1_w = nrm((D, F, 3), dtype=jnp.float32)
    conv2_w = nrm((D, D, 3), dtype=jnp.float32)
    conv1_wcol = conv1_w.reshape(D, F * 3).T.astype(jnp.bfloat16)                  # rows: c_in*3+k
    conv2_wcol = conv2_w.transpose(2, 1, 0).reshape(3 * D, D).astype(jnp.bfloat16)  # rows: k*D+c_in

    lin1_w, lin1_b = head_weights()
    lin2_w, lin2_b = head_weights()

    return dict(
        conv1_wcol=conv1_wcol, conv1_b=zeros((1, D)),
        conv2_wcol=conv2_wcol, conv2_b=zeros((1, D)),
        emb=jax.random.normal(next(kit), (V, D)).astype(jnp.float32),
        pe=sinusoid_pe(max_len, D),
        ln_g=ones((1, D)), ln_b=zeros((1, D)),
        lin1_w=lin1_w, lin1_b=lin1_b,
        lin2_w=lin2_w, lin2_b=lin2_b,
        encoders=[[enc_layer() for _ in range(n_enc_layers)] for _ in range(n_exits)],
        decoders=[[dec_layer() for _ in range(n_dec_layers)] for _ in range(n_exits)],
    )


# ----------------------------------------------------------------------------
# Main
# ----------------------------------------------------------------------------

if __name__ == "__main__":
    B, F, T_in = 2, 8, 35                 # batch, features_length, input time
    D, H, dff = 32, 4, 64                 # d_model, n_head, d_feed_forward
    V_dec = 40                            # dec_voc_size
    n_exits, n_enc_layers, n_dec_layers = 2, 1, 1
    max_len = 64
    S = 8                                 # target sequence length
    trg_pad_idx = 0

    key = jax.random.PRNGKey(0)
    k_src, k_param = jax.random.split(key)

    src = jax.random.normal(k_src, (B, F, T_in), jnp.float32)
    trg = jnp.array([[1, 5, 6, 7, 2, 3, 0, 0],
                     [1, 9, 3, 2, 0, 0, 0, 0]], dtype=jnp.int32)

    params = init_params(k_param, F=F, D=D, dff=dff, V=V_dec, max_len=max_len,
                         n_exits=n_exits, n_enc_layers=n_enc_layers,
                         n_dec_layers=n_dec_layers)

    fwd = jax.jit(functools.partial(early_transformer_forward,
                                    n_head=H, trg_pad_idx=trg_pad_idx,
                                    dec_voc_size=V_dec))
    output, enc_out = fwd(params, src, trg)
    jax.block_until_ready((output, enc_out))

    T1 = (T_in - 3) // 2 + 1
    T2 = (T1 - 3) // 2 + 1
    assert output.shape == (n_exits, B, S, V_dec), output.shape
    assert enc_out.shape == (n_exits, B, T2, V_dec), enc_out.shape
    assert bool(jnp.isfinite(output).all()) and bool(jnp.isfinite(enc_out).all())
    print("KERNEL_OK")
</pallas_src>

<mosaic_0001>
module attributes {stable_mosaic.version = 11 : i64} {
  func.func @_linear_kernel(%arg0: memref<34x24xf32, #tpu.memory_space<vmem>>, %arg1: memref<24x32xbf16, #tpu.memory_space<vmem>>, %arg2: memref<1x32xf32, #tpu.memory_space<vmem>>, %arg3: memref<34x32xbf16, #tpu.memory_space<vmem>>) attributes {dimension_semantics = [], scalar_prefetch = 0 : i64, scratch_operands = 0 : i64, tpu.core_type = #tpu.core_type<tc>} {
    %c0 = arith.constant 0 : index
    %c0_0 = arith.constant 0 : index
    %0 = vector.load %arg0[%c0, %c0_0] : memref<34x24xf32, #tpu.memory_space<vmem>>, vector<34x24xf32>
    %c0_1 = arith.constant 0 : index
    %c0_2 = arith.constant 0 : index
    %1 = vector.load %arg1[%c0_1, %c0_2] : memref<24x32xbf16, #tpu.memory_space<vmem>>, vector<24x32xbf16>
    %c0_3 = arith.constant 0 : index
    %c0_4 = arith.constant 0 : index
    %2 = vector.load %arg2[%c0_3, %c0_4] : memref<1x32xf32, #tpu.memory_space<vmem>>, vector<1x32xf32>
    %3 = arith.truncf %0 : vector<34x24xf32> to vector<34x24xbf16>
    %cst = arith.constant dense<0.000000e+00> : vector<34x32xf32>
    %4 = tpu.matmul %3, %1, %cst {dimension_numbers = #tpu.dot_dimension_numbers<[1], [0], [0], [1], [0, 0, 1, 1], [], []>} : vector<34x24xbf16>, vector<24x32xbf16>, vector<34x32xf32> -> vector<34x32xf32>
    %5 = vector.broadcast %2 : vector<1x32xf32> to vector<34x32xf32>
    %6 = arith.addf %4, %5 : vector<34x32xf32>
    %7 = arith.truncf %6 : vector<34x32xf32> to vector<34x32xbf16>
    %c0_5 = arith.constant 0 : index
    %c0_6 = arith.constant 0 : index
    %8 = vector.load %arg3[%c0_5, %c0_6] : memref<34x32xbf16, #tpu.memory_space<vmem>>, vector<34x32xbf16>
    tpu.vector_store %arg3[%c0_5, %c0_6], %7 {strides = array<i32>} : memref<34x32xbf16, #tpu.memory_space<vmem>>, vector<34x32xbf16>,
    return
  }
}

module attributes {stable_mosaic.version = 11 : i64} {
  func.func @_conv_pe_kernel(%arg0: memref<16x96xbf16, #tpu.memory_space<vmem>>, %arg1: memref<96x32xbf16, #tpu.memory_space<vmem>>, %arg2: memref<1x32xf32, #tpu.memory_space<vmem>>, %arg3: memref<8x32xf32, #tpu.memory_space<vmem>>, %arg4: memref<2x8x32xbf16, #tpu.memory_space<vmem>>) attributes {dimension_semantics = [], scalar_prefetch = 0 : i64, scratch_operands = 0 : i64, tpu.core_type = #tpu.core_type<tc>} {
    %c0 = arith.constant 0 : index
    %c0_0 = arith.constant 0 : index
    %0 = vector.load %arg0[%c0, %c0_0] : memref<16x96xbf16, #tpu.memory_space<vmem>>, vector<16x96xbf16>
    %c0_1 = arith.constant 0 : index
    %c0_2 = arith.constant 0 : index
    %1 = vector.load %arg1[%c0_1, %c0_2] : memref<96x32xbf16, #tpu.memory_space<vmem>>, vector<96x32xbf16>
    %c0_3 = arith.constant 0 : index
    %c0_4 = arith.constant 0 : index
    %2 = vector.load %arg2[%c0_3, %c0_4] : memref<1x32xf32, #tpu.memory_space<vmem>>, vector<1x32xf32>
    %cst = arith.constant dense<0.000000e+00> : vector<16x32xf32>
    %3 = tpu.matmul %0, %1, %cst {dimension_numbers = #tpu.dot_dimension_numbers<[1], [0], [0], [1], [0, 0, 1, 1], [], []>} : vector<16x96xbf16>, vector<96x32xbf16>, vector<16x32xf32> -> vector<16x32xf32>
    %4 = vector.broadcast %2 : vector<1x32xf32> to vector<16x32xf32>
    %5 = arith.addf %3, %4 : vector<16x32xf32>
    %6 = vector.shape_cast %5 : vector<16x32xf32> to vector<2x8x32xf32>
    %c0_5 = arith.constant 0 : index
    %c0_6 = arith.constant 0 : index
    %7 = vector.load %arg3[%c0_5, %c0_6] : memref<8x32xf32, #tpu.memory_space<vmem>>, vector<8x32xf32>
    %8 = vector.shape_cast %7 : vector<8x32xf32> to vector<1x8x32xf32>
    %9 = vector.broadcast %8 : vector<1x8x32xf32> to vector<2x8x32xf32>
    %10 = arith.addf %6, %9 : vector<2x8x32xf32>
    %11 = arith.truncf %10 : vector<2x8x32xf32> to vector<2x8x32xbf16>
    %c0_7 = arith.constant 0 : index
    %c0_8 = arith.constant 0 : index
    %c0_9 = arith.constant 0 : index
    %12 = vector.load %arg4[%c0_7, %c0_8, %c0_9] : memref<2x8x32xbf16, #tpu.memory_space<vmem>>, vector<2x8x32xbf16>
    tpu.vector_store %arg4[%c0_7, %c0_8, %c0_9], %11 {strides = array<i32>} : memref<2x8x32xbf16, #tpu.memory_space<vmem>>, vector<2x8x32xbf16>,
    return
  }
}

module attributes {stable_mosaic.version = 11 : i64} {
  func.func @_encoder_layer_kernel(%arg0: i32, %arg1: memref<1x8x32xbf16, #tpu.memory_space<vmem>>, %arg2: memref<3x32x32xbf16, #tpu.memory_space<vmem>>, %arg3: memref<3x32x1xf32, #tpu.memory_space<vmem>>, %arg4: memref<32x32xbf16, #tpu.memory_space<vmem>>, %arg5: memref<1x32xf32, #tpu.memory_space<vmem>>, %arg6: memref<1x32xf32, #tpu.memory_space<vmem>>, %arg7: memref<1x32xf32, #tpu.memory_space<vmem>>, %arg8: memref<32x64xbf16, #tpu.memory_space<vmem>>, %arg9: memref<1x64xf32, #tpu.memory_space<vmem>>, %arg10: memref<64x32xbf16, #tpu.memory_space<vmem>>, %arg11: memref<1x32xf32, #tpu.memory_space<vmem>>, %arg12: memref<1x32xf32, #tpu.memory_space<vmem>>, %arg13: memref<1x32xf32, #tpu.memory_space<vmem>>, %arg14: memref<1x8x32xbf16, #tpu.memory_space<vmem>>) attributes {dimension_semantics = [#tpu.dimension_semantics<parallel>], iteration_bounds = array<i64: 2>, scalar_prefetch = 0 : i64, scratch_operands = 0 : i64, tpu.core_type = #tpu.core_type<tc>, window_params = [{transform_indices = @transform_0, window_bounds = array<i64: 1, 8, 32>}, {pipeline_mode = #tpu.pipeline_mode<synchronous>, transform_indices = @transform_1, window_bounds = array<i64: 3, 32, 32>}, {pipeline_mode = #tpu.pipeline_mode<synchronous>, transform_indices = @transform_2, window_bounds = array<i64: 3, 32, 1>}, {pipeline_mode = #tpu.pipeline_mode<synchronous>, transform_indices = @transform_3, window_bounds = array<i64: 32, 32>}, {pipeline_mode = #tpu.pipeline_mode<synchronous>, transform_indices = @transform_4, window_bounds = array<i64: 1, 32>}, {pipeline_mode = #tpu.pipeline_mode<synchronous>, transform_indices = @transform_5, window_bounds = array<i64: 1, 32>}, {pipeline_mode = #tpu.pipeline_mode<synchronous>, transform_indices = @transform_6, window_bounds = array<i64: 1, 32>}, {pipeline_mode = #tpu.pipeline_mode<synchronous>, transform_indices = @transform_7, window_bounds = array<i64: 32, 64>}, {pipeline_mode = #tpu.pipeline_mode<synchronous>, transform_indices = @transform_8, window_bounds = array<i64: 1, 64>}, {pipeline_mode = #tpu.pipeline_mode<synchronous>, transform_indices = @transform_9, window_bounds = array<i64: 64, 32>}, {pipeline_mode = #tpu.pipeline_mode<synchronous>, transform_indices = @transform_10, window_bounds = array<i64: 1, 32>}, {pipeline_mode = #tpu.pipeline_mode<synchronous>, transform_indices = @transform_11, window_bounds = array<i64: 1, 32>}, {pipeline_mode = #tpu.pipeline_mode<synchronous>, transform_indices = @transform_12, window_bounds = array<i64: 1, 32>}, {transform_indices = @transform_13, window_bounds = array<i64: 1, 8, 32>}]} {
    %c0 = arith.constant 0 : index
    %c0_0 = arith.constant 0 : index
    %c0_1 = arith.constant 0 : index
    %0 = vector.load %arg1[%c0, %c0_0, %c0_1] : memref<1x8x32xbf16, #tpu.memory_space<vmem>>, vector<1x8x32xbf16>
    %1 = vector.shape_cast %0 : vector<1x8x32xbf16> to vector<8x32xbf16>
    %2 = arith.extf %1 : vector<8x32xbf16> to vector<8x32xf32>
    %3 = tpu.transpose %2, [1, 0] : vector<8x32xf32> -> vector<32x8xf32>
    %c0_2 = arith.constant 0 : index
    %c0_3 = arith.constant 0 : index
    %c0_4 = arith.constant 0 : index
    %4 = vector.load %arg2[%c0_2, %c0_3, %c0_4] : memref<3x32x32xbf16, #tpu.memory_space<vmem>>, vector<1x32x32xbf16>
    %5 = vector.shape_cast %4 : vector<1x32x32xbf16> to vector<32x32xbf16>
    %c0_5 = arith.constant 0 : index
    %c0_6 = arith.constant 0 : index
    %c0_7 = arith.constant 0 : index
    %6 = vector.load %arg3[%c0_5, %c0_6, %c0_7] : memref<3x32x1xf32, #tpu.memory_space<vmem>>, vector<1x32x1xf32>
    %7 = vector.shape_cast %6 : vector<1x32x1xf32> to vector<32x1xf32>
    %8 = arith.truncf %3 : vector<32x8xf32> to vector<32x8xbf16>
    %cst = arith.constant dense<0.000000e+00> : vector<32x8xf32>
    %9 = tpu.matmul %5, %8, %cst {dimension_numbers = #tpu.dot_dimension_numbers<[1], [0], [0], [1], [0, 0, 1, 1], [], []>} : vector<32x32xbf16>, vector<32x8xbf16>, vector<32x8xf32> -> vector<32x8xf32>
    %10 = vector.broadcast %7 : vector<32x1xf32> to vector<32x8xf32>
    %11 = arith.addf %9, %10 : vector<32x8xf32>
    %cst_8 = arith.constant 0.353553385 : f32
    %12 = vector.broadcast %cst_8 : f32 to vector<32x8xf32>
    %13 = arith.mulf %11, %12 : vector<32x8xf32>
    %c1 = arith.constant 1 : index
    %c0_9 = arith.constant 0 : index
    %c0_10 = arith.constant 0 : index
    %14 = vector.load %arg2[%c1, %c0_9, %c0_10] : memref<3x32x32xbf16, #tpu.memory_space<vmem>>, vector<1x32x32xbf16>
    %15 = vector.shape_cast %14 : vector<1x32x32xbf16> to vector<32x32xbf16>
    %c1_11 = arith.constant 1 : index
    %c0_12 = arith.constant 0 : index
    %c0_13 = arith.constant 0 : index
    %16 = vector.load %arg3[%c1_11, %c0_12, %c0_13] : memref<3x32x1xf32, #tpu.memory_space<vmem>>, vector<1x32x1xf32>
    %17 = vector.shape_cast %16 : vector<1x32x1xf32> to vector<32x1xf32>
    %18 = arith.truncf %3 : vector<32x8xf32> to vector<32x8xbf16>
    %cst_14 = arith.constant dense<0.000000e+00> : vector<32x8xf32>
    %19 = tpu.matmul %15, %18, %cst_14 {dimension_numbers = #tpu.dot_dimension_numbers<[1], [0], [0], [1], [0, 0, 1, 1], [], []>} : vector<32x32xbf16>, vector<32x8xbf16>, vector<32x8xf32> -> vector<32x8xf32>
    %20 = vector.broadcast %17 : vector<32x1xf32> to vector<32x8xf32>
    %21 = arith.addf %19, %20 : vector<32x8xf32>
    %c2 = arith.constant 2 : index
    %c0_15 = arith.constant 0 : index
    %c0_16 = arith.constant 0 : index
    %22 = vector.load %arg2[%c2, %c0_15, %c0_16] : memref<3x32x32xbf16, #tpu.memory_space<vmem>>, vector<1x32x32xbf16>
    %23 = vector.shape_cast %22 : vector<1x32x32xbf16> to vector<32x32xbf16>
    %c2_17 = arith.constant 2 : index
    %c0_18 = arith.constant 0 : index
    %c0_19 = arith.constant 0 : index
    %24 = vector.load %arg3[%c2_17, %c0_18, %c0_19] : memref<3x32x1xf32, #tpu.memory_space<vmem>>, vector<1x32x1xf32>
    %25 = vector.shape_cast %24 : vector<1x32x1xf32> to vector<32x1xf32>
    %26 = arith.truncf %3 : vector<32x8xf32> to vector<32x8xbf16>
    %cst_20 = arith.constant dense<0.000000e+00> : vector<32x8xf32>
    %27 = tpu.matmul %23, %26, %cst_20 {dimension_numbers = #tpu.dot_dimension_numbers<[1], [0], [0], [1], [0, 0, 1, 1], [], []>} : vector<32x32xbf16>, vector<32x8xbf16>, vector<32x8xf32> -> vector<32x8xf32>
    %28 = vector.broadcast %25 : vector<32x1xf32> to vector<32x8xf32>
    %29 = arith.addf %27, %28 : vector<32x8xf32>
    %30 = vector.shape_cast %13 : vector<32x8xf32> to vector<4x8x8xf32>
    %31 = tpu.transpose %30, [0, 2, 1] : vector<4x8x8xf32> -> vector<4x8x8xf32>
    %32 = vector.shape_cast %21 : vector<32x8xf32> to vector<4x8x8xf32>
    %33 = vector.shape_cast %29 : vector<32x8xf32> to vector<4x8x8xf32>
    %34 = tpu.transpose %33, [0, 2, 1] : vector<4x8x8xf32> -> vector<4x8x8xf32>
    "tpu.trace_start"() <{level = 10 : i32, message = "hqd,hdk->hqk"}> : () -> ()
    %cst_21 = arith.constant dense<0.000000e+00> : vector<4x8x8xf32>
    %35 = tpu.matmul %31, %32, %cst_21 {dimension_numbers = #tpu.dot_dimension_numbers<[2], [1], [1], [2], [0, 0, 0, 1, 1, 2], [0], [0]>} : vector<4x8x8xf32>, vector<4x8x8xf32>, vector<4x8x8xf32> -> vector<4x8x8xf32>
    "tpu.trace_stop"() : () -> ()
    %cst_22 = arith.constant dense<0xFF800000> : vector<4x8xf32>
    %36 = vector.multi_reduction <maximumf>, %35, %cst_22 [2] : vector<4x8x8xf32> to vector<4x8xf32>
    %37 = vector.shape_cast %36 : vector<4x8xf32> to vector<4x8x1xf32>
    %38 = vector.broadcast %37 : vector<4x8x1xf32> to vector<4x8x8xf32>
    %39 = arith.subf %35, %38 : vector<4x8x8xf32>
    %40 = math.exp %39 : vector<4x8x8xf32>
    %cst_23 = arith.constant dense<0.000000e+00> : vector<4x8xf32>
    %41 = vector.multi_reduction <add>, %40, %cst_23 [2] : vector<4x8x8xf32> to vector<4x8xf32>
    %42 = vector.shape_cast %41 : vector<4x8xf32> to vector<4x8x1xf32>
    %43 = tpu.reciprocal %42 {approx = true} : vector<4x8x1xf32> -> vector<4x8x1xf32>
    %44 = vector.broadcast %43 : vector<4x8x1xf32> to vector<4x8x8xf32>
    %45 = arith.mulf %40, %44 : vector<4x8x8xf32>
    "tpu.trace_start"() <{level = 10 : i32, message = "hqk,hkd->hqd"}> : () -> ()
    %cst_24 = arith.constant dense<0.000000e+00> : vector<4x8x8xf32>
    %46 = tpu.matmul %45, %34, %cst_24 {dimension_numbers = #tpu.dot_dimension_numbers<[2], [1], [1], [2], [0, 0, 0, 1, 1, 2], [0], [0]>} : vector<4x8x8xf32>, vector<4x8x8xf32>, vector<4x8x8xf32> -> vector<4x8x8xf32>
    "tpu.trace_stop"() : () -> ()
    %47 = tpu.transpose %46, [0, 2, 1] : vector<4x8x8xf32> -> vector<4x8x8xf32>
    %48 = vector.shape_cast %47 : vector<4x8x8xf32> to vector<32x8xf32>
    %49 = tpu.transpose %48, [1, 0] : vector<32x8xf32> -> vector<8x32xf32>
    %c0_25 = arith.constant 0 : index
    %c0_26 = arith.constant 0 : index
    %50 = vector.load %arg4[%c0_25, %c0_26] : memref<32x32xbf16, #tpu.memory_space<vmem>>, vector<32x32xbf16>
    %c0_27 = arith.constant 0 : index
    %c0_28 = arith.constant 0 : index
    %51 = vector.load %arg5[%c0_27, %c0_28] : memref<1x32xf32, #tpu.memory_space<vmem>>, vector<1x32xf32>
    %52 = arith.truncf %49 : vector<8x32xf32> to vector<8x32xbf16>
    %cst_29 = arith.constant dense<0.000000e+00> : vector<8x32xf32>
    %53 = tpu.matmul %52, %50, %cst_29 {dimension_numbers = #tpu.dot_dimension_numbers<[1], [0], [0], [1], [0, 0, 1, 1], [], []>} : vector<8x32xbf16>, vector<32x32xbf16>, vector<8x32xf32> -> vector<8x32xf32>
    %54 = vector.broadcast %51 : vector<1x32xf32> to vector<8x32xf32>
    %55 = arith.addf %53, %54 : vector<8x32xf32>
    %56 = arith.addf %2, %55 : vector<8x32xf32>
    %c0_30 = arith.constant 0 : index
    %c0_31 = arith.constant 0 : index
    %57 = vector.load %arg6[%c0_30, %c0_31] : memref<1x32xf32, #tpu.memory_space<vmem>>, vector<1x32xf32>
    %c0_32 = arith.constant 0 : index
    %c0_33 = arith.constant 0 : index
    %58 = vector.load %arg7[%c0_32, %c0_33] : memref<1x32xf32, #tpu.memory_space<vmem>>, vector<1x32xf32>
    %cst_34 = arith.constant dense<0.000000e+00> : vector<8xf32>
    %59 = vector.multi_reduction <add>, %56, %cst_34 [1] : vector<8x32xf32> to vector<8xf32>
    %60 = vector.shape_cast %59 : vector<8xf32> to vector<8x1xf32>
    %cst_35 = arith.constant 3.200000e+01 : f32
    %61 = vector.broadcast %cst_35 : f32 to vector<8x1xf32>
    %62 = arith.divf %60, %61 : vector<8x1xf32>
    %63 = vector.broadcast %62 : vector<8x1xf32> to vector<8x32xf32>
    %64 = arith.subf %56, %63 : vector<8x32xf32>
    %65 = arith.mulf %64, %64 : vector<8x32xf32>
    %cst_36 = arith.constant dense<0.000000e+00> : vector<8xf32>
    %66 = vector.multi_reduction <add>, %65, %cst_36 [1] : vector<8x32xf32> to vector<8xf32>
    %67 = vector.shape_cast %66 : vector<8xf32> to vector<8x1xf32>
    %cst_37 = arith.constant 3.200000e+01 : f32
    %68 = vector.broadcast %cst_37 : f32 to vector<8x1xf32>
    %69 = arith.divf %67, %68 : vector<8x1xf32>
    %70 = vector.broadcast %62 : vector<8x1xf32> to vector<8x32xf32>
    %71 = arith.subf %56, %70 : vector<8x32xf32>
    %cst_38 = arith.constant 9.99999974E-6 : f32
    %72 = vector.broadcast %cst_38 : f32 to vector<8x1xf32>
    %73 = arith.addf %69, %72 : vector<8x1xf32>
    %74 = math.rsqrt %73 : vector<8x1xf32>
    %75 = vector.broadcast %74 : vector<8x1xf32> to vector<8x32xf32>
    %76 = arith.mulf %71, %75 : vector<8x32xf32>
    %77 = vector.broadcast %57 : vector<1x32xf32> to vector<8x32xf32>
    %78 = arith.mulf %76, %77 : vector<8x32xf32>
    %79 = vector.broadcast %58 : vector<1x32xf32> to vector<8x32xf32>
    %80 = arith.addf %78, %79 : vector<8x32xf32>
    %c0_39 = arith.constant 0 : index
    %c0_40 = arith.constant 0 : index
    %81 = vector.load %arg8[%c0_39, %c0_40] : memref<32x64xbf16, #tpu.memory_space<vmem>>, vector<32x64xbf16>
    %c0_41 = arith.constant 0 : index
    %c0_42 = arith.constant 0 : index
    %82 = vector.load %arg9[%c0_41, %c0_42] : memref<1x64xf32, #tpu.memory_space<vmem>>, vector<1x64xf32>
    %83 = arith.truncf %80 : vector<8x32xf32> to vector<8x32xbf16>
    %cst_43 = arith.constant dense<0.000000e+00> : vector<8x64xf32>
    %84 = tpu.matmul %83, %81, %cst_43 {dimension_numbers = #tpu.dot_dimension_numbers<[1], [0], [0], [1], [0, 0, 1, 1], [], []>} : vector<8x32xbf16>, vector<32x64xbf16>, vector<8x64xf32> -> vector<8x64xf32>
    %85 = vector.broadcast %82 : vector<1x64xf32> to vector<8x64xf32>
    %86 = arith.addf %84, %85 : vector<8x64xf32>
    %cst_44 = arith.constant 0.000000e+00 : f32
    %87 = vector.broadcast %cst_44 : f32 to vector<8x64xf32>
    %88 = arith.maximumf %86, %87 : vector<8x64xf32>
    %c0_45 = arith.constant 0 : index
    %c0_46 = arith.constant 0 : index
    %89 = vector.load %arg10[%c0_45, %c0_46] : memref<64x32xbf16, #tpu.memory_space<vmem>>, vector<64x32xbf16>
    %c0_47 = arith.constant 0 : index
    %c0_48 = arith.constant 0 : index
    %90 = vector.load %arg11[%c0_47, %c0_48] : memref<1x32xf32, #tpu.memory_space<vmem>>, vector<1x32xf32>
    %91 = arith.truncf %88 : vector<8x64xf32> to vector<8x64xbf16>
    %cst_49 = arith.constant dense<0.000000e+00> : vector<8x32xf32>
    %92 = tpu.matmul %91, %89, %cst_49 {dimension_numbers = #tpu.dot_dimension_numbers<[1], [0], [0], [1], [0, 0, 1, 1], [], []>} : vector<8x64xbf16>, vector<64x32xbf16>, vector<8x32xf32> -> vector<8x32xf32>
    %93 = vector.broadcast %90 : vector<1x32xf32> to vector<8x32xf32>
    %94 = arith.addf %92, %93 : vector<8x32xf32>
    %95 = arith.addf %80, %94 : vector<8x32xf32>
    %c0_50 = arith.constant 0 : index
    %c0_51 = arith.constant 0 : index
    %96 = vector.load %arg12[%c0_50, %c0_51] : memref<1x32xf32, #tpu.memory_space<vmem>>, vector<1x32xf32>
    %c0_52 = arith.constant 0 : index
    %c0_53 = arith.constant 0 : index
    %97 = vector.load %arg13[%c0_52, %c0_53] : memref<1x32xf32, #tpu.memory_space<vmem>>, vector<1x32xf32>
    %cst_54 = arith.constant dense<0.000000e+00> : vector<8xf32>
    %98 = vector.multi_reduction <add>, %95, %cst_54 [1] : vector<8x32xf32> to vector<8xf32>
    %99 = vector.shape_cast %98 : vector<8xf32> to vector<8x1xf32>
    %cst_55 = arith.constant 3.200000e+01 : f32
    %100 = vector.broadcast %cst_55 : f32 to vector<8x1xf32>
    %101 = arith.divf %99, %100 : vector<8x1xf32>
    %102 = vector.broadcast %101 : vector<8x1xf32> to vector<8x32xf32>
    %103 = arith.subf %95, %102 : vector<8x32xf32>
    %104 = arith.mulf %103, %103 : vector<8x32xf32>
    %cst_56 = arith.constant dense<0.000000e+00> : vector<8xf32>
    %105 = vector.multi_reduction <add>, %104, %cst_56 [1] : vector<8x32xf32> to vector<8xf32>
    %106 = vector.shape_cast %105 : vector<8xf32> to vector<8x1xf32>
    %cst_57 = arith.constant 3.200000e+01 : f32
    %107 = vector.broadcast %cst_57 : f32 to vector<8x1xf32>
    %108 = arith.divf %106, %107 : vector<8x1xf32>
    %109 = vector.broadcast %101 : vector<8x1xf32> to vector<8x32xf32>
    %110 = arith.subf %95, %109 : vector<8x32xf32>
    %cst_58 = arith.constant 9.99999974E-6 : f32
    %111 = vector.broadcast %cst_58 : f32 to vector<8x1xf32>
    %112 = arith.addf %108, %111 : vector<8x1xf32>
    %113 = math.rsqrt %112 : vector<8x1xf32>
    %114 = vector.broadcast %113 : vector<8x1xf32> to vector<8x32xf32>
    %115 = arith.mulf %110, %114 : vector<8x32xf32>
    %116 = vector.broadcast %96 : vector<1x32xf32> to vector<8x32xf32>
    %117 = arith.mulf %115, %116 : vector<8x32xf32>
    %118 = vector.broadcast %97 : vector<1x32xf32> to vector<8x32xf32>
    %119 = arith.addf %117, %118 : vector<8x32xf32>
    %120 = arith.truncf %119 : vector<8x32xf32> to vector<8x32xbf16>
    %c0_59 = arith.constant 0 : index
    %c0_60 = arith.constant 0 : index
    %c0_61 = arith.constant 0 : index
    %121 = vector.load %arg14[%c0_59, %c0_60, %c0_61] : memref<1x8x32xbf16, #tpu.memory_space<vmem>>, vector<1x8x32xbf16>
    %122 = vector.shape_cast %121 : vector<1x8x32xbf16> to vector<8x32xbf16>
    %123 = vector.shape_cast %120 : vector<8x32xbf16> to vector<1x8x32xbf16>
    tpu.vector_store %arg14[%c0_59, %c0_60, %c0_61], %123 {strides = array<i32>} : memref<1x8x32xbf16, #tpu.memory_space<vmem>>, vector<1x8x32xbf16>,
    return
  }
  func.func @transform_0(%arg0: i32) -> (i32, i32, i32) {
    %c0_i32 = arith.constant 0 : i32
    %c0_i32_0 = arith.constant 0 : i32
    %c0_i32_1 = arith.constant 0 : i32
    return %arg0, %c0_i32, %c0_i32_0 : i32, i32, i32
  }
  func.func @transform_1(%arg0: i32) -> (i32, i32, i32) {
    %c0_i32 = arith.constant 0 : i32
    %c0_i32_0 = arith.constant 0 : i32
    %c0_i32_1 = arith.constant 0 : i32
    %c0_i32_2 = arith.constant 0 : i32
    return %c0_i32, %c0_i32_0, %c0_i32_1 : i32, i32, i32
  }
  func.func @transform_2(%arg0: i32) -> (i32, i32, i32) {
    %c0_i32 = arith.constant 0 : i32
    %c0_i32_0 = arith.constant 0 : i32
    %c0_i32_1 = arith.constant 0 : i32
    %c0_i32_2 = arith.constant 0 : i32
    return %c0_i32, %c0_i32_0, %c0_i32_1 : i32, i32, i32
  }
  func.func @transform_3(%arg0: i32) -> (i32, i32) {
    %c0_i32 = arith.constant 0 : i32
    %c0_i32_0 = arith.constant 0 : i32
    %c0_i32_1 = arith.constant 0 : i32
    return %c0_i32, %c0_i32_0 : i32, i32
  }
  func.func @transform_4(%arg0: i32) -> (i32, i32) {
    %c0_i32 = arith.constant 0 : i32
    %c0_i32_0 = arith.constant 0 : i32
    %c0_i32_1 = arith.constant 0 : i32
    return %c0_i32, %c0_i32_0 : i32, i32
  }
  func.func @transform_5(%arg0: i32) -> (i32, i32) {
    %c0_i32 = arith.constant 0 : i32
    %c0_i32_0 = arith.constant 0 : i32
    %c0_i32_1 = arith.constant 0 : i32
    return %c0_i32, %c0_i32_0 : i32, i32
  }
  func.func @transform_6(%arg0: i32) -> (i32, i32) {
    %c0_i32 = arith.constant 0 : i32
    %c0_i32_0 = arith.constant 0 : i32
    %c0_i32_1 = arith.constant 0 : i32
    return %c0_i32, %c0_i32_0 : i32, i32
  }
  func.func @transform_7(%arg0: i32) -> (i32, i32) {
    %c0_i32 = arith.constant 0 : i32
    %c0_i32_0 = arith.constant 0 : i32
    %c0_i32_1 = arith.constant 0 : i32
    return %c0_i32, %c0_i32_0 : i32, i32
  }
  func.func @transform_8(%arg0: i32) -> (i32, i32) {
    %c0_i32 = arith.constant 0 : i32
    %c0_i32_0 = arith.constant 0 : i32
    %c0_i32_1 = arith.constant 0 : i32
    return %c0_i32, %c0_i32_0 : i32, i32
  }
  func.func @transform_9(%arg0: i32) -> (i32, i32) {
    %c0_i32 = arith.constant 0 : i32
    %c0_i32_0 = arith.constant 0 : i32
    %c0_i32_1 = arith.constant 0 : i32
    return %c0_i32, %c0_i32_0 : i32, i32
  }
  func.func @transform_10(%arg0: i32) -> (i32, i32) {
    %c0_i32 = arith.constant 0 : i32
    %c0_i32_0 = arith.constant 0 : i32
    %c0_i32_1 = arith.constant 0 : i32
    return %c0_i32, %c0_i32_0 : i32, i32
  }
  func.func @transform_11(%arg0: i32) -> (i32, i32) {
    %c0_i32 = arith.constant 0 : i32
    %c0_i32_0 = arith.constant 0 : i32
    %c0_i32_1 = arith.constant 0 : i32
    return %c0_i32, %c0_i32_0 : i32, i32
  }
  func.func @transform_12(%arg0: i32) -> (i32, i32) {
    %c0_i32 = arith.constant 0 : i32
    %c0_i32_0 = arith.constant 0 : i32
    %c0_i32_1 = arith.constant 0 : i32
    return %c0_i32, %c0_i32_0 : i32, i32
  }
  func.func @transform_13(%arg0: i32) -> (i32, i32, i32) {
    %c0_i32 = arith.constant 0 : i32
    %c0_i32_0 = arith.constant 0 : i32
    %c0_i32_1 = arith.constant 0 : i32
    return %arg0, %c0_i32, %c0_i32_0 : i32, i32, i32
  }
}

module attributes {stable_mosaic.version = 11 : i64} {
  func.func @_dec_head_kernel(%arg0: i32, %arg1: i32, %arg2: memref<1x1x8x32xbf16, #tpu.memory_space<vmem>>, %arg3: memref<1x32xf32, #tpu.memory_space<vmem>>, %arg4: memref<1x32xf32, #tpu.memory_space<vmem>>, %arg5: memref<1x32x128xbf16, #tpu.memory_space<vmem>>, %arg6: memref<1x1x128xf32, #tpu.memory_space<vmem>>, %arg7: memref<1x1x8x128xf32, #tpu.memory_space<vmem>>) attributes {dimension_semantics = [#tpu.dimension_semantics<parallel>, #tpu.dimension_semantics<parallel>], iteration_bounds = array<i64: 2, 2>, scalar_prefetch = 0 : i64, scratch_operands = 0 : i64, tpu.core_type = #tpu.core_type<tc>, window_params = [{transform_indices = @transform_0, window_bounds = array<i64: 1, 1, 8, 32>}, {pipeline_mode = #tpu.pipeline_mode<synchronous>, transform_indices = @transform_1, window_bounds = array<i64: 1, 32>}, {pipeline_mode = #tpu.pipeline_mode<synchronous>, transform_indices = @transform_2, window_bounds = array<i64: 1, 32>}, {transform_indices = @transform_3, window_bounds = array<i64: 1, 32, 128>}, {transform_indices = @transform_4, window_bounds = array<i64: 1, 1, 128>}, {transform_indices = @transform_5, window_bounds = array<i64: 1, 1, 8, 128>}]} {
    %c0 = arith.constant 0 : index
    %c0_0 = arith.constant 0 : index
    %c0_1 = arith.constant 0 : index
    %c0_2 = arith.constant 0 : index
    %0 = vector.load %arg2[%c0, %c0_0, %c0_1, %c0_2] : memref<1x1x8x32xbf16, #tpu.memory_space<vmem>>, vector<1x1x8x32xbf16>
    %1 = vector.shape_cast %0 : vector<1x1x8x32xbf16> to vector<8x32xbf16>
    %2 = arith.extf %1 : vector<8x32xbf16> to vector<8x32xf32>
    %c0_3 = arith.constant 0 : index
    %c0_4 = arith.constant 0 : index
    %3 = vector.load %arg3[%c0_3, %c0_4] : memref<1x32xf32, #tpu.memory_space<vmem>>, vector<1x32xf32>
    %c0_5 = arith.constant 0 : index
    %c0_6 = arith.constant 0 : index
    %4 = vector.load %arg4[%c0_5, %c0_6] : memref<1x32xf32, #tpu.memory_space<vmem>>, vector<1x32xf32>
    %cst = arith.constant dense<0.000000e+00> : vector<8xf32>
    %5 = vector.multi_reduction <add>, %2, %cst [1] : vector<8x32xf32> to vector<8xf32>
    %6 = vector.shape_cast %5 : vector<8xf32> to vector<8x1xf32>
    %cst_7 = arith.constant 3.200000e+01 : f32
    %7 = vector.broadcast %cst_7 : f32 to vector<8x1xf32>
    %8 = arith.divf %6, %7 : vector<8x1xf32>
    %9 = vector.broadcast %8 : vector<8x1xf32> to vector<8x32xf32>
    %10 = arith.subf %2, %9 : vector<8x32xf32>
    %11 = arith.mulf %10, %10 : vector<8x32xf32>
    %cst_8 = arith.constant dense<0.000000e+00> : vector<8xf32>
    %12 = vector.multi_reduction <add>, %11, %cst_8 [1] : vector<8x32xf32> to vector<8xf32>
    %13 = vector.shape_cast %12 : vector<8xf32> to vector<8x1xf32>
    %cst_9 = arith.constant 3.200000e+01 : f32
    %14 = vector.broadcast %cst_9 : f32 to vector<8x1xf32>
    %15 = arith.divf %13, %14 : vector<8x1xf32>
    %16 = vector.broadcast %8 : vector<8x1xf32> to vector<8x32xf32>
    %17 = arith.subf %2, %16 : vector<8x32xf32>
    %cst_10 = arith.constant 9.99999974E-6 : f32
    %18 = vector.broadcast %cst_10 : f32 to vector<8x1xf32>
    %19 = arith.addf %15, %18 : vector<8x1xf32>
    %20 = math.rsqrt %19 : vector<8x1xf32>
    %21 = vector.broadcast %20 : vector<8x1xf32> to vector<8x32xf32>
    %22 = arith.mulf %17, %21 : vector<8x32xf32>
    %23 = vector.broadcast %3 : vector<1x32xf32> to vector<8x32xf32>
    %24 = arith.mulf %22, %23 : vector<8x32xf32>
    %25 = vector.broadcast %4 : vector<1x32xf32> to vector<8x32xf32>
    %26 = arith.addf %24, %25 : vector<8x32xf32>
    %27 = arith.truncf %26 : vector<8x32xf32> to vector<8x32xbf16>
    %c0_11 = arith.constant 0 : index
    %c0_12 = arith.constant 0 : index
    %c0_13 = arith.constant 0 : index
    %28 = vector.load %arg5[%c0_11, %c0_12, %c0_13] : memref<1x32x128xbf16, #tpu.memory_space<vmem>>, vector<1x32x128xbf16>
    %29 = vector.shape_cast %28 : vector<1x32x128xbf16> to vector<32x128xbf16>
    %cst_14 = arith.constant dense<0.000000e+00> : vector<8x128xf32>
    %30 = tpu.matmul %27, %29, %cst_14 {dimension_numbers = #tpu.dot_dimension_numbers<[1], [0], [0], [1], [0, 0, 1, 1], [], []>} : vector<8x32xbf16>, vector<32x128xbf16>, vector<8x128xf32> -> vector<8x128xf32>
    %c0_15 = arith.constant 0 : index
    %c0_16 = arith.constant 0 : index
    %c0_17 = arith.constant 0 : index
    %31 = vector.load %arg6[%c0_15, %c0_16, %c0_17] : memref<1x1x128xf32, #tpu.memory_space<vmem>>, vector<1x1x128xf32>
    %32 = vector.shape_cast %31 : vector<1x1x128xf32> to vector<1x128xf32>
    %33 = vector.broadcast %32 : vector<1x128xf32> to vector<8x128xf32>
    %34 = arith.addf %30, %33 : vector<8x128xf32>
    %35 = tpu.iota {dimensions = array<i32: 1>} : vector<8x128xi32>
    %c40_i32 = arith.constant 40 : i32
    %36 = vector.broadcast %c40_i32 : i32 to vector<8x128xi32>
    %37 = arith.cmpi slt, %35, %36 : vector<8x128xi32>
    %cst_18 = arith.constant -1.000000e+09 : f32
    %38 = vector.broadcast %cst_18 : f32 to vector<8x128xf32>
    %39 = arith.select %37, %34, %38 : vector<8x128xi1>, vector<8x128xf32>
    %cst_19 = arith.constant dense<0xFF800000> : vector<8xf32>
    %40 = vector.multi_reduction <maximumf>, %39, %cst_19 [1] : vector<8x128xf32> to vector<8xf32>
    %41 = vector.shape_cast %40 : vector<8xf32> to vector<8x1xf32>
    %42 = vector.broadcast %41 : vector<8x1xf32> to vector<8x128xf32>
    %43 = arith.subf %39, %42 : vector<8x128xf32>
    %44 = math.exp %43 : vector<8x128xf32>
    %cst_20 = arith.constant dense<0.000000e+00> : vector<8xf32>
    %45 = vector.multi_reduction <add>, %44, %cst_20 [1] : vector<8x128xf32> to vector<8xf32>
    %46 = vector.shape_cast %45 : vector<8xf32> to vector<8x1xf32>
    %47 = math.log %46 : vector<8x1xf32>
    %48 = arith.addf %47, %41 : vector<8x1xf32>
    %49 = vector.broadcast %48 : vector<8x1xf32> to vector<8x128xf32>
    %50 = arith.subf %39, %49 : vector<8x128xf32>
    %c0_21 = arith.constant 0 : index
    %c0_22 = arith.constant 0 : index
    %c0_23 = arith.constant 0 : index
    %c0_24 = arith.constant 0 : index
    %51 = vector.load %arg7[%c0_21, %c0_22, %c0_23, %c0_24] : memref<1x1x8x128xf32, #tpu.memory_space<vmem>>, vector<1x1x8x128xf32>
    %52 = vector.shape_cast %51 : vector<1x1x8x128xf32> to vector<8x128xf32>
    %53 = vector.shape_cast %50 : vector<8x128xf32> to vector<1x1x8x128xf32>
    tpu.vector_store %arg7[%c0_21, %c0_22, %c0_23, %c0_24], %53 {strides = array<i32>} : memref<1x1x8x128xf32, #tpu.memory_space<vmem>>, vector<1x1x8x128xf32>,
    return
  }
  func.func @transform_0(%arg0: i32, %arg1: i32) -> (i32, i32, i32, i32) {
    %c0_i32 = arith.constant 0 : i32
    %c0_i32_0 = arith.constant 0 : i32
    %c0_i32_1 = arith.constant 0 : i32
    return %arg0, %arg1, %c0_i32, %c0_i32_0 : i32, i32, i32, i32
  }
  func.func @transform_1(%arg0: i32, %arg1: i32) -> (i32, i32) {
    %c0_i32 = arith.constant 0 : i32
    %c0_i32_0 = arith.constant 0 : i32
    %c0_i32_1 = arith.constant 0 : i32
    return %c0_i32, %c0_i32_0 : i32, i32
  }
  func.func @transform_2(%arg0: i32, %arg1: i32) -> (i32, i32) {
    %c0_i32 = arith.constant 0 : i32
    %c0_i32_0 = arith.constant 0 : i32
    %c0_i32_1 = arith.constant 0 : i32
    return %c0_i32, %c0_i32_0 : i32, i32
  }
  func.func @transform_3(%arg0: i32, %arg1: i32) -> (i32, i32, i32) {
    %c0_i32 = arith.constant 0 : i32
    %c0_i32_0 = arith.constant 0 : i32
    %c0_i32_1 = arith.constant 0 : i32
    return %arg0, %c0_i32, %c0_i32_0 : i32, i32, i32
  }
  func.func @transform_4(%arg0: i32, %arg1: i32) -> (i32, i32, i32) {
    %c0_i32 = arith.constant 0 : i32
    %c0_i32_0 = arith.constant 0 : i32
    %c0_i32_1 = arith.constant 0 : i32
    return %arg0, %c0_i32, %c0_i32_0 : i32, i32, i32
  }
  func.func @transform_5(%arg0: i32, %arg1: i32) -> (i32, i32, i32, i32) {
    %c0_i32 = arith.constant 0 : i32
    %c0_i32_0 = arith.constant 0 : i32
    %c0_i32_1 = arith.constant 0 : i32
    return %arg0, %arg1, %c0_i32, %c0_i32_0 : i32, i32, i32, i32
  }
}

module attributes {stable_mosaic.version = 11 : i64} {
  func.func @_enc_head_kernel(%arg0: i32, %arg1: i32, %arg2: memref<1x1x8x32xbf16, #tpu.memory_space<vmem>>, %arg3: memref<1x32x128xbf16, #tpu.memory_space<vmem>>, %arg4: memref<1x1x128xf32, #tpu.memory_space<vmem>>, %arg5: memref<1x1x8x128xf32, #tpu.memory_space<vmem>>) attributes {dimension_semantics = [#tpu.dimension_semantics<parallel>, #tpu.dimension_semantics<parallel>], iteration_bounds = array<i64: 2, 2>, scalar_prefetch = 0 : i64, scratch_operands = 0 : i64, tpu.core_type = #tpu.core_type<tc>, window_params = [{transform_indices = @transform_0, window_bounds = array<i64: 1, 1, 8, 32>}, {transform_indices = @transform_1, window_bounds = array<i64: 1, 32, 128>}, {transform_indices = @transform_2, window_bounds = array<i64: 1, 1, 128>}, {transform_indices = @transform_3, window_bounds = array<i64: 1, 1, 8, 128>}]} {
    %c0 = arith.constant 0 : index
    %c0_0 = arith.constant 0 : index
    %c0_1 = arith.constant 0 : index
    %c0_2 = arith.constant 0 : index
    %0 = vector.load %arg2[%c0, %c0_0, %c0_1, %c0_2] : memref<1x1x8x32xbf16, #tpu.memory_space<vmem>>, vector<1x1x8x32xbf16>
    %1 = vector.shape_cast %0 : vector<1x1x8x32xbf16> to vector<8x32xbf16>
    %c0_3 = arith.constant 0 : index
    %c0_4 = arith.constant 0 : index
    %c0_5 = arith.constant 0 : index
    %2 = vector.load %arg3[%c0_3, %c0_4, %c0_5] : memref<1x32x128xbf16, #tpu.memory_space<vmem>>, vector<1x32x128xbf16>
    %3 = vector.shape_cast %2 : vector<1x32x128xbf16> to vector<32x128xbf16>
    %cst = arith.constant dense<0.000000e+00> : vector<8x128xf32>
    %4 = tpu.matmul %1, %3, %cst {dimension_numbers = #tpu.dot_dimension_numbers<[1], [0], [0], [1], [0, 0, 1, 1], [], []>} : vector<8x32xbf16>, vector<32x128xbf16>, vector<8x128xf32> -> vector<8x128xf32>
    %c0_6 = arith.constant 0 : index
    %c0_7 = arith.constant 0 : index
    %c0_8 = arith.constant 0 : index
    %5 = vector.load %arg4[%c0_6, %c0_7, %c0_8] : memref<1x1x128xf32, #tpu.memory_space<vmem>>, vector<1x1x128xf32>
    %6 = vector.shape_cast %5 : vector<1x1x128xf32> to vector<1x128xf32>
    %7 = vector.broadcast %6 : vector<1x128xf32> to vector<8x128xf32>
    %8 = arith.addf %4, %7 : vector<8x128xf32>
    %9 = tpu.iota {dimensions = array<i32: 1>} : vector<8x128xi32>
    %c40_i32 = arith.constant 40 : i32
    %10 = vector.broadcast %c40_i32 : i32 to vector<8x128xi32>
    %11 = arith.cmpi slt, %9, %10 : vector<8x128xi32>
    %cst_9 = arith.constant -1.000000e+09 : f32
    %12 = vector.broadcast %cst_9 : f32 to vector<8x128xf32>
    %13 = arith.select %11, %8, %12 : vector<8x128xi1>, vector<8x128xf32>
    %cst_10 = arith.constant dense<0xFF800000> : vector<8xf32>
    %14 = vector.multi_reduction <maximumf>, %13, %cst_10 [1] : vector<8x128xf32> to vector<8xf32>
    %15 = vector.shape_cast %14 : vector<8xf32> to vector<8x1xf32>
    %16 = vector.broadcast %15 : vector<8x1xf32> to vector<8x128xf32>
    %17 = arith.subf %13, %16 : vector<8x128xf32>
    %18 = math.exp %17 : vector<8x128xf32>
    %cst_11 = arith.constant dense<0.000000e+00> : vector<8xf32>
    %19 = vector.multi_reduction <add>, %18, %cst_11 [1] : vector<8x128xf32> to vector<8xf32>
    %20 = vector.shape_cast %19 : vector<8xf32> to vector<8x1xf32>
    %21 = math.log %20 : vector<8x1xf32>
    %22 = arith.addf %21, %15 : vector<8x1xf32>
    %23 = vector.broadcast %22 : vector<8x1xf32> to vector<8x128xf32>
    %24 = arith.subf %13, %23 : vector<8x128xf32>
    %c0_12 = arith.constant 0 : index
    %c0_13 = arith.constant 0 : index
    %c0_14 = arith.constant 0 : index
    %c0_15 = arith.constant 0 : index
    %25 = vector.load %arg5[%c0_12, %c0_13, %c0_14, %c0_15] : memref<1x1x8x128xf32, #tpu.memory_space<vmem>>, vector<1x1x8x128xf32>
    %26 = vector.shape_cast %25 : vector<1x1x8x128xf32> to vector<8x128xf32>
    %27 = vector.shape_cast %24 : vector<8x128xf32> to vector<1x1x8x128xf32>
    tpu.vector_store %arg5[%c0_12, %c0_13, %c0_14, %c0_15], %27 {strides = array<i32>} : memref<1x1x8x128xf32, #tpu.memory_space<vmem>>, vector<1x1x8x128xf32>,
    return
  }
  func.func @transform_0(%arg0: i32, %arg1: i32) -> (i32, i32, i32, i32) {
    %c0_i32 = arith.constant 0 : i32
    %c0_i32_0 = arith.constant 0 : i32
    %c0_i32_1 = arith.constant 0 : i32
    return %arg0, %arg1, %c0_i32, %c0_i32_0 : i32, i32, i32, i32
  }
  func.func @transform_1(%arg0: i32, %arg1: i32) -> (i32, i32, i32) {
    %c0_i32 = arith.constant 0 : i32
    %c0_i32_0 = arith.constant 0 : i32
    %c0_i32_1 = arith.constant 0 : i32
    return %arg0, %c0_i32, %c0_i32_0 : i32, i32, i32
  }
  func.func @transform_2(%arg0: i32, %arg1: i32) -> (i32, i32, i32) {
    %c0_i32 = arith.constant 0 : i32
    %c0_i32_0 = arith.constant 0 : i32
    %c0_i32_1 = arith.constant 0 : i32
    return %arg0, %c0_i32, %c0_i32_0 : i32, i32, i32
  }
  func.func @transform_3(%arg0: i32, %arg1: i32) -> (i32, i32, i32, i32) {
    %c0_i32 = arith.constant 0 : i32
    %c0_i32_0 = arith.constant 0 : i32
    %c0_i32_1 = arith.constant 0 : i32
    return %arg0, %arg1, %c0_i32, %c0_i32_0 : i32, i32, i32, i32
  }
}

module attributes {stable_mosaic.version = 11 : i64} {
  func.func @_decoder_layer_kernel(%arg0: i32, %arg1: memref<1x8x32xbf16, #tpu.memory_space<vmem>>, %arg2: memref<1x8x32xbf16, #tpu.memory_space<vmem>>, %arg3: memref<1x1x8xf32, #tpu.memory_space<vmem>>, %arg4: memref<3x32x32xbf16, #tpu.memory_space<vmem>>, %arg5: memref<3x32x1xf32, #tpu.memory_space<vmem>>, %arg6: memref<32x32xbf16, #tpu.memory_space<vmem>>, %arg7: memref<1x32xf32, #tpu.memory_space<vmem>>, %arg8: memref<1x32xf32, #tpu.memory_space<vmem>>, %arg9: memref<1x32xf32, #tpu.memory_space<vmem>>, %arg10: memref<32x32xbf16, #tpu.memory_space<vmem>>, %arg11: memref<32x1xf32, #tpu.memory_space<vmem>>, %arg12: memref<2x32x32xbf16, #tpu.memory_space<vmem>>, %arg13: memref<2x32x1xf32, #tpu.memory_space<vmem>>, %arg14: memref<32x32xbf16, #tpu.memory_space<vmem>>, %arg15: memref<1x32xf32, #tpu.memory_space<vmem>>, %arg16: memref<1x32xf32, #tpu.memory_space<vmem>>, %arg17: memref<1x32xf32, #tpu.memory_space<vmem>>, %arg18: memref<32x64xbf16, #tpu.memory_space<vmem>>, %arg19: memref<1x64xf32, #tpu.memory_space<vmem>>, %arg20: memref<64x32xbf16, #tpu.memory_space<vmem>>, %arg21: memref<1x32xf32, #tpu.memory_space<vmem>>, %arg22: memref<1x32xf32, #tpu.memory_space<vmem>>, %arg23: memref<1x32xf32, #tpu.memory_space<vmem>>, %arg24: memref<1x8x32xbf16, #tpu.memory_space<vmem>>) attributes {dimension_semantics = [#tpu.dimension_semantics<parallel>], iteration_bounds = array<i64: 2>, scalar_prefetch = 0 : i64, scratch_operands = 0 : i64, tpu.core_type = #tpu.core_type<tc>, window_params = [{transform_indices = @transform_0, window_bounds = array<i64: 1, 8, 32>}, {transform_indices = @transform_1, window_bounds = array<i64: 1, 8, 32>}, {transform_indices = @transform_2, window_bounds = array<i64: 1, 1, 8>}, {pipeline_mode = #tpu.pipeline_mode<synchronous>, transform_indices = @transform_3, window_bounds = array<i64: 3, 32, 32>}, {pipeline_mode = #tpu.pipeline_mode<synchronous>, transform_indices = @transform_4, window_bounds = array<i64: 3, 32, 1>}, {pipeline_mode = #tpu.pipeline_mode<synchronous>, transform_indices = @transform_5, window_bounds = array<i64: 32, 32>}, {pipeline_mode = #tpu.pipeline_mode<synchronous>, transform_indices = @transform_6, window_bounds = array<i64: 1, 32>}, {pipeline_mode = #tpu.pipeline_mode<synchronous>, transform_indices = @transform_7, window_bounds = array<i64: 1, 32>}, {pipeline_mode = #tpu.pipeline_mode<synchronous>, transform_indices = @transform_8, window_bounds = array<i64: 1, 32>}, {pipeline_mode = #tpu.pipeline_mode<synchronous>, transform_indices = @transform_9, window_bounds = array<i64: 32, 32>}, {pipeline_mode = #tpu.pipeline_mode<synchronous>, transform_indices = @transform_10, window_bounds = array<i64: 32, 1>}, {pipeline_mode = #tpu.pipeline_mode<synchronous>, transform_indices = @transform_11, window_bounds = array<i64: 2, 32, 32>}, {pipeline_mode = #tpu.pipeline_mode<synchronous>, transform_indices = @transform_12, window_bounds = array<i64: 2, 32, 1>}, {pipeline_mode = #tpu.pipeline_mode<synchronous>, transform_indices = @transform_13, window_bounds = array<i64: 32, 32>}, {pipeline_mode = #tpu.pipeline_mode<synchronous>, transform_indices = @transform_14, window_bounds = array<i64: 1, 32>}, {pipeline_mode = #tpu.pipeline_mode<synchronous>, transform_indices = @transform_15, window_bounds = array<i64: 1, 32>}, {pipeline_mode = #tpu.pipeline_mode<synchronous>, transform_indices = @transform_16, window_bounds = array<i64: 1, 32>}, {pipeline_mode = #tpu.pipeline_mode<synchronous>, transform_indices = @transform_17, window_bounds = array<i64: 32, 64>}, {pipeline_mode = #tpu.pipeline_mode<synchronous>, transform_indices = @transform_18, window_bounds = array<i64: 1, 64>}, {pipeline_mode = #tpu.pipeline_mode<synchronous>, transform_indices = @transform_19, window_bounds = array<i64: 64, 32>}, {pipeline_mode = #tpu.pipeline_mode<synchronous>, transform_indices = @transform_20, window_bounds = array<i64: 1, 32>}, {pipeline_mode = #tpu.pipeline_mode<synchronous>, transform_indices = @transform_21, window_bounds = array<i64: 1, 32>}, {pipeline_mode = #tpu.pipeline_mode<synchronous>, transform_indices = @transform_22, window_bounds = array<i64: 1, 32>}, {transform_indices = @transform_23, window_bounds = array<i64: 1, 8, 32>}]} {
    %c0 = arith.constant 0 : index
    %c0_0 = arith.constant 0 : index
    %c0_1 = arith.constant 0 : index
    %0 = vector.load %arg1[%c0, %c0_0, %c0_1] : memref<1x8x32xbf16, #tpu.memory_space<vmem>>, vector<1x8x32xbf16>
    %1 = vector.shape_cast %0 : vector<1x8x32xbf16> to vector<8x32xbf16>
    %2 = arith.extf %1 : vector<8x32xbf16> to vector<8x32xf32>
    %c0_2 = arith.constant 0 : index
    %c0_3 = arith.constant 0 : index
    %c0_4 = arith.constant 0 : index
    %3 = vector.load %arg2[%c0_2, %c0_3, %c0_4] : memref<1x8x32xbf16, #tpu.memory_space<vmem>>, vector<1x8x32xbf16>
    %4 = vector.shape_cast %3 : vector<1x8x32xbf16> to vector<8x32xbf16>
    %5 = arith.extf %4 : vector<8x32xbf16> to vector<8x32xf32>
    %6 = tpu.transpose %5, [1, 0] : vector<8x32xf32> -> vector<32x8xf32>
    %7 = tpu.iota {dimensions = array<i32: 0>} : vector<8x8xi32>
    %8 = tpu.iota {dimensions = array<i32: 1>} : vector<8x8xi32>
    %9 = arith.cmpi sgt, %8, %7 : vector<8x8xi32>
    %cst = arith.constant -1.000000e+09 : f32
    %cst_5 = arith.constant 0.000000e+00 : f32
    %10 = vector.broadcast %cst : f32 to vector<8x8xf32>
    %11 = vector.broadcast %cst_5 : f32 to vector<8x8xf32>
    %12 = arith.select %9, %10, %11 : vector<8x8xi1>, vector<8x8xf32>
    %c0_6 = arith.constant 0 : index
    %c0_7 = arith.constant 0 : index
    %c0_8 = arith.constant 0 : index
    %13 = vector.load %arg3[%c0_6, %c0_7, %c0_8] : memref<1x1x8xf32, #tpu.memory_space<vmem>>, vector<1x1x8xf32>
    %14 = vector.shape_cast %13 : vector<1x1x8xf32> to vector<1x8xf32>
    %15 = vector.broadcast %14 : vector<1x8xf32> to vector<8x8xf32>
    %16 = arith.addf %12, %15 : vector<8x8xf32>
    %c0_9 = arith.constant 0 : index
    %c0_10 = arith.constant 0 : index
    %17 = vector.load %arg8[%c0_9, %c0_10] : memref<1x32xf32, #tpu.memory_space<vmem>>, vector<1x32xf32>
    %c0_11 = arith.constant 0 : index
    %c0_12 = arith.constant 0 : index
    %18 = vector.load %arg9[%c0_11, %c0_12] : memref<1x32xf32, #tpu.memory_space<vmem>>, vector<1x32xf32>
    %cst_13 = arith.constant dense<0.000000e+00> : vector<8xf32>
    %19 = vector.multi_reduction <add>, %2, %cst_13 [1] : vector<8x32xf32> to vector<8xf32>
    %20 = vector.shape_cast %19 : vector<8xf32> to vector<8x1xf32>
    %cst_14 = arith.constant 3.200000e+01 : f32
    %21 = vector.broadcast %cst_14 : f32 to vector<8x1xf32>
    %22 = arith.divf %20, %21 : vector<8x1xf32>
    %23 = vector.broadcast %22 : vector<8x1xf32> to vector<8x32xf32>
    %24 = arith.subf %2, %23 : vector<8x32xf32>
    %25 = arith.mulf %24, %24 : vector<8x32xf32>
    %cst_15 = arith.constant dense<0.000000e+00> : vector<8xf32>
    %26 = vector.multi_reduction <add>, %25, %cst_15 [1] : vector<8x32xf32> to vector<8xf32>
    %27 = vector.shape_cast %26 : vector<8xf32> to vector<8x1xf32>
    %cst_16 = arith.constant 3.200000e+01 : f32
    %28 = vector.broadcast %cst_16 : f32 to vector<8x1xf32>
    %29 = arith.divf %27, %28 : vector<8x1xf32>
    %30 = vector.broadcast %22 : vector<8x1xf32> to vector<8x32xf32>
    %31 = arith.subf %2, %30 : vector<8x32xf32>
    %cst_17 = arith.constant 9.99999974E-6 : f32
    %32 = vector.broadcast %cst_17 : f32 to vector<8x1xf32>
    %33 = arith.addf %29, %32 : vector<8x1xf32>
    %34 = math.rsqrt %33 : vector<8x1xf32>
    %35 = vector.broadcast %34 : vector<8x1xf32> to vector<8x32xf32>
    %36 = arith.mulf %31, %35 : vector<8x32xf32>
    %37 = vector.broadcast %17 : vector<1x32xf32> to vector<8x32xf32>
    %38 = arith.mulf %36, %37 : vector<8x32xf32>
    %39 = vector.broadcast %18 : vector<1x32xf32> to vector<8x32xf32>
    %40 = arith.addf %38, %39 : vector<8x32xf32>
    %41 = tpu.transpose %40, [1, 0] : vector<8x32xf32> -> vector<32x8xf32>
    %c0_18 = arith.constant 0 : index
    %c0_19 = arith.constant 0 : index
    %c0_20 = arith.constant 0 : index
    %42 = vector.load %arg4[%c0_18, %c0_19, %c0_20] : memref<3x32x32xbf16, #tpu.memory_space<vmem>>, vector<1x32x32xbf16>
    %43 = vector.shape_cast %42 : vector<1x32x32xbf16> to vector<32x32xbf16>
    %c0_21 = arith.constant 0 : index
    %c0_22 = arith.constant 0 : index
    %c0_23 = arith.constant 0 : index
    %44 = vector.load %arg5[%c0_21, %c0_22, %c0_23] : memref<3x32x1xf32, #tpu.memory_space<vmem>>, vector<1x32x1xf32>
    %45 = vector.shape_cast %44 : vector<1x32x1xf32> to vector<32x1xf32>
    %46 = arith.truncf %41 : vector<32x8xf32> to vector<32x8xbf16>
    %cst_24 = arith.constant dense<0.000000e+00> : vector<32x8xf32>
    %47 = tpu.matmul %43, %46, %cst_24 {dimension_numbers = #tpu.dot_dimension_numbers<[1], [0], [0], [1], [0, 0, 1, 1], [], []>} : vector<32x32xbf16>, vector<32x8xbf16>, vector<32x8xf32> -> vector<32x8xf32>
    %48 = vector.broadcast %45 : vector<32x1xf32> to vector<32x8xf32>
    %49 = arith.addf %47, %48 : vector<32x8xf32>
    %cst_25 = arith.constant 0.353553385 : f32
    %50 = vector.broadcast %cst_25 : f32 to vector<32x8xf32>
    %51 = arith.mulf %49, %50 : vector<32x8xf32>
    %c1 = arith.constant 1 : index
    %c0_26 = arith.constant 0 : index
    %c0_27 = arith.constant 0 : index
    %52 = vector.load %arg4[%c1, %c0_26, %c0_27] : memref<3x32x32xbf16, #tpu.memory_space<vmem>>, vector<1x32x32xbf16>
    %53 = vector.shape_cast %52 : vector<1x32x32xbf16> to vector<32x32xbf16>
    %c1_28 = arith.constant 1 : index
    %c0_29 = arith.constant 0 : index
    %c0_30 = arith.constant 0 : index
    %54 = vector.load %arg5[%c1_28, %c0_29, %c0_30] : memref<3x32x1xf32, #tpu.memory_space<vmem>>, vector<1x32x1xf32>
    %55 = vector.shape_cast %54 : vector<1x32x1xf32> to vector<32x1xf32>
    %56 = arith.truncf %41 : vector<32x8xf32> to vector<32x8xbf16>
    %cst_31 = arith.constant dense<0.000000e+00> : vector<32x8xf32>
    %57 = tpu.matmul %53, %56, %cst_31 {dimension_numbers = #tpu.dot_dimension_numbers<[1], [0], [0], [1], [0, 0, 1, 1], [], []>} : vector<32x32xbf16>, vector<32x8xbf16>, vector<32x8xf32> -> vector<32x8xf32>
    %58 = vector.broadcast %55 : vector<32x1xf32> to vector<32x8xf32>
    %59 = arith.addf %57, %58 : vector<32x8xf32>
    %c2 = arith.constant 2 : index
    %c0_32 = arith.constant 0 : index
    %c0_33 = arith.constant 0 : index
    %60 = vector.load %arg4[%c2, %c0_32, %c0_33] : memref<3x32x32xbf16, #tpu.memory_space<vmem>>, vector<1x32x32xbf16>
    %61 = vector.shape_cast %60 : vector<1x32x32xbf16> to vector<32x32xbf16>
    %c2_34 = arith.constant 2 : index
    %c0_35 = arith.constant 0 : index
    %c0_36 = arith.constant 0 : index
    %62 = vector.load %arg5[%c2_34, %c0_35, %c0_36] : memref<3x32x1xf32, #tpu.memory_space<vmem>>, vector<1x32x1xf32>
    %63 = vector.shape_cast %62 : vector<1x32x1xf32> to vector<32x1xf32>
    %64 = arith.truncf %41 : vector<32x8xf32> to vector<32x8xbf16>
    %cst_37 = arith.constant dense<0.000000e+00> : vector<32x8xf32>
    %65 = tpu.matmul %61, %64, %cst_37 {dimension_numbers = #tpu.dot_dimension_numbers<[1], [0], [0], [1], [0, 0, 1, 1], [], []>} : vector<32x32xbf16>, vector<32x8xbf16>, vector<32x8xf32> -> vector<32x8xf32>
    %66 = vector.broadcast %63 : vector<32x1xf32> to vector<32x8xf32>
    %67 = arith.addf %65, %66 : vector<32x8xf32>
    %68 = vector.shape_cast %51 : vector<32x8xf32> to vector<4x8x8xf32>
    %69 = tpu.transpose %68, [0, 2, 1] : vector<4x8x8xf32> -> vector<4x8x8xf32>
    %70 = vector.shape_cast %59 : vector<32x8xf32> to vector<4x8x8xf32>
    %71 = vector.shape_cast %67 : vector<32x8xf32> to vector<4x8x8xf32>
    %72 = tpu.transpose %71, [0, 2, 1] : vector<4x8x8xf32> -> vector<4x8x8xf32>
    "tpu.trace_start"() <{level = 10 : i32, message = "hqd,hdk->hqk"}> : () -> ()
    %cst_38 = arith.constant dense<0.000000e+00> : vector<4x8x8xf32>
    %73 = tpu.matmul %69, %70, %cst_38 {dimension_numbers = #tpu.dot_dimension_numbers<[2], [1], [1], [2], [0, 0, 0, 1, 1, 2], [0], [0]>} : vector<4x8x8xf32>, vector<4x8x8xf32>, vector<4x8x8xf32> -> vector<4x8x8xf32>
    "tpu.trace_stop"() : () -> ()
    %74 = vector.shape_cast %16 : vector<8x8xf32> to vector<1x8x8xf32>
    %75 = vector.broadcast %74 : vector<1x8x8xf32> to vector<4x8x8xf32>
    %76 = arith.addf %73, %75 : vector<4x8x8xf32>
    %cst_39 = arith.constant dense<0xFF800000> : vector<4x8xf32>
    %77 = vector.multi_reduction <maximumf>, %76, %cst_39 [2] : vector<4x8x8xf32> to vector<4x8xf32>
    %78 = vector.shape_cast %77 : vector<4x8xf32> to vector<4x8x1xf32>
    %79 = vector.broadcast %78 : vector<4x8x1xf32> to vector<4x8x8xf32>
    %80 = arith.subf %76, %79 : vector<4x8x8xf32>
    %81 = math.exp %80 : vector<4x8x8xf32>
    %cst_40 = arith.constant dense<0.000000e+00> : vector<4x8xf32>
    %82 = vector.multi_reduction <add>, %81, %cst_40 [2] : vector<4x8x8xf32> to vector<4x8xf32>
    %83 = vector.shape_cast %82 : vector<4x8xf32> to vector<4x8x1xf32>
    %84 = tpu.reciprocal %83 {approx = true} : vector<4x8x1xf32> -> vector<4x8x1xf32>
    %85 = vector.broadcast %84 : vector<4x8x1xf32> to vector<4x8x8xf32>
    %86 = arith.mulf %81, %85 : vector<4x8x8xf32>
    "tpu.trace_start"() <{level = 10 : i32, message = "hqk,hkd->hqd"}> : () -> ()
    %cst_41 = arith.constant dense<0.000000e+00> : vector<4x8x8xf32>
    %87 = tpu.matmul %86, %72, %cst_41 {dimension_numbers = #tpu.dot_dimension_numbers<[2], [1], [1], [2], [0, 0, 0, 1, 1, 2], [0], [0]>} : vector<4x8x8xf32>, vector<4x8x8xf32>, vector<4x8x8xf32> -> vector<4x8x8xf32>
    "tpu.trace_stop"() : () -> ()
    %88 = tpu.transpose %87, [0, 2, 1] : vector<4x8x8xf32> -> vector<4x8x8xf32>
    %89 = vector.shape_cast %88 : vector<4x8x8xf32> to vector<32x8xf32>
    %90 = tpu.transpose %89, [1, 0] : vector<32x8xf32> -> vector<8x32xf32>
    %c0_42 = arith.constant 0 : index
    %c0_43 = arith.constant 0 : index
    %91 = vector.load %arg6[%c0_42, %c0_43] : memref<32x32xbf16, #tpu.memory_space<vmem>>, vector<32x32xbf16>
    %c0_44 = arith.constant 0 : index
    %c0_45 = arith.constant 0 : index
    %92 = vector.load %arg7[%c0_44, %c0_45] : memref<1x32xf32, #tpu.memory_space<vmem>>, vector<1x32xf32>
    %93 = arith.truncf %90 : vector<8x32xf32> to vector<8x32xbf16>
    %cst_46 = arith.constant dense<0.000000e+00> : vector<8x32xf32>
    %94 = tpu.matmul %93, %91, %cst_46 {dimension_numbers = #tpu.dot_dimension_numbers<[1], [0], [0], [1], [0, 0, 1, 1], [], []>} : vector<8x32xbf16>, vector<32x32xbf16>, vector<8x32xf32> -> vector<8x32xf32>
    %95 = vector.broadcast %92 : vector<1x32xf32> to vector<8x32xf32>
    %96 = arith.addf %94, %95 : vector<8x32xf32>
    %97 = arith.addf %2, %96 : vector<8x32xf32>
    %c0_47 = arith.constant 0 : index
    %c0_48 = arith.constant 0 : index
    %98 = vector.load %arg16[%c0_47, %c0_48] : memref<1x32xf32, #tpu.memory_space<vmem>>, vector<1x32xf32>
    %c0_49 = arith.constant 0 : index
    %c0_50 = arith.constant 0 : index
    %99 = vector.load %arg17[%c0_49, %c0_50] : memref<1x32xf32, #tpu.memory_space<vmem>>, vector<1x32xf32>
    %cst_51 = arith.constant dense<0.000000e+00> : vector<8xf32>
    %100 = vector.multi_reduction <add>, %97, %cst_51 [1] : vector<8x32xf32> to vector<8xf32>
    %101 = vector.shape_cast %100 : vector<8xf32> to vector<8x1xf32>
    %cst_52 = arith.constant 3.200000e+01 : f32
    %102 = vector.broadcast %cst_52 : f32 to vector<8x1xf32>
    %103 = arith.divf %101, %102 : vector<8x1xf32>
    %104 = vector.broadcast %103 : vector<8x1xf32> to vector<8x32xf32>
    %105 = arith.subf %97, %104 : vector<8x32xf32>
    %106 = arith.mulf %105, %105 : vector<8x32xf32>
    %cst_53 = arith.constant dense<0.000000e+00> : vector<8xf32>
    %107 = vector.multi_reduction <add>, %106, %cst_53 [1] : vector<8x32xf32> to vector<8xf32>
    %108 = vector.shape_cast %107 : vector<8xf32> to vector<8x1xf32>
    %cst_54 = arith.constant 3.200000e+01 : f32
    %109 = vector.broadcast %cst_54 : f32 to vector<8x1xf32>
    %110 = arith.divf %108, %109 : vector<8x1xf32>
    %111 = vector.broadcast %103 : vector<8x1xf32> to vector<8x32xf32>
    %112 = arith.subf %97, %111 : vector<8x32xf32>
    %cst_55 = arith.constant 9.99999974E-6 : f32
    %113 = vector.broadcast %cst_55 : f32 to vector<8x1xf32>
    %114 = arith.addf %110, %113 : vector<8x1xf32>
    %115 = math.rsqrt %114 : vector<8x1xf32>
    %116 = vector.broadcast %115 : vector<8x1xf32> to vector<8x32xf32>
    %117 = arith.mulf %112, %116 : vector<8x32xf32>
    %118 = vector.broadcast %98 : vector<1x32xf32> to vector<8x32xf32>
    %119 = arith.mulf %117, %118 : vector<8x32xf32>
    %120 = vector.broadcast %99 : vector<1x32xf32> to vector<8x32xf32>
    %121 = arith.addf %119, %120 : vector<8x32xf32>
    %122 = tpu.transpose %121, [1, 0] : vector<8x32xf32> -> vector<32x8xf32>
    %c0_56 = arith.constant 0 : index
    %c0_57 = arith.constant 0 : index
    %123 = vector.load %arg10[%c0_56, %c0_57] : memref<32x32xbf16, #tpu.memory_space<vmem>>, vector<32x32xbf16>
    %c0_58 = arith.constant 0 : index
    %c0_59 = arith.constant 0 : index
    %124 = vector.load %arg11[%c0_58, %c0_59] : memref<32x1xf32, #tpu.memory_space<vmem>>, vector<32x1xf32>
    %125 = arith.truncf %122 : vector<32x8xf32> to vector<32x8xbf16>
    %cst_60 = arith.constant dense<0.000000e+00> : vector<32x8xf32>
    %126 = tpu.matmul %123, %125, %cst_60 {dimension_numbers = #tpu.dot_dimension_numbers<[1], [0], [0], [1], [0, 0, 1, 1], [], []>} : vector<32x32xbf16>, vector<32x8xbf16>, vector<32x8xf32> -> vector<32x8xf32>
    %127 = vector.broadcast %124 : vector<32x1xf32> to vector<32x8xf32>
    %128 = arith.addf %126, %127 : vector<32x8xf32>
    %cst_61 = arith.constant 0.353553385 : f32
    %129 = vector.broadcast %cst_61 : f32 to vector<32x8xf32>
    %130 = arith.mulf %128, %129 : vector<32x8xf32>
    %c0_62 = arith.constant 0 : index
    %c0_63 = arith.constant 0 : index
    %c0_64 = arith.constant 0 : index
    %131 = vector.load %arg12[%c0_62, %c0_63, %c0_64] : memref<2x32x32xbf16, #tpu.memory_space<vmem>>, vector<1x32x32xbf16>
    %132 = vector.shape_cast %131 : vector<1x32x32xbf16> to vector<32x32xbf16>
    %c0_65 = arith.constant 0 : index
    %c0_66 = arith.constant 0 : index
    %c0_67 = arith.constant 0 : index
    %133 = vector.load %arg13[%c0_65, %c0_66, %c0_67] : memref<2x32x1xf32, #tpu.memory_space<vmem>>, vector<1x32x1xf32>
    %134 = vector.shape_cast %133 : vector<1x32x1xf32> to vector<32x1xf32>
    %135 = arith.truncf %6 : vector<32x8xf32> to vector<32x8xbf16>
    %cst_68 = arith.constant dense<0.000000e+00> : vector<32x8xf32>
    %136 = tpu.matmul %132, %135, %cst_68 {dimension_numbers = #tpu.dot_dimension_numbers<[1], [0], [0], [1], [0, 0, 1, 1], [], []>} : vector<32x32xbf16>, vector<32x8xbf16>, vector<32x8xf32> -> vector<32x8xf32>
    %137 = vector.broadcast %134 : vector<32x1xf32> to vector<32x8xf32>
    %138 = arith.addf %136, %137 : vector<32x8xf32>
    %c1_69 = arith.constant 1 : index
    %c0_70 = arith.constant 0 : index
    %c0_71 = arith.constant 0 : index
    %139 = vector.load %arg12[%c1_69, %c0_70, %c0_71] : memref<2x32x32xbf16, #tpu.memory_space<vmem>>, vector<1x32x32xbf16>
    %140 = vector.shape_cast %139 : vector<1x32x32xbf16> to vector<32x32xbf16>
    %c1_72 = arith.constant 1 : index
    %c0_73 = arith.constant 0 : index
    %c0_74 = arith.constant 0 : index
    %141 = vector.load %arg13[%c1_72, %c0_73, %c0_74] : memref<2x32x1xf32, #tpu.memory_space<vmem>>, vector<1x32x1xf32>
    %142 = vector.shape_cast %141 : vector<1x32x1xf32> to vector<32x1xf32>
    %143 = arith.truncf %6 : vector<32x8xf32> to vector<32x8xbf16>
    %cst_75 = arith.constant dense<0.000000e+00> : vector<32x8xf32>
    %144 = tpu.matmul %140, %143, %cst_75 {dimension_numbers = #tpu.dot_dimension_numbers<[1], [0], [0], [1], [0, 0, 1, 1], [], []>} : vector<32x32xbf16>, vector<32x8xbf16>, vector<32x8xf32> -> vector<32x8xf32>
    %145 = vector.broadcast %142 : vector<32x1xf32> to vector<32x8xf32>
    %146 = arith.addf %144, %145 : vector<32x8xf32>
    %147 = vector.shape_cast %130 : vector<32x8xf32> to vector<4x8x8xf32>
    %148 = tpu.transpose %147, [0, 2, 1] : vector<4x8x8xf32> -> vector<4x8x8xf32>
    %149 = vector.shape_cast %138 : vector<32x8xf32> to vector<4x8x8xf32>
    %150 = vector.shape_cast %146 : vector<32x8xf32> to vector<4x8x8xf32>
    %151 = tpu.transpose %150, [0, 2, 1] : vector<4x8x8xf32> -> vector<4x8x8xf32>
    "tpu.trace_start"() <{level = 10 : i32, message = "hqd,hdk->hqk"}> : () -> ()
    %cst_76 = arith.constant dense<0.000000e+00> : vector<4x8x8xf32>
    %152 = tpu.matmul %148, %149, %cst_76 {dimension_numbers = #tpu.dot_dimension_numbers<[2], [1], [1], [2], [0, 0, 0, 1, 1, 2], [0], [0]>} : vector<4x8x8xf32>, vector<4x8x8xf32>, vector<4x8x8xf32> -> vector<4x8x8xf32>
    "tpu.trace_stop"() : () -> ()
    %cst_77 = arith.constant dense<0xFF800000> : vector<4x8xf32>
    %153 = vector.multi_reduction <maximumf>, %152, %cst_77 [2] : vector<4x8x8xf32> to vector<4x8xf32>
    %154 = vector.shape_cast %153 : vector<4x8xf32> to vector<4x8x1xf32>
    %155 = vector.broadcast %154 : vector<4x8x1xf32> to vector<4x8x8xf32>
    %156 = arith.subf %152, %155 : vector<4x8x8xf32>
    %157 = math.exp %156 : vector<4x8x8xf32>
    %cst_78 = arith.constant dense<0.000000e+00> : vector<4x8xf32>
    %158 = vector.multi_reduction <add>, %157, %cst_78 [2] : vector<4x8x8xf32> to vector<4x8xf32>
    %159 = vector.shape_cast %158 : vector<4x8xf32> to vector<4x8x1xf32>
    %160 = tpu.reciprocal %159 {approx = true} : vector<4x8x1xf32> -> vector<4x8x1xf32>
    %161 = vector.broadcast %160 : vector<4x8x1xf32> to vector<4x8x8xf32>
    %162 = arith.mulf %157, %161 : vector<4x8x8xf32>
    "tpu.trace_start"() <{level = 10 : i32, message = "hqk,hkd->hqd"}> : () -> ()
    %cst_79 = arith.constant dense<0.000000e+00> : vector<4x8x8xf32>
    %163 = tpu.matmul %162, %151, %cst_79 {dimension_numbers = #tpu.dot_dimension_numbers<[2], [1], [1], [2], [0, 0, 0, 1, 1, 2], [0], [0]>} : vector<4x8x8xf32>, vector<4x8x8xf32>, vector<4x8x8xf32> -> vector<4x8x8xf32>
    "tpu.trace_stop"() : () -> ()
    %164 = tpu.transpose %163, [0, 2, 1] : vector<4x8x8xf32> -> vector<4x8x8xf32>
    %165 = vector.shape_cast %164 : vector<4x8x8xf32> to vector<32x8xf32>
    %166 = tpu.transpose %165, [1, 0] : vector<32x8xf32> -> vector<8x32xf32>
    %c0_80 = arith.constant 0 : index
    %c0_81 = arith.constant 0 : index
    %167 = vector.load %arg14[%c0_80, %c0_81] : memref<32x32xbf16, #tpu.memory_space<vmem>>, vector<32x32xbf16>
    %c0_82 = arith.constant 0 : index
    %c0_83 = arith.constant 0 : index
    %168 = vector.load %arg15[%c0_82, %c0_83] : memref<1x32xf32, #tpu.memory_space<vmem>>, vector<1x32xf32>
    %169 = arith.truncf %166 : vector<8x32xf32> to vector<8x32xbf16>
    %cst_84 = arith.constant dense<0.000000e+00> : vector<8x32xf32>
    %170 = tpu.matmul %169, %167, %cst_84 {dimension_numbers = #tpu.dot_dimension_numbers<[1], [0], [0], [1], [0, 0, 1, 1], [], []>} : vector<8x32xbf16>, vector<32x32xbf16>, vector<8x32xf32> -> vector<8x32xf32>
    %171 = vector.broadcast %168 : vector<1x32xf32> to vector<8x32xf32>
    %172 = arith.addf %170, %171 : vector<8x32xf32>
    %173 = arith.addf %97, %172 : vector<8x32xf32>
    %c0_85 = arith.constant 0 : index
    %c0_86 = arith.constant 0 : index
    %174 = vector.load %arg22[%c0_85, %c0_86] : memref<1x32xf32, #tpu.memory_space<vmem>>, vector<1x32xf32>
    %c0_87 = arith.constant 0 : index
    %c0_88 = arith.constant 0 : index
    %175 = vector.load %arg23[%c0_87, %c0_88] : memref<1x32xf32, #tpu.memory_space<vmem>>, vector<1x32xf32>
    %cst_89 = arith.constant dense<0.000000e+00> : vector<8xf32>
    %176 = vector.multi_reduction <add>, %173, %cst_89 [1] : vector<8x32xf32> to vector<8xf32>
    %177 = vector.shape_cast %176 : vector<8xf32> to vector<8x1xf32>
    %cst_90 = arith.constant 3.200000e+01 : f32
    %178 = vector.broadcast %cst_90 : f32 to vector<8x1xf32>
    %179 = arith.divf %177, %178 : vector<8x1xf32>
    %180 = vector.broadcast %179 : vector<8x1xf32> to vector<8x32xf32>
    %181 = arith.subf %173, %180 : vector<8x32xf32>
    %182 = arith.mulf %181, %181 : vector<8x32xf32>
    %cst_91 = arith.constant dense<0.000000e+00> : vector<8xf32>
    %183 = vector.multi_reduction <add>, %182, %cst_91 [1] : vector<8x32xf32> to vector<8xf32>
    %184 = vector.shape_cast %183 : vector<8xf32> to vector<8x1xf32>
    %cst_92 = arith.constant 3.200000e+01 : f32
    %185 = vector.broadcast %cst_92 : f32 to vector<8x1xf32>
    %186 = arith.divf %184, %185 : vector<8x1xf32>
    %187 = vector.broadcast %179 : vector<8x1xf32> to vector<8x32xf32>
    %188 = arith.subf %173, %187 : vector<8x32xf32>
    %cst_93 = arith.constant 9.99999974E-6 : f32
    %189 = vector.broadcast %cst_93 : f32 to vector<8x1xf32>
    %190 = arith.addf %186, %189 : vector<8x1xf32>
    %191 = math.rsqrt %190 : vector<8x1xf32>
    %192 = vector.broadcast %191 : vector<8x1xf32> to vector<8x32xf32>
    %193 = arith.mulf %188, %192 : vector<8x32xf32>
    %194 = vector.broadcast %174 : vector<1x32xf32> to vector<8x32xf32>
    %195 = arith.mulf %193, %194 : vector<8x32xf32>
    %196 = vector.broadcast %175 : vector<1x32xf32> to vector<8x32xf32>
    %197 = arith.addf %195, %196 : vector<8x32xf32>
    %c0_94 = arith.constant 0 : index
    %c0_95 = arith.constant 0 : index
    %198 = vector.load %arg18[%c0_94, %c0_95] : memref<32x64xbf16, #tpu.memory_space<vmem>>, vector<32x64xbf16>
    %c0_96 = arith.constant 0 : index
    %c0_97 = arith.constant 0 : index
    %199 = vector.load %arg19[%c0_96, %c0_97] : memref<1x64xf32, #tpu.memory_space<vmem>>, vector<1x64xf32>
    %200 = arith.truncf %197 : vector<8x32xf32> to vector<8x32xbf16>
    %cst_98 = arith.constant dense<0.000000e+00> : vector<8x64xf32>
    %201 = tpu.matmul %200, %198, %cst_98 {dimension_numbers = #tpu.dot_dimension_numbers<[1], [0], [0], [1], [0, 0, 1, 1], [], []>} : vector<8x32xbf16>, vector<32x64xbf16>, vector<8x64xf32> -> vector<8x64xf32>
    %202 = vector.broadcast %199 : vector<1x64xf32> to vector<8x64xf32>
    %203 = arith.addf %201, %202 : vector<8x64xf32>
    %cst_99 = arith.constant 0.000000e+00 : f32
    %204 = vector.broadcast %cst_99 : f32 to vector<8x64xf32>
    %205 = arith.maximumf %203, %204 : vector<8x64xf32>
    %c0_100 = arith.constant 0 : index
    %c0_101 = arith.constant 0 : index
    %206 = vector.load %arg20[%c0_100, %c0_101] : memref<64x32xbf16, #tpu.memory_space<vmem>>, vector<64x32xbf16>
    %c0_102 = arith.constant 0 : index
    %c0_103 = arith.constant 0 : index
    %207 = vector.load %arg21[%c0_102, %c0_103] : memref<1x32xf32, #tpu.memory_space<vmem>>, vector<1x32xf32>
    %208 = arith.truncf %205 : vector<8x64xf32> to vector<8x64xbf16>
    %cst_104 = arith.constant dense<0.000000e+00> : vector<8x32xf32>
    %209 = tpu.matmul %208, %206, %cst_104 {dimension_numbers = #tpu.dot_dimension_numbers<[1], [0], [0], [1], [0, 0, 1, 1], [], []>} : vector<8x64xbf16>, vector<64x32xbf16>, vector<8x32xf32> -> vector<8x32xf32>
    %210 = vector.broadcast %207 : vector<1x32xf32> to vector<8x32xf32>
    %211 = arith.addf %209, %210 : vector<8x32xf32>
    %212 = arith.addf %173, %211 : vector<8x32xf32>
    %213 = arith.truncf %212 : vector<8x32xf32> to vector<8x32xbf16>
    %c0_105 = arith.constant 0 : index
    %c0_106 = arith.constant 0 : index
    %c0_107 = arith.constant 0 : index
    %214 = vector.load %arg24[%c0_105, %c0_106, %c0_107] : memref<1x8x32xbf16, #tpu.memory_space<vmem>>, vector<1x8x32xbf16>
    %215 = vector.shape_cast %214 : vector<1x8x32xbf16> to vector<8x32xbf16>
    %216 = vector.shape_cast %213 : vector<8x32xbf16> to vector<1x8x32xbf16>
    tpu.vector_store %arg24[%c0_105, %c0_106, %c0_107], %216 {strides = array<i32>} : memref<1x8x32xbf16, #tpu.memory_space<vmem>>, vector<1x8x32xbf16>,
    return
  }
  func.func @transform_0(%arg0: i32) -> (i32, i32, i32) {
    %c0_i32 = arith.constant 0 : i32
    %c0_i32_0 = arith.constant 0 : i32
    %c0_i32_1 = arith.constant 0 : i32
    return %arg0, %c0_i32, %c0_i32_0 : i32, i32, i32
  }
  func.func @transform_1(%arg0: i32) -> (i32, i32, i32) {
    %c0_i32 = arith.constant 0 : i32
    %c0_i32_0 = arith.constant 0 : i32
    %c0_i32_1 = arith.constant 0 : i32
    return %arg0, %c0_i32, %c0_i32_0 : i32, i32, i32
  }
  func.func @transform_2(%arg0: i32) -> (i32, i32, i32) {
    %c0_i32 = arith.constant 0 : i32
    %c0_i32_0 = arith.constant 0 : i32
    %c0_i32_1 = arith.constant 0 : i32
    return %arg0, %c0_i32, %c0_i32_0 : i32, i32, i32
  }
  func.func @transform_3(%arg0: i32) -> (i32, i32, i32) {
    %c0_i32 = arith.constant 0 : i32
    %c0_i32_0 = arith.constant 0 : i32
    %c0_i32_1 = arith.constant 0 : i32
    %c0_i32_2 = arith.constant 0 : i32
    return %c0_i32, %c0_i32_0, %c0_i32_1 : i32, i32, i32
  }
  func.func @transform_4(%arg0: i32) -> (i32, i32, i32) {
    %c0_i32 = arith.constant 0 : i32
    %c0_i32_0 = arith.constant 0 : i32
    %c0_i32_1 = arith.constant 0 : i32
    %c0_i32_2 = arith.constant 0 : i32
    return %c0_i32, %c0_i32_0, %c0_i32_1 : i32, i32, i32
  }
  func.func @transform_5(%arg0: i32) -> (i32, i32) {
    %c0_i32 = arith.constant 0 : i32
    %c0_i32_0 = arith.constant 0 : i32
    %c0_i32_1 = arith.constant 0 : i32
    return %c0_i32, %c0_i32_0 : i32, i32
  }
  func.func @transform_6(%arg0: i32) -> (i32, i32) {
    %c0_i32 = arith.constant 0 : i32
    %c0_i32_0 = arith.constant 0 : i32
    %c0_i32_1 = arith.constant 0 : i32
    return %c0_i32, %c0_i32_0 : i32, i32
  }
  func.func @transform_7(%arg0: i32) -> (i32, i32) {
    %c0_i32 = arith.constant 0 : i32
    %c0_i32_0 = arith.constant 0 : i32
    %c0_i32_1 = arith.constant 0 : i32
    return %c0_i32, %c0_i32_0 : i32, i32
  }
  func.func @transform_8(%arg0: i32) -> (i32, i32) {
    %c0_i32 = arith.constant 0 : i32
    %c0_i32_0 = arith.constant 0 : i32
    %c0_i32_1 = arith.constant 0 : i32
    return %c0_i32, %c0_i32_0 : i32, i32
  }
  func.func @transform_9(%arg0: i32) -> (i32, i32) {
    %c0_i32 = arith.constant 0 : i32
    %c0_i32_0 = arith.constant 0 : i32
    %c0_i32_1 = arith.constant 0 : i32
    return %c0_i32, %c0_i32_0 : i32, i32
  }
  func.func @transform_10(%arg0: i32) -> (i32, i32) {
    %c0_i32 = arith.constant 0 : i32
    %c0_i32_0 = arith.constant 0 : i32
    %c0_i32_1 = arith.constant 0 : i32
    return %c0_i32, %c0_i32_0 : i32, i32
  }
  func.func @transform_11(%arg0: i32) -> (i32, i32, i32) {
    %c0_i32 = arith.constant 0 : i32
    %c0_i32_0 = arith.constant 0 : i32
    %c0_i32_1 = arith.constant 0 : i32
    %c0_i32_2 = arith.constant 0 : i32
    return %c0_i32, %c0_i32_0, %c0_i32_1 : i32, i32, i32
  }
  func.func @transform_12(%arg0: i32) -> (i32, i32, i32) {
    %c0_i32 = arith.constant 0 : i32
    %c0_i32_0 = arith.constant 0 : i32
    %c0_i32_1 = arith.constant 0 : i32
    %c0_i32_2 = arith.constant 0 : i32
    return %c0_i32, %c0_i32_0, %c0_i32_1 : i32, i32, i32
  }
  func.func @transform_13(%arg0: i32) -> (i32, i32) {
    %c0_i32 = arith.constant 0 : i32
    %c0_i32_0 = arith.constant 0 : i32
    %c0_i32_1 = arith.constant 0 : i32
    return %c0_i32, %c0_i32_0 : i32, i32
  }
  func.func @transform_14(%arg0: i32) -> (i32, i32) {
    %c0_i32 = arith.constant 0 : i32
    %c0_i32_0 = arith.constant 0 : i32
    %c0_i32_1 = arith.constant 0 : i32
    return %c0_i32, %c0_i32_0 : i32, i32
  }
  func.func @transform_15(%arg0: i32) -> (i32, i32) {
    %c0_i32 = arith.constant 0 : i32
    %c0_i32_0 = arith.constant 0 : i32
    %c0_i32_1 = arith.constant 0 : i32
    return %c0_i32, %c0_i32_0 : i32, i32
  }
  func.func @transform_16(%arg0: i32) -> (i32, i32) {
    %c0_i32 = arith.constant 0 : i32
    %c0_i32_0 = arith.constant 0 : i32
    %c0_i32_1 = arith.constant 0 : i32
    return %c0_i32, %c0_i32_0 : i32, i32
  }
  func.func @transform_17(%arg0: i32) -> (i32, i32) {
    %c0_i32 = arith.constant 0 : i32
    %c0_i32_0 = arith.constant 0 : i32
    %c0_i32_1 = arith.constant 0 : i32
    return %c0_i32, %c0_i32_0 : i32, i32
  }
  func.func @transform_18(%arg0: i32) -> (i32, i32) {
    %c0_i32 = arith.constant 0 : i32
    %c0_i32_0 = arith.constant 0 : i32
    %c0_i32_1 = arith.constant 0 : i32
    return %c0_i32, %c0_i32_0 : i32, i32
  }
  func.func @transform_19(%arg0: i32) -> (i32, i32) {
    %c0_i32 = arith.constant 0 : i32
    %c0_i32_0 = arith.constant 0 : i32
    %c0_i32_1 = arith.constant 0 : i32
    return %c0_i32, %c0_i32_0 : i32, i32
  }
  func.func @transform_20(%arg0: i32) -> (i32, i32) {
    %c0_i32 = arith.constant 0 : i32
    %c0_i32_0 = arith.constant 0 : i32
    %c0_i32_1 = arith.constant 0 : i32
    return %c0_i32, %c0_i32_0 : i32, i32
  }
  func.func @transform_21(%arg0: i32) -> (i32, i32) {
    %c0_i32 = arith.constant 0 : i32
    %c0_i32_0 = arith.constant 0 : i32
    %c0_i32_1 = arith.constant 0 : i32
    return %c0_i32, %c0_i32_0 : i32, i32
  }
  func.func @transform_22(%arg0: i32) -> (i32, i32) {
    %c0_i32 = arith.constant 0 : i32
    %c0_i32_0 = arith.constant 0 : i32
    %c0_i32_1 = arith.constant 0 : i32
    return %c0_i32, %c0_i32_0 : i32, i32
  }
  func.func @transform_23(%arg0: i32) -> (i32, i32, i32) {
    %c0_i32 = arith.constant 0 : i32
    %c0_i32_0 = arith.constant 0 : i32
    %c0_i32_1 = arith.constant 0 : i32
    return %arg0, %c0_i32, %c0_i32_0 : i32, i32, i32
  }
}

</mosaic_0001>

<llo_original>
// kernel: early_transformer_forward.8
$region0: #{early_transformer_forward.8}
  #allocation0 [shape = 'u32[]', space=smem, size = 0x4, offset = 0x4, fixed_abs, tag = 'smem constant byte address 0x4 - core index']
  #allocation1 [shape = 'u32[72,128]{1,0:T(1,128)}', space=vmem, size = 0x9000, scoped, tag = 'internal scratch']
  %s0 = inlined_call_operand.vmem [shape: f32[34,24], index: 0, kind: input, shape index: {}]
  %s1 = inlined_call_operand.vmem [shape: bf16[24,32], index: 1, kind: input, shape index: {}]
  %s2 = inlined_call_operand.vmem [shape: f32[1,32], index: 2, kind: input, shape index: {}]
  %s3 = inlined_call_operand.vmem [shape: bf16[34,32], index: 3, kind: output, shape index: {}]
  %s4 = sld [smem:[#allocation0]]
  $region22: #{early_transformer_forward.8} parent=0
    _
  %s6 = ssub.s32 1, %s4
  %s7 = scalar_select 0, %s6, %s4
  // Predicated region
  $region2: #{early_transformer_forward.8} parent=0 // pred_check
    _
  $region3: #{early_transformer_forward.8} parent=0 // pred_check_branch
    %9 = sbr.rel (0) target = $region5
  $region4: #{early_transformer_forward.8} parent=0 // pred_region
    _
  $region5: #{early_transformer_forward.8} parent=0 // pred_fallthru
    _
  // Predicated region
  $region6: #{early_transformer_forward.8} parent=0 // pred_check
    _
  $region7: #{early_transformer_forward.8} parent=0 // pred_check_branch
    %11 = sbr.rel (0) target = $region9
  $region8: #{early_transformer_forward.8} parent=0 // pred_region
    _
  $region9: #{early_transformer_forward.8} parent=0 // pred_fallthru
    _
  // Predicated region
  $region10: #{early_transformer_forward.8} parent=0 // pred_check
    _
  $region11: #{early_transformer_forward.8} parent=0 // pred_check_branch
    %13 = sbr.rel (0) target = $region13
  $region12: #{early_transformer_forward.8} parent=0 // pred_region
    _
  $region13: #{early_transformer_forward.8} parent=0 // pred_fallthru
    _
  %v15 = vld [vmem:[%s0] sm:$0xff]
  %v16 = vld [vmem:[%s0 + $0x8] sm:$0xff]
  %v17 = vld [vmem:[%s0 + $0x10] sm:$0xff]
  %v18 = vld [vmem:[%s0 + $0x18] sm:$0xff]
  %v19 = vld [vmem:[%s0 + $0x20] sm:$0x3]
  %v20 = vld [vmem:[%s1] sm:$0xf]
  %v21 = vld [vmem:[%s1 + $0x4] sm:$0xf]
  %v22 = vld [vmem:[%s1 + $0x8] sm:$0xf]
  %v23 = vld [vmem:[%s2] sm:$0x1]
  %v24 = vpack.c.bf16 %v16, %v15
  %v25 = vpack.c.bf16 %v18, %v17
  %v26 = vpack.c.bf16 %v19, %v19
  %v28 = vperm.slane %v23, 0
  %v33 = vunpack.c.l.b16 %v20
  %v34 = vunpack.c.l.b16 %v21
  %v35 = vunpack.c.l.b16 %v22
  %v36 = vpack.c.b16 %v34, %v33
  %v37 = vpack.c.b16 %v35, %v35
  %vm39 = vcmask 195584
  %v41 = vsel %vm39, %v24, 0
  %v44 = vsel %vm39, %v25, 0
  %v47 = vsel %vm39, %v26, 0
  %vm49 = vcmask 1043456
  %v51 = vsel %vm49, %v37, 0
  %53 = vmatpush.bf16.msra.mxu0 0
  %54 = vmatpush.bf16.msra.mxu0 0
  %55 = vmatpush.bf16.msra.mxu0 0
  %56 = vmatpush.bf16.msra.mxu0 0
  %57 = vmatpush.bf16.msra.mxu0 0
  %58 = vmatpush.bf16.msra.mxu0 0
  %59 = vmatpush.bf16.msra.mxu0 %v51
  %60 = vmatpush.bf16.msra.mxu0 %v36
  %61 = vmatmul.bf16.gmra.mxu0 %v41
  %v62 = vpop.f32.mrf.mxu0
  %v63 = vadd.f32 %v28, %v62
  %v64 = vpop.f32.mrf.mxu0
  %v65 = vadd.f32 %v28, %v64
  %66 = vmatmul.bf16.gmra.mxu0 %v44
  %v67 = vpop.f32.mrf.mxu0
  %v68 = vadd.f32 %v28, %v67
  %v69 = vpop.f32.mrf.mxu0
  %v70 = vadd.f32 %v28, %v69
  %71 = vmatmul.bf16.gmra.mxu0 %v47
  %v72 = vpop.f32.mrf.mxu0
  %v73 = vadd.f32 %v28, %v72
  %v74 = vpop.f32.mrf.mxu0
  %75 = vdwg.mxu0
  %v76 = vpack.c.bf16 %v63, %v63
  %v77 = vpack.c.bf16 %v65, %v65
  %v78 = vpack.c.bf16 %v68, %v68
  %v79 = vpack.c.bf16 %v70, %v70
  %v80 = vpack.c.bf16 %v73, %v73
  %vm81 = vcmask 257024
  %82 = vst.msk [vmem:[%s3] sm:$0xf] %vm81, %v76
  %83 = vst.msk [vmem:[%s3 + $0x4] sm:$0xf] %vm81, %v77
  %84 = vst.msk [vmem:[%s3 + $0x8] sm:$0xf] %vm81, %v78
  %85 = vst.msk [vmem:[%s3 + $0xc] sm:$0xf] %vm81, %v79
  %vm86 = vcmask 253952
  %87 = vst.msk [vmem:[%s3 + $0x10] sm:$0x1] %vm86, %v80
  // Predicated region
  $region14: #{early_transformer_forward.8} parent=0 // pred_check
    _
  $region15: #{early_transformer_forward.8} parent=0 // pred_check_branch
    %89 = sbr.rel (0) target = $region17
  $region16: #{early_transformer_forward.8} parent=0 // pred_region
    _
  $region17: #{early_transformer_forward.8} parent=0 // pred_fallthru
    _
  // Predicated region
  $region18: #{early_transformer_forward.8} parent=0 // pred_check
    _
  $region19: #{early_transformer_forward.8} parent=0 // pred_check_branch
    %91 = sbr.rel (0) target = $region21
  $region20: #{early_transformer_forward.8} parent=0 // pred_region
    _
  $region21: #{early_transformer_forward.8} parent=0 // pred_fallthru
    _

// kernel: early_transformer_forward.9
$region0: #{early_transformer_forward.9}
  #allocation0 [shape = 'u32[]', space=smem, size = 0x4, offset = 0x4, fixed_abs, tag = 'smem constant byte address 0x4 - core index']
  #allocation1 [shape = 'u32[72,128]{1,0:T(1,128)}', space=vmem, size = 0x9000, scoped, tag = 'internal scratch']
  %s0 = inlined_call_operand.vmem [shape: bf16[16,96], index: 0, kind: input, shape index: {}]
  %s1 = inlined_call_operand.vmem [shape: bf16[96,32], index: 1, kind: input, shape index: {}]
  %s2 = inlined_call_operand.vmem [shape: f32[1,32], index: 2, kind: input, shape index: {}]
  %s3 = inlined_call_operand.vmem [shape: f32[8,32], index: 3, kind: input, shape index: {}]
  %s4 = inlined_call_operand.vmem [shape: bf16[2,8,32], index: 4, kind: output, shape index: {}]
  %s5 = sld [smem:[#allocation0]]
  $region26: #{early_transformer_forward.9} parent=0
    _
  %s7 = ssub.s32 1, %s5
  %s8 = scalar_select 0, %s7, %s5
  // Predicated region
  $region2: #{early_transformer_forward.9} parent=0 // pred_check
    _
  $region3: #{early_transformer_forward.9} parent=0 // pred_check_branch
    %10 = sbr.rel (0) target = $region5
  $region4: #{early_transformer_forward.9} parent=0 // pred_region
    _
  $region5: #{early_transformer_forward.9} parent=0 // pred_fallthru
    _
  // Predicated region
  $region6: #{early_transformer_forward.9} parent=0 // pred_check
    _
  $region7: #{early_transformer_forward.9} parent=0 // pred_check_branch
    %12 = sbr.rel (0) target = $region9
  $region8: #{early_transformer_forward.9} parent=0 // pred_region
    _
  $region9: #{early_transformer_forward.9} parent=0 // pred_fallthru
    _
  // Predicated region
  $region10: #{early_transformer_forward.9} parent=0 // pred_check
    _
  $region11: #{early_transformer_forward.9} parent=0 // pred_check_branch
    %14 = sbr.rel (0) target = $region13
  $region12: #{early_transformer_forward.9} parent=0 // pred_region
    _
  $region13: #{early_transformer_forward.9} parent=0 // pred_fallthru
    _
  // Predicated region
  $region14: #{early_transformer_forward.9} parent=0 // pred_check
    _
  $region15: #{early_transformer_forward.9} parent=0 // pred_check_branch
    %16 = sbr.rel (0) target = $region17
  $region16: #{early_transformer_forward.9} parent=0 // pred_region
    _
  $region17: #{early_transformer_forward.9} parent=0 // pred_fallthru
    _
  %v18 = vld [vmem:[%s0] sm:$0xf]
  %v19 = vld [vmem:[%s0 + $0x4] sm:$0xf]
  %v20 = vld [vmem:[%s1] sm:$0xf]
  %v21 = vld [vmem:[%s1 + $0x4] sm:$0xf]
  %v22 = vld [vmem:[%s1 + $0x8] sm:$0xf]
  %v23 = vld [vmem:[%s1 + $0xc] sm:$0xf]
  %v24 = vld [vmem:[%s1 + $0x10] sm:$0xf]
  %v25 = vld [vmem:[%s1 + $0x14] sm:$0xf]
  %v26 = vld [vmem:[%s1 + $0x18] sm:$0xf]
  %v27 = vld [vmem:[%s1 + $0x1c] sm:$0xf]
  %v28 = vld [vmem:[%s1 + $0x20] sm:$0xf]
  %v29 = vld [vmem:[%s1 + $0x24] sm:$0xf]
  %v30 = vld [vmem:[%s1 + $0x28] sm:$0xf]
  %v31 = vld [vmem:[%s1 + $0x2c] sm:$0xf]
  %v32 = vld [vmem:[%s2] sm:$0x1]
  %v34 = vperm.slane %v32, 0
  %v38 = vunpack.c.l.b16 %v18
  %v39 = vunpack.c.l.b16 %v19
  %v40 = vpack.c.b16 %v39, %v38
  %v53 = vunpack.c.l.b16 %v20
  %v54 = vunpack.c.l.b16 %v21
  %v55 = vunpack.c.l.b16 %v22
  %v56 = vunpack.c.l.b16 %v23
  %v57 = vunpack.c.l.b16 %v24
  %v58 = vunpack.c.l.b16 %v25
  %v59 = vunpack.c.l.b16 %v26
  %v60 = vunpack.c.l.b16 %v27
  %v61 = vunpack.c.l.b16 %v28
  %v62 = vunpack.c.l.b16 %v29
  %v63 = vunpack.c.l.b16 %v30
  %v64 = vunpack.c.l.b16 %v31
  %v65 = vpack.c.b16 %v54, %v53
  %v66 = vpack.c.b16 %v56, %v55
  %v67 = vpack.c.b16 %v58, %v57
  %v68 = vpack.c.b16 %v60, %v59
  %v69 = vpack.c.b16 %v62, %v61
  %v70 = vpack.c.b16 %v64, %v63
  %vm77 = vcmask 785408
  %v79 = vsel %vm77, %v40, 0
  %81 = vmatpush.bf16.msra.mxu0 0
  %82 = vmatpush.bf16.msra.mxu0 0
  %83 = vmatpush.bf16.msra.mxu0 %v70
  %84 = vmatpush.bf16.msra.mxu0 %v69
  %85 = vmatpush.bf16.msra.mxu0 %v68
  %86 = vmatpush.bf16.msra.mxu0 %v67
  %87 = vmatpush.bf16.msra.mxu0 %v66
  %88 = vmatpush.bf16.msra.mxu0 %v65
  %89 = vmatmul.bf16.gmra.mxu0 %v79
  %v90 = vpop.f32.mrf.mxu0
  %v91 = vadd.f32 %v34, %v90
  %v92 = vpop.f32.mrf.mxu0
  %v93 = vadd.f32 %v34, %v92
  %94 = vdwg.mxu0
  %v95 = vld [vmem:[%s3] sm:$0xff]
  %v96 = vadd.f32 %v91, %v95
  %v97 = vadd.f32 %v93, %v95
  %v98 = vpack.c.bf16 %v96, %v96
  %v99 = vpack.c.bf16 %v97, %v97
  %vm100 = vcmask 257024
  %101 = vst.msk [vmem:[%s4] sm:$0xf] %vm100, %v98
  %102 = vst.msk [vmem:[%s4 + $0x4] sm:$0xf] %vm100, %v99
  // Predicated region
  $region18: #{early_transformer_forward.9} parent=0 // pred_check
    _
  $region19: #{early_transformer_forward.9} parent=0 // pred_check_branch
    %104 = sbr.rel (0) target = $region21
  $region20: #{early_transformer_forward.9} parent=0 // pred_region
    _
  $region21: #{early_transformer_forward.9} parent=0 // pred_fallthru
    _
  // Predicated region
  $region22: #{early_transformer_forward.9} parent=0 // pred_check
    _
  $region23: #{early_transformer_forward.9} parent=0 // pred_check_branch
    %106 = sbr.rel (0) target = $region25
  $region24: #{early_transformer_forward.9} parent=0 // pred_region
    _
  $region25: #{early_transformer_forward.9} parent=0 // pred_fallthru
    _

// kernel: early_transformer_forward.14
$region0: #{early_transformer_forward.14}
  #allocation0 [shape = 'u32[]', space=smem, size = 0x4, offset = 0x4, fixed_abs, tag = 'smem constant byte address 0x4 - core index']
  #allocation1 [shape = 'u32[72,128]{1,0:T(1,128)}', space=vmem, size = 0x9000, scoped, tag = 'internal scratch']
  %s0 = inlined_call_operand.vmem [shape: bf16[2,2,8,32], index: 0, kind: input, shape index: {}]
  %s1 = inlined_call_operand.vmem [shape: f32[1,32], index: 1, kind: input, shape index: {}]
  %s2 = inlined_call_operand.vmem [shape: f32[1,32], index: 2, kind: input, shape index: {}]
  %s3 = inlined_call_operand.vmem [shape: bf16[2,32,128], index: 3, kind: input, shape index: {}]
  %s4 = inlined_call_operand.vmem [shape: f32[2,1,128], index: 4, kind: input, shape index: {}]
  %s5 = inlined_call_operand.hbm [shape: f32[2,2,8,128], index: 5, kind: output, shape index: {}]
  %s6 = sld [smem:[#allocation0]]
  $region53: #{early_transformer_forward.14} parent=0
    _
  %s8 = ssub.s32 1, %s6
  %s9 = scalar_select 0, %s8, %s6
  $region1: #{early_transformer_forward.14} parent=0
    #allocation2 [shape = 'u8[8192]{0}', space=vmem, size = 0x2000, scoped, tag = 'output window, operand 0']
    #allocation3 [shape = 's32[2]{0}', space=sflag, size = 0x8, scoped, tag = 'scoped memory for early_transformer_forward.14']
    %10 = vsyncpa [#allocation3], 0
    %s11 = scalar_lea.sflag [#allocation3], 1
    %12 = vsyncpa %s11, 0
    loop: start=0, step=1, limit=6
    $region2: #{early_transformer_forward.14} parent=1 // loop_pre_header
      _
    $region3: #{early_transformer_forward.14} parent=1 // loop_header
      %s14 = sphi 0, %s18
      %p15 = scmp.ge.s32.totalorder %s14, 6
      %s21 = sphi 0, %s33
      %s22 = sphi 0, %s29
      %s23 = sphi 0, %s21
      %s24 = sphi 0, %s22
      %s25 = sphi 0, %s23
      %s26 = sphi 0, %s24
      %s38 = sphi 0, %s40
      %s41 = sphi 0, %s38
      %s42 = sphi 0, %s41
      %s58 = sphi 0, %s42
      %s62 = sphi 0, %s62
      %s64 = sphi 0, %s62
      %s65 = sphi 0, %s64
      %s79 = sphi 0, %s65
      %s83 = sphi 0, %s83
      %s85 = sphi 0, %s83
      %s86 = sphi 0, %s85
      %s100 = sphi 0, %s86
      %s106 = sphi 0, %s108
      %s109 = sphi 0, %s106
      %s110 = sphi 0, %s109
      %s126 = sphi 0, %s110
      %s132 = sphi 0, %s134
      %s135 = sphi 0, %s132
      %s136 = sphi 0, %s135
      %s152 = sphi 0, %s136
      %s160 = sphi 0, %s162
      %s163 = sphi 0, %s160
      %s164 = sphi 0, %s163
      %s180 = sphi 0, %s164
    $region4: #{early_transformer_forward.14} parent=1 // loop_header_branch
      %17 = sbr.rel (%p15) target = $region8
    $region5: #{early_transformer_forward.14} parent=1 // loop_body
      %s19 = ssub.s32 %s14, 1
      %s20 = ssub.s32 %s14, 2
      %s27 = sadd.s32 1, %s22
      %p28 = scmp.ge.s32.totalorder %s27, 2
      %s29 = scalar_select %p28, 0, %s27
      %s30 = sadd.s32 1, %s21
      %s31 = scalar_select %p28, %s30, %s21
      %p32 = scmp.ge.s32.totalorder %s31, 2
      %s33 = scalar_select %p32, 0, %s31
      %s34 = ssub.s32 %s21, %s33
      %s35 = ssub.s32 %s22, %s29
      %s36 = sor.u32 %s34, %s35
      %p37 = scmp.eq.s32.totalorder %s36, 0
      %s39 = sadd.s32 %s38, 1
      %s40 = scalar_select %p37, %s38, %s39
      %p43 = pneg %p37
      %p44 = scmp.eq.s32.totalorder %s14, 3
      %p45 = por %p43, %p44
      %p46 = scmp.ne.s32.totalorder %s38, %s41
      %p47 = scmp.eq.s32.totalorder %s14, 0
      %p48 = por %p46, %p47
      %p49 = scmp.ne.s32.totalorder %s38, %s41
      %p50 = scmp.eq.s32.totalorder %s19, 3
      %p51 = por %p49, %p50
      %p52 = scmp.ne.s32.totalorder %s41, %s42
      %p53 = scmp.eq.s32.totalorder %s19, 0
      %p54 = por %p52, %p53
      %p55 = scmp.ne.s32.totalorder %s41, %s42
      %p56 = scmp.eq.s32.totalorder %s20, 3
      %p57 = por %p55, %p56
      %p59 = scmp.ne.s32.totalorder %s42, %s58
      %p60 = scmp.eq.s32.totalorder %s20, 0
      %p61 = por %p59, %p60
      %s63 = sadd.s32 %s62, 1
      %p66 = scmp.eq.s32.totalorder %s14, 3
      %p67 = scmp.ne.s32.totalorder %s62, %s64
      %p68 = scmp.eq.s32.totalorder %s14, 0
      %p69 = por %p67, %p68
      %p70 = scmp.ne.s32.totalorder %s62, %s64
      %p71 = scmp.eq.s32.totalorder %s19, 3
      %p72 = por %p70, %p71
      %p73 = scmp.ne.s32.totalorder %s64, %s65
      %p74 = scmp.eq.s32.totalorder %s19, 0
      %p75 = por %p73, %p74
      %p76 = scmp.ne.s32.totalorder %s64, %s65
      %p77 = scmp.eq.s32.totalorder %s20, 3
      %p78 = por %p76, %p77
      %p80 = scmp.ne.s32.totalorder %s65, %s79
      %p81 = scmp.eq.s32.totalorder %s20, 0
      %p82 = por %p80, %p81
      %s84 = sadd.s32 %s83, 1
      %p87 = scmp.eq.s32.totalorder %s14, 3
      %p88 = scmp.ne.s32.totalorder %s83, %s85
      %p89 = scmp.eq.s32.totalorder %s14, 0
      %p90 = por %p88, %p89
      %p91 = scmp.ne.s32.totalorder %s83, %s85
      %p92 = scmp.eq.s32.totalorder %s19, 3
      %p93 = por %p91, %p92
      %p94 = scmp.ne.s32.totalorder %s85, %s86
      %p95 = scmp.eq.s32.totalorder %s19, 0
      %p96 = por %p94, %p95
      %p97 = scmp.ne.s32.totalorder %s85, %s86
      %p98 = scmp.eq.s32.totalorder %s20, 3
      %p99 = por %p97, %p98
      %p101 = scmp.ne.s32.totalorder %s86, %s100
      %p102 = scmp.eq.s32.totalorder %s20, 0
      %p103 = por %p101, %p102
      %s104 = ssub.s32 %s21, %s33
      %p105 = scmp.eq.s32.totalorder %s104, 0
      %s107 = sadd.s32 %s106, 1
      %s108 = scalar_select %p105, %s106, %s107
      %p111 = pneg %p105
      %p112 = scmp.eq.s32.totalorder %s14, 3
      %p113 = por %p111, %p112
      %p114 = scmp.ne.s32.totalorder %s106, %s109
      %p115 = scmp.eq.s32.totalorder %s14, 0
      %p116 = por %p114, %p115
      %p117 = scmp.ne.s32.totalorder %s106, %s109
      %p118 = scmp.eq.s32.totalorder %s19, 3
      %p119 = por %p117, %p118
      %p120 = scmp.ne.s32.totalorder %s109, %s110
      %p121 = scmp.eq.s32.totalorder %s19, 0
      %p122 = por %p120, %p121
      %p123 = scmp.ne.s32.totalorder %s109, %s110
      %p124 = scmp.eq.s32.totalorder %s20, 3
      %p125 = por %p123, %p124
      %p127 = scmp.ne.s32.totalorder %s110, %s126
      %p128 = scmp.eq.s32.totalorder %s20, 0
      %p129 = por %p127, %p128
      %s130 = ssub.s32 %s21, %s33
      %p131 = scmp.eq.s32.totalorder %s130, 0
      %s133 = sadd.s32 %s132, 1
      %s134 = scalar_select %p131, %s132, %s133
      %p137 = pneg %p131
      %p138 = scmp.eq.s32.totalorder %s14, 3
      %p139 = por %p137, %p138
      %p140 = scmp.ne.s32.totalorder %s132, %s135
      %p141 = scmp.eq.s32.totalorder %s14, 0
      %p142 = por %p140, %p141
      %p143 = scmp.ne.s32.totalorder %s132, %s135
      %p144 = scmp.eq.s32.totalorder %s19, 3
      %p145 = por %p143, %p144
      %p146 = scmp.ne.s32.totalorder %s135, %s136
      %p147 = scmp.eq.s32.totalorder %s19, 0
      %p148 = por %p146, %p147
      %p149 = scmp.ne.s32.totalorder %s135, %s136
      %p150 = scmp.eq.s32.totalorder %s20, 3
      %p151 = por %p149, %p150
      %p153 = scmp.ne.s32.totalorder %s136, %s152
      %p154 = scmp.eq.s32.totalorder %s20, 0
      %p155 = por %p153, %p154
      %s156 = ssub.s32 %s21, %s33
      %s157 = ssub.s32 %s22, %s29
      %s158 = sor.u32 %s156, %s157
      %p159 = scmp.eq.s32.totalorder %s158, 0
      %s161 = sadd.s32 %s160, 1
      %s162 = scalar_select %p159, %s160, %s161
      %p165 = pneg %p159
      %p166 = scmp.eq.s32.totalorder %s14, 3
      %p167 = por %p165, %p166
      %p168 = scmp.ne.s32.totalorder %s160, %s163
      %p169 = scmp.eq.s32.totalorder %s14, 0
      %p170 = por %p168, %p169
      %p171 = scmp.ne.s32.totalorder %s160, %s163
      %p172 = scmp.eq.s32.totalorder %s19, 3
      %p173 = por %p171, %p172
      %p174 = scmp.ne.s32.totalorder %s163, %s164
      %p175 = scmp.eq.s32.totalorder %s19, 0
      %p176 = por %p174, %p175
      %p177 = scmp.ne.s32.totalorder %s163, %s164
      %p178 = scmp.eq.s32.totalorder %s20, 3
      %p179 = por %p177, %p178
      %p181 = scmp.ne.s32.totalorder %s164, %s180
      %p182 = scmp.eq.s32.totalorder %s20, 0
      %p183 = por %p181, %p182
      %p184 = scmp.le.s32.totalorder 1, %s14
      %p185 = scmp.lt.s32.totalorder %s14, 5
      %p186 = pnand %p184, %p185
      %p187 = pneg %p186
      // Predicated region
      $region9: #{early_transformer_forward.14} parent=5 // pred_check
        _
      $region10: #{early_transformer_forward.14} parent=5 // pred_check_branch
        %189 = sbr.rel (%p186) target = $region12
      $region11: #{early_transformer_forward.14} parent=5 // pred_region
        %s190 = ssub.s32 %s14, 1
        // Predicated region
        $region13: #{early_transformer_forward.14} parent=11 // pred_check
          %p191 = pneg %p75
        $region14: #{early_transformer_forward.14} parent=11 // pred_check_branch
          %193 = sbr.rel (%p191) target = $region16
        $region15: #{early_transformer_forward.14} parent=11 // pred_region
          _
        $region16: #{early_transformer_forward.14} parent=11 // pred_fallthru
          _
        // Predicated region
        $region17: #{early_transformer_forward.14} parent=11 // pred_check
          %p194 = pneg %p96
        $region18: #{early_transformer_forward.14} parent=11 // pred_check_branch
          %196 = sbr.rel (%p194) target = $region20
        $region19: #{early_transformer_forward.14} parent=11 // pred_region
          _
        $region20: #{early_transformer_forward.14} parent=11 // pred_fallthru
          _
      $region12: #{early_transformer_forward.14} parent=5 // pred_fallthru
        _
      %p197 = scmp.lt.s32.totalorder %s14, 4
      // Predicated region
      $region21: #{early_transformer_forward.14} parent=5 // pred_check
        %p198 = pneg %p197
      $region22: #{early_transformer_forward.14} parent=5 // pred_check_branch
        %200 = sbr.rel (%p198) target = $region24
      $region23: #{early_transformer_forward.14} parent=5 // pred_region
        // Predicated region
        $region25: #{early_transformer_forward.14} parent=23 // pred_check
          %p201 = pneg %p48
        $region26: #{early_transformer_forward.14} parent=23 // pred_check_branch
          %203 = sbr.rel (%p201) target = $region28
        $region27: #{early_transformer_forward.14} parent=23 // pred_region
          %p204 = scmp.lt.s32.totalorder %s21, 1
          %s205 = scalar_select %p204, %s21, 1
          %p206 = scmp.lt.s32.totalorder %s22, 1
          %s207 = scalar_select %p206, %s22, 1
          %s208 = smul.addr %s205, 2
          %s209 = sadd.s32 %s207, %s208
          %s210 = smul.addr %s209, 4
          %s211 = scalar_lea.vmem %s0, %s210
        $region28: #{early_transformer_forward.14} parent=23 // pred_fallthru
          _
        // Predicated region
        $region29: #{early_transformer_forward.14} parent=23 // pred_check
          %p212 = pneg %p116
        $region30: #{early_transformer_forward.14} parent=23 // pred_check_branch
          %214 = sbr.rel (%p212) target = $region32
        $region31: #{early_transformer_forward.14} parent=23 // pred_region
          %p215 = scmp.lt.s32.totalorder %s21, 1
          %s216 = scalar_select %p215, %s21, 1
          %s217 = smul.addr %s216, 4
          %s218 = smul.addr %s217, 4
          %s219 = scalar_lea.vmem %s3, %s218
        $region32: #{early_transformer_forward.14} parent=23 // pred_fallthru
          _
        // Predicated region
        $region33: #{early_transformer_forward.14} parent=23 // pred_check
          %p220 = pneg %p142
        $region34: #{early_transformer_forward.14} parent=23 // pred_check_branch
          %222 = sbr.rel (%p220) target = $region36
        $region35: #{early_transformer_forward.14} parent=23 // pred_region
          %p223 = scmp.lt.s32.totalorder %s21, 1
          %s224 = scalar_select %p223, %s21, 1
          %s225 = scalar_lea.vmem %s4, %s224
        $region36: #{early_transformer_forward.14} parent=23 // pred_fallthru
          _
      $region24: #{early_transformer_forward.14} parent=5 // pred_fallthru
        _
      %p226 = scmp.le.s32.totalorder 1, %s14
      %p227 = scmp.lt.s32.totalorder %s14, 5
      %p228 = pnand %p226, %p227
      %p229 = pneg %p228
      // Predicated region
      $region37: #{early_transformer_forward.14} parent=5 // pred_check
        _
      $region38: #{early_transformer_forward.14} parent=5 // pred_check_branch
        %231 = sbr.rel (%p228) target = $region40
      $region39: #{early_transformer_forward.14} parent=5 // pred_region
        %s232 = ssub.s32 %s14, 1
        %p233 = scmp.lt.s32.totalorder %s23, 1
        %s234 = scalar_select %p233, %s23, 1
        %p235 = scmp.lt.s32.totalorder %s24, 1
        %s236 = scalar_select %p235, %s24, 1
        %s237 = smul.addr %s234, 2
        %s238 = sadd.s32 %s236, %s237
        %s239 = smul.addr %s238, 4
        %s240 = scalar_lea.vmem %s0, %s239
        %p241 = pneg %p54
        %p242 = pneg %p51
        %p243 = pneg %p75
        %p244 = pneg %p72
        %p245 = pneg %p96
        %p246 = pneg %p93
        %p247 = scmp.lt.s32.totalorder %s23, 1
        %s248 = scalar_select %p247, %s23, 1
        %s249 = smul.addr %s248, 4
        %s250 = smul.addr %s249, 4
        %s251 = scalar_lea.vmem %s3, %s250
        %p252 = pneg %p122
        %p253 = pneg %p119
        %p254 = scmp.lt.s32.totalorder %s23, 1
        %s255 = scalar_select %p254, %s23, 1
        %s256 = scalar_lea.vmem %s4, %s255
        %p257 = pneg %p148
        %p258 = pneg %p145
        %p259 = pneg %p176
        %p260 = pneg %p173
        %s261 = sand.u32 %s163, 1
        %s262 = scalar_lea.sflag [#allocation3], %s261
        %s263 = sand.u32 %s163, 1
        %s264 = smul.addr %s263, 8
        %s265 = scalar_lea.vmem [#allocation2], %s264
        %p266 = scmp.lt.s32.totalorder %s23, 1
        %s267 = scalar_select %p266, %s23, 1
        %p268 = scmp.lt.s32.totalorder %s24, 1
        %s269 = scalar_select %p268, %s24, 1
        %s270 = smul.addr %s267, 2
        %s271 = sadd.s32 %s269, %s270
        %s272 = smul.addr %s271, 4
        %s273 = scalar_lea.vmem %s0, %s272
        %p274 = scmp.lt.s32.totalorder %s23, 1
        %s275 = scalar_select %p274, %s23, 1
        %s276 = smul.addr %s275, 4
        %s277 = smul.addr %s276, 4
        %s278 = scalar_lea.vmem %s3, %s277
        %p279 = scmp.lt.s32.totalorder %s23, 1
        %s280 = scalar_select %p279, %s23, 1
        %s281 = scalar_lea.vmem %s4, %s280
        %v283 = vld [vmem:[%s273] sm:$0xf]
        %v284 = vunpack.c.l.bf16 %v283
        %v285 = vld [vmem:[%s1] sm:$0x1]
        %v286 = vld [vmem:[%s2] sm:$0x1]
        %vm287 = vcmask 261120
        %v288 = vsel %vm287, %v284, 0.0
        %289 = vadd.xlane.f32.xlu0 %v288
        %v290 = vpop.xlane.xlu0 %289
        %v291 = vrcp.pop 32.0
        %v292 = vmul.f32 32.0, %v291
        %v293 = vsub.f32 1.0, %v292
        %v294 = vmul.f32 %v291, %v293
        %v295 = vadd.f32 %v291, %v294
        %vm296 = vweird.f32 %v291
        %v297 = vsel %vm296, %v291, %v295
        %v298 = vmul.f32 %v290, %v297
        %v299 = vsub.f32 %v284, %v298
        %v300 = vmul.f32 %v299, %v299
        %v301 = vsel %vm287, %v300, 0.0
        %302 = vadd.xlane.f32.xlu0 %v301
        %v303 = vpop.xlane.xlu0 %302
        %v304 = vmul.f32 %v303, %v297
        %v305 = vadd.f32 %v304, 1e-05
        %v306 = vrsqrt.pop %v305
        %v307 = vmul.f32 %v306, %v305
        %v308 = vmul.f32 %v307, %v306
        %v309 = vmul.f32 0.5, %v308
        %v310 = vsub.f32 1.5, %v309
        %v311 = vmul.f32 %v306, %v310
        %vm312 = vweird.f32 %v305
        %vm313 = vweird.f32 %v306
        %vm314 = vmor %vm312, %vm313
        %v315 = vsel %vm314, %v306, %v311
        %v316 = vmul.f32 %v299, %v315
        %v318 = vperm.slane %v285, 0
        %v320 = vmul.f32 %v316, %v318
        %v322 = vperm.slane %v286, 0
        %v324 = vadd.f32 %v320, %v322
        %v325 = vpack.c.bf16 %v324, %v324
        %v326 = vld [vmem:[%s278] sm:$0xf]
        %v327 = vld [vmem:[%s278 + $0x4] sm:$0xf]
        %v328 = vld [vmem:[%s278 + $0x8] sm:$0xf]
        %v329 = vld [vmem:[%s278 + $0xc] sm:$0xf]
        %v330 = vld [vmem:[%s281] sm:$0x1]
        %v332 = vperm.slane %v330, 0
        %v338 = vunpack.c.l.b16 %v326
        %v339 = vunpack.c.l.b16 %v327
        %v340 = vunpack.c.l.b16 %v328
        %v341 = vunpack.c.l.b16 %v329
        %v342 = vpack.c.b16 %v339, %v338
        %v343 = vpack.c.b16 %v341, %v340
        %v347 = vsel %vm287, %v325, 0
        %349 = vmatpush.bf16.msra.mxu0 0
        %350 = vmatpush.bf16.msra.mxu0 0
        %351 = vmatpush.bf16.msra.mxu0 0
        %352 = vmatpush.bf16.msra.mxu0 0
        %353 = vmatpush.bf16.msra.mxu0 0
        %354 = vmatpush.bf16.msra.mxu0 0
        %355 = vmatpush.bf16.msra.mxu0 %v343
        %356 = vmatpush.bf16.msra.mxu0 %v342
        %357 = vmatmul.bf16.gmra.mxu0 %v347
        %v358 = vpop.f32.mrf.mxu0
        %v359 = vadd.f32 %v332, %v358
        %v360 = vpop.f32.mrf.mxu0
        %361 = vdwg.mxu0
        %v362 = vlaneseq
        %v363 = vand.u32 %v362, 127
        %vm364 = vcmp.lt.s32.totalorder %v363, 40
        %v365 = vsel %vm364, %v359, -1e+09
        %366 = vmax.xlane.f32.xlu0 %v365
        %v367 = vpop.xlane.xlu0 %366
        %v368 = vsub.f32 %v365, %v367
        %v369 = vmul.f32 %v368, 1.442695
        %v370 = vpow.pop %v369
        %371 = vadd.xlane.f32.xlu0 %v370
        %v372 = vpop.xlane.xlu0 %371
        %v373 = vlog2.pop %v372
        %v374 = vmul.f32 %v373, 0.6931472
        %v375 = vadd.f32 %v374, %v367
        %v376 = vsub.f32 %v365, %v375
        %377 = vst [vmem:[%s265] sm:$0xff] %v376
        %s378 = sand.u32 %s163, 1
        %s379 = scalar_lea.sflag [#allocation3], %s378
        %s380 = sand.u32 %s163, 1
        %s381 = smul.addr %s380, 8
        %s382 = scalar_lea.vmem [#allocation2], %s381
        // Predicated region
        $region41: #{early_transformer_forward.14} parent=39 // pred_check
          %p383 = pneg %p173
        $region42: #{early_transformer_forward.14} parent=39 // pred_check_branch
          %385 = sbr.rel (%p383) target = $region44
        $region43: #{early_transformer_forward.14} parent=39 // pred_region
          %387 = vsyncadd %s379, 0
          %s388 = smul.addr %s23, 2
          %s389 = sadd.s32 %s24, %s388
          %s390 = smul.addr %s389, 8
          %s391 = scalar_lea.hbm %s5, %s390
          %s393 = sshll.u32 %s382, 4
          %s394 = int_to_ptr.vmem [resolvable:$true] %s393
          %s395 = sshll.u32 %s391, 4
          %s396 = int_to_ptr.hbm [resolvable:$true] %s395
          %398 = dma.vmem_to_hbm [thread:$0]  %s394, 128, %s396, %s379
        $region44: #{early_transformer_forward.14} parent=39 // pred_fallthru
          _
      $region40: #{early_transformer_forward.14} parent=5 // pred_fallthru
        _
      %p399 = scmp.le.s32.totalorder 2, %s14
      // Predicated region
      $region45: #{early_transformer_forward.14} parent=5 // pred_check
        %p400 = pneg %p399
      $region46: #{early_transformer_forward.14} parent=5 // pred_check_branch
        %402 = sbr.rel (%p400) target = $region48
      $region47: #{early_transformer_forward.14} parent=5 // pred_region
        %s403 = ssub.s32 %s14, 2
        // Predicated region
        $region49: #{early_transformer_forward.14} parent=47 // pred_check
          %p404 = pneg %p179
        $region50: #{early_transformer_forward.14} parent=47 // pred_check_branch
          %406 = sbr.rel (%p404) target = $region52
        $region51: #{early_transformer_forward.14} parent=47 // pred_region
          %s407 = sand.u32 %s164, 1
          %s408 = scalar_lea.sflag [#allocation3], %s407
          %s409 = sand.u32 %s164, 1
          %s410 = smul.addr %s409, 8
          %s411 = scalar_lea.vmem [#allocation2], %s410
          %413 = dma.done %s408, 128
        $region52: #{early_transformer_forward.14} parent=47 // pred_fallthru
          _
      $region48: #{early_transformer_forward.14} parent=5 // pred_fallthru
        _
    $region6: #{early_transformer_forward.14} parent=1 // loop_footer
      %s18 = sadd.s32 1, %s14
    $region7: #{early_transformer_forward.14} parent=1 // loop_footer_branch
      %13 = sbr.rel target = $region3
    $region8: #{early_transformer_forward.14} parent=1 // loop_exit
      _
    %414 = vsyncpa [#allocation3], 1
    %s415 = scalar_lea.sflag [#allocation3], 1
    %416 = vsyncpa %s415, 1

// kernel: early_transformer_forward.15
$region0: #{early_transformer_forward.15}
  #allocation0 [shape = 'u32[]', space=smem, size = 0x4, offset = 0x4, fixed_abs, tag = 'smem constant byte address 0x4 - core index']
  #allocation1 [shape = 'u32[72,128]{1,0:T(1,128)}', space=vmem, size = 0x9000, scoped, tag = 'internal scratch']
  %s0 = inlined_call_operand.vmem [shape: bf16[2,2,8,32], index: 0, kind: input, shape index: {}]
  %s1 = inlined_call_operand.vmem [shape: bf16[2,32,128], index: 1, kind: input, shape index: {}]
  %s2 = inlined_call_operand.vmem [shape: f32[2,1,128], index: 2, kind: input, shape index: {}]
  %s3 = inlined_call_operand.hbm [shape: f32[2,2,8,128], index: 3, kind: output, shape index: {}]
  %s4 = sld [smem:[#allocation0]]
  $region45: #{early_transformer_forward.15} parent=0
    _
  %s6 = ssub.s32 1, %s4
  %s7 = scalar_select 0, %s6, %s4
  $region1: #{early_transformer_forward.15} parent=0
    #allocation2 [shape = 'u8[8192]{0}', space=vmem, size = 0x2000, scoped, tag = 'output window, operand 0']
    #allocation3 [shape = 's32[2]{0}', space=sflag, size = 0x8, scoped, tag = 'scoped memory for early_transformer_forward.15']
    %8 = vsyncpa [#allocation3], 0
    %s9 = scalar_lea.sflag [#allocation3], 1
    %10 = vsyncpa %s9, 0
    loop: start=0, step=1, limit=6
    $region2: #{early_transformer_forward.15} parent=1 // loop_pre_header
      _
    $region3: #{early_transformer_forward.15} parent=1 // loop_header
      %s12 = sphi 0, %s16
      %p13 = scmp.ge.s32.totalorder %s12, 6
      %s19 = sphi 0, %s31
      %s20 = sphi 0, %s27
      %s21 = sphi 0, %s19
      %s22 = sphi 0, %s20
      %s23 = sphi 0, %s21
      %s24 = sphi 0, %s22
      %s36 = sphi 0, %s38
      %s39 = sphi 0, %s36
      %s40 = sphi 0, %s39
      %s56 = sphi 0, %s40
      %s62 = sphi 0, %s64
      %s65 = sphi 0, %s62
      %s66 = sphi 0, %s65
      %s82 = sphi 0, %s66
      %s88 = sphi 0, %s90
      %s91 = sphi 0, %s88
      %s92 = sphi 0, %s91
      %s108 = sphi 0, %s92
      %s116 = sphi 0, %s118
      %s119 = sphi 0, %s116
      %s120 = sphi 0, %s119
      %s136 = sphi 0, %s120
    $region4: #{early_transformer_forward.15} parent=1 // loop_header_branch
      %15 = sbr.rel (%p13) target = $region8
    $region5: #{early_transformer_forward.15} parent=1 // loop_body
      %s17 = ssub.s32 %s12, 1
      %s18 = ssub.s32 %s12, 2
      %s25 = sadd.s32 1, %s20
      %p26 = scmp.ge.s32.totalorder %s25, 2
      %s27 = scalar_select %p26, 0, %s25
      %s28 = sadd.s32 1, %s19
      %s29 = scalar_select %p26, %s28, %s19
      %p30 = scmp.ge.s32.totalorder %s29, 2
      %s31 = scalar_select %p30, 0, %s29
      %s32 = ssub.s32 %s19, %s31
      %s33 = ssub.s32 %s20, %s27
      %s34 = sor.u32 %s32, %s33
      %p35 = scmp.eq.s32.totalorder %s34, 0
      %s37 = sadd.s32 %s36, 1
      %s38 = scalar_select %p35, %s36, %s37
      %p41 = pneg %p35
      %p42 = scmp.eq.s32.totalorder %s12, 3
      %p43 = por %p41, %p42
      %p44 = scmp.ne.s32.totalorder %s36, %s39
      %p45 = scmp.eq.s32.totalorder %s12, 0
      %p46 = por %p44, %p45
      %p47 = scmp.ne.s32.totalorder %s36, %s39
      %p48 = scmp.eq.s32.totalorder %s17, 3
      %p49 = por %p47, %p48
      %p50 = scmp.ne.s32.totalorder %s39, %s40
      %p51 = scmp.eq.s32.totalorder %s17, 0
      %p52 = por %p50, %p51
      %p53 = scmp.ne.s32.totalorder %s39, %s40
      %p54 = scmp.eq.s32.totalorder %s18, 3
      %p55 = por %p53, %p54
      %p57 = scmp.ne.s32.totalorder %s40, %s56
      %p58 = scmp.eq.s32.totalorder %s18, 0
      %p59 = por %p57, %p58
      %s60 = ssub.s32 %s19, %s31
      %p61 = scmp.eq.s32.totalorder %s60, 0
      %s63 = sadd.s32 %s62, 1
      %s64 = scalar_select %p61, %s62, %s63
      %p67 = pneg %p61
      %p68 = scmp.eq.s32.totalorder %s12, 3
      %p69 = por %p67, %p68
      %p70 = scmp.ne.s32.totalorder %s62, %s65
      %p71 = scmp.eq.s32.totalorder %s12, 0
      %p72 = por %p70, %p71
      %p73 = scmp.ne.s32.totalorder %s62, %s65
      %p74 = scmp.eq.s32.totalorder %s17, 3
      %p75 = por %p73, %p74
      %p76 = scmp.ne.s32.totalorder %s65, %s66
      %p77 = scmp.eq.s32.totalorder %s17, 0
      %p78 = por %p76, %p77
      %p79 = scmp.ne.s32.totalorder %s65, %s66
      %p80 = scmp.eq.s32.totalorder %s18, 3
      %p81 = por %p79, %p80
      %p83 = scmp.ne.s32.totalorder %s66, %s82
      %p84 = scmp.eq.s32.totalorder %s18, 0
      %p85 = por %p83, %p84
      %s86 = ssub.s32 %s19, %s31
      %p87 = scmp.eq.s32.totalorder %s86, 0
      %s89 = sadd.s32 %s88, 1
      %s90 = scalar_select %p87, %s88, %s89
      %p93 = pneg %p87
      %p94 = scmp.eq.s32.totalorder %s12, 3
      %p95 = por %p93, %p94
      %p96 = scmp.ne.s32.totalorder %s88, %s91
      %p97 = scmp.eq.s32.totalorder %s12, 0
      %p98 = por %p96, %p97
      %p99 = scmp.ne.s32.totalorder %s88, %s91
      %p100 = scmp.eq.s32.totalorder %s17, 3
      %p101 = por %p99, %p100
      %p102 = scmp.ne.s32.totalorder %s91, %s92
      %p103 = scmp.eq.s32.totalorder %s17, 0
      %p104 = por %p102, %p103
      %p105 = scmp.ne.s32.totalorder %s91, %s92
      %p106 = scmp.eq.s32.totalorder %s18, 3
      %p107 = por %p105, %p106
      %p109 = scmp.ne.s32.totalorder %s92, %s108
      %p110 = scmp.eq.s32.totalorder %s18, 0
      %p111 = por %p109, %p110
      %s112 = ssub.s32 %s19, %s31
      %s113 = ssub.s32 %s20, %s27
      %s114 = sor.u32 %s112, %s113
      %p115 = scmp.eq.s32.totalorder %s114, 0
      %s117 = sadd.s32 %s116, 1
      %s118 = scalar_select %p115, %s116, %s117
      %p121 = pneg %p115
      %p122 = scmp.eq.s32.totalorder %s12, 3
      %p123 = por %p121, %p122
      %p124 = scmp.ne.s32.totalorder %s116, %s119
      %p125 = scmp.eq.s32.totalorder %s12, 0
      %p126 = por %p124, %p125
      %p127 = scmp.ne.s32.totalorder %s116, %s119
      %p128 = scmp.eq.s32.totalorder %s17, 3
      %p129 = por %p127, %p128
      %p130 = scmp.ne.s32.totalorder %s119, %s120
      %p131 = scmp.eq.s32.totalorder %s17, 0
      %p132 = por %p130, %p131
      %p133 = scmp.ne.s32.totalorder %s119, %s120
      %p134 = scmp.eq.s32.totalorder %s18, 3
      %p135 = por %p133, %p134
      %p137 = scmp.ne.s32.totalorder %s120, %s136
      %p138 = scmp.eq.s32.totalorder %s18, 0
      %p139 = por %p137, %p138
      %p140 = scmp.le.s32.totalorder 1, %s12
      %p141 = scmp.lt.s32.totalorder %s12, 5
      %p142 = pnand %p140, %p141
      %p143 = pneg %p142
      // Predicated region
      $region9: #{early_transformer_forward.15} parent=5 // pred_check
        _
      $region10: #{early_transformer_forward.15} parent=5 // pred_check_branch
        %145 = sbr.rel (%p142) target = $region12
      $region11: #{early_transformer_forward.15} parent=5 // pred_region
        %s146 = ssub.s32 %s12, 1
      $region12: #{early_transformer_forward.15} parent=5 // pred_fallthru
        _
      %p147 = scmp.lt.s32.totalorder %s12, 4
      // Predicated region
      $region13: #{early_transformer_forward.15} parent=5 // pred_check
        %p148 = pneg %p147
      $region14: #{early_transformer_forward.15} parent=5 // pred_check_branch
        %150 = sbr.rel (%p148) target = $region16
      $region15: #{early_transformer_forward.15} parent=5 // pred_region
        // Predicated region
        $region17: #{early_transformer_forward.15} parent=15 // pred_check
          %p151 = pneg %p46
        $region18: #{early_transformer_forward.15} parent=15 // pred_check_branch
          %153 = sbr.rel (%p151) target = $region20
        $region19: #{early_transformer_forward.15} parent=15 // pred_region
          %p154 = scmp.lt.s32.totalorder %s19, 1
          %s155 = scalar_select %p154, %s19, 1
          %p156 = scmp.lt.s32.totalorder %s20, 1
          %s157 = scalar_select %p156, %s20, 1
          %s158 = smul.addr %s155, 2
          %s159 = sadd.s32 %s157, %s158
          %s160 = smul.addr %s159, 4
          %s161 = scalar_lea.vmem %s0, %s160
        $region20: #{early_transformer_forward.15} parent=15 // pred_fallthru
          _
        // Predicated region
        $region21: #{early_transformer_forward.15} parent=15 // pred_check
          %p162 = pneg %p72
        $region22: #{early_transformer_forward.15} parent=15 // pred_check_branch
          %164 = sbr.rel (%p162) target = $region24
        $region23: #{early_transformer_forward.15} parent=15 // pred_region
          %p165 = scmp.lt.s32.totalorder %s19, 1
          %s166 = scalar_select %p165, %s19, 1
          %s167 = smul.addr %s166, 4
          %s168 = smul.addr %s167, 4
          %s169 = scalar_lea.vmem %s1, %s168
        $region24: #{early_transformer_forward.15} parent=15 // pred_fallthru
          _
        // Predicated region
        $region25: #{early_transformer_forward.15} parent=15 // pred_check
          %p170 = pneg %p98
        $region26: #{early_transformer_forward.15} parent=15 // pred_check_branch
          %172 = sbr.rel (%p170) target = $region28
        $region27: #{early_transformer_forward.15} parent=15 // pred_region
          %p173 = scmp.lt.s32.totalorder %s19, 1
          %s174 = scalar_select %p173, %s19, 1
          %s175 = scalar_lea.vmem %s2, %s174
        $region28: #{early_transformer_forward.15} parent=15 // pred_fallthru
          _
      $region16: #{early_transformer_forward.15} parent=5 // pred_fallthru
        _
      %p176 = scmp.le.s32.totalorder 1, %s12
      %p177 = scmp.lt.s32.totalorder %s12, 5
      %p178 = pnand %p176, %p177
      %p179 = pneg %p178
      // Predicated region
      $region29: #{early_transformer_forward.15} parent=5 // pred_check
        _
      $region30: #{early_transformer_forward.15} parent=5 // pred_check_branch
        %181 = sbr.rel (%p178) target = $region32
      $region31: #{early_transformer_forward.15} parent=5 // pred_region
        %s182 = ssub.s32 %s12, 1
        %p183 = scmp.lt.s32.totalorder %s21, 1
        %s184 = scalar_select %p183, %s21, 1
        %p185 = scmp.lt.s32.totalorder %s22, 1
        %s186 = scalar_select %p185, %s22, 1
        %s187 = smul.addr %s184, 2
        %s188 = sadd.s32 %s186, %s187
        %s189 = smul.addr %s188, 4
        %s190 = scalar_lea.vmem %s0, %s189
        %p191 = pneg %p52
        %p192 = pneg %p49
        %p193 = scmp.lt.s32.totalorder %s21, 1
        %s194 = scalar_select %p193, %s21, 1
        %s195 = smul.addr %s194, 4
        %s196 = smul.addr %s195, 4
        %s197 = scalar_lea.vmem %s1, %s196
        %p198 = pneg %p78
        %p199 = pneg %p75
        %p200 = scmp.lt.s32.totalorder %s21, 1
        %s201 = scalar_select %p200, %s21, 1
        %s202 = scalar_lea.vmem %s2, %s201
        %p203 = pneg %p104
        %p204 = pneg %p101
        %p205 = pneg %p132
        %p206 = pneg %p129
        %s207 = sand.u32 %s119, 1
        %s208 = scalar_lea.sflag [#allocation3], %s207
        %s209 = sand.u32 %s119, 1
        %s210 = smul.addr %s209, 8
        %s211 = scalar_lea.vmem [#allocation2], %s210
        %p212 = scmp.lt.s32.totalorder %s21, 1
        %s213 = scalar_select %p212, %s21, 1
        %p214 = scmp.lt.s32.totalorder %s22, 1
        %s215 = scalar_select %p214, %s22, 1
        %s216 = smul.addr %s213, 2
        %s217 = sadd.s32 %s215, %s216
        %s218 = smul.addr %s217, 4
        %s219 = scalar_lea.vmem %s0, %s218
        %p220 = scmp.lt.s32.totalorder %s21, 1
        %s221 = scalar_select %p220, %s21, 1
        %s222 = smul.addr %s221, 4
        %s223 = smul.addr %s222, 4
        %s224 = scalar_lea.vmem %s1, %s223
        %p225 = scmp.lt.s32.totalorder %s21, 1
        %s226 = scalar_select %p225, %s21, 1
        %s227 = scalar_lea.vmem %s2, %s226
        %v229 = vld [vmem:[%s219] sm:$0xf]
        %v230 = vld [vmem:[%s224] sm:$0xf]
        %v231 = vld [vmem:[%s224 + $0x4] sm:$0xf]
        %v232 = vld [vmem:[%s224 + $0x8] sm:$0xf]
        %v233 = vld [vmem:[%s224 + $0xc] sm:$0xf]
        %v234 = vld [vmem:[%s227] sm:$0x1]
        %v236 = vperm.slane %v234, 0
        %v242 = vunpack.c.l.b16 %v230
        %v243 = vunpack.c.l.b16 %v231
        %v244 = vunpack.c.l.b16 %v232
        %v245 = vunpack.c.l.b16 %v233
        %v246 = vpack.c.b16 %v243, %v242
        %v247 = vpack.c.b16 %v245, %v244
        %vm250 = vcmask 261120
        %v252 = vsel %vm250, %v229, 0
        %254 = vmatpush.bf16.msra.mxu0 0
        %255 = vmatpush.bf16.msra.mxu0 0
        %256 = vmatpush.bf16.msra.mxu0 0
        %257 = vmatpush.bf16.msra.mxu0 0
        %258 = vmatpush.bf16.msra.mxu0 0
        %259 = vmatpush.bf16.msra.mxu0 0
        %260 = vmatpush.bf16.msra.mxu0 %v247
        %261 = vmatpush.bf16.msra.mxu0 %v246
        %262 = vmatmul.bf16.gmra.mxu0 %v252
        %v263 = vpop.f32.mrf.mxu0
        %v264 = vadd.f32 %v236, %v263
        %v265 = vpop.f32.mrf.mxu0
        %266 = vdwg.mxu0
        %v267 = vlaneseq
        %v268 = vand.u32 %v267, 127
        %vm269 = vcmp.lt.s32.totalorder %v268, 40
        %v270 = vsel %vm269, %v264, -1e+09
        %271 = vmax.xlane.f32.xlu0 %v270
        %v272 = vpop.xlane.xlu0 %271
        %v273 = vsub.f32 %v270, %v272
        %v274 = vmul.f32 %v273, 1.442695
        %v275 = vpow.pop %v274
        %276 = vadd.xlane.f32.xlu0 %v275
        %v277 = vpop.xlane.xlu0 %276
        %v278 = vlog2.pop %v277
        %v279 = vmul.f32 %v278, 0.6931472
        %v280 = vadd.f32 %v279, %v272
        %v281 = vsub.f32 %v270, %v280
        %282 = vst [vmem:[%s211] sm:$0xff] %v281
        %s283 = sand.u32 %s119, 1
        %s284 = scalar_lea.sflag [#allocation3], %s283
        %s285 = sand.u32 %s119, 1
        %s286 = smul.addr %s285, 8
        %s287 = scalar_lea.vmem [#allocation2], %s286
        // Predicated region
        $region33: #{early_transformer_forward.15} parent=31 // pred_check
          %p288 = pneg %p129
        $region34: #{early_transformer_forward.15} parent=31 // pred_check_branch
          %290 = sbr.rel (%p288) target = $region36
        $region35: #{early_transformer_forward.15} parent=31 // pred_region
          %292 = vsyncadd %s284, 0
          %s293 = smul.addr %s21, 2
          %s294 = sadd.s32 %s22, %s293
          %s295 = smul.addr %s294, 8
          %s296 = scalar_lea.hbm %s3, %s295
          %s298 = sshll.u32 %s287, 4
          %s299 = int_to_ptr.vmem [resolvable:$true] %s298
          %s300 = sshll.u32 %s296, 4
          %s301 = int_to_ptr.hbm [resolvable:$true] %s300
          %303 = dma.vmem_to_hbm [thread:$0]  %s299, 128, %s301, %s284
        $region36: #{early_transformer_forward.15} parent=31 // pred_fallthru
          _
      $region32: #{early_transformer_forward.15} parent=5 // pred_fallthru
        _
      %p304 = scmp.le.s32.totalorder 2, %s12
      // Predicated region
      $region37: #{early_transformer_forward.15} parent=5 // pred_check
        %p305 = pneg %p304
      $region38: #{early_transformer_forward.15} parent=5 // pred_check_branch
        %307 = sbr.rel (%p305) target = $region40
      $region39: #{early_transformer_forward.15} parent=5 // pred_region
        %s308 = ssub.s32 %s12, 2
        // Predicated region
        $region41: #{early_transformer_forward.15} parent=39 // pred_check
          %p309 = pneg %p135
        $region42: #{early_transformer_forward.15} parent=39 // pred_check_branch
          %311 = sbr.rel (%p309) target = $region44
        $region43: #{early_transformer_forward.15} parent=39 // pred_region
          %s312 = sand.u32 %s120, 1
          %s313 = scalar_lea.sflag [#allocation3], %s312
          %s314 = sand.u32 %s120, 1
          %s315 = smul.addr %s314, 8
          %s316 = scalar_lea.vmem [#allocation2], %s315
          %318 = dma.done %s313, 128
        $region44: #{early_transformer_forward.15} parent=39 // pred_fallthru
          _
      $region40: #{early_transformer_forward.15} parent=5 // pred_fallthru
        _
    $region6: #{early_transformer_forward.15} parent=1 // loop_footer
      %s16 = sadd.s32 1, %s12
    $region7: #{early_transformer_forward.15} parent=1 // loop_footer_branch
      %11 = sbr.rel target = $region3
    $region8: #{early_transformer_forward.15} parent=1 // loop_exit
      _
    %319 = vsyncpa [#allocation3], 1
    %s320 = scalar_lea.sflag [#allocation3], 1
    %321 = vsyncpa %s320, 1

// kernel: early_transformer_forward.10
$region0: #{early_transformer_forward.10}
  #allocation0 [shape = 'u32[]', space=smem, size = 0x4, offset = 0x4, fixed_abs, tag = 'smem constant byte address 0x4 - core index']
  #allocation1 [shape = 'u32[72,128]{1,0:T(1,128)}', space=vmem, size = 0x9000, scoped, tag = 'internal scratch']
  %s0 = inlined_call_operand.vmem [shape: bf16[2,8,32], index: 0, kind: input, shape index: {}]
  %s1 = inlined_call_operand.vmem [shape: bf16[3,32,32], index: 1, kind: input, shape index: {}]
  %s2 = inlined_call_operand.vmem [shape: f32[3,32,1], index: 2, kind: input, shape index: {}]
  %s3 = inlined_call_operand.vmem [shape: bf16[32,32], index: 3, kind: input, shape index: {}]
  %s4 = inlined_call_operand.vmem [shape: f32[1,32], index: 4, kind: input, shape index: {}]
  %s5 = inlined_call_operand.vmem [shape: f32[1,32], index: 5, kind: input, shape index: {}]
  %s6 = inlined_call_operand.vmem [shape: f32[1,32], index: 6, kind: input, shape index: {}]
  %s7 = inlined_call_operand.vmem [shape: bf16[32,64], index: 7, kind: input, shape index: {}]
  %s8 = inlined_call_operand.vmem [shape: f32[1,64], index: 8, kind: input, shape index: {}]
  %s9 = inlined_call_operand.vmem [shape: bf16[64,32], index: 9, kind: input, shape index: {}]
  %s10 = inlined_call_operand.vmem [shape: f32[1,32], index: 10, kind: input, shape index: {}]
  %s11 = inlined_call_operand.vmem [shape: f32[1,32], index: 11, kind: input, shape index: {}]
  %s12 = inlined_call_operand.vmem [shape: f32[1,32], index: 12, kind: input, shape index: {}]
  %s13 = inlined_call_operand.vmem [shape: bf16[2,8,32], index: 13, kind: output, shape index: {}]
  %s14 = sld [smem:[#allocation0]]
  $region85: #{early_transformer_forward.10} parent=0
    _
  %s16 = ssub.s32 1, %s14
  %s17 = scalar_select 0, %s16, %s14
  loop: start=0, step=1, limit=4
  $region2: #{early_transformer_forward.10} parent=0 // loop_pre_header
    _
  $region3: #{early_transformer_forward.10} parent=0 // loop_header
    %s19 = sphi 0, %s23
    %p20 = scmp.ge.s32.totalorder %s19, 4
    %s29 = sphi 0, %s31
    %s32 = sphi 0, %s29
    %s33 = sphi 0, %s32
    %s49 = sphi 0, %s33
    %s53 = sphi 0, %s53
    %s55 = sphi 0, %s53
    %s56 = sphi 0, %s55
    %s70 = sphi 0, %s56
    %s74 = sphi 0, %s74
    %s76 = sphi 0, %s74
    %s77 = sphi 0, %s76
    %s91 = sphi 0, %s77
    %s95 = sphi 0, %s95
    %s97 = sphi 0, %s95
    %s98 = sphi 0, %s97
    %s112 = sphi 0, %s98
    %s116 = sphi 0, %s116
    %s118 = sphi 0, %s116
    %s119 = sphi 0, %s118
    %s133 = sphi 0, %s119
    %s137 = sphi 0, %s137
    %s139 = sphi 0, %s137
    %s140 = sphi 0, %s139
    %s154 = sphi 0, %s140
    %s158 = sphi 0, %s158
    %s160 = sphi 0, %s158
    %s161 = sphi 0, %s160
    %s175 = sphi 0, %s161
    %s179 = sphi 0, %s179
    %s181 = sphi 0, %s179
    %s182 = sphi 0, %s181
    %s196 = sphi 0, %s182
    %s200 = sphi 0, %s200
    %s202 = sphi 0, %s200
    %s203 = sphi 0, %s202
    %s217 = sphi 0, %s203
    %s221 = sphi 0, %s221
    %s223 = sphi 0, %s221
    %s224 = sphi 0, %s223
    %s238 = sphi 0, %s224
    %s242 = sphi 0, %s242
    %s244 = sphi 0, %s242
    %s245 = sphi 0, %s244
    %s259 = sphi 0, %s245
    %s263 = sphi 0, %s263
    %s265 = sphi 0, %s263
    %s266 = sphi 0, %s265
    %s280 = sphi 0, %s266
    %s284 = sphi 0, %s284
    %s286 = sphi 0, %s284
    %s287 = sphi 0, %s286
    %s301 = sphi 0, %s287
    %s307 = sphi 0, %s309
    %s310 = sphi 0, %s307
    %s311 = sphi 0, %s310
    %s327 = sphi 0, %s311
  $region4: #{early_transformer_forward.10} parent=0 // loop_header_branch
    %22 = sbr.rel (%p20) target = $region8
  $region5: #{early_transformer_forward.10} parent=0 // loop_body
    %s24 = ssub.s32 %s19, 1
    %s25 = ssub.s32 %s19, 2
    %s26 = sadd.s32 %s19, 1
    %s27 = ssub.s32 %s19, %s26
    %p28 = scmp.eq.s32.totalorder %s27, 0
    %s30 = sadd.s32 %s29, 1
    %s31 = scalar_select %p28, %s29, %s30
    %p34 = pneg %p28
    %p35 = scmp.eq.s32.totalorder %s19, 1
    %p36 = por %p34, %p35
    %p37 = scmp.ne.s32.totalorder %s29, %s32
    %p38 = scmp.eq.s32.totalorder %s19, 0
    %p39 = por %p37, %p38
    %p40 = scmp.ne.s32.totalorder %s29, %s32
    %p41 = scmp.eq.s32.totalorder %s24, 1
    %p42 = por %p40, %p41
    %p43 = scmp.ne.s32.totalorder %s32, %s33
    %p44 = scmp.eq.s32.totalorder %s24, 0
    %p45 = por %p43, %p44
    %p46 = scmp.ne.s32.totalorder %s32, %s33
    %p47 = scmp.eq.s32.totalorder %s25, 1
    %p48 = por %p46, %p47
    %p50 = scmp.ne.s32.totalorder %s33, %s49
    %p51 = scmp.eq.s32.totalorder %s25, 0
    %p52 = por %p50, %p51
    %s54 = sadd.s32 %s53, 1
    %p57 = scmp.eq.s32.totalorder %s19, 1
    %p58 = scmp.ne.s32.totalorder %s53, %s55
    %p59 = scmp.eq.s32.totalorder %s19, 0
    %p60 = por %p58, %p59
    %p61 = scmp.ne.s32.totalorder %s53, %s55
    %p62 = scmp.eq.s32.totalorder %s24, 1
    %p63 = por %p61, %p62
    %p64 = scmp.ne.s32.totalorder %s55, %s56
    %p65 = scmp.eq.s32.totalorder %s24, 0
    %p66 = por %p64, %p65
    %p67 = scmp.ne.s32.totalorder %s55, %s56
    %p68 = scmp.eq.s32.totalorder %s25, 1
    %p69 = por %p67, %p68
    %p71 = scmp.ne.s32.totalorder %s56, %s70
    %p72 = scmp.eq.s32.totalorder %s25, 0
    %p73 = por %p71, %p72
    %s75 = sadd.s32 %s74, 1
    %p78 = scmp.eq.s32.totalorder %s19, 1
    %p79 = scmp.ne.s32.totalorder %s74, %s76
    %p80 = scmp.eq.s32.totalorder %s19, 0
    %p81 = por %p79, %p80
    %p82 = scmp.ne.s32.totalorder %s74, %s76
    %p83 = scmp.eq.s32.totalorder %s24, 1
    %p84 = por %p82, %p83
    %p85 = scmp.ne.s32.totalorder %s76, %s77
    %p86 = scmp.eq.s32.totalorder %s24, 0
    %p87 = por %p85, %p86
    %p88 = scmp.ne.s32.totalorder %s76, %s77
    %p89 = scmp.eq.s32.totalorder %s25, 1
    %p90 = por %p88, %p89
    %p92 = scmp.ne.s32.totalorder %s77, %s91
    %p93 = scmp.eq.s32.totalorder %s25, 0
    %p94 = por %p92, %p93
    %s96 = sadd.s32 %s95, 1
    %p99 = scmp.eq.s32.totalorder %s19, 1
    %p100 = scmp.ne.s32.totalorder %s95, %s97
    %p101 = scmp.eq.s32.totalorder %s19, 0
    %p102 = por %p100, %p101
    %p103 = scmp.ne.s32.totalorder %s95, %s97
    %p104 = scmp.eq.s32.totalorder %s24, 1
    %p105 = por %p103, %p104
    %p106 = scmp.ne.s32.totalorder %s97, %s98
    %p107 = scmp.eq.s32.totalorder %s24, 0
    %p108 = por %p106, %p107
    %p109 = scmp.ne.s32.totalorder %s97, %s98
    %p110 = scmp.eq.s32.totalorder %s25, 1
    %p111 = por %p109, %p110
    %p113 = scmp.ne.s32.totalorder %s98, %s112
    %p114 = scmp.eq.s32.totalorder %s25, 0
    %p115 = por %p113, %p114
    %s117 = sadd.s32 %s116, 1
    %p120 = scmp.eq.s32.totalorder %s19, 1
    %p121 = scmp.ne.s32.totalorder %s116, %s118
    %p122 = scmp.eq.s32.totalorder %s19, 0
    %p123 = por %p121, %p122
    %p124 = scmp.ne.s32.totalorder %s116, %s118
    %p125 = scmp.eq.s32.totalorder %s24, 1
    %p126 = por %p124, %p125
    %p127 = scmp.ne.s32.totalorder %s118, %s119
    %p128 = scmp.eq.s32.totalorder %s24, 0
    %p129 = por %p127, %p128
    %p130 = scmp.ne.s32.totalorder %s118, %s119
    %p131 = scmp.eq.s32.totalorder %s25, 1
    %p132 = por %p130, %p131
    %p134 = scmp.ne.s32.totalorder %s119, %s133
    %p135 = scmp.eq.s32.totalorder %s25, 0
    %p136 = por %p134, %p135
    %s138 = sadd.s32 %s137, 1
    %p141 = scmp.eq.s32.totalorder %s19, 1
    %p142 = scmp.ne.s32.totalorder %s137, %s139
    %p143 = scmp.eq.s32.totalorder %s19, 0
    %p144 = por %p142, %p143
    %p145 = scmp.ne.s32.totalorder %s137, %s139
    %p146 = scmp.eq.s32.totalorder %s24, 1
    %p147 = por %p145, %p146
    %p148 = scmp.ne.s32.totalorder %s139, %s140
    %p149 = scmp.eq.s32.totalorder %s24, 0
    %p150 = por %p148, %p149
    %p151 = scmp.ne.s32.totalorder %s139, %s140
    %p152 = scmp.eq.s32.totalorder %s25, 1
    %p153 = por %p151, %p152
    %p155 = scmp.ne.s32.totalorder %s140, %s154
    %p156 = scmp.eq.s32.totalorder %s25, 0
    %p157 = por %p155, %p156
    %s159 = sadd.s32 %s158, 1
    %p162 = scmp.eq.s32.totalorder %s19, 1
    %p163 = scmp.ne.s32.totalorder %s158, %s160
    %p164 = scmp.eq.s32.totalorder %s19, 0
    %p165 = por %p163, %p164
    %p166 = scmp.ne.s32.totalorder %s158, %s160
    %p167 = scmp.eq.s32.totalorder %s24, 1
    %p168 = por %p166, %p167
    %p169 = scmp.ne.s32.totalorder %s160, %s161
    %p170 = scmp.eq.s32.totalorder %s24, 0
    %p171 = por %p169, %p170
    %p172 = scmp.ne.s32.totalorder %s160, %s161
    %p173 = scmp.eq.s32.totalorder %s25, 1
    %p174 = por %p172, %p173
    %p176 = scmp.ne.s32.totalorder %s161, %s175
    %p177 = scmp.eq.s32.totalorder %s25, 0
    %p178 = por %p176, %p177
    %s180 = sadd.s32 %s179, 1
    %p183 = scmp.eq.s32.totalorder %s19, 1
    %p184 = scmp.ne.s32.totalorder %s179, %s181
    %p185 = scmp.eq.s32.totalorder %s19, 0
    %p186 = por %p184, %p185
    %p187 = scmp.ne.s32.totalorder %s179, %s181
    %p188 = scmp.eq.s32.totalorder %s24, 1
    %p189 = por %p187, %p188
    %p190 = scmp.ne.s32.totalorder %s181, %s182
    %p191 = scmp.eq.s32.totalorder %s24, 0
    %p192 = por %p190, %p191
    %p193 = scmp.ne.s32.totalorder %s181, %s182
    %p194 = scmp.eq.s32.totalorder %s25, 1
    %p195 = por %p193, %p194
    %p197 = scmp.ne.s32.totalorder %s182, %s196
    %p198 = scmp.eq.s32.totalorder %s25, 0
    %p199 = por %p197, %p198
    %s201 = sadd.s32 %s200, 1
    %p204 = scmp.eq.s32.totalorder %s19, 1
    %p205 = scmp.ne.s32.totalorder %s200, %s202
    %p206 = scmp.eq.s32.totalorder %s19, 0
    %p207 = por %p205, %p206
    %p208 = scmp.ne.s32.totalorder %s200, %s202
    %p209 = scmp.eq.s32.totalorder %s24, 1
    %p210 = por %p208, %p209
    %p211 = scmp.ne.s32.totalorder %s202, %s203
    %p212 = scmp.eq.s32.totalorder %s24, 0
    %p213 = por %p211, %p212
    %p214 = scmp.ne.s32.totalorder %s202, %s203
    %p215 = scmp.eq.s32.totalorder %s25, 1
    %p216 = por %p214, %p215
    %p218 = scmp.ne.s32.totalorder %s203, %s217
    %p219 = scmp.eq.s32.totalorder %s25, 0
    %p220 = por %p218, %p219
    %s222 = sadd.s32 %s221, 1
    %p225 = scmp.eq.s32.totalorder %s19, 1
    %p226 = scmp.ne.s32.totalorder %s221, %s223
    %p227 = scmp.eq.s32.totalorder %s19, 0
    %p228 = por %p226, %p227
    %p229 = scmp.ne.s32.totalorder %s221, %s223
    %p230 = scmp.eq.s32.totalorder %s24, 1
    %p231 = por %p229, %p230
    %p232 = scmp.ne.s32.totalorder %s223, %s224
    %p233 = scmp.eq.s32.totalorder %s24, 0
    %p234 = por %p232, %p233
    %p235 = scmp.ne.s32.totalorder %s223, %s224
    %p236 = scmp.eq.s32.totalorder %s25, 1
    %p237 = por %p235, %p236
    %p239 = scmp.ne.s32.totalorder %s224, %s238
    %p240 = scmp.eq.s32.totalorder %s25, 0
    %p241 = por %p239, %p240
    %s243 = sadd.s32 %s242, 1
    %p246 = scmp.eq.s32.totalorder %s19, 1
    %p247 = scmp.ne.s32.totalorder %s242, %s244
    %p248 = scmp.eq.s32.totalorder %s19, 0
    %p249 = por %p247, %p248
    %p250 = scmp.ne.s32.totalorder %s242, %s244
    %p251 = scmp.eq.s32.totalorder %s24, 1
    %p252 = por %p250, %p251
    %p253 = scmp.ne.s32.totalorder %s244, %s245
    %p254 = scmp.eq.s32.totalorder %s24, 0
    %p255 = por %p253, %p254
    %p256 = scmp.ne.s32.totalorder %s244, %s245
    %p257 = scmp.eq.s32.totalorder %s25, 1
    %p258 = por %p256, %p257
    %p260 = scmp.ne.s32.totalorder %s245, %s259
    %p261 = scmp.eq.s32.totalorder %s25, 0
    %p262 = por %p260, %p261
    %s264 = sadd.s32 %s263, 1
    %p267 = scmp.eq.s32.totalorder %s19, 1
    %p268 = scmp.ne.s32.totalorder %s263, %s265
    %p269 = scmp.eq.s32.totalorder %s19, 0
    %p270 = por %p268, %p269
    %p271 = scmp.ne.s32.totalorder %s263, %s265
    %p272 = scmp.eq.s32.totalorder %s24, 1
    %p273 = por %p271, %p272
    %p274 = scmp.ne.s32.totalorder %s265, %s266
    %p275 = scmp.eq.s32.totalorder %s24, 0
    %p276 = por %p274, %p275
    %p277 = scmp.ne.s32.totalorder %s265, %s266
    %p278 = scmp.eq.s32.totalorder %s25, 1
    %p279 = por %p277, %p278
    %p281 = scmp.ne.s32.totalorder %s266, %s280
    %p282 = scmp.eq.s32.totalorder %s25, 0
    %p283 = por %p281, %p282
    %s285 = sadd.s32 %s284, 1
    %p288 = scmp.eq.s32.totalorder %s19, 1
    %p289 = scmp.ne.s32.totalorder %s284, %s286
    %p290 = scmp.eq.s32.totalorder %s19, 0
    %p291 = por %p289, %p290
    %p292 = scmp.ne.s32.totalorder %s284, %s286
    %p293 = scmp.eq.s32.totalorder %s24, 1
    %p294 = por %p292, %p293
    %p295 = scmp.ne.s32.totalorder %s286, %s287
    %p296 = scmp.eq.s32.totalorder %s24, 0
    %p297 = por %p295, %p296
    %p298 = scmp.ne.s32.totalorder %s286, %s287
    %p299 = scmp.eq.s32.totalorder %s25, 1
    %p300 = por %p298, %p299
    %p302 = scmp.ne.s32.totalorder %s287, %s301
    %p303 = scmp.eq.s32.totalorder %s25, 0
    %p304 = por %p302, %p303
    %s305 = ssub.s32 %s19, %s26
    %p306 = scmp.eq.s32.totalorder %s305, 0
    %s308 = sadd.s32 %s307, 1
    %s309 = scalar_select %p306, %s307, %s308
    %p312 = pneg %p306
    %p313 = scmp.eq.s32.totalorder %s19, 1
    %p314 = por %p312, %p313
    %p315 = scmp.ne.s32.totalorder %s307, %s310
    %p316 = scmp.eq.s32.totalorder %s19, 0
    %p317 = por %p315, %p316
    %p318 = scmp.ne.s32.totalorder %s307, %s310
    %p319 = scmp.eq.s32.totalorder %s24, 1
    %p320 = por %p318, %p319
    %p321 = scmp.ne.s32.totalorder %s310, %s311
    %p322 = scmp.eq.s32.totalorder %s24, 0
    %p323 = por %p321, %p322
    %p324 = scmp.ne.s32.totalorder %s310, %s311
    %p325 = scmp.eq.s32.totalorder %s25, 1
    %p326 = por %p324, %p325
    %p328 = scmp.ne.s32.totalorder %s311, %s327
    %p329 = scmp.eq.s32.totalorder %s25, 0
    %p330 = por %p328, %p329
    %p331 = scmp.le.s32.totalorder 1, %s19
    %p332 = scmp.lt.s32.totalorder %s19, 3
    %p333 = pnand %p331, %p332
    %p334 = pneg %p333
    // Predicated region
    $region9: #{early_transformer_forward.10} parent=5 // pred_check
      _
    $region10: #{early_transformer_forward.10} parent=5 // pred_check_branch
      %336 = sbr.rel (%p333) target = $region12
    $region11: #{early_transformer_forward.10} parent=5 // pred_region
      %s337 = ssub.s32 %s19, 1
      // Predicated region
      $region13: #{early_transformer_forward.10} parent=11 // pred_check
        %p338 = pneg %p66
      $region14: #{early_transformer_forward.10} parent=11 // pred_check_branch
        %340 = sbr.rel (%p338) target = $region16
      $region15: #{early_transformer_forward.10} parent=11 // pred_region
        _
      $region16: #{early_transformer_forward.10} parent=11 // pred_fallthru
        _
      // Predicated region
      $region17: #{early_transformer_forward.10} parent=11 // pred_check
        %p341 = pneg %p87
      $region18: #{early_transformer_forward.10} parent=11 // pred_check_branch
        %343 = sbr.rel (%p341) target = $region20
      $region19: #{early_transformer_forward.10} parent=11 // pred_region
        _
      $region20: #{early_transformer_forward.10} parent=11 // pred_fallthru
        _
      // Predicated region
      $region21: #{early_transformer_forward.10} parent=11 // pred_check
        %p344 = pneg %p108
      $region22: #{early_transformer_forward.10} parent=11 // pred_check_branch
        %346 = sbr.rel (%p344) target = $region24
      $region23: #{early_transformer_forward.10} parent=11 // pred_region
        _
      $region24: #{early_transformer_forward.10} parent=11 // pred_fallthru
        _
      // Predicated region
      $region25: #{early_transformer_forward.10} parent=11 // pred_check
        %p347 = pneg %p129
      $region26: #{early_transformer_forward.10} parent=11 // pred_check_branch
        %349 = sbr.rel (%p347) target = $region28
      $region27: #{early_transformer_forward.10} parent=11 // pred_region
        _
      $region28: #{early_transformer_forward.10} parent=11 // pred_fallthru
        _
      // Predicated region
      $region29: #{early_transformer_forward.10} parent=11 // pred_check
        %p350 = pneg %p150
      $region30: #{early_transformer_forward.10} parent=11 // pred_check_branch
        %352 = sbr.rel (%p350) target = $region32
      $region31: #{early_transformer_forward.10} parent=11 // pred_region
        _
      $region32: #{early_transformer_forward.10} parent=11 // pred_fallthru
        _
      // Predicated region
      $region33: #{early_transformer_forward.10} parent=11 // pred_check
        %p353 = pneg %p171
      $region34: #{early_transformer_forward.10} parent=11 // pred_check_branch
        %355 = sbr.rel (%p353) target = $region36
      $region35: #{early_transformer_forward.10} parent=11 // pred_region
        _
      $region36: #{early_transformer_forward.10} parent=11 // pred_fallthru
        _
      // Predicated region
      $region37: #{early_transformer_forward.10} parent=11 // pred_check
        %p356 = pneg %p192
      $region38: #{early_transformer_forward.10} parent=11 // pred_check_branch
        %358 = sbr.rel (%p356) target = $region40
      $region39: #{early_transformer_forward.10} parent=11 // pred_region
        _
      $region40: #{early_transformer_forward.10} parent=11 // pred_fallthru
        _
      // Predicated region
      $region41: #{early_transformer_forward.10} parent=11 // pred_check
        %p359 = pneg %p213
      $region42: #{early_transformer_forward.10} parent=11 // pred_check_branch
        %361 = sbr.rel (%p359) target = $region44
      $region43: #{early_transformer_forward.10} parent=11 // pred_region
        _
      $region44: #{early_transformer_forward.10} parent=11 // pred_fallthru
        _
      // Predicated region
      $region45: #{early_transformer_forward.10} parent=11 // pred_check
        %p362 = pneg %p234
      $region46: #{early_transformer_forward.10} parent=11 // pred_check_branch
        %364 = sbr.rel (%p362) target = $region48
      $region47: #{early_transformer_forward.10} parent=11 // pred_region
        _
      $region48: #{early_transformer_forward.10} parent=11 // pred_fallthru
        _
      // Predicated region
      $region49: #{early_transformer_forward.10} parent=11 // pred_check
        %p365 = pneg %p255
      $region50: #{early_transformer_forward.10} parent=11 // pred_check_branch
        %367 = sbr.rel (%p365) target = $region52
      $region51: #{early_transformer_forward.10} parent=11 // pred_region
        _
      $region52: #{early_transformer_forward.10} parent=11 // pred_fallthru
        _
      // Predicated region
      $region53: #{early_transformer_forward.10} parent=11 // pred_check
        %p368 = pneg %p276
      $region54: #{early_transformer_forward.10} parent=11 // pred_check_branch
        %370 = sbr.rel (%p368) target = $region56
      $region55: #{early_transformer_forward.10} parent=11 // pred_region
        _
      $region56: #{early_transformer_forward.10} parent=11 // pred_fallthru
        _
      // Predicated region
      $region57: #{early_transformer_forward.10} parent=11 // pred_check
        %p371 = pneg %p297
      $region58: #{early_transformer_forward.10} parent=11 // pred_check_branch
        %373 = sbr.rel (%p371) target = $region60
      $region59: #{early_transformer_forward.10} parent=11 // pred_region
        _
      $region60: #{early_transformer_forward.10} parent=11 // pred_fallthru
        _
    $region12: #{early_transformer_forward.10} parent=5 // pred_fallthru
      _
    %p374 = scmp.lt.s32.totalorder %s19, 2
    // Predicated region
    $region61: #{early_transformer_forward.10} parent=5 // pred_check
      %p375 = pneg %p374
    $region62: #{early_transformer_forward.10} parent=5 // pred_check_branch
      %377 = sbr.rel (%p375) target = $region64
    $region63: #{early_transformer_forward.10} parent=5 // pred_region
      // Predicated region
      $region65: #{early_transformer_forward.10} parent=63 // pred_check
        %p378 = pneg %p39
      $region66: #{early_transformer_forward.10} parent=63 // pred_check_branch
        %380 = sbr.rel (%p378) target = $region68
      $region67: #{early_transformer_forward.10} parent=63 // pred_region
        %p381 = scmp.lt.s32.totalorder %s19, 1
        %s382 = scalar_select %p381, %s19, 1
        %s383 = smul.addr %s382, 4
        %s384 = scalar_lea.vmem %s0, %s383
      $region68: #{early_transformer_forward.10} parent=63 // pred_fallthru
        _
    $region64: #{early_transformer_forward.10} parent=5 // pred_fallthru
      _
    %p385 = scmp.le.s32.totalorder 1, %s19
    %p386 = scmp.lt.s32.totalorder %s19, 3
    %p387 = pnand %p385, %p386
    %p388 = pneg %p387
    // Predicated region
    $region69: #{early_transformer_forward.10} parent=5 // pred_check
      _
    $region70: #{early_transformer_forward.10} parent=5 // pred_check_branch
      %390 = sbr.rel (%p387) target = $region72
    $region71: #{early_transformer_forward.10} parent=5 // pred_region
      %s391 = ssub.s32 %s19, 1
      %p392 = scmp.lt.s32.totalorder %s24, 1
      %s393 = scalar_select %p392, %s24, 1
      %s394 = smul.addr %s393, 4
      %s395 = scalar_lea.vmem %s0, %s394
      %p396 = pneg %p45
      %p397 = pneg %p42
      %p398 = pneg %p66
      %p399 = pneg %p63
      %p400 = pneg %p87
      %p401 = pneg %p84
      %p402 = pneg %p108
      %p403 = pneg %p105
      %p404 = pneg %p129
      %p405 = pneg %p126
      %p406 = pneg %p150
      %p407 = pneg %p147
      %p408 = pneg %p171
      %p409 = pneg %p168
      %p410 = pneg %p192
      %p411 = pneg %p189
      %p412 = pneg %p213
      %p413 = pneg %p210
      %p414 = pneg %p234
      %p415 = pneg %p231
      %p416 = pneg %p255
      %p417 = pneg %p252
      %p418 = pneg %p276
      %p419 = pneg %p273
      %p420 = pneg %p297
      %p421 = pneg %p294
      %p422 = pneg %p323
      %p423 = pneg %p320
      %p424 = scmp.lt.s32.totalorder %s24, 1
      %s425 = scalar_select %p424, %s24, 1
      %s426 = smul.addr %s425, 4
      %s427 = scalar_lea.vmem %s13, %s426
      %p428 = scmp.lt.s32.totalorder %s24, 1
      %s429 = scalar_select %p428, %s24, 1
      %s430 = smul.addr %s429, 4
      %s431 = scalar_lea.vmem %s0, %s430
      %p432 = scmp.lt.s32.totalorder %s24, 1
      %s433 = scalar_select %p432, %s24, 1
      %s434 = smul.addr %s433, 4
      %s435 = scalar_lea.vmem %s13, %s434
      %v437 = vld [vmem:[%s431] sm:$0xf]
      %v438 = vunpack.c.l.bf16 %v437
      %439 = vxpose.xlu0.b32.start [1/16] %v438, 128
      %440 = vxpose.xlu0.b32.cont [2/16] 0.0, 128
      %441 = vxpose.xlu0.b32.cont [3/16] 0.0, 128
      %442 = vxpose.xlu0.b32.cont [4/16] 0.0, 128
      %443 = vxpose.xlu0.b32.cont [5/16] 0.0, 128
      %444 = vxpose.xlu0.b32.cont [6/16] 0.0, 128
      %445 = vxpose.xlu0.b32.cont [7/16] 0.0, 128
      %446 = vxpose.xlu0.b32.cont [8/16] 0.0, 128
      %447 = vxpose.xlu0.b32.cont [9/16] 0.0, 128
      %448 = vxpose.xlu0.b32.cont [10/16] 0.0, 128
      %449 = vxpose.xlu0.b32.cont [11/16] 0.0, 128
      %450 = vxpose.xlu0.b32.cont [12/16] 0.0, 128
      %451 = vxpose.xlu0.b32.cont [13/16] 0.0, 128
      %452 = vxpose.xlu0.b32.cont [14/16] 0.0, 128
      %453 = vxpose.xlu0.b32.cont [15/16] 0.0, 128
      %454 = vxpose.xlu0.b32.end [16/16] 0.0, 128
      %v455 = vpop.trf.xlu0
      %v456 = vpop.trf.xlu0
      %v457 = vpop.trf.xlu0
      %v458 = vpop.trf.xlu0
      %v459 = vpop.trf.xlu0
      %v460 = vpop.trf.xlu0
      %v461 = vpop.trf.xlu0
      %v462 = vpop.trf.xlu0
      %v463 = vpop.trf.xlu0
      %v464 = vpop.trf.xlu0
      %v465 = vpop.trf.xlu0
      %v466 = vpop.trf.xlu0
      %v467 = vpop.trf.xlu0
      %v468 = vpop.trf.xlu0
      %v469 = vpop.trf.xlu0
      %v470 = vpop.trf.xlu0
      %v471 = vld [vmem:[%s1] sm:$0xf]
      %v472 = vld [vmem:[%s1 + $0x4] sm:$0xf]
      %v473 = vld [vmem:[%s1 + $0x8] sm:$0xf]
      %v474 = vld [vmem:[%s1 + $0xc] sm:$0xf]
      %v475 = vld [vmem:[%s2] sm:$0xff]
      %v476 = vld [vmem:[%s2 + $0x8] sm:$0xff]
      %v477 = vld [vmem:[%s2 + $0x10] sm:$0xff]
      %v478 = vld [vmem:[%s2 + $0x18] sm:$0xff]
      %v479 = vpack.c.bf16 %v456, %v455
      %v480 = vpack.c.bf16 %v458, %v457
      %482 = vset.pattern.permute.xlu0 0
      %483 = vperm.xlu0 %482, %v475
      %v484 = vpop.permute.xlu0 %483
      %487 = vset.pattern.permute.xlu0 0
      %488 = vperm.xlu0 %487, %v476
      %v489 = vpop.permute.xlu0 %488
      %492 = vset.pattern.permute.xlu0 0
      %493 = vperm.xlu0 %492, %v477
      %v494 = vpop.permute.xlu0 %493
      %497 = vset.pattern.permute.xlu0 0
      %498 = vperm.xlu0 %497, %v478
      %v499 = vpop.permute.xlu0 %498
      %v505 = vunpack.c.l.b16 %v471
      %v506 = vunpack.c.l.b16 %v472
      %v507 = vunpack.c.l.b16 %v473
      %v508 = vunpack.c.l.b16 %v474
      %v509 = vpack.c.b16 %v506, %v505
      %v510 = vpack.c.b16 %v508, %v507
      %vm511 = vcmask 261120
      %v513 = vsel %vm511, %v509, 0
      %v516 = vsel %vm511, %v510, 0
      %518 = vmatpush.bf16.msra.mxu0 0
      %519 = vmatpush.bf16.msra.mxu0 0
      %520 = vmatpush.bf16.msra.mxu0 0
      %521 = vmatpush.bf16.msra.mxu0 0
      %522 = vmatpush.bf16.msra.mxu0 0
      %523 = vmatpush.bf16.msra.mxu0 0
      %524 = vmatpush.bf16.msra.mxu0 %v480
      %525 = vmatpush.bf16.msra.mxu0 %v479
      %526 = vmatmul.bf16.gmra.mxu0 %v513
      %v527 = vpop.f32.mrf.mxu0
      %v528 = vadd.f32 %v484, %v527
      %v529 = vpop.f32.mrf.mxu0
      %v530 = vadd.f32 %v489, %v529
      %531 = vmatmul.bf16.gmra.mxu0 %v516
      %v532 = vpop.f32.mrf.mxu0
      %v533 = vadd.f32 %v494, %v532
      %v534 = vpop.f32.mrf.mxu0
      %v535 = vadd.f32 %v499, %v534
      %536 = vdwg.mxu0
      %v537 = vmul.f32 %v528, 0.35355338
      %v538 = vmul.f32 %v530, 0.35355338
      %v539 = vmul.f32 %v533, 0.35355338
      %v540 = vmul.f32 %v535, 0.35355338
      %s541 = scalar_lea.vmem %s1, 16
      %v542 = vld [vmem:[%s541] sm:$0xf]
      %v543 = vld [vmem:[%s541 + $0x4] sm:$0xf]
      %v544 = vld [vmem:[%s541 + $0x8] sm:$0xf]
      %v545 = vld [vmem:[%s541 + $0xc] sm:$0xf]
      %s546 = scalar_lea.vmem %s2, 32
      %v547 = vld [vmem:[%s546] sm:$0xff]
      %v548 = vld [vmem:[%s546 + $0x8] sm:$0xff]
      %v549 = vld [vmem:[%s546 + $0x10] sm:$0xff]
      %v550 = vld [vmem:[%s546 + $0x18] sm:$0xff]
      %552 = vset.pattern.permute.xlu0 0
      %553 = vperm.xlu0 %552, %v547
      %v554 = vpop.permute.xlu0 %553
      %557 = vset.pattern.permute.xlu0 0
      %558 = vperm.xlu0 %557, %v548
      %v559 = vpop.permute.xlu0 %558
      %562 = vset.pattern.permute.xlu0 0
      %563 = vperm.xlu0 %562, %v549
      %v564 = vpop.permute.xlu0 %563
      %567 = vset.pattern.permute.xlu0 0
      %568 = vperm.xlu0 %567, %v550
      %v569 = vpop.permute.xlu0 %568
      %v575 = vunpack.c.l.b16 %v542
      %v576 = vunpack.c.l.b16 %v543
      %v577 = vunpack.c.l.b16 %v544
      %v578 = vunpack.c.l.b16 %v545
      %v579 = vpack.c.b16 %v576, %v575
      %v580 = vpack.c.b16 %v578, %v577
      %v582 = vsel %vm511, %v579, 0
      %v585 = vsel %vm511, %v580, 0
      %587 = vmatpush.bf16.msra.mxu0 0
      %588 = vmatpush.bf16.msra.mxu0 0
      %589 = vmatpush.bf16.msra.mxu0 0
      %590 = vmatpush.bf16.msra.mxu0 0
      %591 = vmatpush.bf16.msra.mxu0 0
      %592 = vmatpush.bf16.msra.mxu0 0
      %593 = vmatpush.bf16.msra.mxu0 %v480
      %594 = vmatpush.bf16.msra.mxu0 %v479
      %595 = vmatmul.bf16.gmra.mxu0 %v582
      %v596 = vpop.f32.mrf.mxu0
      %v597 = vadd.f32 %v554, %v596
      %v598 = vpop.f32.mrf.mxu0
      %v599 = vadd.f32 %v559, %v598
      %600 = vmatmul.bf16.gmra.mxu0 %v585
      %v601 = vpop.f32.mrf.mxu0
      %v602 = vadd.f32 %v564, %v601
      %v603 = vpop.f32.mrf.mxu0
      %v604 = vadd.f32 %v569, %v603
      %605 = vdwg.mxu0
      %s606 = scalar_lea.vmem %s1, 32
      %v607 = vld [vmem:[%s606] sm:$0xf]
      %v608 = vld [vmem:[%s606 + $0x4] sm:$0xf]
      %v609 = vld [vmem:[%s606 + $0x8] sm:$0xf]
      %v610 = vld [vmem:[%s606 + $0xc] sm:$0xf]
      %s611 = scalar_lea.vmem %s2, 64
      %v612 = vld [vmem:[%s611] sm:$0xff]
      %v613 = vld [vmem:[%s611 + $0x8] sm:$0xff]
      %v614 = vld [vmem:[%s611 + $0x10] sm:$0xff]
      %v615 = vld [vmem:[%s611 + $0x18] sm:$0xff]
      %617 = vset.pattern.permute.xlu0 0
      %618 = vperm.xlu0 %617, %v612
      %v619 = vpop.permute.xlu0 %618
      %622 = vset.pattern.permute.xlu0 0
      %623 = vperm.xlu0 %622, %v613
      %v624 = vpop.permute.xlu0 %623
      %627 = vset.pattern.permute.xlu0 0
      %628 = vperm.xlu0 %627, %v614
      %v629 = vpop.permute.xlu0 %628
      %632 = vset.pattern.permute.xlu0 0
      %633 = vperm.xlu0 %632, %v615
      %v634 = vpop.permute.xlu0 %633
      %v640 = vunpack.c.l.b16 %v607
      %v641 = vunpack.c.l.b16 %v608
      %v642 = vunpack.c.l.b16 %v609
      %v643 = vunpack.c.l.b16 %v610
      %v644 = vpack.c.b16 %v641, %v640
      %v645 = vpack.c.b16 %v643, %v642
      %v647 = vsel %vm511, %v644, 0
      %v650 = vsel %vm511, %v645, 0
      %652 = vmatpush.bf16.msra.mxu0 0
      %653 = vmatpush.bf16.msra.mxu0 0
      %654 = vmatpush.bf16.msra.mxu0 0
      %655 = vmatpush.bf16.msra.mxu0 0
      %656 = vmatpush.bf16.msra.mxu0 0
      %657 = vmatpush.bf16.msra.mxu0 0
      %658 = vmatpush.bf16.msra.mxu0 %v480
      %659 = vmatpush.bf16.msra.mxu0 %v479
      %660 = vmatmul.bf16.gmra.mxu0 %v647
      %v661 = vpop.f32.mrf.mxu0
      %v662 = vadd.f32 %v619, %v661
      %v663 = vpop.f32.mrf.mxu0
      %v664 = vadd.f32 %v624, %v663
      %665 = vmatmul.bf16.gmra.mxu0 %v650
      %v666 = vpop.f32.mrf.mxu0
      %v667 = vadd.f32 %v629, %v666
      %v668 = vpop.f32.mrf.mxu0
      %v669 = vadd.f32 %v634, %v668
      %670 = vdwg.mxu0
      %671 = vxpose.xlu0.b32.start [1/16] %v537, 128
      %672 = vxpose.xlu0.b32.cont [2/16] 0.0, 128
      %673 = vxpose.xlu0.b32.cont [3/16] 0.0, 128
      %674 = vxpose.xlu0.b32.cont [4/16] 0.0, 128
      %675 = vxpose.xlu0.b32.cont [5/16] 0.0, 128
      %676 = vxpose.xlu0.b32.cont [6/16] 0.0, 128
      %677 = vxpose.xlu0.b32.cont [7/16] 0.0, 128
      %678 = vxpose.xlu0.b32.cont [8/16] 0.0, 128
      %679 = vxpose.xlu0.b32.cont [9/16] 0.0, 128
      %680 = vxpose.xlu0.b32.cont [10/16] 0.0, 128
      %681 = vxpose.xlu0.b32.cont [11/16] 0.0, 128
      %682 = vxpose.xlu0.b32.cont [12/16] 0.0, 128
      %683 = vxpose.xlu0.b32.cont [13/16] 0.0, 128
      %684 = vxpose.xlu0.b32.cont [14/16] 0.0, 128
      %685 = vxpose.xlu0.b32.cont [15/16] 0.0, 128
      %686 = vxpose.xlu0.b32.end [16/16] 0.0, 128
      %v687 = vpop.trf.xlu0
      %v688 = vpop.trf.xlu0
      %v689 = vpop.trf.xlu0
      %v690 = vpop.trf.xlu0
      %v691 = vpop.trf.xlu0
      %v692 = vpop.trf.xlu0
      %v693 = vpop.trf.xlu0
      %v694 = vpop.trf.xlu0
      %v695 = vpop.trf.xlu0
      %v696 = vpop.trf.xlu0
      %v697 = vpop.trf.xlu0
      %v698 = vpop.trf.xlu0
      %v699 = vpop.trf.xlu0
      %v700 = vpop.trf.xlu0
      %v701 = vpop.trf.xlu0
      %v702 = vpop.trf.xlu0
      %703 = vxpose.xlu0.b32.start [1/16] %v538, 128
      %704 = vxpose.xlu0.b32.cont [2/16] 0.0, 128
      %705 = vxpose.xlu0.b32.cont [3/16] 0.0, 128
      %706 = vxpose.xlu0.b32.cont [4/16] 0.0, 128
      %707 = vxpose.xlu0.b32.cont [5/16] 0.0, 128
      %708 = vxpose.xlu0.b32.cont [6/16] 0.0, 128
      %709 = vxpose.xlu0.b32.cont [7/16] 0.0, 128
      %710 = vxpose.xlu0.b32.cont [8/16] 0.0, 128
      %711 = vxpose.xlu0.b32.cont [9/16] 0.0, 128
      %712 = vxpose.xlu0.b32.cont [10/16] 0.0, 128
      %713 = vxpose.xlu0.b32.cont [11/16] 0.0, 128
      %714 = vxpose.xlu0.b32.cont [12/16] 0.0, 128
      %715 = vxpose.xlu0.b32.cont [13/16] 0.0, 128
      %716 = vxpose.xlu0.b32.cont [14/16] 0.0, 128
      %717 = vxpose.xlu0.b32.cont [15/16] 0.0, 128
      %718 = vxpose.xlu0.b32.end [16/16] 0.0, 128
      %v719 = vpop.trf.xlu0
      %v720 = vpop.trf.xlu0
      %v721 = vpop.trf.xlu0
      %v722 = vpop.trf.xlu0
      %v723 = vpop.trf.xlu0
      %v724 = vpop.trf.xlu0
      %v725 = vpop.trf.xlu0
      %v726 = vpop.trf.xlu0
      %v727 = vpop.trf.xlu0
      %v728 = vpop.trf.xlu0
      %v729 = vpop.trf.xlu0
      %v730 = vpop.trf.xlu0
      %v731 = vpop.trf.xlu0
      %v732 = vpop.trf.xlu0
      %v733 = vpop.trf.xlu0
      %v734 = vpop.trf.xlu0
      %735 = vxpose.xlu0.b32.start [1/16] %v539, 128
      %736 = vxpose.xlu0.b32.cont [2/16] 0.0, 128
      %737 = vxpose.xlu0.b32.cont [3/16] 0.0, 128
      %738 = vxpose.xlu0.b32.cont [4/16] 0.0, 128
      %739 = vxpose.xlu0.b32.cont [5/16] 0.0, 128
      %740 = vxpose.xlu0.b32.cont [6/16] 0.0, 128
      %741 = vxpose.xlu0.b32.cont [7/16] 0.0, 128
      %742 = vxpose.xlu0.b32.cont [8/16] 0.0, 128
      %743 = vxpose.xlu0.b32.cont [9/16] 0.0, 128
      %744 = vxpose.xlu0.b32.cont [10/16] 0.0, 128
      %745 = vxpose.xlu0.b32.cont [11/16] 0.0, 128
      %746 = vxpose.xlu0.b32.cont [12/16] 0.0, 128
      %747 = vxpose.xlu0.b32.cont [13/16] 0.0, 128
      %748 = vxpose.xlu0.b32.cont [14/16] 0.0, 128
      %749 = vxpose.xlu0.b32.cont [15/16] 0.0, 128
      %750 = vxpose.xlu0.b32.end [16/16] 0.0, 128
      %v751 = vpop.trf.xlu0
      %v752 = vpop.trf.xlu0
      %v753 = vpop.trf.xlu0
      %v754 = vpop.trf.xlu0
      %v755 = vpop.trf.xlu0
      %v756 = vpop.trf.xlu0
      %v757 = vpop.trf.xlu0
      %v758 = vpop.trf.xlu0
      %v759 = vpop.trf.xlu0
      %v760 = vpop.trf.xlu0
      %v761 = vpop.trf.xlu0
      %v762 = vpop.trf.xlu0
      %v763 = vpop.trf.xlu0
      %v764 = vpop.trf.xlu0
      %v765 = vpop.trf.xlu0
      %v766 = vpop.trf.xlu0
      %767 = vxpose.xlu0.b32.start [1/16] %v540, 128
      %768 = vxpose.xlu0.b32.cont [2/16] 0.0, 128
      %769 = vxpose.xlu0.b32.cont [3/16] 0.0, 128
      %770 = vxpose.xlu0.b32.cont [4/16] 0.0, 128
      %771 = vxpose.xlu0.b32.cont [5/16] 0.0, 128
      %772 = vxpose.xlu0.b32.cont [6/16] 0.0, 128
      %773 = vxpose.xlu0.b32.cont [7/16] 0.0, 128
      %774 = vxpose.xlu0.b32.cont [8/16] 0.0, 128
      %775 = vxpose.xlu0.b32.cont [9/16] 0.0, 128
      %776 = vxpose.xlu0.b32.cont [10/16] 0.0, 128
      %777 = vxpose.xlu0.b32.cont [11/16] 0.0, 128
      %778 = vxpose.xlu0.b32.cont [12/16] 0.0, 128
      %779 = vxpose.xlu0.b32.cont [13/16] 0.0, 128
      %780 = vxpose.xlu0.b32.cont [14/16] 0.0, 128
      %781 = vxpose.xlu0.b32.cont [15/16] 0.0, 128
      %782 = vxpose.xlu0.b32.end [16/16] 0.0, 128
      %v783 = vpop.trf.xlu0
      %v784 = vpop.trf.xlu0
      %v785 = vpop.trf.xlu0
      %v786 = vpop.trf.xlu0
      %v787 = vpop.trf.xlu0
      %v788 = vpop.trf.xlu0
      %v789 = vpop.trf.xlu0
      %v790 = vpop.trf.xlu0
      %v791 = vpop.trf.xlu0
      %v792 = vpop.trf.xlu0
      %v793 = vpop.trf.xlu0
      %v794 = vpop.trf.xlu0
      %v795 = vpop.trf.xlu0
      %v796 = vpop.trf.xlu0
      %v797 = vpop.trf.xlu0
      %v798 = vpop.trf.xlu0
      %vm799 = vcmask 64512
      %v801 = vsel %vm799, %v687, 0
      %803 = vmatpush.msra.mxu0 0.0
      %804 = vmatpush.msra.mxu0 0.0
      %805 = vmatpush.msra.mxu0 0.0
      %806 = vmatpush.msra.mxu0 0.0
      %807 = vmatpush.msra.mxu0 0.0
      %808 = vmatpush.msra.mxu0 0.0
      %809 = vmatpush.msra.mxu0 0.0
      %810 = vmatpush.msra.mxu0 0.0
      %811 = vmatpush.msra.mxu0 0.0
      %812 = vmatpush.msra.mxu0 0.0
      %813 = vmatpush.msra.mxu0 0.0
      %814 = vmatpush.msra.mxu0 0.0
      %815 = vmatpush.msra.mxu0 0.0
      %816 = vmatpush.msra.mxu0 0.0
      %817 = vmatpush.msra.mxu0 0.0
      %818 = vmatpush.msra.mxu0 %v597
      %819 = vmatmul.f32.gmra.mxu0 %v801
      %v820 = vpop.f32.mrf.mxu0
      %v821 = vadd.f32 0.0, %v820
      %822 = vdwg.mxu0
      %v824 = vsel %vm799, %v719, 0
      %826 = vmatpush.msra.mxu0 0.0
      %827 = vmatpush.msra.mxu0 0.0
      %828 = vmatpush.msra.mxu0 0.0
      %829 = vmatpush.msra.mxu0 0.0
      %830 = vmatpush.msra.mxu0 0.0
      %831 = vmatpush.msra.mxu0 0.0
      %832 = vmatpush.msra.mxu0 0.0
      %833 = vmatpush.msra.mxu0 0.0
      %834 = vmatpush.msra.mxu0 0.0
      %835 = vmatpush.msra.mxu0 0.0
      %836 = vmatpush.msra.mxu0 0.0
      %837 = vmatpush.msra.mxu0 0.0
      %838 = vmatpush.msra.mxu0 0.0
      %839 = vmatpush.msra.mxu0 0.0
      %840 = vmatpush.msra.mxu0 0.0
      %841 = vmatpush.msra.mxu0 %v599
      %842 = vmatmul.f32.gmra.mxu0 %v824
      %v843 = vpop.f32.mrf.mxu0
      %v844 = vadd.f32 0.0, %v843
      %845 = vdwg.mxu0
      %v847 = vsel %vm799, %v751, 0
      %849 = vmatpush.msra.mxu0 0.0
      %850 = vmatpush.msra.mxu0 0.0
      %851 = vmatpush.msra.mxu0 0.0
      %852 = vmatpush.msra.mxu0 0.0
      %853 = vmatpush.msra.mxu0 0.0
      %854 = vmatpush.msra.mxu0 0.0
      %855 = vmatpush.msra.mxu0 0.0
      %856 = vmatpush.msra.mxu0 0.0
      %857 = vmatpush.msra.mxu0 0.0
      %858 = vmatpush.msra.mxu0 0.0
      %859 = vmatpush.msra.mxu0 0.0
      %860 = vmatpush.msra.mxu0 0.0
      %861 = vmatpush.msra.mxu0 0.0
      %862 = vmatpush.msra.mxu0 0.0
      %863 = vmatpush.msra.mxu0 0.0
      %864 = vmatpush.msra.mxu0 %v602
      %865 = vmatmul.f32.gmra.mxu0 %v847
      %v866 = vpop.f32.mrf.mxu0
      %v867 = vadd.f32 0.0, %v866
      %868 = vdwg.mxu0
      %v870 = vsel %vm799, %v783, 0
      %872 = vmatpush.msra.mxu0 0.0
      %873 = vmatpush.msra.mxu0 0.0
      %874 = vmatpush.msra.mxu0 0.0
      %875 = vmatpush.msra.mxu0 0.0
      %876 = vmatpush.msra.mxu0 0.0
      %877 = vmatpush.msra.mxu0 0.0
      %878 = vmatpush.msra.mxu0 0.0
      %879 = vmatpush.msra.mxu0 0.0
      %880 = vmatpush.msra.mxu0 0.0
      %881 = vmatpush.msra.mxu0 0.0
      %882 = vmatpush.msra.mxu0 0.0
      %883 = vmatpush.msra.mxu0 0.0
      %884 = vmatpush.msra.mxu0 0.0
      %885 = vmatpush.msra.mxu0 0.0
      %886 = vmatpush.msra.mxu0 0.0
      %887 = vmatpush.msra.mxu0 %v604
      %888 = vmatmul.f32.gmra.mxu0 %v870
      %v889 = vpop.f32.mrf.mxu0
      %v890 = vadd.f32 0.0, %v889
      %891 = vdwg.mxu0
      %v892 = vsel %vm799, %v821, -inf
      %893 = vmax.xlane.f32.xlu0 %v892
      %v894 = vpop.xlane.xlu0 %893
      %v895 = vsel %vm799, %v844, -inf
      %896 = vmax.xlane.f32.xlu0 %v895
      %v897 = vpop.xlane.xlu0 %896
      %v898 = vsel %vm799, %v867, -inf
      %899 = vmax.xlane.f32.xlu0 %v898
      %v900 = vpop.xlane.xlu0 %899
      %v901 = vsel %vm799, %v890, -inf
      %902 = vmax.xlane.f32.xlu0 %v901
      %v903 = vpop.xlane.xlu0 %902
      %v904 = vsub.f32 %v821, %v894
      %v905 = vsub.f32 %v844, %v897
      %v906 = vsub.f32 %v867, %v900
      %v907 = vsub.f32 %v890, %v903
      %v908 = vmul.f32 %v904, 1.442695
      %v909 = vpow.pop %v908
      %v910 = vmul.f32 %v905, 1.442695
      %v911 = vpow.pop %v910
      %v912 = vmul.f32 %v906, 1.442695
      %v913 = vpow.pop %v912
      %v914 = vmul.f32 %v907, 1.442695
      %v915 = vpow.pop %v914
      %v916 = vsel %vm799, %v909, 0.0
      %917 = vadd.xlane.f32.xlu0 %v916
      %v918 = vpop.xlane.xlu0 %917
      %v919 = vsel %vm799, %v911, 0.0
      %920 = vadd.xlane.f32.xlu0 %v919
      %v921 = vpop.xlane.xlu0 %920
      %v922 = vsel %vm799, %v913, 0.0
      %923 = vadd.xlane.f32.xlu0 %v922
      %v924 = vpop.xlane.xlu0 %923
      %v925 = vsel %vm799, %v915, 0.0
      %926 = vadd.xlane.f32.xlu0 %v925
      %v927 = vpop.xlane.xlu0 %926
      %v928 = vrcp.pop %v918
      %v929 = vrcp.pop %v921
      %v930 = vrcp.pop %v924
      %v931 = vrcp.pop %v927
      %v932 = vmul.f32 %v909, %v928
      %v933 = vmul.f32 %v911, %v929
      %v934 = vmul.f32 %v913, %v930
      %v935 = vmul.f32 %v915, %v931
      %v937 = vsel %vm799, %v932, 0
      %v940 = vsel %vm799, %v662, 0
      %942 = vmatpush.xpose.msra.mxu0 0.0
      %943 = vmatpush.xpose.msra.mxu0 0.0
      %944 = vmatpush.xpose.msra.mxu0 0.0
      %945 = vmatpush.xpose.msra.mxu0 0.0
      %946 = vmatpush.xpose.msra.mxu0 0.0
      %947 = vmatpush.xpose.msra.mxu0 0.0
      %948 = vmatpush.xpose.msra.mxu0 0.0
      %949 = vmatpush.xpose.msra.mxu0 0.0
      %950 = vmatpush.xpose.msra.mxu0 0.0
      %951 = vmatpush.xpose.msra.mxu0 0.0
      %952 = vmatpush.xpose.msra.mxu0 0.0
      %953 = vmatpush.xpose.msra.mxu0 0.0
      %954 = vmatpush.xpose.msra.mxu0 0.0
      %955 = vmatpush.xpose.msra.mxu0 0.0
      %956 = vmatpush.xpose.msra.mxu0 0.0
      %957 = vmatpush.xpose.msra.mxu0 %v940
      %958 = vmatmul.f32.gmra.mxu0 %v937
      %v959 = vpop.f32.mrf.mxu0
      %v960 = vadd.f32 0.0, %v959
      %961 = vdwg.mxu0
      %v963 = vsel %vm799, %v933, 0
      %v966 = vsel %vm799, %v664, 0
      %968 = vmatpush.xpose.msra.mxu0 0.0
      %969 = vmatpush.xpose.msra.mxu0 0.0
      %970 = vmatpush.xpose.msra.mxu0 0.0
      %971 = vmatpush.xpose.msra.mxu0 0.0
      %972 = vmatpush.xpose.msra.mxu0 0.0
      %973 = vmatpush.xpose.msra.mxu0 0.0
      %974 = vmatpush.xpose.msra.mxu0 0.0
      %975 = vmatpush.xpose.msra.mxu0 0.0
      %976 = vmatpush.xpose.msra.mxu0 0.0
      %977 = vmatpush.xpose.msra.mxu0 0.0
      %978 = vmatpush.xpose.msra.mxu0 0.0
      %979 = vmatpush.xpose.msra.mxu0 0.0
      %980 = vmatpush.xpose.msra.mxu0 0.0
      %981 = vmatpush.xpose.msra.mxu0 0.0
      %982 = vmatpush.xpose.msra.mxu0 0.0
      %983 = vmatpush.xpose.msra.mxu0 %v966
      %984 = vmatmul.f32.gmra.mxu0 %v963
      %v985 = vpop.f32.mrf.mxu0
      %v986 = vadd.f32 0.0, %v985
      %987 = vdwg.mxu0
      %v989 = vsel %vm799, %v934, 0
      %v992 = vsel %vm799, %v667, 0
      %994 = vmatpush.xpose.msra.mxu0 0.0
      %995 = vmatpush.xpose.msra.mxu0 0.0
      %996 = vmatpush.xpose.msra.mxu0 0.0
      %997 = vmatpush.xpose.msra.mxu0 0.0
      %998 = vmatpush.xpose.msra.mxu0 0.0
      %999 = vmatpush.xpose.msra.mxu0 0.0
      %1000 = vmatpush.xpose.msra.mxu0 0.0
      %1001 = vmatpush.xpose.msra.mxu0 0.0
      %1002 = vmatpush.xpose.msra.mxu0 0.0
      %1003 = vmatpush.xpose.msra.mxu0 0.0
      %1004 = vmatpush.xpose.msra.mxu0 0.0
      %1005 = vmatpush.xpose.msra.mxu0 0.0
      %1006 = vmatpush.xpose.msra.mxu0 0.0
      %1007 = vmatpush.xpose.msra.mxu0 0.0
      %1008 = vmatpush.xpose.msra.mxu0 0.0
      %1009 = vmatpush.xpose.msra.mxu0 %v992
      %1010 = vmatmul.f32.gmra.mxu0 %v989
      %v1011 = vpop.f32.mrf.mxu0
      %v1012 = vadd.f32 0.0, %v1011
      %1013 = vdwg.mxu0
      %v1015 = vsel %vm799, %v935, 0
      %v1018 = vsel %vm799, %v669, 0
      %1020 = vmatpush.xpose.msra.mxu0 0.0
      %1021 = vmatpush.xpose.msra.mxu0 0.0
      %1022 = vmatpush.xpose.msra.mxu0 0.0
      %1023 = vmatpush.xpose.msra.mxu0 0.0
      %1024 = vmatpush.xpose.msra.mxu0 0.0
      %1025 = vmatpush.xpose.msra.mxu0 0.0
      %1026 = vmatpush.xpose.msra.mxu0 0.0
      %1027 = vmatpush.xpose.msra.mxu0 0.0
      %1028 = vmatpush.xpose.msra.mxu0 0.0
      %1029 = vmatpush.xpose.msra.mxu0 0.0
      %1030 = vmatpush.xpose.msra.mxu0 0.0
      %1031 = vmatpush.xpose.msra.mxu0 0.0
      %1032 = vmatpush.xpose.msra.mxu0 0.0
      %1033 = vmatpush.xpose.msra.mxu0 0.0
      %1034 = vmatpush.xpose.msra.mxu0 0.0
      %1035 = vmatpush.xpose.msra.mxu0 %v1018
      %1036 = vmatmul.f32.gmra.mxu0 %v1015
      %v1037 = vpop.f32.mrf.mxu0
      %v1038 = vadd.f32 0.0, %v1037
      %1039 = vdwg.mxu0
      %1040 = vxpose.xlu0.b32.start [1/16] %v960, 128
      %1041 = vxpose.xlu0.b32.cont [2/16] 0.0, 128
      %1042 = vxpose.xlu0.b32.cont [3/16] 0.0, 128
      %1043 = vxpose.xlu0.b32.cont [4/16] 0.0, 128
      %1044 = vxpose.xlu0.b32.cont [5/16] 0.0, 128
      %1045 = vxpose.xlu0.b32.cont [6/16] 0.0, 128
      %1046 = vxpose.xlu0.b32.cont [7/16] 0.0, 128
      %1047 = vxpose.xlu0.b32.cont [8/16] 0.0, 128
      %1048 = vxpose.xlu0.b32.cont [9/16] 0.0, 128
      %1049 = vxpose.xlu0.b32.cont [10/16] 0.0, 128
      %1050 = vxpose.xlu0.b32.cont [11/16] 0.0, 128
      %1051 = vxpose.xlu0.b32.cont [12/16] 0.0, 128
      %1052 = vxpose.xlu0.b32.cont [13/16] 0.0, 128
      %1053 = vxpose.xlu0.b32.cont [14/16] 0.0, 128
      %1054 = vxpose.xlu0.b32.cont [15/16] 0.0, 128
      %1055 = vxpose.xlu0.b32.end [16/16] 0.0, 128
      %v1056 = vpop.trf.xlu0
      %v1057 = vpop.trf.xlu0
      %v1058 = vpop.trf.xlu0
      %v1059 = vpop.trf.xlu0
      %v1060 = vpop.trf.xlu0
      %v1061 = vpop.trf.xlu0
      %v1062 = vpop.trf.xlu0
      %v1063 = vpop.trf.xlu0
      %v1064 = vpop.trf.xlu0
      %v1065 = vpop.trf.xlu0
      %v1066 = vpop.trf.xlu0
      %v1067 = vpop.trf.xlu0
      %v1068 = vpop.trf.xlu0
      %v1069 = vpop.trf.xlu0
      %v1070 = vpop.trf.xlu0
      %v1071 = vpop.trf.xlu0
      %1072 = vxpose.xlu0.b32.start [1/16] %v986, 128
      %1073 = vxpose.xlu0.b32.cont [2/16] 0.0, 128
      %1074 = vxpose.xlu0.b32.cont [3/16] 0.0, 128
      %1075 = vxpose.xlu0.b32.cont [4/16] 0.0, 128
      %1076 = vxpose.xlu0.b32.cont [5/16] 0.0, 128
      %1077 = vxpose.xlu0.b32.cont [6/16] 0.0, 128
      %1078 = vxpose.xlu0.b32.cont [7/16] 0.0, 128
      %1079 = vxpose.xlu0.b32.cont [8/16] 0.0, 128
      %1080 = vxpose.xlu0.b32.cont [9/16] 0.0, 128
      %1081 = vxpose.xlu0.b32.cont [10/16] 0.0, 128
      %1082 = vxpose.xlu0.b32.cont [11/16] 0.0, 128
      %1083 = vxpose.xlu0.b32.cont [12/16] 0.0, 128
      %1084 = vxpose.xlu0.b32.cont [13/16] 0.0, 128
      %1085 = vxpose.xlu0.b32.cont [14/16] 0.0, 128
      %1086 = vxpose.xlu0.b32.cont [15/16] 0.0, 128
      %1087 = vxpose.xlu0.b32.end [16/16] 0.0, 128
      %v1088 = vpop.trf.xlu0
      %v1089 = vpop.trf.xlu0
      %v1090 = vpop.trf.xlu0
      %v1091 = vpop.trf.xlu0
      %v1092 = vpop.trf.xlu0
      %v1093 = vpop.trf.xlu0
      %v1094 = vpop.trf.xlu0
      %v1095 = vpop.trf.xlu0
      %v1096 = vpop.trf.xlu0
      %v1097 = vpop.trf.xlu0
      %v1098 = vpop.trf.xlu0
      %v1099 = vpop.trf.xlu0
      %v1100 = vpop.trf.xlu0
      %v1101 = vpop.trf.xlu0
      %v1102 = vpop.trf.xlu0
      %v1103 = vpop.trf.xlu0
      %1104 = vxpose.xlu0.b32.start [1/16] %v1012, 128
      %1105 = vxpose.xlu0.b32.cont [2/16] 0.0, 128
      %1106 = vxpose.xlu0.b32.cont [3/16] 0.0, 128
      %1107 = vxpose.xlu0.b32.cont [4/16] 0.0, 128
      %1108 = vxpose.xlu0.b32.cont [5/16] 0.0, 128
      %1109 = vxpose.xlu0.b32.cont [6/16] 0.0, 128
      %1110 = vxpose.xlu0.b32.cont [7/16] 0.0, 128
      %1111 = vxpose.xlu0.b32.cont [8/16] 0.0, 128
      %1112 = vxpose.xlu0.b32.cont [9/16] 0.0, 128
      %1113 = vxpose.xlu0.b32.cont [10/16] 0.0, 128
      %1114 = vxpose.xlu0.b32.cont [11/16] 0.0, 128
      %1115 = vxpose.xlu0.b32.cont [12/16] 0.0, 128
      %1116 = vxpose.xlu0.b32.cont [13/16] 0.0, 128
      %1117 = vxpose.xlu0.b32.cont [14/16] 0.0, 128
      %1118 = vxpose.xlu0.b32.cont [15/16] 0.0, 128
      %1119 = vxpose.xlu0.b32.end [16/16] 0.0, 128
      %v1120 = vpop.trf.xlu0
      %v1121 = vpop.trf.xlu0
      %v1122 = vpop.trf.xlu0
      %v1123 = vpop.trf.xlu0
      %v1124 = vpop.trf.xlu0
      %v1125 = vpop.trf.xlu0
      %v1126 = vpop.trf.xlu0
      %v1127 = vpop.trf.xlu0
      %v1128 = vpop.trf.xlu0
      %v1129 = vpop.trf.xlu0
      %v1130 = vpop.trf.xlu0
      %v1131 = vpop.trf.xlu0
      %v1132 = vpop.trf.xlu0
      %v1133 = vpop.trf.xlu0
      %v1134 = vpop.trf.xlu0
      %v1135 = vpop.trf.xlu0
      %1136 = vxpose.xlu0.b32.start [1/16] %v1038, 128
      %1137 = vxpose.xlu0.b32.cont [2/16] 0.0, 128
      %1138 = vxpose.xlu0.b32.cont [3/16] 0.0, 128
      %1139 = vxpose.xlu0.b32.cont [4/16] 0.0, 128
      %1140 = vxpose.xlu0.b32.cont [5/16] 0.0, 128
      %1141 = vxpose.xlu0.b32.cont [6/16] 0.0, 128
      %1142 = vxpose.xlu0.b32.cont [7/16] 0.0, 128
      %1143 = vxpose.xlu0.b32.cont [8/16] 0.0, 128
      %1144 = vxpose.xlu0.b32.cont [9/16] 0.0, 128
      %1145 = vxpose.xlu0.b32.cont [10/16] 0.0, 128
      %1146 = vxpose.xlu0.b32.cont [11/16] 0.0, 128
      %1147 = vxpose.xlu0.b32.cont [12/16] 0.0, 128
      %1148 = vxpose.xlu0.b32.cont [13/16] 0.0, 128
      %1149 = vxpose.xlu0.b32.cont [14/16] 0.0, 128
      %1150 = vxpose.xlu0.b32.cont [15/16] 0.0, 128
      %1151 = vxpose.xlu0.b32.end [16/16] 0.0, 128
      %v1152 = vpop.trf.xlu0
      %v1153 = vpop.trf.xlu0
      %v1154 = vpop.trf.xlu0
      %v1155 = vpop.trf.xlu0
      %v1156 = vpop.trf.xlu0
      %v1157 = vpop.trf.xlu0
      %v1158 = vpop.trf.xlu0
      %v1159 = vpop.trf.xlu0
      %v1160 = vpop.trf.xlu0
      %v1161 = vpop.trf.xlu0
      %v1162 = vpop.trf.xlu0
      %v1163 = vpop.trf.xlu0
      %v1164 = vpop.trf.xlu0
      %v1165 = vpop.trf.xlu0
      %v1166 = vpop.trf.xlu0
      %v1167 = vpop.trf.xlu0
      %1168 = vxpose.xlu0.b32.start [1/16] %v1056, 128
      %1169 = vxpose.xlu0.b32.cont [2/16] %v1088, 128
      %1170 = vxpose.xlu0.b32.cont [3/16] %v1120, 128
      %1171 = vxpose.xlu0.b32.cont [4/16] %v1152, 128
      %1172 = vxpose.xlu0.b32.cont [5/16] 0.0, 128
      %1173 = vxpose.xlu0.b32.cont [6/16] 0.0, 128
      %1174 = vxpose.xlu0.b32.cont [7/16] 0.0, 128
      %1175 = vxpose.xlu0.b32.cont [8/16] 0.0, 128
      %1176 = vxpose.xlu0.b32.cont [9/16] 0.0, 128
      %1177 = vxpose.xlu0.b32.cont [10/16] 0.0, 128
      %1178 = vxpose.xlu0.b32.cont [11/16] 0.0, 128
      %1179 = vxpose.xlu0.b32.cont [12/16] 0.0, 128
      %1180 = vxpose.xlu0.b32.cont [13/16] 0.0, 128
      %1181 = vxpose.xlu0.b32.cont [14/16] 0.0, 128
      %1182 = vxpose.xlu0.b32.cont [15/16] 0.0, 128
      %1183 = vxpose.xlu0.b32.end [16/16] 0.0, 128
      %v1184 = vpop.trf.xlu0
      %v1185 = vpop.trf.xlu0
      %v1186 = vpop.trf.xlu0
      %v1187 = vpop.trf.xlu0
      %v1188 = vpop.trf.xlu0
      %v1189 = vpop.trf.xlu0
      %v1190 = vpop.trf.xlu0
      %v1191 = vpop.trf.xlu0
      %v1192 = vpop.trf.xlu0
      %v1193 = vpop.trf.xlu0
      %v1194 = vpop.trf.xlu0
      %v1195 = vpop.trf.xlu0
      %v1196 = vpop.trf.xlu0
      %v1197 = vpop.trf.xlu0
      %v1198 = vpop.trf.xlu0
      %v1199 = vpop.trf.xlu0
      %v1200 = vld [vmem:[%s3] sm:$0xf]
      %v1201 = vld [vmem:[%s3 + $0x4] sm:$0xf]
      %v1202 = vld [vmem:[%s3 + $0x8] sm:$0xf]
      %v1203 = vld [vmem:[%s3 + $0xc] sm:$0xf]
      %v1204 = vld [vmem:[%s4] sm:$0x1]
      %v1205 = vpack.c.bf16 %v1184, %v1184
      %v1207 = vperm.slane %v1204, 0
      %v1213 = vunpack.c.l.b16 %v1200
      %v1214 = vunpack.c.l.b16 %v1201
      %v1215 = vunpack.c.l.b16 %v1202
      %v1216 = vunpack.c.l.b16 %v1203
      %v1217 = vpack.c.b16 %v1214, %v1213
      %v1218 = vpack.c.b16 %v1216, %v1215
      %v1222 = vsel %vm511, %v1205, 0
      %1224 = vmatpush.bf16.msra.mxu0 0
      %1225 = vmatpush.bf16.msra.mxu0 0
      %1226 = vmatpush.bf16.msra.mxu0 0
      %1227 = vmatpush.bf16.msra.mxu0 0
      %1228 = vmatpush.bf16.msra.mxu0 0
      %1229 = vmatpush.bf16.msra.mxu0 0
      %1230 = vmatpush.bf16.msra.mxu0 %v1218
      %1231 = vmatpush.bf16.msra.mxu0 %v1217
      %1232 = vmatmul.bf16.gmra.mxu0 %v1222
      %v1233 = vpop.f32.mrf.mxu0
      %v1234 = vadd.f32 %v1207, %v1233
      %v1235 = vpop.f32.mrf.mxu0
      %1236 = vdwg.mxu0
      %v1237 = vadd.f32 %v438, %v1234
      %v1238 = vld [vmem:[%s5] sm:$0x1]
      %v1239 = vld [vmem:[%s6] sm:$0x1]
      %v1240 = vsel %vm511, %v1237, 0.0
      %1241 = vadd.xlane.f32.xlu0 %v1240
      %v1242 = vpop.xlane.xlu0 %1241
      %v1243 = vrcp.pop 32.0
      %v1244 = vmul.f32 32.0, %v1243
      %v1245 = vsub.f32 1.0, %v1244
      %v1246 = vmul.f32 %v1243, %v1245
      %v1247 = vadd.f32 %v1243, %v1246
      %vm1248 = vweird.f32 %v1243
      %v1249 = vsel %vm1248, %v1243, %v1247
      %v1250 = vmul.f32 %v1242, %v1249
      %v1251 = vsub.f32 %v1237, %v1250
      %v1252 = vmul.f32 %v1251, %v1251
      %v1253 = vsel %vm511, %v1252, 0.0
      %1254 = vadd.xlane.f32.xlu0 %v1253
      %v1255 = vpop.xlane.xlu0 %1254
      %v1256 = vmul.f32 %v1255, %v1249
      %v1257 = vadd.f32 %v1256, 1e-05
      %v1258 = vrsqrt.pop %v1257
      %v1259 = vmul.f32 %v1258, %v1257
      %v1260 = vmul.f32 %v1259, %v1258
      %v1261 = vmul.f32 0.5, %v1260
      %v1262 = vsub.f32 1.5, %v1261
      %v1263 = vmul.f32 %v1258, %v1262
      %vm1264 = vweird.f32 %v1257
      %vm1265 = vweird.f32 %v1258
      %vm1266 = vmor %vm1264, %vm1265
      %v1267 = vsel %vm1266, %v1258, %v1263
      %v1268 = vmul.f32 %v1251, %v1267
      %v1270 = vperm.slane %v1238, 0
      %v1272 = vmul.f32 %v1268, %v1270
      %v1274 = vperm.slane %v1239, 0
      %v1276 = vadd.f32 %v1272, %v1274
      %v1277 = vld [vmem:[%s7] sm:$0xf]
      %v1278 = vld [vmem:[%s7 + $0x4] sm:$0xf]
      %v1279 = vld [vmem:[%s7 + $0x8] sm:$0xf]
      %v1280 = vld [vmem:[%s7 + $0xc] sm:$0xf]
      %v1281 = vld [vmem:[%s8] sm:$0x1]
      %v1282 = vpack.c.bf16 %v1276, %v1276
      %v1284 = vperm.slane %v1281, 0
      %v1290 = vunpack.c.l.b16 %v1277
      %v1291 = vunpack.c.l.b16 %v1278
      %v1292 = vunpack.c.l.b16 %v1279
      %v1293 = vunpack.c.l.b16 %v1280
      %v1294 = vpack.c.b16 %v1291, %v1290
      %v1295 = vpack.c.b16 %v1293, %v1292
      %v1299 = vsel %vm511, %v1282, 0
      %1301 = vmatpush.bf16.msra.mxu0 0
      %1302 = vmatpush.bf16.msra.mxu0 0
      %1303 = vmatpush.bf16.msra.mxu0 0
      %1304 = vmatpush.bf16.msra.mxu0 0
      %1305 = vmatpush.bf16.msra.mxu0 0
      %1306 = vmatpush.bf16.msra.mxu0 0
      %1307 = vmatpush.bf16.msra.mxu0 %v1295
      %1308 = vmatpush.bf16.msra.mxu0 %v1294
      %1309 = vmatmul.bf16.gmra.mxu0 %v1299
      %v1310 = vpop.f32.mrf.mxu0
      %v1311 = vadd.f32 %v1284, %v1310
      %v1312 = vpop.f32.mrf.mxu0
      %1313 = vdwg.mxu0
      %v1314 = vmax.f32 %v1311, 0.0
      %v1315 = vld [vmem:[%s9] sm:$0xf]
      %v1316 = vld [vmem:[%s9 + $0x4] sm:$0xf]
      %v1317 = vld [vmem:[%s9 + $0x8] sm:$0xf]
      %v1318 = vld [vmem:[%s9 + $0xc] sm:$0xf]
      %v1319 = vld [vmem:[%s9 + $0x10] sm:$0xf]
      %v1320 = vld [vmem:[%s9 + $0x14] sm:$0xf]
      %v1321 = vld [vmem:[%s9 + $0x18] sm:$0xf]
      %v1322 = vld [vmem:[%s9 + $0x1c] sm:$0xf]
      %v1323 = vld [vmem:[%s10] sm:$0x1]
      %v1324 = vpack.c.bf16 %v1314, %v1314
      %v1326 = vperm.slane %v1323, 0
      %v1336 = vunpack.c.l.b16 %v1315
      %v1337 = vunpack.c.l.b16 %v1316
      %v1338 = vunpack.c.l.b16 %v1317
      %v1339 = vunpack.c.l.b16 %v1318
      %v1340 = vunpack.c.l.b16 %v1319
      %v1341 = vunpack.c.l.b16 %v1320
      %v1342 = vunpack.c.l.b16 %v1321
      %v1343 = vunpack.c.l.b16 %v1322
      %v1344 = vpack.c.b16 %v1337, %v1336
      %v1345 = vpack.c.b16 %v1339, %v1338
      %v1346 = vpack.c.b16 %v1341, %v1340
      %v1347 = vpack.c.b16 %v1343, %v1342
      %vm1352 = vcmask 523264
      %v1354 = vsel %vm1352, %v1324, 0
      %1356 = vmatpush.bf16.msra.mxu0 0
      %1357 = vmatpush.bf16.msra.mxu0 0
      %1358 = vmatpush.bf16.msra.mxu0 0
      %1359 = vmatpush.bf16.msra.mxu0 0
      %1360 = vmatpush.bf16.msra.mxu0 %v1347
      %1361 = vmatpush.bf16.msra.mxu0 %v1346
      %1362 = vmatpush.bf16.msra.mxu0 %v1345
      %1363 = vmatpush.bf16.msra.mxu0 %v1344
      %1364 = vmatmul.bf16.gmra.mxu0 %v1354
      %v1365 = vpop.f32.mrf.mxu0
      %v1366 = vadd.f32 %v1326, %v1365
      %v1367 = vpop.f32.mrf.mxu0
      %1368 = vdwg.mxu0
      %v1369 = vadd.f32 %v1276, %v1366
      %v1370 = vld [vmem:[%s11] sm:$0x1]
      %v1371 = vld [vmem:[%s12] sm:$0x1]
      %v1372 = vsel %vm511, %v1369, 0.0
      %1373 = vadd.xlane.f32.xlu0 %v1372
      %v1374 = vpop.xlane.xlu0 %1373
      %v1375 = vmul.f32 %v1374, %v1249
      %v1376 = vsub.f32 %v1369, %v1375
      %v1377 = vmul.f32 %v1376, %v1376
      %v1378 = vsel %vm511, %v1377, 0.0
      %1379 = vadd.xlane.f32.xlu0 %v1378
      %v1380 = vpop.xlane.xlu0 %1379
      %v1381 = vmul.f32 %v1380, %v1249
      %v1382 = vadd.f32 %v1381, 1e-05
      %v1383 = vrsqrt.pop %v1382
      %v1384 = vmul.f32 %v1383, %v1382
      %v1385 = vmul.f32 %v1384, %v1383
      %v1386 = vmul.f32 0.5, %v1385
      %v1387 = vsub.f32 1.5, %v1386
      %v1388 = vmul.f32 %v1383, %v1387
      %vm1389 = vweird.f32 %v1382
      %vm1390 = vweird.f32 %v1383
      %vm1391 = vmor %vm1389, %vm1390
      %v1392 = vsel %vm1391, %v1383, %v1388
      %v1393 = vmul.f32 %v1376, %v1392
      %v1395 = vperm.slane %v1370, 0
      %v1397 = vmul.f32 %v1393, %v1395
      %v1399 = vperm.slane %v1371, 0
      %v1401 = vadd.f32 %v1397, %v1399
      %v1402 = vpack.c.bf16 %v1401, %v1401
      %vm1403 = vcmask 257024
      %1404 = vst.msk [vmem:[%s435] sm:$0xf] %vm1403, %v1402
      %p1405 = scmp.lt.s32.totalorder %s24, 1
      %s1406 = scalar_select %p1405, %s24, 1
      %s1407 = smul.addr %s1406, 4
      %s1408 = scalar_lea.vmem %s13, %s1407
      // Predicated region
      $region73: #{early_transformer_forward.10} parent=71 // pred_check
        %p1409 = pneg %p320
      $region74: #{early_transformer_forward.10} parent=71 // pred_check_branch
        %1411 = sbr.rel (%p1409) target = $region76
      $region75: #{early_transformer_forward.10} parent=71 // pred_region
        _
      $region76: #{early_transformer_forward.10} parent=71 // pred_fallthru
        _
    $region72: #{early_transformer_forward.10} parent=5 // pred_fallthru
      _
    %p1412 = scmp.le.s32.totalorder 2, %s19
    // Predicated region
    $region77: #{early_transformer_forward.10} parent=5 // pred_check
      %p1413 = pneg %p1412
    $region78: #{early_transformer_forward.10} parent=5 // pred_check_branch
      %1415 = sbr.rel (%p1413) target = $region80
    $region79: #{early_transformer_forward.10} parent=5 // pred_region
      %s1416 = ssub.s32 %s19, 2
      // Predicated region
      $region81: #{early_transformer_forward.10} parent=79 // pred_check
        %p1417 = pneg %p326
      $region82: #{early_transformer_forward.10} parent=79 // pred_check_branch
        %1419 = sbr.rel (%p1417) target = $region84
      $region83: #{early_transformer_forward.10} parent=79 // pred_region
        %p1420 = scmp.lt.s32.totalorder %s25, 1
        %s1421 = scalar_select %p1420, %s25, 1
        %s1422 = smul.addr %s1421, 4
        %s1423 = scalar_lea.vmem %s13, %s1422
      $region84: #{early_transformer_forward.10} parent=79 // pred_fallthru
        _
    $region80: #{early_transformer_forward.10} parent=5 // pred_fallthru
      _
  $region6: #{early_transformer_forward.10} parent=0 // loop_footer
    %s23 = sadd.s32 1, %s19
  $region7: #{early_transformer_forward.10} parent=0 // loop_footer_branch
    %18 = sbr.rel target = $region3
  $region8: #{early_transformer_forward.10} parent=0 // loop_exit
    _

// kernel: early_transformer_forward.13
$region0: #{early_transformer_forward.13}
  #allocation0 [shape = 'u32[]', space=smem, size = 0x4, offset = 0x4, fixed_abs, tag = 'smem constant byte address 0x4 - core index']
  #allocation1 [shape = 'u32[72,128]{1,0:T(1,128)}', space=vmem, size = 0x9000, scoped, tag = 'internal scratch']
  %s0 = inlined_call_operand.vmem [shape: bf16[2,8,32], index: 0, kind: input, shape index: {}]
  %s1 = inlined_call_operand.vmem [shape: bf16[2,8,32], index: 1, kind: input, shape index: {}]
  %s2 = inlined_call_operand.vmem [shape: f32[2,1,8], index: 2, kind: input, shape index: {}]
  %s3 = inlined_call_operand.vmem [shape: bf16[3,32,32], index: 3, kind: input, shape index: {}]
  %s4 = inlined_call_operand.vmem [shape: f32[3,32,1], index: 4, kind: input, shape index: {}]
  %s5 = inlined_call_operand.vmem [shape: bf16[32,32], index: 5, kind: input, shape index: {}]
  %s6 = inlined_call_operand.vmem [shape: f32[1,32], index: 6, kind: input, shape index: {}]
  %s7 = inlined_call_operand.vmem [shape: f32[1,32], index: 7, kind: input, shape index: {}]
  %s8 = inlined_call_operand.vmem [shape: f32[1,32], index: 8, kind: input, shape index: {}]
  %s9 = inlined_call_operand.vmem [shape: bf16[32,32], index: 9, kind: input, shape index: {}]
  %s10 = inlined_call_operand.vmem [shape: f32[32,1], index: 10, kind: input, shape index: {}]
  %s11 = inlined_call_operand.vmem [shape: bf16[2,32,32], index: 11, kind: input, shape index: {}]
  %s12 = inlined_call_operand.vmem [shape: f32[2,32,1], index: 12, kind: input, shape index: {}]
  %s13 = inlined_call_operand.vmem [shape: bf16[32,32], index: 13, kind: input, shape index: {}]
  %s14 = inlined_call_operand.vmem [shape: f32[1,32], index: 14, kind: input, shape index: {}]
  %s15 = inlined_call_operand.vmem [shape: f32[1,32], index: 15, kind: input, shape index: {}]
  %s16 = inlined_call_operand.vmem [shape: f32[1,32], index: 16, kind: input, shape index: {}]
  %s17 = inlined_call_operand.vmem [shape: bf16[32,64], index: 17, kind: input, shape index: {}]
  %s18 = inlined_call_operand.vmem [shape: f32[1,64], index: 18, kind: input, shape index: {}]
  %s19 = inlined_call_operand.vmem [shape: bf16[64,32], index: 19, kind: input, shape index: {}]
  %s20 = inlined_call_operand.vmem [shape: f32[1,32], index: 20, kind: input, shape index: {}]
  %s21 = inlined_call_operand.vmem [shape: f32[1,32], index: 21, kind: input, shape index: {}]
  %s22 = inlined_call_operand.vmem [shape: f32[1,32], index: 22, kind: input, shape index: {}]
  %s23 = inlined_call_operand.vmem [shape: bf16[2,8,32], index: 23, kind: output, shape index: {}]
  %s24 = sld [smem:[#allocation0]]
  $region125: #{early_transformer_forward.13} parent=0
    _
  %s26 = ssub.s32 1, %s24
  %s27 = scalar_select 0, %s26, %s24
  loop: start=0, step=1, limit=4
  $region2: #{early_transformer_forward.13} parent=0 // loop_pre_header
    _
  $region3: #{early_transformer_forward.13} parent=0 // loop_header
    %s29 = sphi 0, %s33
    %p30 = scmp.ge.s32.totalorder %s29, 4
    %s39 = sphi 0, %s41
    %s42 = sphi 0, %s39
    %s43 = sphi 0, %s42
    %s59 = sphi 0, %s43
    %s65 = sphi 0, %s67
    %s68 = sphi 0, %s65
    %s69 = sphi 0, %s68
    %s85 = sphi 0, %s69
    %s91 = sphi 0, %s93
    %s94 = sphi 0, %s91
    %s95 = sphi 0, %s94
    %s111 = sphi 0, %s95
    %s115 = sphi 0, %s115
    %s117 = sphi 0, %s115
    %s118 = sphi 0, %s117
    %s132 = sphi 0, %s118
    %s136 = sphi 0, %s136
    %s138 = sphi 0, %s136
    %s139 = sphi 0, %s138
    %s153 = sphi 0, %s139
    %s157 = sphi 0, %s157
    %s159 = sphi 0, %s157
    %s160 = sphi 0, %s159
    %s174 = sphi 0, %s160
    %s178 = sphi 0, %s178
    %s180 = sphi 0, %s178
    %s181 = sphi 0, %s180
    %s195 = sphi 0, %s181
    %s199 = sphi 0, %s199
    %s201 = sphi 0, %s199
    %s202 = sphi 0, %s201
    %s216 = sphi 0, %s202
    %s220 = sphi 0, %s220
    %s222 = sphi 0, %s220
    %s223 = sphi 0, %s222
    %s237 = sphi 0, %s223
    %s241 = sphi 0, %s241
    %s243 = sphi 0, %s241
    %s244 = sphi 0, %s243
    %s258 = sphi 0, %s244
    %s262 = sphi 0, %s262
    %s264 = sphi 0, %s262
    %s265 = sphi 0, %s264
    %s279 = sphi 0, %s265
    %s283 = sphi 0, %s283
    %s285 = sphi 0, %s283
    %s286 = sphi 0, %s285
    %s300 = sphi 0, %s286
    %s304 = sphi 0, %s304
    %s306 = sphi 0, %s304
    %s307 = sphi 0, %s306
    %s321 = sphi 0, %s307
    %s325 = sphi 0, %s325
    %s327 = sphi 0, %s325
    %s328 = sphi 0, %s327
    %s342 = sphi 0, %s328
    %s346 = sphi 0, %s346
    %s348 = sphi 0, %s346
    %s349 = sphi 0, %s348
    %s363 = sphi 0, %s349
    %s367 = sphi 0, %s367
    %s369 = sphi 0, %s367
    %s370 = sphi 0, %s369
    %s384 = sphi 0, %s370
    %s388 = sphi 0, %s388
    %s390 = sphi 0, %s388
    %s391 = sphi 0, %s390
    %s405 = sphi 0, %s391
    %s409 = sphi 0, %s409
    %s411 = sphi 0, %s409
    %s412 = sphi 0, %s411
    %s426 = sphi 0, %s412
    %s430 = sphi 0, %s430
    %s432 = sphi 0, %s430
    %s433 = sphi 0, %s432
    %s447 = sphi 0, %s433
    %s451 = sphi 0, %s451
    %s453 = sphi 0, %s451
    %s454 = sphi 0, %s453
    %s468 = sphi 0, %s454
    %s472 = sphi 0, %s472
    %s474 = sphi 0, %s472
    %s475 = sphi 0, %s474
    %s489 = sphi 0, %s475
    %s493 = sphi 0, %s493
    %s495 = sphi 0, %s493
    %s496 = sphi 0, %s495
    %s510 = sphi 0, %s496
    %s514 = sphi 0, %s514
    %s516 = sphi 0, %s514
    %s517 = sphi 0, %s516
    %s531 = sphi 0, %s517
    %s537 = sphi 0, %s539
    %s540 = sphi 0, %s537
    %s541 = sphi 0, %s540
    %s557 = sphi 0, %s541
  $region4: #{early_transformer_forward.13} parent=0 // loop_header_branch
    %32 = sbr.rel (%p30) target = $region8
  $region5: #{early_transformer_forward.13} parent=0 // loop_body
    %s34 = ssub.s32 %s29, 1
    %s35 = ssub.s32 %s29, 2
    %s36 = sadd.s32 %s29, 1
    %s37 = ssub.s32 %s29, %s36
    %p38 = scmp.eq.s32.totalorder %s37, 0
    %s40 = sadd.s32 %s39, 1
    %s41 = scalar_select %p38, %s39, %s40
    %p44 = pneg %p38
    %p45 = scmp.eq.s32.totalorder %s29, 1
    %p46 = por %p44, %p45
    %p47 = scmp.ne.s32.totalorder %s39, %s42
    %p48 = scmp.eq.s32.totalorder %s29, 0
    %p49 = por %p47, %p48
    %p50 = scmp.ne.s32.totalorder %s39, %s42
    %p51 = scmp.eq.s32.totalorder %s34, 1
    %p52 = por %p50, %p51
    %p53 = scmp.ne.s32.totalorder %s42, %s43
    %p54 = scmp.eq.s32.totalorder %s34, 0
    %p55 = por %p53, %p54
    %p56 = scmp.ne.s32.totalorder %s42, %s43
    %p57 = scmp.eq.s32.totalorder %s35, 1
    %p58 = por %p56, %p57
    %p60 = scmp.ne.s32.totalorder %s43, %s59
    %p61 = scmp.eq.s32.totalorder %s35, 0
    %p62 = por %p60, %p61
    %s63 = ssub.s32 %s29, %s36
    %p64 = scmp.eq.s32.totalorder %s63, 0
    %s66 = sadd.s32 %s65, 1
    %s67 = scalar_select %p64, %s65, %s66
    %p70 = pneg %p64
    %p71 = scmp.eq.s32.totalorder %s29, 1
    %p72 = por %p70, %p71
    %p73 = scmp.ne.s32.totalorder %s65, %s68
    %p74 = scmp.eq.s32.totalorder %s29, 0
    %p75 = por %p73, %p74
    %p76 = scmp.ne.s32.totalorder %s65, %s68
    %p77 = scmp.eq.s32.totalorder %s34, 1
    %p78 = por %p76, %p77
    %p79 = scmp.ne.s32.totalorder %s68, %s69
    %p80 = scmp.eq.s32.totalorder %s34, 0
    %p81 = por %p79, %p80
    %p82 = scmp.ne.s32.totalorder %s68, %s69
    %p83 = scmp.eq.s32.totalorder %s35, 1
    %p84 = por %p82, %p83
    %p86 = scmp.ne.s32.totalorder %s69, %s85
    %p87 = scmp.eq.s32.totalorder %s35, 0
    %p88 = por %p86, %p87
    %s89 = ssub.s32 %s29, %s36
    %p90 = scmp.eq.s32.totalorder %s89, 0
    %s92 = sadd.s32 %s91, 1
    %s93 = scalar_select %p90, %s91, %s92
    %p96 = pneg %p90
    %p97 = scmp.eq.s32.totalorder %s29, 1
    %p98 = por %p96, %p97
    %p99 = scmp.ne.s32.totalorder %s91, %s94
    %p100 = scmp.eq.s32.totalorder %s29, 0
    %p101 = por %p99, %p100
    %p102 = scmp.ne.s32.totalorder %s91, %s94
    %p103 = scmp.eq.s32.totalorder %s34, 1
    %p104 = por %p102, %p103
    %p105 = scmp.ne.s32.totalorder %s94, %s95
    %p106 = scmp.eq.s32.totalorder %s34, 0
    %p107 = por %p105, %p106
    %p108 = scmp.ne.s32.totalorder %s94, %s95
    %p109 = scmp.eq.s32.totalorder %s35, 1
    %p110 = por %p108, %p109
    %p112 = scmp.ne.s32.totalorder %s95, %s111
    %p113 = scmp.eq.s32.totalorder %s35, 0
    %p114 = por %p112, %p113
    %s116 = sadd.s32 %s115, 1
    %p119 = scmp.eq.s32.totalorder %s29, 1
    %p120 = scmp.ne.s32.totalorder %s115, %s117
    %p121 = scmp.eq.s32.totalorder %s29, 0
    %p122 = por %p120, %p121
    %p123 = scmp.ne.s32.totalorder %s115, %s117
    %p124 = scmp.eq.s32.totalorder %s34, 1
    %p125 = por %p123, %p124
    %p126 = scmp.ne.s32.totalorder %s117, %s118
    %p127 = scmp.eq.s32.totalorder %s34, 0
    %p128 = por %p126, %p127
    %p129 = scmp.ne.s32.totalorder %s117, %s118
    %p130 = scmp.eq.s32.totalorder %s35, 1
    %p131 = por %p129, %p130
    %p133 = scmp.ne.s32.totalorder %s118, %s132
    %p134 = scmp.eq.s32.totalorder %s35, 0
    %p135 = por %p133, %p134
    %s137 = sadd.s32 %s136, 1
    %p140 = scmp.eq.s32.totalorder %s29, 1
    %p141 = scmp.ne.s32.totalorder %s136, %s138
    %p142 = scmp.eq.s32.totalorder %s29, 0
    %p143 = por %p141, %p142
    %p144 = scmp.ne.s32.totalorder %s136, %s138
    %p145 = scmp.eq.s32.totalorder %s34, 1
    %p146 = por %p144, %p145
    %p147 = scmp.ne.s32.totalorder %s138, %s139
    %p148 = scmp.eq.s32.totalorder %s34, 0
    %p149 = por %p147, %p148
    %p150 = scmp.ne.s32.totalorder %s138, %s139
    %p151 = scmp.eq.s32.totalorder %s35, 1
    %p152 = por %p150, %p151
    %p154 = scmp.ne.s32.totalorder %s139, %s153
    %p155 = scmp.eq.s32.totalorder %s35, 0
    %p156 = por %p154, %p155
    %s158 = sadd.s32 %s157, 1
    %p161 = scmp.eq.s32.totalorder %s29, 1
    %p162 = scmp.ne.s32.totalorder %s157, %s159
    %p163 = scmp.eq.s32.totalorder %s29, 0
    %p164 = por %p162, %p163
    %p165 = scmp.ne.s32.totalorder %s157, %s159
    %p166 = scmp.eq.s32.totalorder %s34, 1
    %p167 = por %p165, %p166
    %p168 = scmp.ne.s32.totalorder %s159, %s160
    %p169 = scmp.eq.s32.totalorder %s34, 0
    %p170 = por %p168, %p169
    %p171 = scmp.ne.s32.totalorder %s159, %s160
    %p172 = scmp.eq.s32.totalorder %s35, 1
    %p173 = por %p171, %p172
    %p175 = scmp.ne.s32.totalorder %s160, %s174
    %p176 = scmp.eq.s32.totalorder %s35, 0
    %p177 = por %p175, %p176
    %s179 = sadd.s32 %s178, 1
    %p182 = scmp.eq.s32.totalorder %s29, 1
    %p183 = scmp.ne.s32.totalorder %s178, %s180
    %p184 = scmp.eq.s32.totalorder %s29, 0
    %p185 = por %p183, %p184
    %p186 = scmp.ne.s32.totalorder %s178, %s180
    %p187 = scmp.eq.s32.totalorder %s34, 1
    %p188 = por %p186, %p187
    %p189 = scmp.ne.s32.totalorder %s180, %s181
    %p190 = scmp.eq.s32.totalorder %s34, 0
    %p191 = por %p189, %p190
    %p192 = scmp.ne.s32.totalorder %s180, %s181
    %p193 = scmp.eq.s32.totalorder %s35, 1
    %p194 = por %p192, %p193
    %p196 = scmp.ne.s32.totalorder %s181, %s195
    %p197 = scmp.eq.s32.totalorder %s35, 0
    %p198 = por %p196, %p197
    %s200 = sadd.s32 %s199, 1
    %p203 = scmp.eq.s32.totalorder %s29, 1
    %p204 = scmp.ne.s32.totalorder %s199, %s201
    %p205 = scmp.eq.s32.totalorder %s29, 0
    %p206 = por %p204, %p205
    %p207 = scmp.ne.s32.totalorder %s199, %s201
    %p208 = scmp.eq.s32.totalorder %s34, 1
    %p209 = por %p207, %p208
    %p210 = scmp.ne.s32.totalorder %s201, %s202
    %p211 = scmp.eq.s32.totalorder %s34, 0
    %p212 = por %p210, %p211
    %p213 = scmp.ne.s32.totalorder %s201, %s202
    %p214 = scmp.eq.s32.totalorder %s35, 1
    %p215 = por %p213, %p214
    %p217 = scmp.ne.s32.totalorder %s202, %s216
    %p218 = scmp.eq.s32.totalorder %s35, 0
    %p219 = por %p217, %p218
    %s221 = sadd.s32 %s220, 1
    %p224 = scmp.eq.s32.totalorder %s29, 1
    %p225 = scmp.ne.s32.totalorder %s220, %s222
    %p226 = scmp.eq.s32.totalorder %s29, 0
    %p227 = por %p225, %p226
    %p228 = scmp.ne.s32.totalorder %s220, %s222
    %p229 = scmp.eq.s32.totalorder %s34, 1
    %p230 = por %p228, %p229
    %p231 = scmp.ne.s32.totalorder %s222, %s223
    %p232 = scmp.eq.s32.totalorder %s34, 0
    %p233 = por %p231, %p232
    %p234 = scmp.ne.s32.totalorder %s222, %s223
    %p235 = scmp.eq.s32.totalorder %s35, 1
    %p236 = por %p234, %p235
    %p238 = scmp.ne.s32.totalorder %s223, %s237
    %p239 = scmp.eq.s32.totalorder %s35, 0
    %p240 = por %p238, %p239
    %s242 = sadd.s32 %s241, 1
    %p245 = scmp.eq.s32.totalorder %s29, 1
    %p246 = scmp.ne.s32.totalorder %s241, %s243
    %p247 = scmp.eq.s32.totalorder %s29, 0
    %p248 = por %p246, %p247
    %p249 = scmp.ne.s32.totalorder %s241, %s243
    %p250 = scmp.eq.s32.totalorder %s34, 1
    %p251 = por %p249, %p250
    %p252 = scmp.ne.s32.totalorder %s243, %s244
    %p253 = scmp.eq.s32.totalorder %s34, 0
    %p254 = por %p252, %p253
    %p255 = scmp.ne.s32.totalorder %s243, %s244
    %p256 = scmp.eq.s32.totalorder %s35, 1
    %p257 = por %p255, %p256
    %p259 = scmp.ne.s32.totalorder %s244, %s258
    %p260 = scmp.eq.s32.totalorder %s35, 0
    %p261 = por %p259, %p260
    %s263 = sadd.s32 %s262, 1
    %p266 = scmp.eq.s32.totalorder %s29, 1
    %p267 = scmp.ne.s32.totalorder %s262, %s264
    %p268 = scmp.eq.s32.totalorder %s29, 0
    %p269 = por %p267, %p268
    %p270 = scmp.ne.s32.totalorder %s262, %s264
    %p271 = scmp.eq.s32.totalorder %s34, 1
    %p272 = por %p270, %p271
    %p273 = scmp.ne.s32.totalorder %s264, %s265
    %p274 = scmp.eq.s32.totalorder %s34, 0
    %p275 = por %p273, %p274
    %p276 = scmp.ne.s32.totalorder %s264, %s265
    %p277 = scmp.eq.s32.totalorder %s35, 1
    %p278 = por %p276, %p277
    %p280 = scmp.ne.s32.totalorder %s265, %s279
    %p281 = scmp.eq.s32.totalorder %s35, 0
    %p282 = por %p280, %p281
    %s284 = sadd.s32 %s283, 1
    %p287 = scmp.eq.s32.totalorder %s29, 1
    %p288 = scmp.ne.s32.totalorder %s283, %s285
    %p289 = scmp.eq.s32.totalorder %s29, 0
    %p290 = por %p288, %p289
    %p291 = scmp.ne.s32.totalorder %s283, %s285
    %p292 = scmp.eq.s32.totalorder %s34, 1
    %p293 = por %p291, %p292
    %p294 = scmp.ne.s32.totalorder %s285, %s286
    %p295 = scmp.eq.s32.totalorder %s34, 0
    %p296 = por %p294, %p295
    %p297 = scmp.ne.s32.totalorder %s285, %s286
    %p298 = scmp.eq.s32.totalorder %s35, 1
    %p299 = por %p297, %p298
    %p301 = scmp.ne.s32.totalorder %s286, %s300
    %p302 = scmp.eq.s32.totalorder %s35, 0
    %p303 = por %p301, %p302
    %s305 = sadd.s32 %s304, 1
    %p308 = scmp.eq.s32.totalorder %s29, 1
    %p309 = scmp.ne.s32.totalorder %s304, %s306
    %p310 = scmp.eq.s32.totalorder %s29, 0
    %p311 = por %p309, %p310
    %p312 = scmp.ne.s32.totalorder %s304, %s306
    %p313 = scmp.eq.s32.totalorder %s34, 1
    %p314 = por %p312, %p313
    %p315 = scmp.ne.s32.totalorder %s306, %s307
    %p316 = scmp.eq.s32.totalorder %s34, 0
    %p317 = por %p315, %p316
    %p318 = scmp.ne.s32.totalorder %s306, %s307
    %p319 = scmp.eq.s32.totalorder %s35, 1
    %p320 = por %p318, %p319
    %p322 = scmp.ne.s32.totalorder %s307, %s321
    %p323 = scmp.eq.s32.totalorder %s35, 0
    %p324 = por %p322, %p323
    %s326 = sadd.s32 %s325, 1
    %p329 = scmp.eq.s32.totalorder %s29, 1
    %p330 = scmp.ne.s32.totalorder %s325, %s327
    %p331 = scmp.eq.s32.totalorder %s29, 0
    %p332 = por %p330, %p331
    %p333 = scmp.ne.s32.totalorder %s325, %s327
    %p334 = scmp.eq.s32.totalorder %s34, 1
    %p335 = por %p333, %p334
    %p336 = scmp.ne.s32.totalorder %s327, %s328
    %p337 = scmp.eq.s32.totalorder %s34, 0
    %p338 = por %p336, %p337
    %p339 = scmp.ne.s32.totalorder %s327, %s328
    %p340 = scmp.eq.s32.totalorder %s35, 1
    %p341 = por %p339, %p340
    %p343 = scmp.ne.s32.totalorder %s328, %s342
    %p344 = scmp.eq.s32.totalorder %s35, 0
    %p345 = por %p343, %p344
    %s347 = sadd.s32 %s346, 1
    %p350 = scmp.eq.s32.totalorder %s29, 1
    %p351 = scmp.ne.s32.totalorder %s346, %s348
    %p352 = scmp.eq.s32.totalorder %s29, 0
    %p353 = por %p351, %p352
    %p354 = scmp.ne.s32.totalorder %s346, %s348
    %p355 = scmp.eq.s32.totalorder %s34, 1
    %p356 = por %p354, %p355
    %p357 = scmp.ne.s32.totalorder %s348, %s349
    %p358 = scmp.eq.s32.totalorder %s34, 0
    %p359 = por %p357, %p358
    %p360 = scmp.ne.s32.totalorder %s348, %s349
    %p361 = scmp.eq.s32.totalorder %s35, 1
    %p362 = por %p360, %p361
    %p364 = scmp.ne.s32.totalorder %s349, %s363
    %p365 = scmp.eq.s32.totalorder %s35, 0
    %p366 = por %p364, %p365
    %s368 = sadd.s32 %s367, 1
    %p371 = scmp.eq.s32.totalorder %s29, 1
    %p372 = scmp.ne.s32.totalorder %s367, %s369
    %p373 = scmp.eq.s32.totalorder %s29, 0
    %p374 = por %p372, %p373
    %p375 = scmp.ne.s32.totalorder %s367, %s369
    %p376 = scmp.eq.s32.totalorder %s34, 1
    %p377 = por %p375, %p376
    %p378 = scmp.ne.s32.totalorder %s369, %s370
    %p379 = scmp.eq.s32.totalorder %s34, 0
    %p380 = por %p378, %p379
    %p381 = scmp.ne.s32.totalorder %s369, %s370
    %p382 = scmp.eq.s32.totalorder %s35, 1
    %p383 = por %p381, %p382
    %p385 = scmp.ne.s32.totalorder %s370, %s384
    %p386 = scmp.eq.s32.totalorder %s35, 0
    %p387 = por %p385, %p386
    %s389 = sadd.s32 %s388, 1
    %p392 = scmp.eq.s32.totalorder %s29, 1
    %p393 = scmp.ne.s32.totalorder %s388, %s390
    %p394 = scmp.eq.s32.totalorder %s29, 0
    %p395 = por %p393, %p394
    %p396 = scmp.ne.s32.totalorder %s388, %s390
    %p397 = scmp.eq.s32.totalorder %s34, 1
    %p398 = por %p396, %p397
    %p399 = scmp.ne.s32.totalorder %s390, %s391
    %p400 = scmp.eq.s32.totalorder %s34, 0
    %p401 = por %p399, %p400
    %p402 = scmp.ne.s32.totalorder %s390, %s391
    %p403 = scmp.eq.s32.totalorder %s35, 1
    %p404 = por %p402, %p403
    %p406 = scmp.ne.s32.totalorder %s391, %s405
    %p407 = scmp.eq.s32.totalorder %s35, 0
    %p408 = por %p406, %p407
    %s410 = sadd.s32 %s409, 1
    %p413 = scmp.eq.s32.totalorder %s29, 1
    %p414 = scmp.ne.s32.totalorder %s409, %s411
    %p415 = scmp.eq.s32.totalorder %s29, 0
    %p416 = por %p414, %p415
    %p417 = scmp.ne.s32.totalorder %s409, %s411
    %p418 = scmp.eq.s32.totalorder %s34, 1
    %p419 = por %p417, %p418
    %p420 = scmp.ne.s32.totalorder %s411, %s412
    %p421 = scmp.eq.s32.totalorder %s34, 0
    %p422 = por %p420, %p421
    %p423 = scmp.ne.s32.totalorder %s411, %s412
    %p424 = scmp.eq.s32.totalorder %s35, 1
    %p425 = por %p423, %p424
    %p427 = scmp.ne.s32.totalorder %s412, %s426
    %p428 = scmp.eq.s32.totalorder %s35, 0
    %p429 = por %p427, %p428
    %s431 = sadd.s32 %s430, 1
    %p434 = scmp.eq.s32.totalorder %s29, 1
    %p435 = scmp.ne.s32.totalorder %s430, %s432
    %p436 = scmp.eq.s32.totalorder %s29, 0
    %p437 = por %p435, %p436
    %p438 = scmp.ne.s32.totalorder %s430, %s432
    %p439 = scmp.eq.s32.totalorder %s34, 1
    %p440 = por %p438, %p439
    %p441 = scmp.ne.s32.totalorder %s432, %s433
    %p442 = scmp.eq.s32.totalorder %s34, 0
    %p443 = por %p441, %p442
    %p444 = scmp.ne.s32.totalorder %s432, %s433
    %p445 = scmp.eq.s32.totalorder %s35, 1
    %p446 = por %p444, %p445
    %p448 = scmp.ne.s32.totalorder %s433, %s447
    %p449 = scmp.eq.s32.totalorder %s35, 0
    %p450 = por %p448, %p449
    %s452 = sadd.s32 %s451, 1
    %p455 = scmp.eq.s32.totalorder %s29, 1
    %p456 = scmp.ne.s32.totalorder %s451, %s453
    %p457 = scmp.eq.s32.totalorder %s29, 0
    %p458 = por %p456, %p457
    %p459 = scmp.ne.s32.totalorder %s451, %s453
    %p460 = scmp.eq.s32.totalorder %s34, 1
    %p461 = por %p459, %p460
    %p462 = scmp.ne.s32.totalorder %s453, %s454
    %p463 = scmp.eq.s32.totalorder %s34, 0
    %p464 = por %p462, %p463
    %p465 = scmp.ne.s32.totalorder %s453, %s454
    %p466 = scmp.eq.s32.totalorder %s35, 1
    %p467 = por %p465, %p466
    %p469 = scmp.ne.s32.totalorder %s454, %s468
    %p470 = scmp.eq.s32.totalorder %s35, 0
    %p471 = por %p469, %p470
    %s473 = sadd.s32 %s472, 1
    %p476 = scmp.eq.s32.totalorder %s29, 1
    %p477 = scmp.ne.s32.totalorder %s472, %s474
    %p478 = scmp.eq.s32.totalorder %s29, 0
    %p479 = por %p477, %p478
    %p480 = scmp.ne.s32.totalorder %s472, %s474
    %p481 = scmp.eq.s32.totalorder %s34, 1
    %p482 = por %p480, %p481
    %p483 = scmp.ne.s32.totalorder %s474, %s475
    %p484 = scmp.eq.s32.totalorder %s34, 0
    %p485 = por %p483, %p484
    %p486 = scmp.ne.s32.totalorder %s474, %s475
    %p487 = scmp.eq.s32.totalorder %s35, 1
    %p488 = por %p486, %p487
    %p490 = scmp.ne.s32.totalorder %s475, %s489
    %p491 = scmp.eq.s32.totalorder %s35, 0
    %p492 = por %p490, %p491
    %s494 = sadd.s32 %s493, 1
    %p497 = scmp.eq.s32.totalorder %s29, 1
    %p498 = scmp.ne.s32.totalorder %s493, %s495
    %p499 = scmp.eq.s32.totalorder %s29, 0
    %p500 = por %p498, %p499
    %p501 = scmp.ne.s32.totalorder %s493, %s495
    %p502 = scmp.eq.s32.totalorder %s34, 1
    %p503 = por %p501, %p502
    %p504 = scmp.ne.s32.totalorder %s495, %s496
    %p505 = scmp.eq.s32.totalorder %s34, 0
    %p506 = por %p504, %p505
    %p507 = scmp.ne.s32.totalorder %s495, %s496
    %p508 = scmp.eq.s32.totalorder %s35, 1
    %p509 = por %p507, %p508
    %p511 = scmp.ne.s32.totalorder %s496, %s510
    %p512 = scmp.eq.s32.totalorder %s35, 0
    %p513 = por %p511, %p512
    %s515 = sadd.s32 %s514, 1
    %p518 = scmp.eq.s32.totalorder %s29, 1
    %p519 = scmp.ne.s32.totalorder %s514, %s516
    %p520 = scmp.eq.s32.totalorder %s29, 0
    %p521 = por %p519, %p520
    %p522 = scmp.ne.s32.totalorder %s514, %s516
    %p523 = scmp.eq.s32.totalorder %s34, 1
    %p524 = por %p522, %p523
    %p525 = scmp.ne.s32.totalorder %s516, %s517
    %p526 = scmp.eq.s32.totalorder %s34, 0
    %p527 = por %p525, %p526
    %p528 = scmp.ne.s32.totalorder %s516, %s517
    %p529 = scmp.eq.s32.totalorder %s35, 1
    %p530 = por %p528, %p529
    %p532 = scmp.ne.s32.totalorder %s517, %s531
    %p533 = scmp.eq.s32.totalorder %s35, 0
    %p534 = por %p532, %p533
    %s535 = ssub.s32 %s29, %s36
    %p536 = scmp.eq.s32.totalorder %s535, 0
    %s538 = sadd.s32 %s537, 1
    %s539 = scalar_select %p536, %s537, %s538
    %p542 = pneg %p536
    %p543 = scmp.eq.s32.totalorder %s29, 1
    %p544 = por %p542, %p543
    %p545 = scmp.ne.s32.totalorder %s537, %s540
    %p546 = scmp.eq.s32.totalorder %s29, 0
    %p547 = por %p545, %p546
    %p548 = scmp.ne.s32.totalorder %s537, %s540
    %p549 = scmp.eq.s32.totalorder %s34, 1
    %p550 = por %p548, %p549
    %p551 = scmp.ne.s32.totalorder %s540, %s541
    %p552 = scmp.eq.s32.totalorder %s34, 0
    %p553 = por %p551, %p552
    %p554 = scmp.ne.s32.totalorder %s540, %s541
    %p555 = scmp.eq.s32.totalorder %s35, 1
    %p556 = por %p554, %p555
    %p558 = scmp.ne.s32.totalorder %s541, %s557
    %p559 = scmp.eq.s32.totalorder %s35, 0
    %p560 = por %p558, %p559
    %p561 = scmp.le.s32.totalorder 1, %s29
    %p562 = scmp.lt.s32.totalorder %s29, 3
    %p563 = pnand %p561, %p562
    %p564 = pneg %p563
    // Predicated region
    $region9: #{early_transformer_forward.13} parent=5 // pred_check
      _
    $region10: #{early_transformer_forward.13} parent=5 // pred_check_branch
      %566 = sbr.rel (%p563) target = $region12
    $region11: #{early_transformer_forward.13} parent=5 // pred_region
      %s567 = ssub.s32 %s29, 1
      // Predicated region
      $region13: #{early_transformer_forward.13} parent=11 // pred_check
        %p568 = pneg %p128
      $region14: #{early_transformer_forward.13} parent=11 // pred_check_branch
        %570 = sbr.rel (%p568) target = $region16
      $region15: #{early_transformer_forward.13} parent=11 // pred_region
        _
      $region16: #{early_transformer_forward.13} parent=11 // pred_fallthru
        _
      // Predicated region
      $region17: #{early_transformer_forward.13} parent=11 // pred_check
        %p571 = pneg %p149
      $region18: #{early_transformer_forward.13} parent=11 // pred_check_branch
        %573 = sbr.rel (%p571) target = $region20
      $region19: #{early_transformer_forward.13} parent=11 // pred_region
        _
      $region20: #{early_transformer_forward.13} parent=11 // pred_fallthru
        _
      // Predicated region
      $region21: #{early_transformer_forward.13} parent=11 // pred_check
        %p574 = pneg %p170
      $region22: #{early_transformer_forward.13} parent=11 // pred_check_branch
        %576 = sbr.rel (%p574) target = $region24
      $region23: #{early_transformer_forward.13} parent=11 // pred_region
        _
      $region24: #{early_transformer_forward.13} parent=11 // pred_fallthru
        _
      // Predicated region
      $region25: #{early_transformer_forward.13} parent=11 // pred_check
        %p577 = pneg %p191
      $region26: #{early_transformer_forward.13} parent=11 // pred_check_branch
        %579 = sbr.rel (%p577) target = $region28
      $region27: #{early_transformer_forward.13} parent=11 // pred_region
        _
      $region28: #{early_transformer_forward.13} parent=11 // pred_fallthru
        _
      // Predicated region
      $region29: #{early_transformer_forward.13} parent=11 // pred_check
        %p580 = pneg %p212
      $region30: #{early_transformer_forward.13} parent=11 // pred_check_branch
        %582 = sbr.rel (%p580) target = $region32
      $region31: #{early_transformer_forward.13} parent=11 // pred_region
        _
      $region32: #{early_transformer_forward.13} parent=11 // pred_fallthru
        _
      // Predicated region
      $region33: #{early_transformer_forward.13} parent=11 // pred_check
        %p583 = pneg %p233
      $region34: #{early_transformer_forward.13} parent=11 // pred_check_branch
        %585 = sbr.rel (%p583) target = $region36
      $region35: #{early_transformer_forward.13} parent=11 // pred_region
        _
      $region36: #{early_transformer_forward.13} parent=11 // pred_fallthru
        _
      // Predicated region
      $region37: #{early_transformer_forward.13} parent=11 // pred_check
        %p586 = pneg %p254
      $region38: #{early_transformer_forward.13} parent=11 // pred_check_branch
        %588 = sbr.rel (%p586) target = $region40
      $region39: #{early_transformer_forward.13} parent=11 // pred_region
        _
      $region40: #{early_transformer_forward.13} parent=11 // pred_fallthru
        _
      // Predicated region
      $region41: #{early_transformer_forward.13} parent=11 // pred_check
        %p589 = pneg %p275
      $region42: #{early_transformer_forward.13} parent=11 // pred_check_branch
        %591 = sbr.rel (%p589) target = $region44
      $region43: #{early_transformer_forward.13} parent=11 // pred_region
        _
      $region44: #{early_transformer_forward.13} parent=11 // pred_fallthru
        _
      // Predicated region
      $region45: #{early_transformer_forward.13} parent=11 // pred_check
        %p592 = pneg %p296
      $region46: #{early_transformer_forward.13} parent=11 // pred_check_branch
        %594 = sbr.rel (%p592) target = $region48
      $region47: #{early_transformer_forward.13} parent=11 // pred_region
        _
      $region48: #{early_transformer_forward.13} parent=11 // pred_fallthru
        _
      // Predicated region
      $region49: #{early_transformer_forward.13} parent=11 // pred_check
        %p595 = pneg %p317
      $region50: #{early_transformer_forward.13} parent=11 // pred_check_branch
        %597 = sbr.rel (%p595) target = $region52
      $region51: #{early_transformer_forward.13} parent=11 // pred_region
        _
      $region52: #{early_transformer_forward.13} parent=11 // pred_fallthru
        _
      // Predicated region
      $region53: #{early_transformer_forward.13} parent=11 // pred_check
        %p598 = pneg %p338
      $region54: #{early_transformer_forward.13} parent=11 // pred_check_branch
        %600 = sbr.rel (%p598) target = $region56
      $region55: #{early_transformer_forward.13} parent=11 // pred_region
        _
      $region56: #{early_transformer_forward.13} parent=11 // pred_fallthru
        _
      // Predicated region
      $region57: #{early_transformer_forward.13} parent=11 // pred_check
        %p601 = pneg %p359
      $region58: #{early_transformer_forward.13} parent=11 // pred_check_branch
        %603 = sbr.rel (%p601) target = $region60
      $region59: #{early_transformer_forward.13} parent=11 // pred_region
        _
      $region60: #{early_transformer_forward.13} parent=11 // pred_fallthru
        _
      // Predicated region
      $region61: #{early_transformer_forward.13} parent=11 // pred_check
        %p604 = pneg %p380
      $region62: #{early_transformer_forward.13} parent=11 // pred_check_branch
        %606 = sbr.rel (%p604) target = $region64
      $region63: #{early_transformer_forward.13} parent=11 // pred_region
        _
      $region64: #{early_transformer_forward.13} parent=11 // pred_fallthru
        _
      // Predicated region
      $region65: #{early_transformer_forward.13} parent=11 // pred_check
        %p607 = pneg %p401
      $region66: #{early_transformer_forward.13} parent=11 // pred_check_branch
        %609 = sbr.rel (%p607) target = $region68
      $region67: #{early_transformer_forward.13} parent=11 // pred_region
        _
      $region68: #{early_transformer_forward.13} parent=11 // pred_fallthru
        _
      // Predicated region
      $region69: #{early_transformer_forward.13} parent=11 // pred_check
        %p610 = pneg %p422
      $region70: #{early_transformer_forward.13} parent=11 // pred_check_branch
        %612 = sbr.rel (%p610) target = $region72
      $region71: #{early_transformer_forward.13} parent=11 // pred_region
        _
      $region72: #{early_transformer_forward.13} parent=11 // pred_fallthru
        _
      // Predicated region
      $region73: #{early_transformer_forward.13} parent=11 // pred_check
        %p613 = pneg %p443
      $region74: #{early_transformer_forward.13} parent=11 // pred_check_branch
        %615 = sbr.rel (%p613) target = $region76
      $region75: #{early_transformer_forward.13} parent=11 // pred_region
        _
      $region76: #{early_transformer_forward.13} parent=11 // pred_fallthru
        _
      // Predicated region
      $region77: #{early_transformer_forward.13} parent=11 // pred_check
        %p616 = pneg %p464
      $region78: #{early_transformer_forward.13} parent=11 // pred_check_branch
        %618 = sbr.rel (%p616) target = $region80
      $region79: #{early_transformer_forward.13} parent=11 // pred_region
        _
      $region80: #{early_transformer_forward.13} parent=11 // pred_fallthru
        _
      // Predicated region
      $region81: #{early_transformer_forward.13} parent=11 // pred_check
        %p619 = pneg %p485
      $region82: #{early_transformer_forward.13} parent=11 // pred_check_branch
        %621 = sbr.rel (%p619) target = $region84
      $region83: #{early_transformer_forward.13} parent=11 // pred_region
        _
      $region84: #{early_transformer_forward.13} parent=11 // pred_fallthru
        _
      // Predicated region
      $region85: #{early_transformer_forward.13} parent=11 // pred_check
        %p622 = pneg %p506
      $region86: #{early_transformer_forward.13} parent=11 // pred_check_branch
        %624 = sbr.rel (%p622) target = $region88
      $region87: #{early_transformer_forward.13} parent=11 // pred_region
        _
      $region88: #{early_transformer_forward.13} parent=11 // pred_fallthru
        _
      // Predicated region
      $region89: #{early_transformer_forward.13} parent=11 // pred_check
        %p625 = pneg %p527
      $region90: #{early_transformer_forward.13} parent=11 // pred_check_branch
        %627 = sbr.rel (%p625) target = $region92
      $region91: #{early_transformer_forward.13} parent=11 // pred_region
        _
      $region92: #{early_transformer_forward.13} parent=11 // pred_fallthru
        _
    $region12: #{early_transformer_forward.13} parent=5 // pred_fallthru
      _
    %p628 = scmp.lt.s32.totalorder %s29, 2
    // Predicated region
    $region93: #{early_transformer_forward.13} parent=5 // pred_check
      %p629 = pneg %p628
    $region94: #{early_transformer_forward.13} parent=5 // pred_check_branch
      %631 = sbr.rel (%p629) target = $region96
    $region95: #{early_transformer_forward.13} parent=5 // pred_region
      // Predicated region
      $region97: #{early_transformer_forward.13} parent=95 // pred_check
        %p632 = pneg %p49
      $region98: #{early_transformer_forward.13} parent=95 // pred_check_branch
        %634 = sbr.rel (%p632) target = $region100
      $region99: #{early_transformer_forward.13} parent=95 // pred_region
        %p635 = scmp.lt.s32.totalorder %s29, 1
        %s636 = scalar_select %p635, %s29, 1
        %s637 = smul.addr %s636, 4
        %s638 = scalar_lea.vmem %s0, %s637
      $region100: #{early_transformer_forward.13} parent=95 // pred_fallthru
        _
      // Predicated region
      $region101: #{early_transformer_forward.13} parent=95 // pred_check
        %p639 = pneg %p75
      $region102: #{early_transformer_forward.13} parent=95 // pred_check_branch
        %641 = sbr.rel (%p639) target = $region104
      $region103: #{early_transformer_forward.13} parent=95 // pred_region
        %p642 = scmp.lt.s32.totalorder %s29, 1
        %s643 = scalar_select %p642, %s29, 1
        %s644 = smul.addr %s643, 4
        %s645 = scalar_lea.vmem %s1, %s644
      $region104: #{early_transformer_forward.13} parent=95 // pred_fallthru
        _
      // Predicated region
      $region105: #{early_transformer_forward.13} parent=95 // pred_check
        %p646 = pneg %p101
      $region106: #{early_transformer_forward.13} parent=95 // pred_check_branch
        %648 = sbr.rel (%p646) target = $region108
      $region107: #{early_transformer_forward.13} parent=95 // pred_region
        %p649 = scmp.lt.s32.totalorder %s29, 1
        %s650 = scalar_select %p649, %s29, 1
        %s651 = scalar_lea.vmem %s2, %s650
      $region108: #{early_transformer_forward.13} parent=95 // pred_fallthru
        _
    $region96: #{early_transformer_forward.13} parent=5 // pred_fallthru
      _
    %p652 = scmp.le.s32.totalorder 1, %s29
    %p653 = scmp.lt.s32.totalorder %s29, 3
    %p654 = pnand %p652, %p653
    %p655 = pneg %p654
    // Predicated region
    $region109: #{early_transformer_forward.13} parent=5 // pred_check
      _
    $region110: #{early_transformer_forward.13} parent=5 // pred_check_branch
      %657 = sbr.rel (%p654) target = $region112
    $region111: #{early_transformer_forward.13} parent=5 // pred_region
      %s658 = ssub.s32 %s29, 1
      %p659 = scmp.lt.s32.totalorder %s34, 1
      %s660 = scalar_select %p659, %s34, 1
      %s661 = smul.addr %s660, 4
      %s662 = scalar_lea.vmem %s0, %s661
      %p663 = pneg %p55
      %p664 = pneg %p52
      %p665 = scmp.lt.s32.totalorder %s34, 1
      %s666 = scalar_select %p665, %s34, 1
      %s667 = smul.addr %s666, 4
      %s668 = scalar_lea.vmem %s1, %s667
      %p669 = pneg %p81
      %p670 = pneg %p78
      %p671 = scmp.lt.s32.totalorder %s34, 1
      %s672 = scalar_select %p671, %s34, 1
      %s673 = scalar_lea.vmem %s2, %s672
      %p674 = pneg %p107
      %p675 = pneg %p104
      %p676 = pneg %p128
      %p677 = pneg %p125
      %p678 = pneg %p149
      %p679 = pneg %p146
      %p680 = pneg %p170
      %p681 = pneg %p167
      %p682 = pneg %p191
      %p683 = pneg %p188
      %p684 = pneg %p212
      %p685 = pneg %p209
      %p686 = pneg %p233
      %p687 = pneg %p230
      %p688 = pneg %p254
      %p689 = pneg %p251
      %p690 = pneg %p275
      %p691 = pneg %p272
      %p692 = pneg %p296
      %p693 = pneg %p293
      %p694 = pneg %p317
      %p695 = pneg %p314
      %p696 = pneg %p338
      %p697 = pneg %p335
      %p698 = pneg %p359
      %p699 = pneg %p356
      %p700 = pneg %p380
      %p701 = pneg %p377
      %p702 = pneg %p401
      %p703 = pneg %p398
      %p704 = pneg %p422
      %p705 = pneg %p419
      %p706 = pneg %p443
      %p707 = pneg %p440
      %p708 = pneg %p464
      %p709 = pneg %p461
      %p710 = pneg %p485
      %p711 = pneg %p482
      %p712 = pneg %p506
      %p713 = pneg %p503
      %p714 = pneg %p527
      %p715 = pneg %p524
      %p716 = pneg %p553
      %p717 = pneg %p550
      %p718 = scmp.lt.s32.totalorder %s34, 1
      %s719 = scalar_select %p718, %s34, 1
      %s720 = smul.addr %s719, 4
      %s721 = scalar_lea.vmem %s23, %s720
      %p722 = scmp.lt.s32.totalorder %s34, 1
      %s723 = scalar_select %p722, %s34, 1
      %s724 = smul.addr %s723, 4
      %s725 = scalar_lea.vmem %s0, %s724
      %p726 = scmp.lt.s32.totalorder %s34, 1
      %s727 = scalar_select %p726, %s34, 1
      %s728 = smul.addr %s727, 4
      %s729 = scalar_lea.vmem %s1, %s728
      %p730 = scmp.lt.s32.totalorder %s34, 1
      %s731 = scalar_select %p730, %s34, 1
      %s732 = scalar_lea.vmem %s2, %s731
      %p733 = scmp.lt.s32.totalorder %s34, 1
      %s734 = scalar_select %p733, %s34, 1
      %s735 = smul.addr %s734, 4
      %s736 = scalar_lea.vmem %s23, %s735
      %v738 = vld [vmem:[%s725] sm:$0xf]
      %v739 = vunpack.c.l.bf16 %v738
      %v740 = vld [vmem:[%s729] sm:$0xf]
      %v741 = vunpack.c.l.bf16 %v740
      %742 = vxpose.xlu0.b32.start [1/16] %v741, 128
      %743 = vxpose.xlu0.b32.cont [2/16] 0.0, 128
      %744 = vxpose.xlu0.b32.cont [3/16] 0.0, 128
      %745 = vxpose.xlu0.b32.cont [4/16] 0.0, 128
      %746 = vxpose.xlu0.b32.cont [5/16] 0.0, 128
      %747 = vxpose.xlu0.b32.cont [6/16] 0.0, 128
      %748 = vxpose.xlu0.b32.cont [7/16] 0.0, 128
      %749 = vxpose.xlu0.b32.cont [8/16] 0.0, 128
      %750 = vxpose.xlu0.b32.cont [9/16] 0.0, 128
      %751 = vxpose.xlu0.b32.cont [10/16] 0.0, 128
      %752 = vxpose.xlu0.b32.cont [11/16] 0.0, 128
      %753 = vxpose.xlu0.b32.cont [12/16] 0.0, 128
      %754 = vxpose.xlu0.b32.cont [13/16] 0.0, 128
      %755 = vxpose.xlu0.b32.cont [14/16] 0.0, 128
      %756 = vxpose.xlu0.b32.cont [15/16] 0.0, 128
      %757 = vxpose.xlu0.b32.end [16/16] 0.0, 128
      %v758 = vpop.trf.xlu0
      %v759 = vpop.trf.xlu0
      %v760 = vpop.trf.xlu0
      %v761 = vpop.trf.xlu0
      %v762 = vpop.trf.xlu0
      %v763 = vpop.trf.xlu0
      %v764 = vpop.trf.xlu0
      %v765 = vpop.trf.xlu0
      %v766 = vpop.trf.xlu0
      %v767 = vpop.trf.xlu0
      %v768 = vpop.trf.xlu0
      %v769 = vpop.trf.xlu0
      %v770 = vpop.trf.xlu0
      %v771 = vpop.trf.xlu0
      %v772 = vpop.trf.xlu0
      %v773 = vpop.trf.xlu0
      %v774 = vlaneseq
      %v775 = vshrl.u32 %v774, 7
      %v776 = vlaneseq
      %v777 = vand.u32 %v776, 127
      %vm778 = vcmp.gt.s32.totalorder %v777, %v775
      %v779 = vsel %vm778, -1e+09, 0.0
      %v780 = vld [vmem:[%s732] sm:$0x1]
      %v782 = vperm.slane %v780, 0
      %v784 = vadd.f32 %v779, %v782
      %v785 = vld [vmem:[%s7] sm:$0x1]
      %v786 = vld [vmem:[%s8] sm:$0x1]
      %vm787 = vcmask 261120
      %v788 = vsel %vm787, %v739, 0.0
      %789 = vadd.xlane.f32.xlu0 %v788
      %v790 = vpop.xlane.xlu0 %789
      %v791 = vrcp.pop 32.0
      %v792 = vmul.f32 32.0, %v791
      %v793 = vsub.f32 1.0, %v792
      %v794 = vmul.f32 %v791, %v793
      %v795 = vadd.f32 %v791, %v794
      %vm796 = vweird.f32 %v791
      %v797 = vsel %vm796, %v791, %v795
      %v798 = vmul.f32 %v790, %v797
      %v799 = vsub.f32 %v739, %v798
      %v800 = vmul.f32 %v799, %v799
      %v801 = vsel %vm787, %v800, 0.0
      %802 = vadd.xlane.f32.xlu0 %v801
      %v803 = vpop.xlane.xlu0 %802
      %v804 = vmul.f32 %v803, %v797
      %v805 = vadd.f32 %v804, 1e-05
      %v806 = vrsqrt.pop %v805
      %v807 = vmul.f32 %v806, %v805
      %v808 = vmul.f32 %v807, %v806
      %v809 = vmul.f32 0.5, %v808
      %v810 = vsub.f32 1.5, %v809
      %v811 = vmul.f32 %v806, %v810
      %vm812 = vweird.f32 %v805
      %vm813 = vweird.f32 %v806
      %vm814 = vmor %vm812, %vm813
      %v815 = vsel %vm814, %v806, %v811
      %v816 = vmul.f32 %v799, %v815
      %v818 = vperm.slane %v785, 0
      %v820 = vmul.f32 %v816, %v818
      %v822 = vperm.slane %v786, 0
      %v824 = vadd.f32 %v820, %v822
      %825 = vxpose.xlu0.b32.start [1/16] %v824, 128
      %826 = vxpose.xlu0.b32.cont [2/16] 0.0, 128
      %827 = vxpose.xlu0.b32.cont [3/16] 0.0, 128
      %828 = vxpose.xlu0.b32.cont [4/16] 0.0, 128
      %829 = vxpose.xlu0.b32.cont [5/16] 0.0, 128
      %830 = vxpose.xlu0.b32.cont [6/16] 0.0, 128
      %831 = vxpose.xlu0.b32.cont [7/16] 0.0, 128
      %832 = vxpose.xlu0.b32.cont [8/16] 0.0, 128
      %833 = vxpose.xlu0.b32.cont [9/16] 0.0, 128
      %834 = vxpose.xlu0.b32.cont [10/16] 0.0, 128
      %835 = vxpose.xlu0.b32.cont [11/16] 0.0, 128
      %836 = vxpose.xlu0.b32.cont [12/16] 0.0, 128
      %837 = vxpose.xlu0.b32.cont [13/16] 0.0, 128
      %838 = vxpose.xlu0.b32.cont [14/16] 0.0, 128
      %839 = vxpose.xlu0.b32.cont [15/16] 0.0, 128
      %840 = vxpose.xlu0.b32.end [16/16] 0.0, 128
      %v841 = vpop.trf.xlu0
      %v842 = vpop.trf.xlu0
      %v843 = vpop.trf.xlu0
      %v844 = vpop.trf.xlu0
      %v845 = vpop.trf.xlu0
      %v846 = vpop.trf.xlu0
      %v847 = vpop.trf.xlu0
      %v848 = vpop.trf.xlu0
      %v849 = vpop.trf.xlu0
      %v850 = vpop.trf.xlu0
      %v851 = vpop.trf.xlu0
      %v852 = vpop.trf.xlu0
      %v853 = vpop.trf.xlu0
      %v854 = vpop.trf.xlu0
      %v855 = vpop.trf.xlu0
      %v856 = vpop.trf.xlu0
      %v857 = vld [vmem:[%s3] sm:$0xf]
      %v858 = vld [vmem:[%s3 + $0x4] sm:$0xf]
      %v859 = vld [vmem:[%s3 + $0x8] sm:$0xf]
      %v860 = vld [vmem:[%s3 + $0xc] sm:$0xf]
      %v861 = vld [vmem:[%s4] sm:$0xff]
      %v862 = vld [vmem:[%s4 + $0x8] sm:$0xff]
      %v863 = vld [vmem:[%s4 + $0x10] sm:$0xff]
      %v864 = vld [vmem:[%s4 + $0x18] sm:$0xff]
      %v865 = vpack.c.bf16 %v842, %v841
      %v866 = vpack.c.bf16 %v844, %v843
      %868 = vset.pattern.permute.xlu0 0
      %869 = vperm.xlu0 %868, %v861
      %v870 = vpop.permute.xlu0 %869
      %873 = vset.pattern.permute.xlu0 0
      %874 = vperm.xlu0 %873, %v862
      %v875 = vpop.permute.xlu0 %874
      %878 = vset.pattern.permute.xlu0 0
      %879 = vperm.xlu0 %878, %v863
      %v880 = vpop.permute.xlu0 %879
      %883 = vset.pattern.permute.xlu0 0
      %884 = vperm.xlu0 %883, %v864
      %v885 = vpop.permute.xlu0 %884
      %v891 = vunpack.c.l.b16 %v857
      %v892 = vunpack.c.l.b16 %v858
      %v893 = vunpack.c.l.b16 %v859
      %v894 = vunpack.c.l.b16 %v860
      %v895 = vpack.c.b16 %v892, %v891
      %v896 = vpack.c.b16 %v894, %v893
      %v898 = vsel %vm787, %v895, 0
      %v901 = vsel %vm787, %v896, 0
      %903 = vmatpush.bf16.msra.mxu0 0
      %904 = vmatpush.bf16.msra.mxu0 0
      %905 = vmatpush.bf16.msra.mxu0 0
      %906 = vmatpush.bf16.msra.mxu0 0
      %907 = vmatpush.bf16.msra.mxu0 0
      %908 = vmatpush.bf16.msra.mxu0 0
      %909 = vmatpush.bf16.msra.mxu0 %v866
      %910 = vmatpush.bf16.msra.mxu0 %v865
      %911 = vmatmul.bf16.gmra.mxu0 %v898
      %v912 = vpop.f32.mrf.mxu0
      %v913 = vadd.f32 %v870, %v912
      %v914 = vpop.f32.mrf.mxu0
      %v915 = vadd.f32 %v875, %v914
      %916 = vmatmul.bf16.gmra.mxu0 %v901
      %v917 = vpop.f32.mrf.mxu0
      %v918 = vadd.f32 %v880, %v917
      %v919 = vpop.f32.mrf.mxu0
      %v920 = vadd.f32 %v885, %v919
      %921 = vdwg.mxu0
      %v922 = vmul.f32 %v913, 0.35355338
      %v923 = vmul.f32 %v915, 0.35355338
      %v924 = vmul.f32 %v918, 0.35355338
      %v925 = vmul.f32 %v920, 0.35355338
      %s926 = scalar_lea.vmem %s3, 16
      %v927 = vld [vmem:[%s926] sm:$0xf]
      %v928 = vld [vmem:[%s926 + $0x4] sm:$0xf]
      %v929 = vld [vmem:[%s926 + $0x8] sm:$0xf]
      %v930 = vld [vmem:[%s926 + $0xc] sm:$0xf]
      %s931 = scalar_lea.vmem %s4, 32
      %v932 = vld [vmem:[%s931] sm:$0xff]
      %v933 = vld [vmem:[%s931 + $0x8] sm:$0xff]
      %v934 = vld [vmem:[%s931 + $0x10] sm:$0xff]
      %v935 = vld [vmem:[%s931 + $0x18] sm:$0xff]
      %937 = vset.pattern.permute.xlu0 0
      %938 = vperm.xlu0 %937, %v932
      %v939 = vpop.permute.xlu0 %938
      %942 = vset.pattern.permute.xlu0 0
      %943 = vperm.xlu0 %942, %v933
      %v944 = vpop.permute.xlu0 %943
      %947 = vset.pattern.permute.xlu0 0
      %948 = vperm.xlu0 %947, %v934
      %v949 = vpop.permute.xlu0 %948
      %952 = vset.pattern.permute.xlu0 0
      %953 = vperm.xlu0 %952, %v935
      %v954 = vpop.permute.xlu0 %953
      %v960 = vunpack.c.l.b16 %v927
      %v961 = vunpack.c.l.b16 %v928
      %v962 = vunpack.c.l.b16 %v929
      %v963 = vunpack.c.l.b16 %v930
      %v964 = vpack.c.b16 %v961, %v960
      %v965 = vpack.c.b16 %v963, %v962
      %v967 = vsel %vm787, %v964, 0
      %v970 = vsel %vm787, %v965, 0
      %972 = vmatpush.bf16.msra.mxu0 0
      %973 = vmatpush.bf16.msra.mxu0 0
      %974 = vmatpush.bf16.msra.mxu0 0
      %975 = vmatpush.bf16.msra.mxu0 0
      %976 = vmatpush.bf16.msra.mxu0 0
      %977 = vmatpush.bf16.msra.mxu0 0
      %978 = vmatpush.bf16.msra.mxu0 %v866
      %979 = vmatpush.bf16.msra.mxu0 %v865
      %980 = vmatmul.bf16.gmra.mxu0 %v967
      %v981 = vpop.f32.mrf.mxu0
      %v982 = vadd.f32 %v939, %v981
      %v983 = vpop.f32.mrf.mxu0
      %v984 = vadd.f32 %v944, %v983
      %985 = vmatmul.bf16.gmra.mxu0 %v970
      %v986 = vpop.f32.mrf.mxu0
      %v987 = vadd.f32 %v949, %v986
      %v988 = vpop.f32.mrf.mxu0
      %v989 = vadd.f32 %v954, %v988
      %990 = vdwg.mxu0
      %s991 = scalar_lea.vmem %s3, 32
      %v992 = vld [vmem:[%s991] sm:$0xf]
      %v993 = vld [vmem:[%s991 + $0x4] sm:$0xf]
      %v994 = vld [vmem:[%s991 + $0x8] sm:$0xf]
      %v995 = vld [vmem:[%s991 + $0xc] sm:$0xf]
      %s996 = scalar_lea.vmem %s4, 64
      %v997 = vld [vmem:[%s996] sm:$0xff]
      %v998 = vld [vmem:[%s996 + $0x8] sm:$0xff]
      %v999 = vld [vmem:[%s996 + $0x10] sm:$0xff]
      %v1000 = vld [vmem:[%s996 + $0x18] sm:$0xff]
      %1002 = vset.pattern.permute.xlu0 0
      %1003 = vperm.xlu0 %1002, %v997
      %v1004 = vpop.permute.xlu0 %1003
      %1007 = vset.pattern.permute.xlu0 0
      %1008 = vperm.xlu0 %1007, %v998
      %v1009 = vpop.permute.xlu0 %1008
      %1012 = vset.pattern.permute.xlu0 0
      %1013 = vperm.xlu0 %1012, %v999
      %v1014 = vpop.permute.xlu0 %1013
      %1017 = vset.pattern.permute.xlu0 0
      %1018 = vperm.xlu0 %1017, %v1000
      %v1019 = vpop.permute.xlu0 %1018
      %v1025 = vunpack.c.l.b16 %v992
      %v1026 = vunpack.c.l.b16 %v993
      %v1027 = vunpack.c.l.b16 %v994
      %v1028 = vunpack.c.l.b16 %v995
      %v1029 = vpack.c.b16 %v1026, %v1025
      %v1030 = vpack.c.b16 %v1028, %v1027
      %v1032 = vsel %vm787, %v1029, 0
      %v1035 = vsel %vm787, %v1030, 0
      %1037 = vmatpush.bf16.msra.mxu0 0
      %1038 = vmatpush.bf16.msra.mxu0 0
      %1039 = vmatpush.bf16.msra.mxu0 0
      %1040 = vmatpush.bf16.msra.mxu0 0
      %1041 = vmatpush.bf16.msra.mxu0 0
      %1042 = vmatpush.bf16.msra.mxu0 0
      %1043 = vmatpush.bf16.msra.mxu0 %v866
      %1044 = vmatpush.bf16.msra.mxu0 %v865
      %1045 = vmatmul.bf16.gmra.mxu0 %v1032
      %v1046 = vpop.f32.mrf.mxu0
      %v1047 = vadd.f32 %v1004, %v1046
      %v1048 = vpop.f32.mrf.mxu0
      %v1049 = vadd.f32 %v1009, %v1048
      %1050 = vmatmul.bf16.gmra.mxu0 %v1035
      %v1051 = vpop.f32.mrf.mxu0
      %v1052 = vadd.f32 %v1014, %v1051
      %v1053 = vpop.f32.mrf.mxu0
      %v1054 = vadd.f32 %v1019, %v1053
      %1055 = vdwg.mxu0
      %1056 = vxpose.xlu0.b32.start [1/16] %v922, 128
      %1057 = vxpose.xlu0.b32.cont [2/16] 0.0, 128
      %1058 = vxpose.xlu0.b32.cont [3/16] 0.0, 128
      %1059 = vxpose.xlu0.b32.cont [4/16] 0.0, 128
      %1060 = vxpose.xlu0.b32.cont [5/16] 0.0, 128
      %1061 = vxpose.xlu0.b32.cont [6/16] 0.0, 128
      %1062 = vxpose.xlu0.b32.cont [7/16] 0.0, 128
      %1063 = vxpose.xlu0.b32.cont [8/16] 0.0, 128
      %1064 = vxpose.xlu0.b32.cont [9/16] 0.0, 128
      %1065 = vxpose.xlu0.b32.cont [10/16] 0.0, 128
      %1066 = vxpose.xlu0.b32.cont [11/16] 0.0, 128
      %1067 = vxpose.xlu0.b32.cont [12/16] 0.0, 128
      %1068 = vxpose.xlu0.b32.cont [13/16] 0.0, 128
      %1069 = vxpose.xlu0.b32.cont [14/16] 0.0, 128
      %1070 = vxpose.xlu0.b32.cont [15/16] 0.0, 128
      %1071 = vxpose.xlu0.b32.end [16/16] 0.0, 128
      %v1072 = vpop.trf.xlu0
      %v1073 = vpop.trf.xlu0
      %v1074 = vpop.trf.xlu0
      %v1075 = vpop.trf.xlu0
      %v1076 = vpop.trf.xlu0
      %v1077 = vpop.trf.xlu0
      %v1078 = vpop.trf.xlu0
      %v1079 = vpop.trf.xlu0
      %v1080 = vpop.trf.xlu0
      %v1081 = vpop.trf.xlu0
      %v1082 = vpop.trf.xlu0
      %v1083 = vpop.trf.xlu0
      %v1084 = vpop.trf.xlu0
      %v1085 = vpop.trf.xlu0
      %v1086 = vpop.trf.xlu0
      %v1087 = vpop.trf.xlu0
      %1088 = vxpose.xlu0.b32.start [1/16] %v923, 128
      %1089 = vxpose.xlu0.b32.cont [2/16] 0.0, 128
      %1090 = vxpose.xlu0.b32.cont [3/16] 0.0, 128
      %1091 = vxpose.xlu0.b32.cont [4/16] 0.0, 128
      %1092 = vxpose.xlu0.b32.cont [5/16] 0.0, 128
      %1093 = vxpose.xlu0.b32.cont [6/16] 0.0, 128
      %1094 = vxpose.xlu0.b32.cont [7/16] 0.0, 128
      %1095 = vxpose.xlu0.b32.cont [8/16] 0.0, 128
      %1096 = vxpose.xlu0.b32.cont [9/16] 0.0, 128
      %1097 = vxpose.xlu0.b32.cont [10/16] 0.0, 128
      %1098 = vxpose.xlu0.b32.cont [11/16] 0.0, 128
      %1099 = vxpose.xlu0.b32.cont [12/16] 0.0, 128
      %1100 = vxpose.xlu0.b32.cont [13/16] 0.0, 128
      %1101 = vxpose.xlu0.b32.cont [14/16] 0.0, 128
      %1102 = vxpose.xlu0.b32.cont [15/16] 0.0, 128
      %1103 = vxpose.xlu0.b32.end [16/16] 0.0, 128
      %v1104 = vpop.trf.xlu0
      %v1105 = vpop.trf.xlu0
      %v1106 = vpop.trf.xlu0
      %v1107 = vpop.trf.xlu0
      %v1108 = vpop.trf.xlu0
      %v1109 = vpop.trf.xlu0
      %v1110 = vpop.trf.xlu0
      %v1111 = vpop.trf.xlu0
      %v1112 = vpop.trf.xlu0
      %v1113 = vpop.trf.xlu0
      %v1114 = vpop.trf.xlu0
      %v1115 = vpop.trf.xlu0
      %v1116 = vpop.trf.xlu0
      %v1117 = vpop.trf.xlu0
      %v1118 = vpop.trf.xlu0
      %v1119 = vpop.trf.xlu0
      %1120 = vxpose.xlu0.b32.start [1/16] %v924, 128
      %1121 = vxpose.xlu0.b32.cont [2/16] 0.0, 128
      %1122 = vxpose.xlu0.b32.cont [3/16] 0.0, 128
      %1123 = vxpose.xlu0.b32.cont [4/16] 0.0, 128
      %1124 = vxpose.xlu0.b32.cont [5/16] 0.0, 128
      %1125 = vxpose.xlu0.b32.cont [6/16] 0.0, 128
      %1126 = vxpose.xlu0.b32.cont [7/16] 0.0, 128
      %1127 = vxpose.xlu0.b32.cont [8/16] 0.0, 128
      %1128 = vxpose.xlu0.b32.cont [9/16] 0.0, 128
      %1129 = vxpose.xlu0.b32.cont [10/16] 0.0, 128
      %1130 = vxpose.xlu0.b32.cont [11/16] 0.0, 128
      %1131 = vxpose.xlu0.b32.cont [12/16] 0.0, 128
      %1132 = vxpose.xlu0.b32.cont [13/16] 0.0, 128
      %1133 = vxpose.xlu0.b32.cont [14/16] 0.0, 128
      %1134 = vxpose.xlu0.b32.cont [15/16] 0.0, 128
      %1135 = vxpose.xlu0.b32.end [16/16] 0.0, 128
      %v1136 = vpop.trf.xlu0
      %v1137 = vpop.trf.xlu0
      %v1138 = vpop.trf.xlu0
      %v1139 = vpop.trf.xlu0
      %v1140 = vpop.trf.xlu0
      %v1141 = vpop.trf.xlu0
      %v1142 = vpop.trf.xlu0
      %v1143 = vpop.trf.xlu0
      %v1144 = vpop.trf.xlu0
      %v1145 = vpop.trf.xlu0
      %v1146 = vpop.trf.xlu0
      %v1147 = vpop.trf.xlu0
      %v1148 = vpop.trf.xlu0
      %v1149 = vpop.trf.xlu0
      %v1150 = vpop.trf.xlu0
      %v1151 = vpop.trf.xlu0
      %1152 = vxpose.xlu0.b32.start [1/16] %v925, 128
      %1153 = vxpose.xlu0.b32.cont [2/16] 0.0, 128
      %1154 = vxpose.xlu0.b32.cont [3/16] 0.0, 128
      %1155 = vxpose.xlu0.b32.cont [4/16] 0.0, 128
      %1156 = vxpose.xlu0.b32.cont [5/16] 0.0, 128
      %1157 = vxpose.xlu0.b32.cont [6/16] 0.0, 128
      %1158 = vxpose.xlu0.b32.cont [7/16] 0.0, 128
      %1159 = vxpose.xlu0.b32.cont [8/16] 0.0, 128
      %1160 = vxpose.xlu0.b32.cont [9/16] 0.0, 128
      %1161 = vxpose.xlu0.b32.cont [10/16] 0.0, 128
      %1162 = vxpose.xlu0.b32.cont [11/16] 0.0, 128
      %1163 = vxpose.xlu0.b32.cont [12/16] 0.0, 128
      %1164 = vxpose.xlu0.b32.cont [13/16] 0.0, 128
      %1165 = vxpose.xlu0.b32.cont [14/16] 0.0, 128
      %1166 = vxpose.xlu0.b32.cont [15/16] 0.0, 128
      %1167 = vxpose.xlu0.b32.end [16/16] 0.0, 128
      %v1168 = vpop.trf.xlu0
      %v1169 = vpop.trf.xlu0
      %v1170 = vpop.trf.xlu0
      %v1171 = vpop.trf.xlu0
      %v1172 = vpop.trf.xlu0
      %v1173 = vpop.trf.xlu0
      %v1174 = vpop.trf.xlu0
      %v1175 = vpop.trf.xlu0
      %v1176 = vpop.trf.xlu0
      %v1177 = vpop.trf.xlu0
      %v1178 = vpop.trf.xlu0
      %v1179 = vpop.trf.xlu0
      %v1180 = vpop.trf.xlu0
      %v1181 = vpop.trf.xlu0
      %v1182 = vpop.trf.xlu0
      %v1183 = vpop.trf.xlu0
      %vm1184 = vcmask 64512
      %v1186 = vsel %vm1184, %v1072, 0
      %1188 = vmatpush.msra.mxu0 0.0
      %1189 = vmatpush.msra.mxu0 0.0
      %1190 = vmatpush.msra.mxu0 0.0
      %1191 = vmatpush.msra.mxu0 0.0
      %1192 = vmatpush.msra.mxu0 0.0
      %1193 = vmatpush.msra.mxu0 0.0
      %1194 = vmatpush.msra.mxu0 0.0
      %1195 = vmatpush.msra.mxu0 0.0
      %1196 = vmatpush.msra.mxu0 0.0
      %1197 = vmatpush.msra.mxu0 0.0
      %1198 = vmatpush.msra.mxu0 0.0
      %1199 = vmatpush.msra.mxu0 0.0
      %1200 = vmatpush.msra.mxu0 0.0
      %1201 = vmatpush.msra.mxu0 0.0
      %1202 = vmatpush.msra.mxu0 0.0
      %1203 = vmatpush.msra.mxu0 %v982
      %1204 = vmatmul.f32.gmra.mxu0 %v1186
      %v1205 = vpop.f32.mrf.mxu0
      %v1206 = vadd.f32 %v784, %v1205
      %1207 = vdwg.mxu0
      %v1209 = vsel %vm1184, %v1104, 0
      %1211 = vmatpush.msra.mxu0 0.0
      %1212 = vmatpush.msra.mxu0 0.0
      %1213 = vmatpush.msra.mxu0 0.0
      %1214 = vmatpush.msra.mxu0 0.0
      %1215 = vmatpush.msra.mxu0 0.0
      %1216 = vmatpush.msra.mxu0 0.0
      %1217 = vmatpush.msra.mxu0 0.0
      %1218 = vmatpush.msra.mxu0 0.0
      %1219 = vmatpush.msra.mxu0 0.0
      %1220 = vmatpush.msra.mxu0 0.0
      %1221 = vmatpush.msra.mxu0 0.0
      %1222 = vmatpush.msra.mxu0 0.0
      %1223 = vmatpush.msra.mxu0 0.0
      %1224 = vmatpush.msra.mxu0 0.0
      %1225 = vmatpush.msra.mxu0 0.0
      %1226 = vmatpush.msra.mxu0 %v984
      %1227 = vmatmul.f32.gmra.mxu0 %v1209
      %v1228 = vpop.f32.mrf.mxu0
      %v1229 = vadd.f32 %v784, %v1228
      %1230 = vdwg.mxu0
      %v1232 = vsel %vm1184, %v1136, 0
      %1234 = vmatpush.msra.mxu0 0.0
      %1235 = vmatpush.msra.mxu0 0.0
      %1236 = vmatpush.msra.mxu0 0.0
      %1237 = vmatpush.msra.mxu0 0.0
      %1238 = vmatpush.msra.mxu0 0.0
      %1239 = vmatpush.msra.mxu0 0.0
      %1240 = vmatpush.msra.mxu0 0.0
      %1241 = vmatpush.msra.mxu0 0.0
      %1242 = vmatpush.msra.mxu0 0.0
      %1243 = vmatpush.msra.mxu0 0.0
      %1244 = vmatpush.msra.mxu0 0.0
      %1245 = vmatpush.msra.mxu0 0.0
      %1246 = vmatpush.msra.mxu0 0.0
      %1247 = vmatpush.msra.mxu0 0.0
      %1248 = vmatpush.msra.mxu0 0.0
      %1249 = vmatpush.msra.mxu0 %v987
      %1250 = vmatmul.f32.gmra.mxu0 %v1232
      %v1251 = vpop.f32.mrf.mxu0
      %v1252 = vadd.f32 %v784, %v1251
      %1253 = vdwg.mxu0
      %v1255 = vsel %vm1184, %v1168, 0
      %1257 = vmatpush.msra.mxu0 0.0
      %1258 = vmatpush.msra.mxu0 0.0
      %1259 = vmatpush.msra.mxu0 0.0
      %1260 = vmatpush.msra.mxu0 0.0
      %1261 = vmatpush.msra.mxu0 0.0
      %1262 = vmatpush.msra.mxu0 0.0
      %1263 = vmatpush.msra.mxu0 0.0
      %1264 = vmatpush.msra.mxu0 0.0
      %1265 = vmatpush.msra.mxu0 0.0
      %1266 = vmatpush.msra.mxu0 0.0
      %1267 = vmatpush.msra.mxu0 0.0
      %1268 = vmatpush.msra.mxu0 0.0
      %1269 = vmatpush.msra.mxu0 0.0
      %1270 = vmatpush.msra.mxu0 0.0
      %1271 = vmatpush.msra.mxu0 0.0
      %1272 = vmatpush.msra.mxu0 %v989
      %1273 = vmatmul.f32.gmra.mxu0 %v1255
      %v1274 = vpop.f32.mrf.mxu0
      %v1275 = vadd.f32 %v784, %v1274
      %1276 = vdwg.mxu0
      %v1277 = vsel %vm1184, %v1206, -inf
      %1278 = vmax.xlane.f32.xlu0 %v1277
      %v1279 = vpop.xlane.xlu0 %1278
      %v1280 = vsel %vm1184, %v1229, -inf
      %1281 = vmax.xlane.f32.xlu0 %v1280
      %v1282 = vpop.xlane.xlu0 %1281
      %v1283 = vsel %vm1184, %v1252, -inf
      %1284 = vmax.xlane.f32.xlu0 %v1283
      %v1285 = vpop.xlane.xlu0 %1284
      %v1286 = vsel %vm1184, %v1275, -inf
      %1287 = vmax.xlane.f32.xlu0 %v1286
      %v1288 = vpop.xlane.xlu0 %1287
      %v1289 = vsub.f32 %v1206, %v1279
      %v1290 = vsub.f32 %v1229, %v1282
      %v1291 = vsub.f32 %v1252, %v1285
      %v1292 = vsub.f32 %v1275, %v1288
      %v1293 = vmul.f32 %v1289, 1.442695
      %v1294 = vpow.pop %v1293
      %v1295 = vmul.f32 %v1290, 1.442695
      %v1296 = vpow.pop %v1295
      %v1297 = vmul.f32 %v1291, 1.442695
      %v1298 = vpow.pop %v1297
      %v1299 = vmul.f32 %v1292, 1.442695
      %v1300 = vpow.pop %v1299
      %v1301 = vsel %vm1184, %v1294, 0.0
      %1302 = vadd.xlane.f32.xlu0 %v1301
      %v1303 = vpop.xlane.xlu0 %1302
      %v1304 = vsel %vm1184, %v1296, 0.0
      %1305 = vadd.xlane.f32.xlu0 %v1304
      %v1306 = vpop.xlane.xlu0 %1305
      %v1307 = vsel %vm1184, %v1298, 0.0
      %1308 = vadd.xlane.f32.xlu0 %v1307
      %v1309 = vpop.xlane.xlu0 %1308
      %v1310 = vsel %vm1184, %v1300, 0.0
      %1311 = vadd.xlane.f32.xlu0 %v1310
      %v1312 = vpop.xlane.xlu0 %1311
      %v1313 = vrcp.pop %v1303
      %v1314 = vrcp.pop %v1306
      %v1315 = vrcp.pop %v1309
      %v1316 = vrcp.pop %v1312
      %v1317 = vmul.f32 %v1294, %v1313
      %v1318 = vmul.f32 %v1296, %v1314
      %v1319 = vmul.f32 %v1298, %v1315
      %v1320 = vmul.f32 %v1300, %v1316
      %v1322 = vsel %vm1184, %v1317, 0
      %v1325 = vsel %vm1184, %v1047, 0
      %1327 = vmatpush.xpose.msra.mxu0 0.0
      %1328 = vmatpush.xpose.msra.mxu0 0.0
      %1329 = vmatpush.xpose.msra.mxu0 0.0
      %1330 = vmatpush.xpose.msra.mxu0 0.0
      %1331 = vmatpush.xpose.msra.mxu0 0.0
      %1332 = vmatpush.xpose.msra.mxu0 0.0
      %1333 = vmatpush.xpose.msra.mxu0 0.0
      %1334 = vmatpush.xpose.msra.mxu0 0.0
      %1335 = vmatpush.xpose.msra.mxu0 0.0
      %1336 = vmatpush.xpose.msra.mxu0 0.0
      %1337 = vmatpush.xpose.msra.mxu0 0.0
      %1338 = vmatpush.xpose.msra.mxu0 0.0
      %1339 = vmatpush.xpose.msra.mxu0 0.0
      %1340 = vmatpush.xpose.msra.mxu0 0.0
      %1341 = vmatpush.xpose.msra.mxu0 0.0
      %1342 = vmatpush.xpose.msra.mxu0 %v1325
      %1343 = vmatmul.f32.gmra.mxu0 %v1322
      %v1344 = vpop.f32.mrf.mxu0
      %v1345 = vadd.f32 0.0, %v1344
      %1346 = vdwg.mxu0
      %v1348 = vsel %vm1184, %v1318, 0
      %v1351 = vsel %vm1184, %v1049, 0
      %1353 = vmatpush.xpose.msra.mxu0 0.0
      %1354 = vmatpush.xpose.msra.mxu0 0.0
      %1355 = vmatpush.xpose.msra.mxu0 0.0
      %1356 = vmatpush.xpose.msra.mxu0 0.0
      %1357 = vmatpush.xpose.msra.mxu0 0.0
      %1358 = vmatpush.xpose.msra.mxu0 0.0
      %1359 = vmatpush.xpose.msra.mxu0 0.0
      %1360 = vmatpush.xpose.msra.mxu0 0.0
      %1361 = vmatpush.xpose.msra.mxu0 0.0
      %1362 = vmatpush.xpose.msra.mxu0 0.0
      %1363 = vmatpush.xpose.msra.mxu0 0.0
      %1364 = vmatpush.xpose.msra.mxu0 0.0
      %1365 = vmatpush.xpose.msra.mxu0 0.0
      %1366 = vmatpush.xpose.msra.mxu0 0.0
      %1367 = vmatpush.xpose.msra.mxu0 0.0
      %1368 = vmatpush.xpose.msra.mxu0 %v1351
      %1369 = vmatmul.f32.gmra.mxu0 %v1348
      %v1370 = vpop.f32.mrf.mxu0
      %v1371 = vadd.f32 0.0, %v1370
      %1372 = vdwg.mxu0
      %v1374 = vsel %vm1184, %v1319, 0
      %v1377 = vsel %vm1184, %v1052, 0
      %1379 = vmatpush.xpose.msra.mxu0 0.0
      %1380 = vmatpush.xpose.msra.mxu0 0.0
      %1381 = vmatpush.xpose.msra.mxu0 0.0
      %1382 = vmatpush.xpose.msra.mxu0 0.0
      %1383 = vmatpush.xpose.msra.mxu0 0.0
      %1384 = vmatpush.xpose.msra.mxu0 0.0
      %1385 = vmatpush.xpose.msra.mxu0 0.0
      %1386 = vmatpush.xpose.msra.mxu0 0.0
      %1387 = vmatpush.xpose.msra.mxu0 0.0
      %1388 = vmatpush.xpose.msra.mxu0 0.0
      %1389 = vmatpush.xpose.msra.mxu0 0.0
      %1390 = vmatpush.xpose.msra.mxu0 0.0
      %1391 = vmatpush.xpose.msra.mxu0 0.0
      %1392 = vmatpush.xpose.msra.mxu0 0.0
      %1393 = vmatpush.xpose.msra.mxu0 0.0
      %1394 = vmatpush.xpose.msra.mxu0 %v1377
      %1395 = vmatmul.f32.gmra.mxu0 %v1374
      %v1396 = vpop.f32.mrf.mxu0
      %v1397 = vadd.f32 0.0, %v1396
      %1398 = vdwg.mxu0
      %v1400 = vsel %vm1184, %v1320, 0
      %v1403 = vsel %vm1184, %v1054, 0
      %1405 = vmatpush.xpose.msra.mxu0 0.0
      %1406 = vmatpush.xpose.msra.mxu0 0.0
      %1407 = vmatpush.xpose.msra.mxu0 0.0
      %1408 = vmatpush.xpose.msra.mxu0 0.0
      %1409 = vmatpush.xpose.msra.mxu0 0.0
      %1410 = vmatpush.xpose.msra.mxu0 0.0
      %1411 = vmatpush.xpose.msra.mxu0 0.0
      %1412 = vmatpush.xpose.msra.mxu0 0.0
      %1413 = vmatpush.xpose.msra.mxu0 0.0
      %1414 = vmatpush.xpose.msra.mxu0 0.0
      %1415 = vmatpush.xpose.msra.mxu0 0.0
      %1416 = vmatpush.xpose.msra.mxu0 0.0
      %1417 = vmatpush.xpose.msra.mxu0 0.0
      %1418 = vmatpush.xpose.msra.mxu0 0.0
      %1419 = vmatpush.xpose.msra.mxu0 0.0
      %1420 = vmatpush.xpose.msra.mxu0 %v1403
      %1421 = vmatmul.f32.gmra.mxu0 %v1400
      %v1422 = vpop.f32.mrf.mxu0
      %v1423 = vadd.f32 0.0, %v1422
      %1424 = vdwg.mxu0
      %1425 = vxpose.xlu0.b32.start [1/16] %v1345, 128
      %1426 = vxpose.xlu0.b32.cont [2/16] 0.0, 128
      %1427 = vxpose.xlu0.b32.cont [3/16] 0.0, 128
      %1428 = vxpose.xlu0.b32.cont [4/16] 0.0, 128
      %1429 = vxpose.xlu0.b32.cont [5/16] 0.0, 128
      %1430 = vxpose.xlu0.b32.cont [6/16] 0.0, 128
      %1431 = vxpose.xlu0.b32.cont [7/16] 0.0, 128
      %1432 = vxpose.xlu0.b32.cont [8/16] 0.0, 128
      %1433 = vxpose.xlu0.b32.cont [9/16] 0.0, 128
      %1434 = vxpose.xlu0.b32.cont [10/16] 0.0, 128
      %1435 = vxpose.xlu0.b32.cont [11/16] 0.0, 128
      %1436 = vxpose.xlu0.b32.cont [12/16] 0.0, 128
      %1437 = vxpose.xlu0.b32.cont [13/16] 0.0, 128
      %1438 = vxpose.xlu0.b32.cont [14/16] 0.0, 128
      %1439 = vxpose.xlu0.b32.cont [15/16] 0.0, 128
      %1440 = vxpose.xlu0.b32.end [16/16] 0.0, 128
      %v1441 = vpop.trf.xlu0
      %v1442 = vpop.trf.xlu0
      %v1443 = vpop.trf.xlu0
      %v1444 = vpop.trf.xlu0
      %v1445 = vpop.trf.xlu0
      %v1446 = vpop.trf.xlu0
      %v1447 = vpop.trf.xlu0
      %v1448 = vpop.trf.xlu0
      %v1449 = vpop.trf.xlu0
      %v1450 = vpop.trf.xlu0
      %v1451 = vpop.trf.xlu0
      %v1452 = vpop.trf.xlu0
      %v1453 = vpop.trf.xlu0
      %v1454 = vpop.trf.xlu0
      %v1455 = vpop.trf.xlu0
      %v1456 = vpop.trf.xlu0
      %1457 = vxpose.xlu0.b32.start [1/16] %v1371, 128
      %1458 = vxpose.xlu0.b32.cont [2/16] 0.0, 128
      %1459 = vxpose.xlu0.b32.cont [3/16] 0.0, 128
      %1460 = vxpose.xlu0.b32.cont [4/16] 0.0, 128
      %1461 = vxpose.xlu0.b32.cont [5/16] 0.0, 128
      %1462 = vxpose.xlu0.b32.cont [6/16] 0.0, 128
      %1463 = vxpose.xlu0.b32.cont [7/16] 0.0, 128
      %1464 = vxpose.xlu0.b32.cont [8/16] 0.0, 128
      %1465 = vxpose.xlu0.b32.cont [9/16] 0.0, 128
      %1466 = vxpose.xlu0.b32.cont [10/16] 0.0, 128
      %1467 = vxpose.xlu0.b32.cont [11/16] 0.0, 128
      %1468 = vxpose.xlu0.b32.cont [12/16] 0.0, 128
      %1469 = vxpose.xlu0.b32.cont [13/16] 0.0, 128
      %1470 = vxpose.xlu0.b32.cont [14/16] 0.0, 128
      %1471 = vxpose.xlu0.b32.cont [15/16] 0.0, 128
      %1472 = vxpose.xlu0.b32.end [16/16] 0.0, 128
      %v1473 = vpop.trf.xlu0
      %v1474 = vpop.trf.xlu0
      %v1475 = vpop.trf.xlu0
      %v1476 = vpop.trf.xlu0
      %v1477 = vpop.trf.xlu0
      %v1478 = vpop.trf.xlu0
      %v1479 = vpop.trf.xlu0
      %v1480 = vpop.trf.xlu0
      %v1481 = vpop.trf.xlu0
      %v1482 = vpop.trf.xlu0
      %v1483 = vpop.trf.xlu0
      %v1484 = vpop.trf.xlu0
      %v1485 = vpop.trf.xlu0
      %v1486 = vpop.trf.xlu0
      %v1487 = vpop.trf.xlu0
      %v1488 = vpop.trf.xlu0
      %1489 = vxpose.xlu0.b32.start [1/16] %v1397, 128
      %1490 = vxpose.xlu0.b32.cont [2/16] 0.0, 128
      %1491 = vxpose.xlu0.b32.cont [3/16] 0.0, 128
      %1492 = vxpose.xlu0.b32.cont [4/16] 0.0, 128
      %1493 = vxpose.xlu0.b32.cont [5/16] 0.0, 128
      %1494 = vxpose.xlu0.b32.cont [6/16] 0.0, 128
      %1495 = vxpose.xlu0.b32.cont [7/16] 0.0, 128
      %1496 = vxpose.xlu0.b32.cont [8/16] 0.0, 128
      %1497 = vxpose.xlu0.b32.cont [9/16] 0.0, 128
      %1498 = vxpose.xlu0.b32.cont [10/16] 0.0, 128
      %1499 = vxpose.xlu0.b32.cont [11/16] 0.0, 128
      %1500 = vxpose.xlu0.b32.cont [12/16] 0.0, 128
      %1501 = vxpose.xlu0.b32.cont [13/16] 0.0, 128
      %1502 = vxpose.xlu0.b32.cont [14/16] 0.0, 128
      %1503 = vxpose.xlu0.b32.cont [15/16] 0.0, 128
      %1504 = vxpose.xlu0.b32.end [16/16] 0.0, 128
      %v1505 = vpop.trf.xlu0
      %v1506 = vpop.trf.xlu0
      %v1507 = vpop.trf.xlu0
      %v1508 = vpop.trf.xlu0
      %v1509 = vpop.trf.xlu0
      %v1510 = vpop.trf.xlu0
      %v1511 = vpop.trf.xlu0
      %v1512 = vpop.trf.xlu0
      %v1513 = vpop.trf.xlu0
      %v1514 = vpop.trf.xlu0
      %v1515 = vpop.trf.xlu0
      %v1516 = vpop.trf.xlu0
      %v1517 = vpop.trf.xlu0
      %v1518 = vpop.trf.xlu0
      %v1519 = vpop.trf.xlu0
      %v1520 = vpop.trf.xlu0
      %1521 = vxpose.xlu0.b32.start [1/16] %v1423, 128
      %1522 = vxpose.xlu0.b32.cont [2/16] 0.0, 128
      %1523 = vxpose.xlu0.b32.cont [3/16] 0.0, 128
      %1524 = vxpose.xlu0.b32.cont [4/16] 0.0, 128
      %1525 = vxpose.xlu0.b32.cont [5/16] 0.0, 128
      %1526 = vxpose.xlu0.b32.cont [6/16] 0.0, 128
      %1527 = vxpose.xlu0.b32.cont [7/16] 0.0, 128
      %1528 = vxpose.xlu0.b32.cont [8/16] 0.0, 128
      %1529 = vxpose.xlu0.b32.cont [9/16] 0.0, 128
      %1530 = vxpose.xlu0.b32.cont [10/16] 0.0, 128
      %1531 = vxpose.xlu0.b32.cont [11/16] 0.0, 128
      %1532 = vxpose.xlu0.b32.cont [12/16] 0.0, 128
      %1533 = vxpose.xlu0.b32.cont [13/16] 0.0, 128
      %1534 = vxpose.xlu0.b32.cont [14/16] 0.0, 128
      %1535 = vxpose.xlu0.b32.cont [15/16] 0.0, 128
      %1536 = vxpose.xlu0.b32.end [16/16] 0.0, 128
      %v1537 = vpop.trf.xlu0
      %v1538 = vpop.trf.xlu0
      %v1539 = vpop.trf.xlu0
      %v1540 = vpop.trf.xlu0
      %v1541 = vpop.trf.xlu0
      %v1542 = vpop.trf.xlu0
      %v1543 = vpop.trf.xlu0
      %v1544 = vpop.trf.xlu0
      %v1545 = vpop.trf.xlu0
      %v1546 = vpop.trf.xlu0
      %v1547 = vpop.trf.xlu0
      %v1548 = vpop.trf.xlu0
      %v1549 = vpop.trf.xlu0
      %v1550 = vpop.trf.xlu0
      %v1551 = vpop.trf.xlu0
      %v1552 = vpop.trf.xlu0
      %1553 = vxpose.xlu0.b32.start [1/16] %v1441, 128
      %1554 = vxpose.xlu0.b32.cont [2/16] %v1473, 128
      %1555 = vxpose.xlu0.b32.cont [3/16] %v1505, 128
      %1556 = vxpose.xlu0.b32.cont [4/16] %v1537, 128
      %1557 = vxpose.xlu0.b32.cont [5/16] 0.0, 128
      %1558 = vxpose.xlu0.b32.cont [6/16] 0.0, 128
      %1559 = vxpose.xlu0.b32.cont [7/16] 0.0, 128
      %1560 = vxpose.xlu0.b32.cont [8/16] 0.0, 128
      %1561 = vxpose.xlu0.b32.cont [9/16] 0.0, 128
      %1562 = vxpose.xlu0.b32.cont [10/16] 0.0, 128
      %1563 = vxpose.xlu0.b32.cont [11/16] 0.0, 128
      %1564 = vxpose.xlu0.b32.cont [12/16] 0.0, 128
      %1565 = vxpose.xlu0.b32.cont [13/16] 0.0, 128
      %1566 = vxpose.xlu0.b32.cont [14/16] 0.0, 128
      %1567 = vxpose.xlu0.b32.cont [15/16] 0.0, 128
      %1568 = vxpose.xlu0.b32.end [16/16] 0.0, 128
      %v1569 = vpop.trf.xlu0
      %v1570 = vpop.trf.xlu0
      %v1571 = vpop.trf.xlu0
      %v1572 = vpop.trf.xlu0
      %v1573 = vpop.trf.xlu0
      %v1574 = vpop.trf.xlu0
      %v1575 = vpop.trf.xlu0
      %v1576 = vpop.trf.xlu0
      %v1577 = vpop.trf.xlu0
      %v1578 = vpop.trf.xlu0
      %v1579 = vpop.trf.xlu0
      %v1580 = vpop.trf.xlu0
      %v1581 = vpop.trf.xlu0
      %v1582 = vpop.trf.xlu0
      %v1583 = vpop.trf.xlu0
      %v1584 = vpop.trf.xlu0
      %v1585 = vld [vmem:[%s5] sm:$0xf]
      %v1586 = vld [vmem:[%s5 + $0x4] sm:$0xf]
      %v1587 = vld [vmem:[%s5 + $0x8] sm:$0xf]
      %v1588 = vld [vmem:[%s5 + $0xc] sm:$0xf]
      %v1589 = vld [vmem:[%s6] sm:$0x1]
      %v1590 = vpack.c.bf16 %v1569, %v1569
      %v1592 = vperm.slane %v1589, 0
      %v1598 = vunpack.c.l.b16 %v1585
      %v1599 = vunpack.c.l.b16 %v1586
      %v1600 = vunpack.c.l.b16 %v1587
      %v1601 = vunpack.c.l.b16 %v1588
      %v1602 = vpack.c.b16 %v1599, %v1598
      %v1603 = vpack.c.b16 %v1601, %v1600
      %v1607 = vsel %vm787, %v1590, 0
      %1609 = vmatpush.bf16.msra.mxu0 0
      %1610 = vmatpush.bf16.msra.mxu0 0
      %1611 = vmatpush.bf16.msra.mxu0 0
      %1612 = vmatpush.bf16.msra.mxu0 0
      %1613 = vmatpush.bf16.msra.mxu0 0
      %1614 = vmatpush.bf16.msra.mxu0 0
      %1615 = vmatpush.bf16.msra.mxu0 %v1603
      %1616 = vmatpush.bf16.msra.mxu0 %v1602
      %1617 = vmatmul.bf16.gmra.mxu0 %v1607
      %v1618 = vpop.f32.mrf.mxu0
      %v1619 = vadd.f32 %v1592, %v1618
      %v1620 = vpop.f32.mrf.mxu0
      %1621 = vdwg.mxu0
      %v1622 = vadd.f32 %v739, %v1619
      %v1623 = vld [vmem:[%s15] sm:$0x1]
      %v1624 = vld [vmem:[%s16] sm:$0x1]
      %v1625 = vsel %vm787, %v1622, 0.0
      %1626 = vadd.xlane.f32.xlu0 %v1625
      %v1627 = vpop.xlane.xlu0 %1626
      %v1628 = vmul.f32 %v1627, %v797
      %v1629 = vsub.f32 %v1622, %v1628
      %v1630 = vmul.f32 %v1629, %v1629
      %v1631 = vsel %vm787, %v1630, 0.0
      %1632 = vadd.xlane.f32.xlu0 %v1631
      %v1633 = vpop.xlane.xlu0 %1632
      %v1634 = vmul.f32 %v1633, %v797
      %v1635 = vadd.f32 %v1634, 1e-05
      %v1636 = vrsqrt.pop %v1635
      %v1637 = vmul.f32 %v1636, %v1635
      %v1638 = vmul.f32 %v1637, %v1636
      %v1639 = vmul.f32 0.5, %v1638
      %v1640 = vsub.f32 1.5, %v1639
      %v1641 = vmul.f32 %v1636, %v1640
      %vm1642 = vweird.f32 %v1635
      %vm1643 = vweird.f32 %v1636
      %vm1644 = vmor %vm1642, %vm1643
      %v1645 = vsel %vm1644, %v1636, %v1641
      %v1646 = vmul.f32 %v1629, %v1645
      %v1648 = vperm.slane %v1623, 0
      %v1650 = vmul.f32 %v1646, %v1648
      %v1652 = vperm.slane %v1624, 0
      %v1654 = vadd.f32 %v1650, %v1652
      %1655 = vxpose.xlu0.b32.start [1/16] %v1654, 128
      %1656 = vxpose.xlu0.b32.cont [2/16] 0.0, 128
      %1657 = vxpose.xlu0.b32.cont [3/16] 0.0, 128
      %1658 = vxpose.xlu0.b32.cont [4/16] 0.0, 128
      %1659 = vxpose.xlu0.b32.cont [5/16] 0.0, 128
      %1660 = vxpose.xlu0.b32.cont [6/16] 0.0, 128
      %1661 = vxpose.xlu0.b32.cont [7/16] 0.0, 128
      %1662 = vxpose.xlu0.b32.cont [8/16] 0.0, 128
      %1663 = vxpose.xlu0.b32.cont [9/16] 0.0, 128
      %1664 = vxpose.xlu0.b32.cont [10/16] 0.0, 128
      %1665 = vxpose.xlu0.b32.cont [11/16] 0.0, 128
      %1666 = vxpose.xlu0.b32.cont [12/16] 0.0, 128
      %1667 = vxpose.xlu0.b32.cont [13/16] 0.0, 128
      %1668 = vxpose.xlu0.b32.cont [14/16] 0.0, 128
      %1669 = vxpose.xlu0.b32.cont [15/16] 0.0, 128
      %1670 = vxpose.xlu0.b32.end [16/16] 0.0, 128
      %v1671 = vpop.trf.xlu0
      %v1672 = vpop.trf.xlu0
      %v1673 = vpop.trf.xlu0
      %v1674 = vpop.trf.xlu0
      %v1675 = vpop.trf.xlu0
      %v1676 = vpop.trf.xlu0
      %v1677 = vpop.trf.xlu0
      %v1678 = vpop.trf.xlu0
      %v1679 = vpop.trf.xlu0
      %v1680 = vpop.trf.xlu0
      %v1681 = vpop.trf.xlu0
      %v1682 = vpop.trf.xlu0
      %v1683 = vpop.trf.xlu0
      %v1684 = vpop.trf.xlu0
      %v1685 = vpop.trf.xlu0
      %v1686 = vpop.trf.xlu0
      %v1687 = vld [vmem:[%s9] sm:$0xf]
      %v1688 = vld [vmem:[%s9 + $0x4] sm:$0xf]
      %v1689 = vld [vmem:[%s9 + $0x8] sm:$0xf]
      %v1690 = vld [vmem:[%s9 + $0xc] sm:$0xf]
      %v1691 = vld [vmem:[%s10] sm:$0xff]
      %v1692 = vld [vmem:[%s10 + $0x8] sm:$0xff]
      %v1693 = vld [vmem:[%s10 + $0x10] sm:$0xff]
      %v1694 = vld [vmem:[%s10 + $0x18] sm:$0xff]
      %v1695 = vpack.c.bf16 %v1672, %v1671
      %v1696 = vpack.c.bf16 %v1674, %v1673
      %1698 = vset.pattern.permute.xlu0 0
      %1699 = vperm.xlu0 %1698, %v1691
      %v1700 = vpop.permute.xlu0 %1699
      %1703 = vset.pattern.permute.xlu0 0
      %1704 = vperm.xlu0 %1703, %v1692
      %v1705 = vpop.permute.xlu0 %1704
      %1708 = vset.pattern.permute.xlu0 0
      %1709 = vperm.xlu0 %1708, %v1693
      %v1710 = vpop.permute.xlu0 %1709
      %1713 = vset.pattern.permute.xlu0 0
      %1714 = vperm.xlu0 %1713, %v1694
      %v1715 = vpop.permute.xlu0 %1714
      %v1721 = vunpack.c.l.b16 %v1687
      %v1722 = vunpack.c.l.b16 %v1688
      %v1723 = vunpack.c.l.b16 %v1689
      %v1724 = vunpack.c.l.b16 %v1690
      %v1725 = vpack.c.b16 %v1722, %v1721
      %v1726 = vpack.c.b16 %v1724, %v1723
      %v1728 = vsel %vm787, %v1725, 0
      %v1731 = vsel %vm787, %v1726, 0
      %1733 = vmatpush.bf16.msra.mxu0 0
      %1734 = vmatpush.bf16.msra.mxu0 0
      %1735 = vmatpush.bf16.msra.mxu0 0
      %1736 = vmatpush.bf16.msra.mxu0 0
      %1737 = vmatpush.bf16.msra.mxu0 0
      %1738 = vmatpush.bf16.msra.mxu0 0
      %1739 = vmatpush.bf16.msra.mxu0 %v1696
      %1740 = vmatpush.bf16.msra.mxu0 %v1695
      %1741 = vmatmul.bf16.gmra.mxu0 %v1728
      %v1742 = vpop.f32.mrf.mxu0
      %v1743 = vadd.f32 %v1700, %v1742
      %v1744 = vpop.f32.mrf.mxu0
      %v1745 = vadd.f32 %v1705, %v1744
      %1746 = vmatmul.bf16.gmra.mxu0 %v1731
      %v1747 = vpop.f32.mrf.mxu0
      %v1748 = vadd.f32 %v1710, %v1747
      %v1749 = vpop.f32.mrf.mxu0
      %v1750 = vadd.f32 %v1715, %v1749
      %1751 = vdwg.mxu0
      %v1752 = vmul.f32 %v1743, 0.35355338
      %v1753 = vmul.f32 %v1745, 0.35355338
      %v1754 = vmul.f32 %v1748, 0.35355338
      %v1755 = vmul.f32 %v1750, 0.35355338
      %v1756 = vld [vmem:[%s11] sm:$0xf]
      %v1757 = vld [vmem:[%s11 + $0x4] sm:$0xf]
      %v1758 = vld [vmem:[%s11 + $0x8] sm:$0xf]
      %v1759 = vld [vmem:[%s11 + $0xc] sm:$0xf]
      %v1760 = vld [vmem:[%s12] sm:$0xff]
      %v1761 = vld [vmem:[%s12 + $0x8] sm:$0xff]
      %v1762 = vld [vmem:[%s12 + $0x10] sm:$0xff]
      %v1763 = vld [vmem:[%s12 + $0x18] sm:$0xff]
      %v1764 = vpack.c.bf16 %v759, %v758
      %v1765 = vpack.c.bf16 %v761, %v760
      %1767 = vset.pattern.permute.xlu0 0
      %1768 = vperm.xlu0 %1767, %v1760
      %v1769 = vpop.permute.xlu0 %1768
      %1772 = vset.pattern.permute.xlu0 0
      %1773 = vperm.xlu0 %1772, %v1761
      %v1774 = vpop.permute.xlu0 %1773
      %1777 = vset.pattern.permute.xlu0 0
      %1778 = vperm.xlu0 %1777, %v1762
      %v1779 = vpop.permute.xlu0 %1778
      %1782 = vset.pattern.permute.xlu0 0
      %1783 = vperm.xlu0 %1782, %v1763
      %v1784 = vpop.permute.xlu0 %1783
      %v1790 = vunpack.c.l.b16 %v1756
      %v1791 = vunpack.c.l.b16 %v1757
      %v1792 = vunpack.c.l.b16 %v1758
      %v1793 = vunpack.c.l.b16 %v1759
      %v1794 = vpack.c.b16 %v1791, %v1790
      %v1795 = vpack.c.b16 %v1793, %v1792
      %v1797 = vsel %vm787, %v1794, 0
      %v1800 = vsel %vm787, %v1795, 0
      %1802 = vmatpush.bf16.msra.mxu0 0
      %1803 = vmatpush.bf16.msra.mxu0 0
      %1804 = vmatpush.bf16.msra.mxu0 0
      %1805 = vmatpush.bf16.msra.mxu0 0
      %1806 = vmatpush.bf16.msra.mxu0 0
      %1807 = vmatpush.bf16.msra.mxu0 0
      %1808 = vmatpush.bf16.msra.mxu0 %v1765
      %1809 = vmatpush.bf16.msra.mxu0 %v1764
      %1810 = vmatmul.bf16.gmra.mxu0 %v1797
      %v1811 = vpop.f32.mrf.mxu0
      %v1812 = vadd.f32 %v1769, %v1811
      %v1813 = vpop.f32.mrf.mxu0
      %v1814 = vadd.f32 %v1774, %v1813
      %1815 = vmatmul.bf16.gmra.mxu0 %v1800
      %v1816 = vpop.f32.mrf.mxu0
      %v1817 = vadd.f32 %v1779, %v1816
      %v1818 = vpop.f32.mrf.mxu0
      %v1819 = vadd.f32 %v1784, %v1818
      %1820 = vdwg.mxu0
      %s1821 = scalar_lea.vmem %s11, 16
      %v1822 = vld [vmem:[%s1821] sm:$0xf]
      %v1823 = vld [vmem:[%s1821 + $0x4] sm:$0xf]
      %v1824 = vld [vmem:[%s1821 + $0x8] sm:$0xf]
      %v1825 = vld [vmem:[%s1821 + $0xc] sm:$0xf]
      %s1826 = scalar_lea.vmem %s12, 32
      %v1827 = vld [vmem:[%s1826] sm:$0xff]
      %v1828 = vld [vmem:[%s1826 + $0x8] sm:$0xff]
      %v1829 = vld [vmem:[%s1826 + $0x10] sm:$0xff]
      %v1830 = vld [vmem:[%s1826 + $0x18] sm:$0xff]
      %1832 = vset.pattern.permute.xlu0 0
      %1833 = vperm.xlu0 %1832, %v1827
      %v1834 = vpop.permute.xlu0 %1833
      %1837 = vset.pattern.permute.xlu0 0
      %1838 = vperm.xlu0 %1837, %v1828
      %v1839 = vpop.permute.xlu0 %1838
      %1842 = vset.pattern.permute.xlu0 0
      %1843 = vperm.xlu0 %1842, %v1829
      %v1844 = vpop.permute.xlu0 %1843
      %1847 = vset.pattern.permute.xlu0 0
      %1848 = vperm.xlu0 %1847, %v1830
      %v1849 = vpop.permute.xlu0 %1848
      %v1855 = vunpack.c.l.b16 %v1822
      %v1856 = vunpack.c.l.b16 %v1823
      %v1857 = vunpack.c.l.b16 %v1824
      %v1858 = vunpack.c.l.b16 %v1825
      %v1859 = vpack.c.b16 %v1856, %v1855
      %v1860 = vpack.c.b16 %v1858, %v1857
      %v1862 = vsel %vm787, %v1859, 0
      %v1865 = vsel %vm787, %v1860, 0
      %1867 = vmatpush.bf16.msra.mxu0 0
      %1868 = vmatpush.bf16.msra.mxu0 0
      %1869 = vmatpush.bf16.msra.mxu0 0
      %1870 = vmatpush.bf16.msra.mxu0 0
      %1871 = vmatpush.bf16.msra.mxu0 0
      %1872 = vmatpush.bf16.msra.mxu0 0
      %1873 = vmatpush.bf16.msra.mxu0 %v1765
      %1874 = vmatpush.bf16.msra.mxu0 %v1764
      %1875 = vmatmul.bf16.gmra.mxu0 %v1862
      %v1876 = vpop.f32.mrf.mxu0
      %v1877 = vadd.f32 %v1834, %v1876
      %v1878 = vpop.f32.mrf.mxu0
      %v1879 = vadd.f32 %v1839, %v1878
      %1880 = vmatmul.bf16.gmra.mxu0 %v1865
      %v1881 = vpop.f32.mrf.mxu0
      %v1882 = vadd.f32 %v1844, %v1881
      %v1883 = vpop.f32.mrf.mxu0
      %v1884 = vadd.f32 %v1849, %v1883
      %1885 = vdwg.mxu0
      %1886 = vxpose.xlu0.b32.start [1/16] %v1752, 128
      %1887 = vxpose.xlu0.b32.cont [2/16] 0.0, 128
      %1888 = vxpose.xlu0.b32.cont [3/16] 0.0, 128
      %1889 = vxpose.xlu0.b32.cont [4/16] 0.0, 128
      %1890 = vxpose.xlu0.b32.cont [5/16] 0.0, 128
      %1891 = vxpose.xlu0.b32.cont [6/16] 0.0, 128
      %1892 = vxpose.xlu0.b32.cont [7/16] 0.0, 128
      %1893 = vxpose.xlu0.b32.cont [8/16] 0.0, 128
      %1894 = vxpose.xlu0.b32.cont [9/16] 0.0, 128
      %1895 = vxpose.xlu0.b32.cont [10/16] 0.0, 128
      %1896 = vxpose.xlu0.b32.cont [11/16] 0.0, 128
      %1897 = vxpose.xlu0.b32.cont [12/16] 0.0, 128
      %1898 = vxpose.xlu0.b32.cont [13/16] 0.0, 128
      %1899 = vxpose.xlu0.b32.cont [14/16] 0.0, 128
      %1900 = vxpose.xlu0.b32.cont [15/16] 0.0, 128
      %1901 = vxpose.xlu0.b32.end [16/16] 0.0, 128
      %v1902 = vpop.trf.xlu0
      %v1903 = vpop.trf.xlu0
      %v1904 = vpop.trf.xlu0
      %v1905 = vpop.trf.xlu0
      %v1906 = vpop.trf.xlu0
      %v1907 = vpop.trf.xlu0
      %v1908 = vpop.trf.xlu0
      %v1909 = vpop.trf.xlu0
      %v1910 = vpop.trf.xlu0
      %v1911 = vpop.trf.xlu0
      %v1912 = vpop.trf.xlu0
      %v1913 = vpop.trf.xlu0
      %v1914 = vpop.trf.xlu0
      %v1915 = vpop.trf.xlu0
      %v1916 = vpop.trf.xlu0
      %v1917 = vpop.trf.xlu0
      %1918 = vxpose.xlu0.b32.start [1/16] %v1753, 128
      %1919 = vxpose.xlu0.b32.cont [2/16] 0.0, 128
      %1920 = vxpose.xlu0.b32.cont [3/16] 0.0, 128
      %1921 = vxpose.xlu0.b32.cont [4/16] 0.0, 128
      %1922 = vxpose.xlu0.b32.cont [5/16] 0.0, 128
      %1923 = vxpose.xlu0.b32.cont [6/16] 0.0, 128
      %1924 = vxpose.xlu0.b32.cont [7/16] 0.0, 128
      %1925 = vxpose.xlu0.b32.cont [8/16] 0.0, 128
      %1926 = vxpose.xlu0.b32.cont [9/16] 0.0, 128
      %1927 = vxpose.xlu0.b32.cont [10/16] 0.0, 128
      %1928 = vxpose.xlu0.b32.cont [11/16] 0.0, 128
      %1929 = vxpose.xlu0.b32.cont [12/16] 0.0, 128
      %1930 = vxpose.xlu0.b32.cont [13/16] 0.0, 128
      %1931 = vxpose.xlu0.b32.cont [14/16] 0.0, 128
      %1932 = vxpose.xlu0.b32.cont [15/16] 0.0, 128
      %1933 = vxpose.xlu0.b32.end [16/16] 0.0, 128
      %v1934 = vpop.trf.xlu0
      %v1935 = vpop.trf.xlu0
      %v1936 = vpop.trf.xlu0
      %v1937 = vpop.trf.xlu0
      %v1938 = vpop.trf.xlu0
      %v1939 = vpop.trf.xlu0
      %v1940 = vpop.trf.xlu0
      %v1941 = vpop.trf.xlu0
      %v1942 = vpop.trf.xlu0
      %v1943 = vpop.trf.xlu0
      %v1944 = vpop.trf.xlu0
      %v1945 = vpop.trf.xlu0
      %v1946 = vpop.trf.xlu0
      %v1947 = vpop.trf.xlu0
      %v1948 = vpop.trf.xlu0
      %v1949 = vpop.trf.xlu0
      %1950 = vxpose.xlu0.b32.start [1/16] %v1754, 128
      %1951 = vxpose.xlu0.b32.cont [2/16] 0.0, 128
      %1952 = vxpose.xlu0.b32.cont [3/16] 0.0, 128
      %1953 = vxpose.xlu0.b32.cont [4/16] 0.0, 128
      %1954 = vxpose.xlu0.b32.cont [5/16] 0.0, 128
      %1955 = vxpose.xlu0.b32.cont [6/16] 0.0, 128
      %1956 = vxpose.xlu0.b32.cont [7/16] 0.0, 128
      %1957 = vxpose.xlu0.b32.cont [8/16] 0.0, 128
      %1958 = vxpose.xlu0.b32.cont [9/16] 0.0, 128
      %1959 = vxpose.xlu0.b32.cont [10/16] 0.0, 128
      %1960 = vxpose.xlu0.b32.cont [11/16] 0.0, 128
      %1961 = vxpose.xlu0.b32.cont [12/16] 0.0, 128
      %1962 = vxpose.xlu0.b32.cont [13/16] 0.0, 128
      %1963 = vxpose.xlu0.b32.cont [14/16] 0.0, 128
      %1964 = vxpose.xlu0.b32.cont [15/16] 0.0, 128
      %1965 = vxpose.xlu0.b32.end [16/16] 0.0, 128
      %v1966 = vpop.trf.xlu0
      %v1967 = vpop.trf.xlu0
      %v1968 = vpop.trf.xlu0
      %v1969 = vpop.trf.xlu0
      %v1970 = vpop.trf.xlu0
      %v1971 = vpop.trf.xlu0
      %v1972 = vpop.trf.xlu0
      %v1973 = vpop.trf.xlu0
      %v1974 = vpop.trf.xlu0
      %v1975 = vpop.trf.xlu0
      %v1976 = vpop.trf.xlu0
      %v1977 = vpop.trf.xlu0
      %v1978 = vpop.trf.xlu0
      %v1979 = vpop.trf.xlu0
      %v1980 = vpop.trf.xlu0
      %v1981 = vpop.trf.xlu0
      %1982 = vxpose.xlu0.b32.start [1/16] %v1755, 128
      %1983 = vxpose.xlu0.b32.cont [2/16] 0.0, 128
      %1984 = vxpose.xlu0.b32.cont [3/16] 0.0, 128
      %1985 = vxpose.xlu0.b32.cont [4/16] 0.0, 128
      %1986 = vxpose.xlu0.b32.cont [5/16] 0.0, 128
      %1987 = vxpose.xlu0.b32.cont [6/16] 0.0, 128
      %1988 = vxpose.xlu0.b32.cont [7/16] 0.0, 128
      %1989 = vxpose.xlu0.b32.cont [8/16] 0.0, 128
      %1990 = vxpose.xlu0.b32.cont [9/16] 0.0, 128
      %1991 = vxpose.xlu0.b32.cont [10/16] 0.0, 128
      %1992 = vxpose.xlu0.b32.cont [11/16] 0.0, 128
      %1993 = vxpose.xlu0.b32.cont [12/16] 0.0, 128
      %1994 = vxpose.xlu0.b32.cont [13/16] 0.0, 128
      %1995 = vxpose.xlu0.b32.cont [14/16] 0.0, 128
      %1996 = vxpose.xlu0.b32.cont [15/16] 0.0, 128
      %1997 = vxpose.xlu0.b32.end [16/16] 0.0, 128
      %v1998 = vpop.trf.xlu0
      %v1999 = vpop.trf.xlu0
      %v2000 = vpop.trf.xlu0
      %v2001 = vpop.trf.xlu0
      %v2002 = vpop.trf.xlu0
      %v2003 = vpop.trf.xlu0
      %v2004 = vpop.trf.xlu0
      %v2005 = vpop.trf.xlu0
      %v2006 = vpop.trf.xlu0
      %v2007 = vpop.trf.xlu0
      %v2008 = vpop.trf.xlu0
      %v2009 = vpop.trf.xlu0
      %v2010 = vpop.trf.xlu0
      %v2011 = vpop.trf.xlu0
      %v2012 = vpop.trf.xlu0
      %v2013 = vpop.trf.xlu0
      %v2015 = vsel %vm1184, %v1902, 0
      %2017 = vmatpush.msra.mxu0 0.0
      %2018 = vmatpush.msra.mxu0 0.0
      %2019 = vmatpush.msra.mxu0 0.0
      %2020 = vmatpush.msra.mxu0 0.0
      %2021 = vmatpush.msra.mxu0 0.0
      %2022 = vmatpush.msra.mxu0 0.0
      %2023 = vmatpush.msra.mxu0 0.0
      %2024 = vmatpush.msra.mxu0 0.0
      %2025 = vmatpush.msra.mxu0 0.0
      %2026 = vmatpush.msra.mxu0 0.0
      %2027 = vmatpush.msra.mxu0 0.0
      %2028 = vmatpush.msra.mxu0 0.0
      %2029 = vmatpush.msra.mxu0 0.0
      %2030 = vmatpush.msra.mxu0 0.0
      %2031 = vmatpush.msra.mxu0 0.0
      %2032 = vmatpush.msra.mxu0 %v1812
      %2033 = vmatmul.f32.gmra.mxu0 %v2015
      %v2034 = vpop.f32.mrf.mxu0
      %v2035 = vadd.f32 0.0, %v2034
      %2036 = vdwg.mxu0
      %v2038 = vsel %vm1184, %v1934, 0
      %2040 = vmatpush.msra.mxu0 0.0
      %2041 = vmatpush.msra.mxu0 0.0
      %2042 = vmatpush.msra.mxu0 0.0
      %2043 = vmatpush.msra.mxu0 0.0
      %2044 = vmatpush.msra.mxu0 0.0
      %2045 = vmatpush.msra.mxu0 0.0
      %2046 = vmatpush.msra.mxu0 0.0
      %2047 = vmatpush.msra.mxu0 0.0
      %2048 = vmatpush.msra.mxu0 0.0
      %2049 = vmatpush.msra.mxu0 0.0
      %2050 = vmatpush.msra.mxu0 0.0
      %2051 = vmatpush.msra.mxu0 0.0
      %2052 = vmatpush.msra.mxu0 0.0
      %2053 = vmatpush.msra.mxu0 0.0
      %2054 = vmatpush.msra.mxu0 0.0
      %2055 = vmatpush.msra.mxu0 %v1814
      %2056 = vmatmul.f32.gmra.mxu0 %v2038
      %v2057 = vpop.f32.mrf.mxu0
      %v2058 = vadd.f32 0.0, %v2057
      %2059 = vdwg.mxu0
      %v2061 = vsel %vm1184, %v1966, 0
      %2063 = vmatpush.msra.mxu0 0.0
      %2064 = vmatpush.msra.mxu0 0.0
      %2065 = vmatpush.msra.mxu0 0.0
      %2066 = vmatpush.msra.mxu0 0.0
      %2067 = vmatpush.msra.mxu0 0.0
      %2068 = vmatpush.msra.mxu0 0.0
      %2069 = vmatpush.msra.mxu0 0.0
      %2070 = vmatpush.msra.mxu0 0.0
      %2071 = vmatpush.msra.mxu0 0.0
      %2072 = vmatpush.msra.mxu0 0.0
      %2073 = vmatpush.msra.mxu0 0.0
      %2074 = vmatpush.msra.mxu0 0.0
      %2075 = vmatpush.msra.mxu0 0.0
      %2076 = vmatpush.msra.mxu0 0.0
      %2077 = vmatpush.msra.mxu0 0.0
      %2078 = vmatpush.msra.mxu0 %v1817
      %2079 = vmatmul.f32.gmra.mxu0 %v2061
      %v2080 = vpop.f32.mrf.mxu0
      %v2081 = vadd.f32 0.0, %v2080
      %2082 = vdwg.mxu0
      %v2084 = vsel %vm1184, %v1998, 0
      %2086 = vmatpush.msra.mxu0 0.0
      %2087 = vmatpush.msra.mxu0 0.0
      %2088 = vmatpush.msra.mxu0 0.0
      %2089 = vmatpush.msra.mxu0 0.0
      %2090 = vmatpush.msra.mxu0 0.0
      %2091 = vmatpush.msra.mxu0 0.0
      %2092 = vmatpush.msra.mxu0 0.0
      %2093 = vmatpush.msra.mxu0 0.0
      %2094 = vmatpush.msra.mxu0 0.0
      %2095 = vmatpush.msra.mxu0 0.0
      %2096 = vmatpush.msra.mxu0 0.0
      %2097 = vmatpush.msra.mxu0 0.0
      %2098 = vmatpush.msra.mxu0 0.0
      %2099 = vmatpush.msra.mxu0 0.0
      %2100 = vmatpush.msra.mxu0 0.0
      %2101 = vmatpush.msra.mxu0 %v1819
      %2102 = vmatmul.f32.gmra.mxu0 %v2084
      %v2103 = vpop.f32.mrf.mxu0
      %v2104 = vadd.f32 0.0, %v2103
      %2105 = vdwg.mxu0
      %v2106 = vsel %vm1184, %v2035, -inf
      %2107 = vmax.xlane.f32.xlu0 %v2106
      %v2108 = vpop.xlane.xlu0 %2107
      %v2109 = vsel %vm1184, %v2058, -inf
      %2110 = vmax.xlane.f32.xlu0 %v2109
      %v2111 = vpop.xlane.xlu0 %2110
      %v2112 = vsel %vm1184, %v2081, -inf
      %2113 = vmax.xlane.f32.xlu0 %v2112
      %v2114 = vpop.xlane.xlu0 %2113
      %v2115 = vsel %vm1184, %v2104, -inf
      %2116 = vmax.xlane.f32.xlu0 %v2115
      %v2117 = vpop.xlane.xlu0 %2116
      %v2118 = vsub.f32 %v2035, %v2108
      %v2119 = vsub.f32 %v2058, %v2111
      %v2120 = vsub.f32 %v2081, %v2114
      %v2121 = vsub.f32 %v2104, %v2117
      %v2122 = vmul.f32 %v2118, 1.442695
      %v2123 = vpow.pop %v2122
      %v2124 = vmul.f32 %v2119, 1.442695
      %v2125 = vpow.pop %v2124
      %v2126 = vmul.f32 %v2120, 1.442695
      %v2127 = vpow.pop %v2126
      %v2128 = vmul.f32 %v2121, 1.442695
      %v2129 = vpow.pop %v2128
      %v2130 = vsel %vm1184, %v2123, 0.0
      %2131 = vadd.xlane.f32.xlu0 %v2130
      %v2132 = vpop.xlane.xlu0 %2131
      %v2133 = vsel %vm1184, %v2125, 0.0
      %2134 = vadd.xlane.f32.xlu0 %v2133
      %v2135 = vpop.xlane.xlu0 %2134
      %v2136 = vsel %vm1184, %v2127, 0.0
      %2137 = vadd.xlane.f32.xlu0 %v2136
      %v2138 = vpop.xlane.xlu0 %2137
      %v2139 = vsel %vm1184, %v2129, 0.0
      %2140 = vadd.xlane.f32.xlu0 %v2139
      %v2141 = vpop.xlane.xlu0 %2140
      %v2142 = vrcp.pop %v2132
      %v2143 = vrcp.pop %v2135
      %v2144 = vrcp.pop %v2138
      %v2145 = vrcp.pop %v2141
      %v2146 = vmul.f32 %v2123, %v2142
      %v2147 = vmul.f32 %v2125, %v2143
      %v2148 = vmul.f32 %v2127, %v2144
      %v2149 = vmul.f32 %v2129, %v2145
      %v2151 = vsel %vm1184, %v2146, 0
      %v2154 = vsel %vm1184, %v1877, 0
      %2156 = vmatpush.xpose.msra.mxu0 0.0
      %2157 = vmatpush.xpose.msra.mxu0 0.0
      %2158 = vmatpush.xpose.msra.mxu0 0.0
      %2159 = vmatpush.xpose.msra.mxu0 0.0
      %2160 = vmatpush.xpose.msra.mxu0 0.0
      %2161 = vmatpush.xpose.msra.mxu0 0.0
      %2162 = vmatpush.xpose.msra.mxu0 0.0
      %2163 = vmatpush.xpose.msra.mxu0 0.0
      %2164 = vmatpush.xpose.msra.mxu0 0.0
      %2165 = vmatpush.xpose.msra.mxu0 0.0
      %2166 = vmatpush.xpose.msra.mxu0 0.0
      %2167 = vmatpush.xpose.msra.mxu0 0.0
      %2168 = vmatpush.xpose.msra.mxu0 0.0
      %2169 = vmatpush.xpose.msra.mxu0 0.0
      %2170 = vmatpush.xpose.msra.mxu0 0.0
      %2171 = vmatpush.xpose.msra.mxu0 %v2154
      %2172 = vmatmul.f32.gmra.mxu0 %v2151
      %v2173 = vpop.f32.mrf.mxu0
      %v2174 = vadd.f32 0.0, %v2173
      %2175 = vdwg.mxu0
      %v2177 = vsel %vm1184, %v2147, 0
      %v2180 = vsel %vm1184, %v1879, 0
      %2182 = vmatpush.xpose.msra.mxu0 0.0
      %2183 = vmatpush.xpose.msra.mxu0 0.0
      %2184 = vmatpush.xpose.msra.mxu0 0.0
      %2185 = vmatpush.xpose.msra.mxu0 0.0
      %2186 = vmatpush.xpose.msra.mxu0 0.0
      %2187 = vmatpush.xpose.msra.mxu0 0.0
      %2188 = vmatpush.xpose.msra.mxu0 0.0
      %2189 = vmatpush.xpose.msra.mxu0 0.0
      %2190 = vmatpush.xpose.msra.mxu0 0.0
      %2191 = vmatpush.xpose.msra.mxu0 0.0
      %2192 = vmatpush.xpose.msra.mxu0 0.0
      %2193 = vmatpush.xpose.msra.mxu0 0.0
      %2194 = vmatpush.xpose.msra.mxu0 0.0
      %2195 = vmatpush.xpose.msra.mxu0 0.0
      %2196 = vmatpush.xpose.msra.mxu0 0.0
      %2197 = vmatpush.xpose.msra.mxu0 %v2180
      %2198 = vmatmul.f32.gmra.mxu0 %v2177
      %v2199 = vpop.f32.mrf.mxu0
      %v2200 = vadd.f32 0.0, %v2199
      %2201 = vdwg.mxu0
      %v2203 = vsel %vm1184, %v2148, 0
      %v2206 = vsel %vm1184, %v1882, 0
      %2208 = vmatpush.xpose.msra.mxu0 0.0
      %2209 = vmatpush.xpose.msra.mxu0 0.0
      %2210 = vmatpush.xpose.msra.mxu0 0.0
      %2211 = vmatpush.xpose.msra.mxu0 0.0
      %2212 = vmatpush.xpose.msra.mxu0 0.0
      %2213 = vmatpush.xpose.msra.mxu0 0.0
      %2214 = vmatpush.xpose.msra.mxu0 0.0
      %2215 = vmatpush.xpose.msra.mxu0 0.0
      %2216 = vmatpush.xpose.msra.mxu0 0.0
      %2217 = vmatpush.xpose.msra.mxu0 0.0
      %2218 = vmatpush.xpose.msra.mxu0 0.0
      %2219 = vmatpush.xpose.msra.mxu0 0.0
      %2220 = vmatpush.xpose.msra.mxu0 0.0
      %2221 = vmatpush.xpose.msra.mxu0 0.0
      %2222 = vmatpush.xpose.msra.mxu0 0.0
      %2223 = vmatpush.xpose.msra.mxu0 %v2206
      %2224 = vmatmul.f32.gmra.mxu0 %v2203
      %v2225 = vpop.f32.mrf.mxu0
      %v2226 = vadd.f32 0.0, %v2225
      %2227 = vdwg.mxu0
      %v2229 = vsel %vm1184, %v2149, 0
      %v2232 = vsel %vm1184, %v1884, 0
      %2234 = vmatpush.xpose.msra.mxu0 0.0
      %2235 = vmatpush.xpose.msra.mxu0 0.0
      %2236 = vmatpush.xpose.msra.mxu0 0.0
      %2237 = vmatpush.xpose.msra.mxu0 0.0
      %2238 = vmatpush.xpose.msra.mxu0 0.0
      %2239 = vmatpush.xpose.msra.mxu0 0.0
      %2240 = vmatpush.xpose.msra.mxu0 0.0
      %2241 = vmatpush.xpose.msra.mxu0 0.0
      %2242 = vmatpush.xpose.msra.mxu0 0.0
      %2243 = vmatpush.xpose.msra.mxu0 0.0
      %2244 = vmatpush.xpose.msra.mxu0 0.0
      %2245 = vmatpush.xpose.msra.mxu0 0.0
      %2246 = vmatpush.xpose.msra.mxu0 0.0
      %2247 = vmatpush.xpose.msra.mxu0 0.0
      %2248 = vmatpush.xpose.msra.mxu0 0.0
      %2249 = vmatpush.xpose.msra.mxu0 %v2232
      %2250 = vmatmul.f32.gmra.mxu0 %v2229
      %v2251 = vpop.f32.mrf.mxu0
      %v2252 = vadd.f32 0.0, %v2251
      %2253 = vdwg.mxu0
      %2254 = vxpose.xlu0.b32.start [1/16] %v2174, 128
      %2255 = vxpose.xlu0.b32.cont [2/16] 0.0, 128
      %2256 = vxpose.xlu0.b32.cont [3/16] 0.0, 128
      %2257 = vxpose.xlu0.b32.cont [4/16] 0.0, 128
      %2258 = vxpose.xlu0.b32.cont [5/16] 0.0, 128
      %2259 = vxpose.xlu0.b32.cont [6/16] 0.0, 128
      %2260 = vxpose.xlu0.b32.cont [7/16] 0.0, 128
      %2261 = vxpose.xlu0.b32.cont [8/16] 0.0, 128
      %2262 = vxpose.xlu0.b32.cont [9/16] 0.0, 128
      %2263 = vxpose.xlu0.b32.cont [10/16] 0.0, 128
      %2264 = vxpose.xlu0.b32.cont [11/16] 0.0, 128
      %2265 = vxpose.xlu0.b32.cont [12/16] 0.0, 128
      %2266 = vxpose.xlu0.b32.cont [13/16] 0.0, 128
      %2267 = vxpose.xlu0.b32.cont [14/16] 0.0, 128
      %2268 = vxpose.xlu0.b32.cont [15/16] 0.0, 128
      %2269 = vxpose.xlu0.b32.end [16/16] 0.0, 128
      %v2270 = vpop.trf.xlu0
      %v2271 = vpop.trf.xlu0
      %v2272 = vpop.trf.xlu0
      %v2273 = vpop.trf.xlu0
      %v2274 = vpop.trf.xlu0
      %v2275 = vpop.trf.xlu0
      %v2276 = vpop.trf.xlu0
      %v2277 = vpop.trf.xlu0
      %v2278 = vpop.trf.xlu0
      %v2279 = vpop.trf.xlu0
      %v2280 = vpop.trf.xlu0
      %v2281 = vpop.trf.xlu0
      %v2282 = vpop.trf.xlu0
      %v2283 = vpop.trf.xlu0
      %v2284 = vpop.trf.xlu0
      %v2285 = vpop.trf.xlu0
      %2286 = vxpose.xlu0.b32.start [1/16] %v2200, 128
      %2287 = vxpose.xlu0.b32.cont [2/16] 0.0, 128
      %2288 = vxpose.xlu0.b32.cont [3/16] 0.0, 128
      %2289 = vxpose.xlu0.b32.cont [4/16] 0.0, 128
      %2290 = vxpose.xlu0.b32.cont [5/16] 0.0, 128
      %2291 = vxpose.xlu0.b32.cont [6/16] 0.0, 128
      %2292 = vxpose.xlu0.b32.cont [7/16] 0.0, 128
      %2293 = vxpose.xlu0.b32.cont [8/16] 0.0, 128
      %2294 = vxpose.xlu0.b32.cont [9/16] 0.0, 128
      %2295 = vxpose.xlu0.b32.cont [10/16] 0.0, 128
      %2296 = vxpose.xlu0.b32.cont [11/16] 0.0, 128
      %2297 = vxpose.xlu0.b32.cont [12/16] 0.0, 128
      %2298 = vxpose.xlu0.b32.cont [13/16] 0.0, 128
      %2299 = vxpose.xlu0.b32.cont [14/16] 0.0, 128
      %2300 = vxpose.xlu0.b32.cont [15/16] 0.0, 128
      %2301 = vxpose.xlu0.b32.end [16/16] 0.0, 128
      %v2302 = vpop.trf.xlu0
      %v2303 = vpop.trf.xlu0
      %v2304 = vpop.trf.xlu0
      %v2305 = vpop.trf.xlu0
      %v2306 = vpop.trf.xlu0
      %v2307 = vpop.trf.xlu0
      %v2308 = vpop.trf.xlu0
      %v2309 = vpop.trf.xlu0
      %v2310 = vpop.trf.xlu0
      %v2311 = vpop.trf.xlu0
      %v2312 = vpop.trf.xlu0
      %v2313 = vpop.trf.xlu0
      %v2314 = vpop.trf.xlu0
      %v2315 = vpop.trf.xlu0
      %v2316 = vpop.trf.xlu0
      %v2317 = vpop.trf.xlu0
      %2318 = vxpose.xlu0.b32.start [1/16] %v2226, 128
      %2319 = vxpose.xlu0.b32.cont [2/16] 0.0, 128
      %2320 = vxpose.xlu0.b32.cont [3/16] 0.0, 128
      %2321 = vxpose.xlu0.b32.cont [4/16] 0.0, 128
      %2322 = vxpose.xlu0.b32.cont [5/16] 0.0, 128
      %2323 = vxpose.xlu0.b32.cont [6/16] 0.0, 128
      %2324 = vxpose.xlu0.b32.cont [7/16] 0.0, 128
      %2325 = vxpose.xlu0.b32.cont [8/16] 0.0, 128
      %2326 = vxpose.xlu0.b32.cont [9/16] 0.0, 128
      %2327 = vxpose.xlu0.b32.cont [10/16] 0.0, 128
      %2328 = vxpose.xlu0.b32.cont [11/16] 0.0, 128
      %2329 = vxpose.xlu0.b32.cont [12/16] 0.0, 128
      %2330 = vxpose.xlu0.b32.cont [13/16] 0.0, 128
      %2331 = vxpose.xlu0.b32.cont [14/16] 0.0, 128
      %2332 = vxpose.xlu0.b32.cont [15/16] 0.0, 128
      %2333 = vxpose.xlu0.b32.end [16/16] 0.0, 128
      %v2334 = vpop.trf.xlu0
      %v2335 = vpop.trf.xlu0
      %v2336 = vpop.trf.xlu0
      %v2337 = vpop.trf.xlu0
      %v2338 = vpop.trf.xlu0
      %v2339 = vpop.trf.xlu0
      %v2340 = vpop.trf.xlu0
      %v2341 = vpop.trf.xlu0
      %v2342 = vpop.trf.xlu0
      %v2343 = vpop.trf.xlu0
      %v2344 = vpop.trf.xlu0
      %v2345 = vpop.trf.xlu0
      %v2346 = vpop.trf.xlu0
      %v2347 = vpop.trf.xlu0
      %v2348 = vpop.trf.xlu0
      %v2349 = vpop.trf.xlu0
      %2350 = vxpose.xlu0.b32.start [1/16] %v2252, 128
      %2351 = vxpose.xlu0.b32.cont [2/16] 0.0, 128
      %2352 = vxpose.xlu0.b32.cont [3/16] 0.0, 128
      %2353 = vxpose.xlu0.b32.cont [4/16] 0.0, 128
      %2354 = vxpose.xlu0.b32.cont [5/16] 0.0, 128
      %2355 = vxpose.xlu0.b32.cont [6/16] 0.0, 128
      %2356 = vxpose.xlu0.b32.cont [7/16] 0.0, 128
      %2357 = vxpose.xlu0.b32.cont [8/16] 0.0, 128
      %2358 = vxpose.xlu0.b32.cont [9/16] 0.0, 128
      %2359 = vxpose.xlu0.b32.cont [10/16] 0.0, 128
      %2360 = vxpose.xlu0.b32.cont [11/16] 0.0, 128
      %2361 = vxpose.xlu0.b32.cont [12/16] 0.0, 128
      %2362 = vxpose.xlu0.b32.cont [13/16] 0.0, 128
      %2363 = vxpose.xlu0.b32.cont [14/16] 0.0, 128
      %2364 = vxpose.xlu0.b32.cont [15/16] 0.0, 128
      %2365 = vxpose.xlu0.b32.end [16/16] 0.0, 128
      %v2366 = vpop.trf.xlu0
      %v2367 = vpop.trf.xlu0
      %v2368 = vpop.trf.xlu0
      %v2369 = vpop.trf.xlu0
      %v2370 = vpop.trf.xlu0
      %v2371 = vpop.trf.xlu0
      %v2372 = vpop.trf.xlu0
      %v2373 = vpop.trf.xlu0
      %v2374 = vpop.trf.xlu0
      %v2375 = vpop.trf.xlu0
      %v2376 = vpop.trf.xlu0
      %v2377 = vpop.trf.xlu0
      %v2378 = vpop.trf.xlu0
      %v2379 = vpop.trf.xlu0
      %v2380 = vpop.trf.xlu0
      %v2381 = vpop.trf.xlu0
      %2382 = vxpose.xlu0.b32.start [1/16] %v2270, 128
      %2383 = vxpose.xlu0.b32.cont [2/16] %v2302, 128
      %2384 = vxpose.xlu0.b32.cont [3/16] %v2334, 128
      %2385 = vxpose.xlu0.b32.cont [4/16] %v2366, 128
      %2386 = vxpose.xlu0.b32.cont [5/16] 0.0, 128
      %2387 = vxpose.xlu0.b32.cont [6/16] 0.0, 128
      %2388 = vxpose.xlu0.b32.cont [7/16] 0.0, 128
      %2389 = vxpose.xlu0.b32.cont [8/16] 0.0, 128
      %2390 = vxpose.xlu0.b32.cont [9/16] 0.0, 128
      %2391 = vxpose.xlu0.b32.cont [10/16] 0.0, 128
      %2392 = vxpose.xlu0.b32.cont [11/16] 0.0, 128
      %2393 = vxpose.xlu0.b32.cont [12/16] 0.0, 128
      %2394 = vxpose.xlu0.b32.cont [13/16] 0.0, 128
      %2395 = vxpose.xlu0.b32.cont [14/16] 0.0, 128
      %2396 = vxpose.xlu0.b32.cont [15/16] 0.0, 128
      %2397 = vxpose.xlu0.b32.end [16/16] 0.0, 128
      %v2398 = vpop.trf.xlu0
      %v2399 = vpop.trf.xlu0
      %v2400 = vpop.trf.xlu0
      %v2401 = vpop.trf.xlu0
      %v2402 = vpop.trf.xlu0
      %v2403 = vpop.trf.xlu0
      %v2404 = vpop.trf.xlu0
      %v2405 = vpop.trf.xlu0
      %v2406 = vpop.trf.xlu0
      %v2407 = vpop.trf.xlu0
      %v2408 = vpop.trf.xlu0
      %v2409 = vpop.trf.xlu0
      %v2410 = vpop.trf.xlu0
      %v2411 = vpop.trf.xlu0
      %v2412 = vpop.trf.xlu0
      %v2413 = vpop.trf.xlu0
      %v2414 = vld [vmem:[%s13] sm:$0xf]
      %v2415 = vld [vmem:[%s13 + $0x4] sm:$0xf]
      %v2416 = vld [vmem:[%s13 + $0x8] sm:$0xf]
      %v2417 = vld [vmem:[%s13 + $0xc] sm:$0xf]
      %v2418 = vld [vmem:[%s14] sm:$0x1]
      %v2419 = vpack.c.bf16 %v2398, %v2398
      %v2421 = vperm.slane %v2418, 0
      %v2427 = vunpack.c.l.b16 %v2414
      %v2428 = vunpack.c.l.b16 %v2415
      %v2429 = vunpack.c.l.b16 %v2416
      %v2430 = vunpack.c.l.b16 %v2417
      %v2431 = vpack.c.b16 %v2428, %v2427
      %v2432 = vpack.c.b16 %v2430, %v2429
      %v2436 = vsel %vm787, %v2419, 0
      %2438 = vmatpush.bf16.msra.mxu0 0
      %2439 = vmatpush.bf16.msra.mxu0 0
      %2440 = vmatpush.bf16.msra.mxu0 0
      %2441 = vmatpush.bf16.msra.mxu0 0
      %2442 = vmatpush.bf16.msra.mxu0 0
      %2443 = vmatpush.bf16.msra.mxu0 0
      %2444 = vmatpush.bf16.msra.mxu0 %v2432
      %2445 = vmatpush.bf16.msra.mxu0 %v2431
      %2446 = vmatmul.bf16.gmra.mxu0 %v2436
      %v2447 = vpop.f32.mrf.mxu0
      %v2448 = vadd.f32 %v2421, %v2447
      %v2449 = vpop.f32.mrf.mxu0
      %2450 = vdwg.mxu0
      %v2451 = vadd.f32 %v1622, %v2448
      %v2452 = vld [vmem:[%s21] sm:$0x1]
      %v2453 = vld [vmem:[%s22] sm:$0x1]
      %v2454 = vsel %vm787, %v2451, 0.0
      %2455 = vadd.xlane.f32.xlu0 %v2454
      %v2456 = vpop.xlane.xlu0 %2455
      %v2457 = vmul.f32 %v2456, %v797
      %v2458 = vsub.f32 %v2451, %v2457
      %v2459 = vmul.f32 %v2458, %v2458
      %v2460 = vsel %vm787, %v2459, 0.0
      %2461 = vadd.xlane.f32.xlu0 %v2460
      %v2462 = vpop.xlane.xlu0 %2461
      %v2463 = vmul.f32 %v2462, %v797
      %v2464 = vadd.f32 %v2463, 1e-05
      %v2465 = vrsqrt.pop %v2464
      %v2466 = vmul.f32 %v2465, %v2464
      %v2467 = vmul.f32 %v2466, %v2465
      %v2468 = vmul.f32 0.5, %v2467
      %v2469 = vsub.f32 1.5, %v2468
      %v2470 = vmul.f32 %v2465, %v2469
      %vm2471 = vweird.f32 %v2464
      %vm2472 = vweird.f32 %v2465
      %vm2473 = vmor %vm2471, %vm2472
      %v2474 = vsel %vm2473, %v2465, %v2470
      %v2475 = vmul.f32 %v2458, %v2474
      %v2477 = vperm.slane %v2452, 0
      %v2479 = vmul.f32 %v2475, %v2477
      %v2481 = vperm.slane %v2453, 0
      %v2483 = vadd.f32 %v2479, %v2481
      %v2484 = vld [vmem:[%s17] sm:$0xf]
      %v2485 = vld [vmem:[%s17 + $0x4] sm:$0xf]
      %v2486 = vld [vmem:[%s17 + $0x8] sm:$0xf]
      %v2487 = vld [vmem:[%s17 + $0xc] sm:$0xf]
      %v2488 = vld [vmem:[%s18] sm:$0x1]
      %v2489 = vpack.c.bf16 %v2483, %v2483
      %v2491 = vperm.slane %v2488, 0
      %v2497 = vunpack.c.l.b16 %v2484
      %v2498 = vunpack.c.l.b16 %v2485
      %v2499 = vunpack.c.l.b16 %v2486
      %v2500 = vunpack.c.l.b16 %v2487
      %v2501 = vpack.c.b16 %v2498, %v2497
      %v2502 = vpack.c.b16 %v2500, %v2499
      %v2506 = vsel %vm787, %v2489, 0
      %2508 = vmatpush.bf16.msra.mxu0 0
      %2509 = vmatpush.bf16.msra.mxu0 0
      %2510 = vmatpush.bf16.msra.mxu0 0
      %2511 = vmatpush.bf16.msra.mxu0 0
      %2512 = vmatpush.bf16.msra.mxu0 0
      %2513 = vmatpush.bf16.msra.mxu0 0
      %2514 = vmatpush.bf16.msra.mxu0 %v2502
      %2515 = vmatpush.bf16.msra.mxu0 %v2501
      %2516 = vmatmul.bf16.gmra.mxu0 %v2506
      %v2517 = vpop.f32.mrf.mxu0
      %v2518 = vadd.f32 %v2491, %v2517
      %v2519 = vpop.f32.mrf.mxu0
      %2520 = vdwg.mxu0
      %v2521 = vmax.f32 %v2518, 0.0
      %v2522 = vld [vmem:[%s19] sm:$0xf]
      %v2523 = vld [vmem:[%s19 + $0x4] sm:$0xf]
      %v2524 = vld [vmem:[%s19 + $0x8] sm:$0xf]
      %v2525 = vld [vmem:[%s19 + $0xc] sm:$0xf]
      %v2526 = vld [vmem:[%s19 + $0x10] sm:$0xf]
      %v2527 = vld [vmem:[%s19 + $0x14] sm:$0xf]
      %v2528 = vld [vmem:[%s19 + $0x18] sm:$0xf]
      %v2529 = vld [vmem:[%s19 + $0x1c] sm:$0xf]
      %v2530 = vld [vmem:[%s20] sm:$0x1]
      %v2531 = vpack.c.bf16 %v2521, %v2521
      %v2533 = vperm.slane %v2530, 0
      %v2543 = vunpack.c.l.b16 %v2522
      %v2544 = vunpack.c.l.b16 %v2523
      %v2545 = vunpack.c.l.b16 %v2524
      %v2546 = vunpack.c.l.b16 %v2525
      %v2547 = vunpack.c.l.b16 %v2526
      %v2548 = vunpack.c.l.b16 %v2527
      %v2549 = vunpack.c.l.b16 %v2528
      %v2550 = vunpack.c.l.b16 %v2529
      %v2551 = vpack.c.b16 %v2544, %v2543
      %v2552 = vpack.c.b16 %v2546, %v2545
      %v2553 = vpack.c.b16 %v2548, %v2547
      %v2554 = vpack.c.b16 %v2550, %v2549
      %vm2559 = vcmask 523264
      %v2561 = vsel %vm2559, %v2531, 0
      %2563 = vmatpush.bf16.msra.mxu0 0
      %2564 = vmatpush.bf16.msra.mxu0 0
      %2565 = vmatpush.bf16.msra.mxu0 0
      %2566 = vmatpush.bf16.msra.mxu0 0
      %2567 = vmatpush.bf16.msra.mxu0 %v2554
      %2568 = vmatpush.bf16.msra.mxu0 %v2553
      %2569 = vmatpush.bf16.msra.mxu0 %v2552
      %2570 = vmatpush.bf16.msra.mxu0 %v2551
      %2571 = vmatmul.bf16.gmra.mxu0 %v2561
      %v2572 = vpop.f32.mrf.mxu0
      %v2573 = vadd.f32 %v2533, %v2572
      %v2574 = vpop.f32.mrf.mxu0
      %2575 = vdwg.mxu0
      %v2576 = vadd.f32 %v2451, %v2573
      %v2577 = vpack.c.bf16 %v2576, %v2576
      %vm2578 = vcmask 257024
      %2579 = vst.msk [vmem:[%s736] sm:$0xf] %vm2578, %v2577
      %p2580 = scmp.lt.s32.totalorder %s34, 1
      %s2581 = scalar_select %p2580, %s34, 1
      %s2582 = smul.addr %s2581, 4
      %s2583 = scalar_lea.vmem %s23, %s2582
      // Predicated region
      $region113: #{early_transformer_forward.13} parent=111 // pred_check
        %p2584 = pneg %p550
      $region114: #{early_transformer_forward.13} parent=111 // pred_check_branch
        %2586 = sbr.rel (%p2584) target = $region116
      $region115: #{early_transformer_forward.13} parent=111 // pred_region
        _
      $region116: #{early_transformer_forward.13} parent=111 // pred_fallthru
        _
    $region112: #{early_transformer_forward.13} parent=5 // pred_fallthru
      _
    %p2587 = scmp.le.s32.totalorder 2, %s29
    // Predicated region
    $region117: #{early_transformer_forward.13} parent=5 // pred_check
      %p2588 = pneg %p2587
    $region118: #{early_transformer_forward.13} parent=5 // pred_check_branch
      %2590 = sbr.rel (%p2588) target = $region120
    $region119: #{early_transformer_forward.13} parent=5 // pred_region
      %s2591 = ssub.s32 %s29, 2
      // Predicated region
      $region121: #{early_transformer_forward.13} parent=119 // pred_check
        %p2592 = pneg %p556
      $region122: #{early_transformer_forward.13} parent=119 // pred_check_branch
        %2594 = sbr.rel (%p2592) target = $region124
      $region123: #{early_transformer_forward.13} parent=119 // pred_region
        %p2595 = scmp.lt.s32.totalorder %s35, 1
        %s2596 = scalar_select %p2595, %s35, 1
        %s2597 = smul.addr %s2596, 4
        %s2598 = scalar_lea.vmem %s23, %s2597
      $region124: #{early_transformer_forward.13} parent=119 // pred_fallthru
        _
    $region120: #{early_transformer_forward.13} parent=5 // pred_fallthru
      _
  $region6: #{early_transformer_forward.13} parent=0 // loop_footer
    %s33 = sadd.s32 1, %s29
  $region7: #{early_transformer_forward.13} parent=0 // loop_footer_branch
    %28 = sbr.rel target = $region3
  $region8: #{early_transformer_forward.13} parent=0 // loop_exit
    _

</llo_original>
